<compile_context>
chip_gen: v7x
topology: tpu7x:2x2x1
jax: 0.10.0
libtpu: 0.0.40
codegen_flags: <defaults>
</compile_context>

<pallas_src>
import math

import jax
import jax.numpy as jnp
from jax import lax
from jax.experimental import pallas as pl
from jax.experimental.pallas import tpu as pltpu

COMPUTE_DTYPE = jnp.bfloat16   # MXU operand dtype (set jnp.float32 for exact f32 math)
LEAKY_SLOPE = 0.01             # nn.LeakyReLU default
BN_EPS = 1e-5                  # nn.BatchNorm1d default


# ----------------------- sinusoidal time embedding (tiny, pure JAX) -----------------
def sinusoidal_pos_emb(t, dim):
    half = dim // 2
    freqs = jnp.exp(-math.log(10000.0) * jnp.arange(half, dtype=jnp.float32) / (half - 1))
    args = t.astype(jnp.float32)[:, None] * freqs[None, :]
    return jnp.concatenate([jnp.sin(args), jnp.cos(args)], axis=-1)      # (B, dim)


# ----------------------- dilated-conv planning (static, wrapper side) ----------------
def _plan_layers(T, convs):
    """For the dilated full-resolution formulation, compute per-layer dilation and
    how many full-resolution rows must be produced so the true strided outputs are
    recoverable by subsampling only at the very end."""
    # true output lengths of the strided network
    Ls = []
    L = T
    for c in convs:
        L = (L - c["K"]) // c["S"] + 1
        assert L >= 1, "sequence too short for the conv stack"
        Ls.append(L)
    # dilation of layer i = product of strides of layers < i
    plans = []
    d = 1
    for c in convs:
        plans.append(dict(K=c["K"], S=c["S"], d=d))
        d *= c["S"]
    c_total = d                                  # product of all strides
    L_out = Ls[-1]
    # rows of each full-res activation z_i to compute (backwards recursion)
    n = len(convs)
    n_rows = [0] * n
    n_rows[-1] = c_total * (L_out - 1) + 1
    for i in range(n - 2, -1, -1):
        n_rows[i] = n_rows[i + 1] + plans[i + 1]["d"] * (plans[i + 1]["K"] - 1)
    for i, p in enumerate(plans):
        p["n_rows"] = n_rows[i]
    assert n_rows[0] + convs[0]["K"] - 1 <= T    # layer-0 reads stay inside x0
    return plans, L_out, c_total


# ------------------------------ fused kernel ------------------------------------------
def make_fused_kernel(plans, L_out, c_total):
    n_layers = len(plans)

    def kernel(*refs):
        (inp_ref, cond_ref, keep_ref, tvec_ref,
         wc1_ref, bc1_ref, wc2_ref, bc2_ref) = refs[:8]
        conv_refs = refs[8:8 + 2 * n_layers]           # (weight, epilogue) per layer
        o_ref = refs[8 + 2 * n_layers]
        scr = refs[9 + 2 * n_layers:]                  # n_layers VMEM scratch buffers
        cd = COMPUTE_DTYPE

        # ---------- prologue: x0 = keep * (inp + cond_mlp) + tvec -------------------
        c = cond_ref[0].astype(cd)                                          # (T, Dc)
        h = jnp.dot(c, wc1_ref[...], preferred_element_type=jnp.float32) + bc1_ref[...]
        h = jnp.where(h >= 0, h, LEAKY_SLOPE * h)                           # LeakyReLU
        cm = jnp.dot(h.astype(cd), wc2_ref[...],
                     preferred_element_type=jnp.float32) + bc2_ref[...]     # (T, C)
        x0 = (inp_ref[0].astype(jnp.float32) + cm) * keep_ref[0] + tvec_ref[0]
        scr[0][...] = x0

        # ---------- dilated full-resolution conv stack -------------------------------
        y = None
        for i, p in enumerate(plans):
            w_ref, epi_ref = conv_refs[2 * i], conv_refs[2 * i + 1]
            Co = w_ref.shape[-1]
            n, d, K = p["n_rows"], p["d"], p["K"]
            acc = jnp.zeros((n, Co), jnp.float32)
            for k in range(K):                          # one MXU dot per conv tap
                xk = scr[i][pl.ds(k * d, n), :].astype(cd)      # contiguous slice
                acc = acc + jnp.dot(xk, w_ref[k],
                                    preferred_element_type=jnp.float32)
            y = jnp.maximum(acc + epi_ref[0:1, :], 0.0)         # bias + ReLU
            y = y * epi_ref[1:2, :] + epi_ref[2:3, :]           # BatchNorm1d (eval)
            if i + 1 < n_layers:
                scr[i + 1][...] = y
        # Dropout: identity in eval mode.

        # ---------- subsample the full-res last layer to the true strided outputs ---
        rows = [y[l * c_total: l * c_total + 1, :] for l in range(L_out)]
        o_ref[0] = jnp.concatenate(rows, axis=0).astype(o_ref.dtype)

    return kernel


# ------------------------------ full forward -------------------------------------------
def cnn_classifier_forward(inp, mask, cond, t, params):
    """inp: (B,T,in_dim), mask: (B,T) bool (True = zero out), cond: (B,T,cond_dim), t: (B,)."""
    B, T, C = inp.shape
    Dc = cond.shape[-1]
    cd = COMPUTE_DTYPE
    convs = params["cnn"]
    plans, L_out, c_total = _plan_layers(T, convs)
    d_out = convs[-1]["Co"]

    # ---- tiny time-MLP hoisted out of the kernel (plain JAX, 1 row per batch) -------
    def mm(x, w):
        return jnp.dot(x.astype(cd), w.astype(cd), preferred_element_type=jnp.float32)

    temb = sinusoidal_pos_emb(t, params["time_emb_dim"])                   # (B, Dt)
    th = mm(temb, params["wt1"]) + params["bt1"]
    th = jnp.where(th >= 0, th, LEAKY_SLOPE * th)
    tvec = (mm(th, params["wt2"]) + params["bt2"])[:, None, :]             # (B, 1, C)

    keep = jnp.where(mask, 0.0, 1.0).astype(jnp.float32)[..., None]        # (B, T, 1)

    kernel = make_fused_kernel(plans, L_out, c_total)

    resident2 = lambda shape: pl.BlockSpec(shape, lambda b: (0, 0))
    resident3 = lambda shape: pl.BlockSpec(shape, lambda b: (0, 0, 0))

    in_specs = [
        pl.BlockSpec((1, T, C), lambda b: (b, 0, 0)),    # inp   (per batch)
        pl.BlockSpec((1, T, Dc), lambda b: (b, 0, 0)),   # cond  (per batch)
        pl.BlockSpec((1, T, 1), lambda b: (b, 0, 0)),    # keep  (per batch)
        pl.BlockSpec((1, 1, C), lambda b: (b, 0, 0)),    # tvec  (per batch)
        resident2((Dc, C)), resident2((1, C)),           # cond_layer linear 1
        resident2((C, C)), resident2((1, C)),            # cond_layer linear 2
    ]
    args = [inp, cond, keep, tvec,
            params["wc1"].astype(cd), params["bc1"],
            params["wc2"].astype(cd), params["bc2"]]
    scratch = [pltpu.VMEM((T, C), jnp.float32)]
    flops = 2 * B * T * (Dc * C + C * C)
    for i, (blk, p) in enumerate(zip(convs, plans)):
        K, Ci, Co = blk["K"], blk["Ci"], blk["Co"]
        in_specs += [resident3((K, Ci, Co)), resident2((3, Co))]
        args += [blk["w_kio"].astype(cd), blk["epi"]]
        if i + 1 < len(convs):
            scratch.append(pltpu.VMEM((p["n_rows"], Co), jnp.float32))
        flops += 2 * B * p["n_rows"] * K * Ci * Co

    bytes_accessed = (inp.size + keep.size + tvec.size + cond.size) * 4 \
        + sum(int(a.size) * a.dtype.itemsize for a in args[4:]) \
        + B * L_out * d_out * 4

    out = pl.pallas_call(
        kernel,
        out_shape=jax.ShapeDtypeStruct((B, L_out, d_out), jnp.float32),
        grid=(B,),
        in_specs=in_specs,
        out_specs=pl.BlockSpec((1, L_out, d_out), lambda b: (b, 0, 0)),
        scratch_shapes=scratch,
        compiler_params=pltpu.CompilerParams(dimension_semantics=("parallel",)),
        cost_estimate=pl.CostEstimate(flops=int(flops), transcendentals=0,
                                      bytes_accessed=int(bytes_accessed)),
    )(*args)
    return jnp.transpose(out, (0, 2, 1))     # (B, d_decoder, L_out) — tiny, keep in XLA


# ------------------------------ params & reference -------------------------------------
def make_params(key, in_dim, d_decoder, cond_dim, time_emb_dim):
    ks = jax.random.split(key, 8)

    def lin(k, din, dout):
        kw, kb = jax.random.split(k)
        s = 1.0 / math.sqrt(din)
        return (jax.random.uniform(kw, (din, dout), jnp.float32, -s, s),
                jax.random.uniform(kb, (1, dout), jnp.float32, -s, s))

    wc1, bc1 = lin(ks[0], cond_dim, in_dim)
    wc2, bc2 = lin(ks[1], in_dim, in_dim)
    wt1, bt1 = lin(ks[2], time_emb_dim, in_dim)
    wt2, bt2 = lin(ks[3], in_dim, in_dim)

    cfg = [(in_dim, d_decoder, 8, 4), (d_decoder, d_decoder, 8, 4),
           (d_decoder, d_decoder, 4, 2), (d_decoder, d_decoder, 4, 2)]
    convs = []
    for n, (ci, co, K, S) in enumerate(cfg):
        k1, k2, k3, k4, k5, k6 = jax.random.split(ks[4 + n], 6)
        s = 1.0 / math.sqrt(ci * K)
        w_torch = jax.random.uniform(k1, (co, ci, K), jnp.float32, -s, s)   # (Co, Ci, K)
        bias = jax.random.uniform(k2, (co,), jnp.float32, -s, s)
        gamma = jax.random.uniform(k3, (co,), jnp.float32, 0.5, 1.5)
        beta = jax.random.normal(k4, (co,), jnp.float32) * 0.1
        mean = jax.random.normal(k5, (co,), jnp.float32) * 0.1
        var = jax.random.uniform(k6, (co,), jnp.float32, 0.5, 1.5)
        w_kio = jnp.transpose(w_torch, (2, 1, 0))                           # (K, Ci, Co)
        bn_scale = gamma / jnp.sqrt(var + BN_EPS)
        bn_shift = beta - mean * bn_scale
        epi = jnp.stack([bias, bn_scale, bn_shift], axis=0)                 # (3, Co)
        convs.append(dict(w_torch=w_torch, w_kio=w_kio, epi=epi,
                          K=K, S=S, Ci=ci, Co=co))
    return dict(wc1=wc1, bc1=bc1, wc2=wc2, bc2=bc2,
                wt1=wt1, bt1=bt1, wt2=wt2, bt2=bt2,
                cnn=convs, time_emb_dim=time_emb_dim)


def reference_forward(inp, mask, cond, t, p):
    """Pure-JAX reference with the same bf16-operand / f32-accumulation policy."""
    cd = COMPUTE_DTYPE
    B, T, C = inp.shape

    def mm(x, w):
        return jnp.dot(x.astype(cd), w.astype(cd), preferred_element_type=jnp.float32)

    def leaky(x):
        return jnp.where(x >= 0, x, LEAKY_SLOPE * x)

    temb = sinusoidal_pos_emb(t, p["time_emb_dim"])                          # (B, Dt)
    tvec = mm(leaky(mm(temb, p["wt1"]) + p["bt1"]), p["wt2"]) + p["bt2"]     # (B, C)

    cmlp = mm(leaky(mm(cond.reshape(B * T, -1), p["wc1"]) + p["bc1"]), p["wc2"]) + p["bc2"]
    cmlp = cmlp.reshape(B, T, C)

    keep = jnp.where(mask, 0.0, 1.0)[..., None]
    x = (inp + cmlp) * keep + tvec[:, None, :]                               # (B, T, C)

    y = jnp.transpose(x, (0, 2, 1))                                          # (B, C, T)
    for blk in p["cnn"]:
        yc = lax.conv_general_dilated(
            y.astype(cd), blk["w_torch"].astype(cd),
            window_strides=(blk["S"],), padding="VALID",
            dimension_numbers=("NCW", "OIW", "NCW"),
            preferred_element_type=jnp.float32)
        yc = yc + blk["epi"][0][None, :, None]
        yc = jnp.maximum(yc, 0.0)                                            # ReLU
        y = yc * blk["epi"][1][None, :, None] + blk["epi"][2][None, :, None]
    return y                                                                 # (B, d_decoder, L)


# ----------------------------------- test ----------------------------------------------
if __name__ == "__main__":
    B, T = 2, 256
    in_dim, d_decoder, cond_dim, time_emb_dim = 128, 128, 64, 128

    key = jax.random.PRNGKey(0)
    k_inp, k_cond, k_t, k_p = jax.random.split(key, 4)
    inp = jax.random.normal(k_inp, (B, T, in_dim), jnp.float32)
    cond = jax.random.normal(k_cond, (B, T, cond_dim), jnp.float32)
    t = jax.random.uniform(k_t, (B,), jnp.float32)
    lengths = jnp.array([T - (b * T) // (2 * B) for b in range(B)], dtype=jnp.int32)
    mask = jnp.arange(T)[None, :] >= lengths[:, None]                        # (B, T) bool

    params = make_params(k_p, in_dim, d_decoder, cond_dim, time_emb_dim)

    fwd = jax.jit(lambda a, m, c, tt: cnn_classifier_forward(a, m, c, tt, params))
    out = jax.block_until_ready(fwd(inp, mask, cond, t))

    ref = reference_forward(inp, mask, cond, t, params)

    L = T
    for (_, _, K, S) in [(in_dim, d_decoder, 8, 4), (d_decoder, d_decoder, 8, 4),
                         (d_decoder, d_decoder, 4, 2), (d_decoder, d_decoder, 4, 2)]:
        L = (L - K) // S + 1
    assert out.shape == (B, d_decoder, L), out.shape
    max_err = float(jnp.max(jnp.abs(out - ref)))
    assert jnp.allclose(out, ref, atol=1e-2, rtol=1e-2), max_err

    print("KERNEL_OK")
</pallas_src>

<mosaic_0001>
module attributes {stable_mosaic.version = 11 : i64} {
  func.func @kernel(%arg0: i32, %arg1: memref<1x256x128xf32, #tpu.memory_space<vmem>>, %arg2: memref<1x256x64xf32, #tpu.memory_space<vmem>>, %arg3: memref<1x256x1xf32, #tpu.memory_space<vmem>>, %arg4: memref<1x1x128xf32, #tpu.memory_space<vmem>>, %arg5: memref<64x128xbf16, #tpu.memory_space<vmem>>, %arg6: memref<1x128xf32, #tpu.memory_space<vmem>>, %arg7: memref<128x128xbf16, #tpu.memory_space<vmem>>, %arg8: memref<1x128xf32, #tpu.memory_space<vmem>>, %arg9: memref<8x128x128xbf16, #tpu.memory_space<vmem>>, %arg10: memref<3x128xf32, #tpu.memory_space<vmem>>, %arg11: memref<8x128x128xbf16, #tpu.memory_space<vmem>>, %arg12: memref<3x128xf32, #tpu.memory_space<vmem>>, %arg13: memref<4x128x128xbf16, #tpu.memory_space<vmem>>, %arg14: memref<3x128xf32, #tpu.memory_space<vmem>>, %arg15: memref<4x128x128xbf16, #tpu.memory_space<vmem>>, %arg16: memref<3x128xf32, #tpu.memory_space<vmem>>, %arg17: memref<1x2x128xf32, #tpu.memory_space<vmem>>, %arg18: memref<256x128xf32, #tpu.memory_space<vmem>>, %arg19: memref<237x128xf32, #tpu.memory_space<vmem>>, %arg20: memref<209x128xf32, #tpu.memory_space<vmem>>, %arg21: memref<161x128xf32, #tpu.memory_space<vmem>>) attributes {dimension_semantics = [#tpu.dimension_semantics<parallel>], iteration_bounds = array<i64: 2>, scalar_prefetch = 0 : i64, scratch_operands = 4 : i64, tpu.core_type = #tpu.core_type<tc>, window_params = [{transform_indices = @transform_0, window_bounds = array<i64: 1, 256, 128>}, {transform_indices = @transform_1, window_bounds = array<i64: 1, 256, 64>}, {transform_indices = @transform_2, window_bounds = array<i64: 1, 256, 1>}, {transform_indices = @transform_3, window_bounds = array<i64: 1, 1, 128>}, {pipeline_mode = #tpu.pipeline_mode<synchronous>, transform_indices = @transform_4, window_bounds = array<i64: 64, 128>}, {pipeline_mode = #tpu.pipeline_mode<synchronous>, transform_indices = @transform_5, window_bounds = array<i64: 1, 128>}, {pipeline_mode = #tpu.pipeline_mode<synchronous>, transform_indices = @transform_6, window_bounds = array<i64: 128, 128>}, {pipeline_mode = #tpu.pipeline_mode<synchronous>, transform_indices = @transform_7, window_bounds = array<i64: 1, 128>}, {pipeline_mode = #tpu.pipeline_mode<synchronous>, transform_indices = @transform_8, window_bounds = array<i64: 8, 128, 128>}, {pipeline_mode = #tpu.pipeline_mode<synchronous>, transform_indices = @transform_9, window_bounds = array<i64: 3, 128>}, {pipeline_mode = #tpu.pipeline_mode<synchronous>, transform_indices = @transform_10, window_bounds = array<i64: 8, 128, 128>}, {pipeline_mode = #tpu.pipeline_mode<synchronous>, transform_indices = @transform_11, window_bounds = array<i64: 3, 128>}, {pipeline_mode = #tpu.pipeline_mode<synchronous>, transform_indices = @transform_12, window_bounds = array<i64: 4, 128, 128>}, {pipeline_mode = #tpu.pipeline_mode<synchronous>, transform_indices = @transform_13, window_bounds = array<i64: 3, 128>}, {pipeline_mode = #tpu.pipeline_mode<synchronous>, transform_indices = @transform_14, window_bounds = array<i64: 4, 128, 128>}, {pipeline_mode = #tpu.pipeline_mode<synchronous>, transform_indices = @transform_15, window_bounds = array<i64: 3, 128>}, {transform_indices = @transform_16, window_bounds = array<i64: 1, 2, 128>}]} {
    %c0 = arith.constant 0 : index
    %c0_0 = arith.constant 0 : index
    %c0_1 = arith.constant 0 : index
    %0 = vector.load %arg2[%c0, %c0_0, %c0_1] : memref<1x256x64xf32, #tpu.memory_space<vmem>>, vector<1x256x64xf32>
    %1 = vector.shape_cast %0 : vector<1x256x64xf32> to vector<256x64xf32>
    %2 = arith.truncf %1 : vector<256x64xf32> to vector<256x64xbf16>
    %c0_2 = arith.constant 0 : index
    %c0_3 = arith.constant 0 : index
    %3 = vector.load %arg5[%c0_2, %c0_3] : memref<64x128xbf16, #tpu.memory_space<vmem>>, vector<64x128xbf16>
    %cst = arith.constant dense<0.000000e+00> : vector<256x128xf32>
    %4 = tpu.matmul %2, %3, %cst {dimension_numbers = #tpu.dot_dimension_numbers<[1], [0], [0], [1], [0, 0, 1, 1], [], []>} : vector<256x64xbf16>, vector<64x128xbf16>, vector<256x128xf32> -> vector<256x128xf32>
    %c0_4 = arith.constant 0 : index
    %c0_5 = arith.constant 0 : index
    %5 = vector.load %arg6[%c0_4, %c0_5] : memref<1x128xf32, #tpu.memory_space<vmem>>, vector<1x128xf32>
    %6 = vector.broadcast %5 : vector<1x128xf32> to vector<256x128xf32>
    %7 = arith.addf %4, %6 : vector<256x128xf32>
    %cst_6 = arith.constant 0.000000e+00 : f32
    %8 = vector.broadcast %cst_6 : f32 to vector<256x128xf32>
    %9 = arith.cmpf oge, %7, %8 : vector<256x128xf32>
    %cst_7 = arith.constant 0.00999999977 : f32
    %10 = vector.broadcast %cst_7 : f32 to vector<256x128xf32>
    %11 = arith.mulf %10, %7 : vector<256x128xf32>
    %12 = arith.select %9, %7, %11 : vector<256x128xi1>, vector<256x128xf32>
    %13 = arith.truncf %12 : vector<256x128xf32> to vector<256x128xbf16>
    %c0_8 = arith.constant 0 : index
    %c0_9 = arith.constant 0 : index
    %14 = vector.load %arg7[%c0_8, %c0_9] : memref<128x128xbf16, #tpu.memory_space<vmem>>, vector<128x128xbf16>
    %cst_10 = arith.constant dense<0.000000e+00> : vector<256x128xf32>
    %15 = tpu.matmul %13, %14, %cst_10 {dimension_numbers = #tpu.dot_dimension_numbers<[1], [0], [0], [1], [0, 0, 1, 1], [], []>} : vector<256x128xbf16>, vector<128x128xbf16>, vector<256x128xf32> -> vector<256x128xf32>
    %c0_11 = arith.constant 0 : index
    %c0_12 = arith.constant 0 : index
    %16 = vector.load %arg8[%c0_11, %c0_12] : memref<1x128xf32, #tpu.memory_space<vmem>>, vector<1x128xf32>
    %17 = vector.broadcast %16 : vector<1x128xf32> to vector<256x128xf32>
    %18 = arith.addf %15, %17 : vector<256x128xf32>
    %c0_13 = arith.constant 0 : index
    %c0_14 = arith.constant 0 : index
    %c0_15 = arith.constant 0 : index
    %19 = vector.load %arg1[%c0_13, %c0_14, %c0_15] : memref<1x256x128xf32, #tpu.memory_space<vmem>>, vector<1x256x128xf32>
    %20 = vector.shape_cast %19 : vector<1x256x128xf32> to vector<256x128xf32>
    %21 = arith.addf %20, %18 : vector<256x128xf32>
    %c0_16 = arith.constant 0 : index
    %c0_17 = arith.constant 0 : index
    %c0_18 = arith.constant 0 : index
    %22 = vector.load %arg3[%c0_16, %c0_17, %c0_18] : memref<1x256x1xf32, #tpu.memory_space<vmem>>, vector<1x256x1xf32>
    %23 = vector.shape_cast %22 : vector<1x256x1xf32> to vector<256x1xf32>
    %24 = vector.broadcast %23 : vector<256x1xf32> to vector<256x128xf32>
    %25 = arith.mulf %21, %24 : vector<256x128xf32>
    %c0_19 = arith.constant 0 : index
    %c0_20 = arith.constant 0 : index
    %c0_21 = arith.constant 0 : index
    %26 = vector.load %arg4[%c0_19, %c0_20, %c0_21] : memref<1x1x128xf32, #tpu.memory_space<vmem>>, vector<1x1x128xf32>
    %27 = vector.shape_cast %26 : vector<1x1x128xf32> to vector<1x128xf32>
    %28 = vector.broadcast %27 : vector<1x128xf32> to vector<256x128xf32>
    %29 = arith.addf %25, %28 : vector<256x128xf32>
    %c0_22 = arith.constant 0 : index
    %c0_23 = arith.constant 0 : index
    %30 = vector.load %arg18[%c0_22, %c0_23] : memref<256x128xf32, #tpu.memory_space<vmem>>, vector<256x128xf32>
    tpu.vector_store %arg18[%c0_22, %c0_23], %29 {strides = array<i32>} : memref<256x128xf32, #tpu.memory_space<vmem>>, vector<256x128xf32>,
    %cst_24 = arith.constant 0.000000e+00 : f32
    %31 = vector.broadcast %cst_24 : f32 to vector<237x128xf32>
    %c0_25 = arith.constant 0 : index
    %c0_26 = arith.constant 0 : index
    %32 = vector.load %arg18[%c0_25, %c0_26] : memref<256x128xf32, #tpu.memory_space<vmem>>, vector<237x128xf32>
    %33 = arith.truncf %32 : vector<237x128xf32> to vector<237x128xbf16>
    %c0_27 = arith.constant 0 : index
    %c0_28 = arith.constant 0 : index
    %c0_29 = arith.constant 0 : index
    %34 = vector.load %arg9[%c0_27, %c0_28, %c0_29] : memref<8x128x128xbf16, #tpu.memory_space<vmem>>, vector<1x128x128xbf16>
    %35 = vector.shape_cast %34 : vector<1x128x128xbf16> to vector<128x128xbf16>
    %cst_30 = arith.constant dense<0.000000e+00> : vector<237x128xf32>
    %36 = tpu.matmul %33, %35, %cst_30 {dimension_numbers = #tpu.dot_dimension_numbers<[1], [0], [0], [1], [0, 0, 1, 1], [], []>} : vector<237x128xbf16>, vector<128x128xbf16>, vector<237x128xf32> -> vector<237x128xf32>
    %37 = arith.addf %31, %36 : vector<237x128xf32>
    %c1 = arith.constant 1 : index
    %c0_31 = arith.constant 0 : index
    %38 = vector.load %arg18[%c1, %c0_31] : memref<256x128xf32, #tpu.memory_space<vmem>>, vector<237x128xf32>
    %39 = arith.truncf %38 : vector<237x128xf32> to vector<237x128xbf16>
    %c1_32 = arith.constant 1 : index
    %c0_33 = arith.constant 0 : index
    %c0_34 = arith.constant 0 : index
    %40 = vector.load %arg9[%c1_32, %c0_33, %c0_34] : memref<8x128x128xbf16, #tpu.memory_space<vmem>>, vector<1x128x128xbf16>
    %41 = vector.shape_cast %40 : vector<1x128x128xbf16> to vector<128x128xbf16>
    %cst_35 = arith.constant dense<0.000000e+00> : vector<237x128xf32>
    %42 = tpu.matmul %39, %41, %cst_35 {dimension_numbers = #tpu.dot_dimension_numbers<[1], [0], [0], [1], [0, 0, 1, 1], [], []>} : vector<237x128xbf16>, vector<128x128xbf16>, vector<237x128xf32> -> vector<237x128xf32>
    %43 = arith.addf %37, %42 : vector<237x128xf32>
    %c2 = arith.constant 2 : index
    %c0_36 = arith.constant 0 : index
    %44 = vector.load %arg18[%c2, %c0_36] : memref<256x128xf32, #tpu.memory_space<vmem>>, vector<237x128xf32>
    %45 = arith.truncf %44 : vector<237x128xf32> to vector<237x128xbf16>
    %c2_37 = arith.constant 2 : index
    %c0_38 = arith.constant 0 : index
    %c0_39 = arith.constant 0 : index
    %46 = vector.load %arg9[%c2_37, %c0_38, %c0_39] : memref<8x128x128xbf16, #tpu.memory_space<vmem>>, vector<1x128x128xbf16>
    %47 = vector.shape_cast %46 : vector<1x128x128xbf16> to vector<128x128xbf16>
    %cst_40 = arith.constant dense<0.000000e+00> : vector<237x128xf32>
    %48 = tpu.matmul %45, %47, %cst_40 {dimension_numbers = #tpu.dot_dimension_numbers<[1], [0], [0], [1], [0, 0, 1, 1], [], []>} : vector<237x128xbf16>, vector<128x128xbf16>, vector<237x128xf32> -> vector<237x128xf32>
    %49 = arith.addf %43, %48 : vector<237x128xf32>
    %c3 = arith.constant 3 : index
    %c0_41 = arith.constant 0 : index
    %50 = vector.load %arg18[%c3, %c0_41] : memref<256x128xf32, #tpu.memory_space<vmem>>, vector<237x128xf32>
    %51 = arith.truncf %50 : vector<237x128xf32> to vector<237x128xbf16>
    %c3_42 = arith.constant 3 : index
    %c0_43 = arith.constant 0 : index
    %c0_44 = arith.constant 0 : index
    %52 = vector.load %arg9[%c3_42, %c0_43, %c0_44] : memref<8x128x128xbf16, #tpu.memory_space<vmem>>, vector<1x128x128xbf16>
    %53 = vector.shape_cast %52 : vector<1x128x128xbf16> to vector<128x128xbf16>
    %cst_45 = arith.constant dense<0.000000e+00> : vector<237x128xf32>
    %54 = tpu.matmul %51, %53, %cst_45 {dimension_numbers = #tpu.dot_dimension_numbers<[1], [0], [0], [1], [0, 0, 1, 1], [], []>} : vector<237x128xbf16>, vector<128x128xbf16>, vector<237x128xf32> -> vector<237x128xf32>
    %55 = arith.addf %49, %54 : vector<237x128xf32>
    %c4 = arith.constant 4 : index
    %c0_46 = arith.constant 0 : index
    %56 = vector.load %arg18[%c4, %c0_46] : memref<256x128xf32, #tpu.memory_space<vmem>>, vector<237x128xf32>
    %57 = arith.truncf %56 : vector<237x128xf32> to vector<237x128xbf16>
    %c4_47 = arith.constant 4 : index
    %c0_48 = arith.constant 0 : index
    %c0_49 = arith.constant 0 : index
    %58 = vector.load %arg9[%c4_47, %c0_48, %c0_49] : memref<8x128x128xbf16, #tpu.memory_space<vmem>>, vector<1x128x128xbf16>
    %59 = vector.shape_cast %58 : vector<1x128x128xbf16> to vector<128x128xbf16>
    %cst_50 = arith.constant dense<0.000000e+00> : vector<237x128xf32>
    %60 = tpu.matmul %57, %59, %cst_50 {dimension_numbers = #tpu.dot_dimension_numbers<[1], [0], [0], [1], [0, 0, 1, 1], [], []>} : vector<237x128xbf16>, vector<128x128xbf16>, vector<237x128xf32> -> vector<237x128xf32>
    %61 = arith.addf %55, %60 : vector<237x128xf32>
    %c5 = arith.constant 5 : index
    %c0_51 = arith.constant 0 : index
    %62 = vector.load %arg18[%c5, %c0_51] : memref<256x128xf32, #tpu.memory_space<vmem>>, vector<237x128xf32>
    %63 = arith.truncf %62 : vector<237x128xf32> to vector<237x128xbf16>
    %c5_52 = arith.constant 5 : index
    %c0_53 = arith.constant 0 : index
    %c0_54 = arith.constant 0 : index
    %64 = vector.load %arg9[%c5_52, %c0_53, %c0_54] : memref<8x128x128xbf16, #tpu.memory_space<vmem>>, vector<1x128x128xbf16>
    %65 = vector.shape_cast %64 : vector<1x128x128xbf16> to vector<128x128xbf16>
    %cst_55 = arith.constant dense<0.000000e+00> : vector<237x128xf32>
    %66 = tpu.matmul %63, %65, %cst_55 {dimension_numbers = #tpu.dot_dimension_numbers<[1], [0], [0], [1], [0, 0, 1, 1], [], []>} : vector<237x128xbf16>, vector<128x128xbf16>, vector<237x128xf32> -> vector<237x128xf32>
    %67 = arith.addf %61, %66 : vector<237x128xf32>
    %c6 = arith.constant 6 : index
    %c0_56 = arith.constant 0 : index
    %68 = vector.load %arg18[%c6, %c0_56] : memref<256x128xf32, #tpu.memory_space<vmem>>, vector<237x128xf32>
    %69 = arith.truncf %68 : vector<237x128xf32> to vector<237x128xbf16>
    %c6_57 = arith.constant 6 : index
    %c0_58 = arith.constant 0 : index
    %c0_59 = arith.constant 0 : index
    %70 = vector.load %arg9[%c6_57, %c0_58, %c0_59] : memref<8x128x128xbf16, #tpu.memory_space<vmem>>, vector<1x128x128xbf16>
    %71 = vector.shape_cast %70 : vector<1x128x128xbf16> to vector<128x128xbf16>
    %cst_60 = arith.constant dense<0.000000e+00> : vector<237x128xf32>
    %72 = tpu.matmul %69, %71, %cst_60 {dimension_numbers = #tpu.dot_dimension_numbers<[1], [0], [0], [1], [0, 0, 1, 1], [], []>} : vector<237x128xbf16>, vector<128x128xbf16>, vector<237x128xf32> -> vector<237x128xf32>
    %73 = arith.addf %67, %72 : vector<237x128xf32>
    %c7 = arith.constant 7 : index
    %c0_61 = arith.constant 0 : index
    %74 = vector.load %arg18[%c7, %c0_61] : memref<256x128xf32, #tpu.memory_space<vmem>>, vector<237x128xf32>
    %75 = arith.truncf %74 : vector<237x128xf32> to vector<237x128xbf16>
    %c7_62 = arith.constant 7 : index
    %c0_63 = arith.constant 0 : index
    %c0_64 = arith.constant 0 : index
    %76 = vector.load %arg9[%c7_62, %c0_63, %c0_64] : memref<8x128x128xbf16, #tpu.memory_space<vmem>>, vector<1x128x128xbf16>
    %77 = vector.shape_cast %76 : vector<1x128x128xbf16> to vector<128x128xbf16>
    %cst_65 = arith.constant dense<0.000000e+00> : vector<237x128xf32>
    %78 = tpu.matmul %75, %77, %cst_65 {dimension_numbers = #tpu.dot_dimension_numbers<[1], [0], [0], [1], [0, 0, 1, 1], [], []>} : vector<237x128xbf16>, vector<128x128xbf16>, vector<237x128xf32> -> vector<237x128xf32>
    %79 = arith.addf %73, %78 : vector<237x128xf32>
    %c0_66 = arith.constant 0 : index
    %c0_67 = arith.constant 0 : index
    %80 = vector.load %arg10[%c0_66, %c0_67] : memref<3x128xf32, #tpu.memory_space<vmem>>, vector<1x128xf32>
    %81 = vector.broadcast %80 : vector<1x128xf32> to vector<237x128xf32>
    %82 = arith.addf %79, %81 : vector<237x128xf32>
    %cst_68 = arith.constant 0.000000e+00 : f32
    %83 = vector.broadcast %cst_68 : f32 to vector<237x128xf32>
    %84 = arith.maximumf %82, %83 : vector<237x128xf32>
    %c1_69 = arith.constant 1 : index
    %c0_70 = arith.constant 0 : index
    %85 = vector.load %arg10[%c1_69, %c0_70] : memref<3x128xf32, #tpu.memory_space<vmem>>, vector<1x128xf32>
    %86 = vector.broadcast %85 : vector<1x128xf32> to vector<237x128xf32>
    %87 = arith.mulf %84, %86 : vector<237x128xf32>
    %c2_71 = arith.constant 2 : index
    %c0_72 = arith.constant 0 : index
    %88 = vector.load %arg10[%c2_71, %c0_72] : memref<3x128xf32, #tpu.memory_space<vmem>>, vector<1x128xf32>
    %89 = vector.broadcast %88 : vector<1x128xf32> to vector<237x128xf32>
    %90 = arith.addf %87, %89 : vector<237x128xf32>
    %c0_73 = arith.constant 0 : index
    %c0_74 = arith.constant 0 : index
    %91 = vector.load %arg19[%c0_73, %c0_74] : memref<237x128xf32, #tpu.memory_space<vmem>>, vector<237x128xf32>
    tpu.vector_store %arg19[%c0_73, %c0_74], %90 {strides = array<i32>} : memref<237x128xf32, #tpu.memory_space<vmem>>, vector<237x128xf32>,
    %cst_75 = arith.constant 0.000000e+00 : f32
    %92 = vector.broadcast %cst_75 : f32 to vector<209x128xf32>
    %c0_76 = arith.constant 0 : index
    %c0_77 = arith.constant 0 : index
    %93 = vector.load %arg19[%c0_76, %c0_77] : memref<237x128xf32, #tpu.memory_space<vmem>>, vector<209x128xf32>
    %94 = arith.truncf %93 : vector<209x128xf32> to vector<209x128xbf16>
    %c0_78 = arith.constant 0 : index
    %c0_79 = arith.constant 0 : index
    %c0_80 = arith.constant 0 : index
    %95 = vector.load %arg11[%c0_78, %c0_79, %c0_80] : memref<8x128x128xbf16, #tpu.memory_space<vmem>>, vector<1x128x128xbf16>
    %96 = vector.shape_cast %95 : vector<1x128x128xbf16> to vector<128x128xbf16>
    %cst_81 = arith.constant dense<0.000000e+00> : vector<209x128xf32>
    %97 = tpu.matmul %94, %96, %cst_81 {dimension_numbers = #tpu.dot_dimension_numbers<[1], [0], [0], [1], [0, 0, 1, 1], [], []>} : vector<209x128xbf16>, vector<128x128xbf16>, vector<209x128xf32> -> vector<209x128xf32>
    %98 = arith.addf %92, %97 : vector<209x128xf32>
    %c4_82 = arith.constant 4 : index
    %c0_83 = arith.constant 0 : index
    %99 = vector.load %arg19[%c4_82, %c0_83] : memref<237x128xf32, #tpu.memory_space<vmem>>, vector<209x128xf32>
    %100 = arith.truncf %99 : vector<209x128xf32> to vector<209x128xbf16>
    %c1_84 = arith.constant 1 : index
    %c0_85 = arith.constant 0 : index
    %c0_86 = arith.constant 0 : index
    %101 = vector.load %arg11[%c1_84, %c0_85, %c0_86] : memref<8x128x128xbf16, #tpu.memory_space<vmem>>, vector<1x128x128xbf16>
    %102 = vector.shape_cast %101 : vector<1x128x128xbf16> to vector<128x128xbf16>
    %cst_87 = arith.constant dense<0.000000e+00> : vector<209x128xf32>
    %103 = tpu.matmul %100, %102, %cst_87 {dimension_numbers = #tpu.dot_dimension_numbers<[1], [0], [0], [1], [0, 0, 1, 1], [], []>} : vector<209x128xbf16>, vector<128x128xbf16>, vector<209x128xf32> -> vector<209x128xf32>
    %104 = arith.addf %98, %103 : vector<209x128xf32>
    %c8 = arith.constant 8 : index
    %c0_88 = arith.constant 0 : index
    %105 = vector.load %arg19[%c8, %c0_88] : memref<237x128xf32, #tpu.memory_space<vmem>>, vector<209x128xf32>
    %106 = arith.truncf %105 : vector<209x128xf32> to vector<209x128xbf16>
    %c2_89 = arith.constant 2 : index
    %c0_90 = arith.constant 0 : index
    %c0_91 = arith.constant 0 : index
    %107 = vector.load %arg11[%c2_89, %c0_90, %c0_91] : memref<8x128x128xbf16, #tpu.memory_space<vmem>>, vector<1x128x128xbf16>
    %108 = vector.shape_cast %107 : vector<1x128x128xbf16> to vector<128x128xbf16>
    %cst_92 = arith.constant dense<0.000000e+00> : vector<209x128xf32>
    %109 = tpu.matmul %106, %108, %cst_92 {dimension_numbers = #tpu.dot_dimension_numbers<[1], [0], [0], [1], [0, 0, 1, 1], [], []>} : vector<209x128xbf16>, vector<128x128xbf16>, vector<209x128xf32> -> vector<209x128xf32>
    %110 = arith.addf %104, %109 : vector<209x128xf32>
    %c12 = arith.constant 12 : index
    %c0_93 = arith.constant 0 : index
    %111 = vector.load %arg19[%c12, %c0_93] : memref<237x128xf32, #tpu.memory_space<vmem>>, vector<209x128xf32>
    %112 = arith.truncf %111 : vector<209x128xf32> to vector<209x128xbf16>
    %c3_94 = arith.constant 3 : index
    %c0_95 = arith.constant 0 : index
    %c0_96 = arith.constant 0 : index
    %113 = vector.load %arg11[%c3_94, %c0_95, %c0_96] : memref<8x128x128xbf16, #tpu.memory_space<vmem>>, vector<1x128x128xbf16>
    %114 = vector.shape_cast %113 : vector<1x128x128xbf16> to vector<128x128xbf16>
    %cst_97 = arith.constant dense<0.000000e+00> : vector<209x128xf32>
    %115 = tpu.matmul %112, %114, %cst_97 {dimension_numbers = #tpu.dot_dimension_numbers<[1], [0], [0], [1], [0, 0, 1, 1], [], []>} : vector<209x128xbf16>, vector<128x128xbf16>, vector<209x128xf32> -> vector<209x128xf32>
    %116 = arith.addf %110, %115 : vector<209x128xf32>
    %c16 = arith.constant 16 : index
    %c0_98 = arith.constant 0 : index
    %117 = vector.load %arg19[%c16, %c0_98] : memref<237x128xf32, #tpu.memory_space<vmem>>, vector<209x128xf32>
    %118 = arith.truncf %117 : vector<209x128xf32> to vector<209x128xbf16>
    %c4_99 = arith.constant 4 : index
    %c0_100 = arith.constant 0 : index
    %c0_101 = arith.constant 0 : index
    %119 = vector.load %arg11[%c4_99, %c0_100, %c0_101] : memref<8x128x128xbf16, #tpu.memory_space<vmem>>, vector<1x128x128xbf16>
    %120 = vector.shape_cast %119 : vector<1x128x128xbf16> to vector<128x128xbf16>
    %cst_102 = arith.constant dense<0.000000e+00> : vector<209x128xf32>
    %121 = tpu.matmul %118, %120, %cst_102 {dimension_numbers = #tpu.dot_dimension_numbers<[1], [0], [0], [1], [0, 0, 1, 1], [], []>} : vector<209x128xbf16>, vector<128x128xbf16>, vector<209x128xf32> -> vector<209x128xf32>
    %122 = arith.addf %116, %121 : vector<209x128xf32>
    %c20 = arith.constant 20 : index
    %c0_103 = arith.constant 0 : index
    %123 = vector.load %arg19[%c20, %c0_103] : memref<237x128xf32, #tpu.memory_space<vmem>>, vector<209x128xf32>
    %124 = arith.truncf %123 : vector<209x128xf32> to vector<209x128xbf16>
    %c5_104 = arith.constant 5 : index
    %c0_105 = arith.constant 0 : index
    %c0_106 = arith.constant 0 : index
    %125 = vector.load %arg11[%c5_104, %c0_105, %c0_106] : memref<8x128x128xbf16, #tpu.memory_space<vmem>>, vector<1x128x128xbf16>
    %126 = vector.shape_cast %125 : vector<1x128x128xbf16> to vector<128x128xbf16>
    %cst_107 = arith.constant dense<0.000000e+00> : vector<209x128xf32>
    %127 = tpu.matmul %124, %126, %cst_107 {dimension_numbers = #tpu.dot_dimension_numbers<[1], [0], [0], [1], [0, 0, 1, 1], [], []>} : vector<209x128xbf16>, vector<128x128xbf16>, vector<209x128xf32> -> vector<209x128xf32>
    %128 = arith.addf %122, %127 : vector<209x128xf32>
    %c24 = arith.constant 24 : index
    %c0_108 = arith.constant 0 : index
    %129 = vector.load %arg19[%c24, %c0_108] : memref<237x128xf32, #tpu.memory_space<vmem>>, vector<209x128xf32>
    %130 = arith.truncf %129 : vector<209x128xf32> to vector<209x128xbf16>
    %c6_109 = arith.constant 6 : index
    %c0_110 = arith.constant 0 : index
    %c0_111 = arith.constant 0 : index
    %131 = vector.load %arg11[%c6_109, %c0_110, %c0_111] : memref<8x128x128xbf16, #tpu.memory_space<vmem>>, vector<1x128x128xbf16>
    %132 = vector.shape_cast %131 : vector<1x128x128xbf16> to vector<128x128xbf16>
    %cst_112 = arith.constant dense<0.000000e+00> : vector<209x128xf32>
    %133 = tpu.matmul %130, %132, %cst_112 {dimension_numbers = #tpu.dot_dimension_numbers<[1], [0], [0], [1], [0, 0, 1, 1], [], []>} : vector<209x128xbf16>, vector<128x128xbf16>, vector<209x128xf32> -> vector<209x128xf32>
    %134 = arith.addf %128, %133 : vector<209x128xf32>
    %c28 = arith.constant 28 : index
    %c0_113 = arith.constant 0 : index
    %135 = vector.load %arg19[%c28, %c0_113] : memref<237x128xf32, #tpu.memory_space<vmem>>, vector<209x128xf32>
    %136 = arith.truncf %135 : vector<209x128xf32> to vector<209x128xbf16>
    %c7_114 = arith.constant 7 : index
    %c0_115 = arith.constant 0 : index
    %c0_116 = arith.constant 0 : index
    %137 = vector.load %arg11[%c7_114, %c0_115, %c0_116] : memref<8x128x128xbf16, #tpu.memory_space<vmem>>, vector<1x128x128xbf16>
    %138 = vector.shape_cast %137 : vector<1x128x128xbf16> to vector<128x128xbf16>
    %cst_117 = arith.constant dense<0.000000e+00> : vector<209x128xf32>
    %139 = tpu.matmul %136, %138, %cst_117 {dimension_numbers = #tpu.dot_dimension_numbers<[1], [0], [0], [1], [0, 0, 1, 1], [], []>} : vector<209x128xbf16>, vector<128x128xbf16>, vector<209x128xf32> -> vector<209x128xf32>
    %140 = arith.addf %134, %139 : vector<209x128xf32>
    %c0_118 = arith.constant 0 : index
    %c0_119 = arith.constant 0 : index
    %141 = vector.load %arg12[%c0_118, %c0_119] : memref<3x128xf32, #tpu.memory_space<vmem>>, vector<1x128xf32>
    %142 = vector.broadcast %141 : vector<1x128xf32> to vector<209x128xf32>
    %143 = arith.addf %140, %142 : vector<209x128xf32>
    %cst_120 = arith.constant 0.000000e+00 : f32
    %144 = vector.broadcast %cst_120 : f32 to vector<209x128xf32>
    %145 = arith.maximumf %143, %144 : vector<209x128xf32>
    %c1_121 = arith.constant 1 : index
    %c0_122 = arith.constant 0 : index
    %146 = vector.load %arg12[%c1_121, %c0_122] : memref<3x128xf32, #tpu.memory_space<vmem>>, vector<1x128xf32>
    %147 = vector.broadcast %146 : vector<1x128xf32> to vector<209x128xf32>
    %148 = arith.mulf %145, %147 : vector<209x128xf32>
    %c2_123 = arith.constant 2 : index
    %c0_124 = arith.constant 0 : index
    %149 = vector.load %arg12[%c2_123, %c0_124] : memref<3x128xf32, #tpu.memory_space<vmem>>, vector<1x128xf32>
    %150 = vector.broadcast %149 : vector<1x128xf32> to vector<209x128xf32>
    %151 = arith.addf %148, %150 : vector<209x128xf32>
    %c0_125 = arith.constant 0 : index
    %c0_126 = arith.constant 0 : index
    %152 = vector.load %arg20[%c0_125, %c0_126] : memref<209x128xf32, #tpu.memory_space<vmem>>, vector<209x128xf32>
    tpu.vector_store %arg20[%c0_125, %c0_126], %151 {strides = array<i32>} : memref<209x128xf32, #tpu.memory_space<vmem>>, vector<209x128xf32>,
    %cst_127 = arith.constant 0.000000e+00 : f32
    %153 = vector.broadcast %cst_127 : f32 to vector<161x128xf32>
    %c0_128 = arith.constant 0 : index
    %c0_129 = arith.constant 0 : index
    %154 = vector.load %arg20[%c0_128, %c0_129] : memref<209x128xf32, #tpu.memory_space<vmem>>, vector<161x128xf32>
    %155 = arith.truncf %154 : vector<161x128xf32> to vector<161x128xbf16>
    %c0_130 = arith.constant 0 : index
    %c0_131 = arith.constant 0 : index
    %c0_132 = arith.constant 0 : index
    %156 = vector.load %arg13[%c0_130, %c0_131, %c0_132] : memref<4x128x128xbf16, #tpu.memory_space<vmem>>, vector<1x128x128xbf16>
    %157 = vector.shape_cast %156 : vector<1x128x128xbf16> to vector<128x128xbf16>
    %cst_133 = arith.constant dense<0.000000e+00> : vector<161x128xf32>
    %158 = tpu.matmul %155, %157, %cst_133 {dimension_numbers = #tpu.dot_dimension_numbers<[1], [0], [0], [1], [0, 0, 1, 1], [], []>} : vector<161x128xbf16>, vector<128x128xbf16>, vector<161x128xf32> -> vector<161x128xf32>
    %159 = arith.addf %153, %158 : vector<161x128xf32>
    %c16_134 = arith.constant 16 : index
    %c0_135 = arith.constant 0 : index
    %160 = vector.load %arg20[%c16_134, %c0_135] : memref<209x128xf32, #tpu.memory_space<vmem>>, vector<161x128xf32>
    %161 = arith.truncf %160 : vector<161x128xf32> to vector<161x128xbf16>
    %c1_136 = arith.constant 1 : index
    %c0_137 = arith.constant 0 : index
    %c0_138 = arith.constant 0 : index
    %162 = vector.load %arg13[%c1_136, %c0_137, %c0_138] : memref<4x128x128xbf16, #tpu.memory_space<vmem>>, vector<1x128x128xbf16>
    %163 = vector.shape_cast %162 : vector<1x128x128xbf16> to vector<128x128xbf16>
    %cst_139 = arith.constant dense<0.000000e+00> : vector<161x128xf32>
    %164 = tpu.matmul %161, %163, %cst_139 {dimension_numbers = #tpu.dot_dimension_numbers<[1], [0], [0], [1], [0, 0, 1, 1], [], []>} : vector<161x128xbf16>, vector<128x128xbf16>, vector<161x128xf32> -> vector<161x128xf32>
    %165 = arith.addf %159, %164 : vector<161x128xf32>
    %c32 = arith.constant 32 : index
    %c0_140 = arith.constant 0 : index
    %166 = vector.load %arg20[%c32, %c0_140] : memref<209x128xf32, #tpu.memory_space<vmem>>, vector<161x128xf32>
    %167 = arith.truncf %166 : vector<161x128xf32> to vector<161x128xbf16>
    %c2_141 = arith.constant 2 : index
    %c0_142 = arith.constant 0 : index
    %c0_143 = arith.constant 0 : index
    %168 = vector.load %arg13[%c2_141, %c0_142, %c0_143] : memref<4x128x128xbf16, #tpu.memory_space<vmem>>, vector<1x128x128xbf16>
    %169 = vector.shape_cast %168 : vector<1x128x128xbf16> to vector<128x128xbf16>
    %cst_144 = arith.constant dense<0.000000e+00> : vector<161x128xf32>
    %170 = tpu.matmul %167, %169, %cst_144 {dimension_numbers = #tpu.dot_dimension_numbers<[1], [0], [0], [1], [0, 0, 1, 1], [], []>} : vector<161x128xbf16>, vector<128x128xbf16>, vector<161x128xf32> -> vector<161x128xf32>
    %171 = arith.addf %165, %170 : vector<161x128xf32>
    %c48 = arith.constant 48 : index
    %c0_145 = arith.constant 0 : index
    %172 = vector.load %arg20[%c48, %c0_145] : memref<209x128xf32, #tpu.memory_space<vmem>>, vector<161x128xf32>
    %173 = arith.truncf %172 : vector<161x128xf32> to vector<161x128xbf16>
    %c3_146 = arith.constant 3 : index
    %c0_147 = arith.constant 0 : index
    %c0_148 = arith.constant 0 : index
    %174 = vector.load %arg13[%c3_146, %c0_147, %c0_148] : memref<4x128x128xbf16, #tpu.memory_space<vmem>>, vector<1x128x128xbf16>
    %175 = vector.shape_cast %174 : vector<1x128x128xbf16> to vector<128x128xbf16>
    %cst_149 = arith.constant dense<0.000000e+00> : vector<161x128xf32>
    %176 = tpu.matmul %173, %175, %cst_149 {dimension_numbers = #tpu.dot_dimension_numbers<[1], [0], [0], [1], [0, 0, 1, 1], [], []>} : vector<161x128xbf16>, vector<128x128xbf16>, vector<161x128xf32> -> vector<161x128xf32>
    %177 = arith.addf %171, %176 : vector<161x128xf32>
    %c0_150 = arith.constant 0 : index
    %c0_151 = arith.constant 0 : index
    %178 = vector.load %arg14[%c0_150, %c0_151] : memref<3x128xf32, #tpu.memory_space<vmem>>, vector<1x128xf32>
    %179 = vector.broadcast %178 : vector<1x128xf32> to vector<161x128xf32>
    %180 = arith.addf %177, %179 : vector<161x128xf32>
    %cst_152 = arith.constant 0.000000e+00 : f32
    %181 = vector.broadcast %cst_152 : f32 to vector<161x128xf32>
    %182 = arith.maximumf %180, %181 : vector<161x128xf32>
    %c1_153 = arith.constant 1 : index
    %c0_154 = arith.constant 0 : index
    %183 = vector.load %arg14[%c1_153, %c0_154] : memref<3x128xf32, #tpu.memory_space<vmem>>, vector<1x128xf32>
    %184 = vector.broadcast %183 : vector<1x128xf32> to vector<161x128xf32>
    %185 = arith.mulf %182, %184 : vector<161x128xf32>
    %c2_155 = arith.constant 2 : index
    %c0_156 = arith.constant 0 : index
    %186 = vector.load %arg14[%c2_155, %c0_156] : memref<3x128xf32, #tpu.memory_space<vmem>>, vector<1x128xf32>
    %187 = vector.broadcast %186 : vector<1x128xf32> to vector<161x128xf32>
    %188 = arith.addf %185, %187 : vector<161x128xf32>
    %c0_157 = arith.constant 0 : index
    %c0_158 = arith.constant 0 : index
    %189 = vector.load %arg21[%c0_157, %c0_158] : memref<161x128xf32, #tpu.memory_space<vmem>>, vector<161x128xf32>
    tpu.vector_store %arg21[%c0_157, %c0_158], %188 {strides = array<i32>} : memref<161x128xf32, #tpu.memory_space<vmem>>, vector<161x128xf32>,
    %cst_159 = arith.constant 0.000000e+00 : f32
    %190 = vector.broadcast %cst_159 : f32 to vector<65x128xf32>
    %c0_160 = arith.constant 0 : index
    %c0_161 = arith.constant 0 : index
    %191 = vector.load %arg21[%c0_160, %c0_161] : memref<161x128xf32, #tpu.memory_space<vmem>>, vector<65x128xf32>
    %192 = arith.truncf %191 : vector<65x128xf32> to vector<65x128xbf16>
    %c0_162 = arith.constant 0 : index
    %c0_163 = arith.constant 0 : index
    %c0_164 = arith.constant 0 : index
    %193 = vector.load %arg15[%c0_162, %c0_163, %c0_164] : memref<4x128x128xbf16, #tpu.memory_space<vmem>>, vector<1x128x128xbf16>
    %194 = vector.shape_cast %193 : vector<1x128x128xbf16> to vector<128x128xbf16>
    %cst_165 = arith.constant dense<0.000000e+00> : vector<65x128xf32>
    %195 = tpu.matmul %192, %194, %cst_165 {dimension_numbers = #tpu.dot_dimension_numbers<[1], [0], [0], [1], [0, 0, 1, 1], [], []>} : vector<65x128xbf16>, vector<128x128xbf16>, vector<65x128xf32> -> vector<65x128xf32>
    %196 = arith.addf %190, %195 : vector<65x128xf32>
    %c32_166 = arith.constant 32 : index
    %c0_167 = arith.constant 0 : index
    %197 = vector.load %arg21[%c32_166, %c0_167] : memref<161x128xf32, #tpu.memory_space<vmem>>, vector<65x128xf32>
    %198 = arith.truncf %197 : vector<65x128xf32> to vector<65x128xbf16>
    %c1_168 = arith.constant 1 : index
    %c0_169 = arith.constant 0 : index
    %c0_170 = arith.constant 0 : index
    %199 = vector.load %arg15[%c1_168, %c0_169, %c0_170] : memref<4x128x128xbf16, #tpu.memory_space<vmem>>, vector<1x128x128xbf16>
    %200 = vector.shape_cast %199 : vector<1x128x128xbf16> to vector<128x128xbf16>
    %cst_171 = arith.constant dense<0.000000e+00> : vector<65x128xf32>
    %201 = tpu.matmul %198, %200, %cst_171 {dimension_numbers = #tpu.dot_dimension_numbers<[1], [0], [0], [1], [0, 0, 1, 1], [], []>} : vector<65x128xbf16>, vector<128x128xbf16>, vector<65x128xf32> -> vector<65x128xf32>
    %202 = arith.addf %196, %201 : vector<65x128xf32>
    %c64 = arith.constant 64 : index
    %c0_172 = arith.constant 0 : index
    %203 = vector.load %arg21[%c64, %c0_172] : memref<161x128xf32, #tpu.memory_space<vmem>>, vector<65x128xf32>
    %204 = arith.truncf %203 : vector<65x128xf32> to vector<65x128xbf16>
    %c2_173 = arith.constant 2 : index
    %c0_174 = arith.constant 0 : index
    %c0_175 = arith.constant 0 : index
    %205 = vector.load %arg15[%c2_173, %c0_174, %c0_175] : memref<4x128x128xbf16, #tpu.memory_space<vmem>>, vector<1x128x128xbf16>
    %206 = vector.shape_cast %205 : vector<1x128x128xbf16> to vector<128x128xbf16>
    %cst_176 = arith.constant dense<0.000000e+00> : vector<65x128xf32>
    %207 = tpu.matmul %204, %206, %cst_176 {dimension_numbers = #tpu.dot_dimension_numbers<[1], [0], [0], [1], [0, 0, 1, 1], [], []>} : vector<65x128xbf16>, vector<128x128xbf16>, vector<65x128xf32> -> vector<65x128xf32>
    %208 = arith.addf %202, %207 : vector<65x128xf32>
    %c96 = arith.constant 96 : index
    %c0_177 = arith.constant 0 : index
    %209 = vector.load %arg21[%c96, %c0_177] : memref<161x128xf32, #tpu.memory_space<vmem>>, vector<65x128xf32>
    %210 = arith.truncf %209 : vector<65x128xf32> to vector<65x128xbf16>
    %c3_178 = arith.constant 3 : index
    %c0_179 = arith.constant 0 : index
    %c0_180 = arith.constant 0 : index
    %211 = vector.load %arg15[%c3_178, %c0_179, %c0_180] : memref<4x128x128xbf16, #tpu.memory_space<vmem>>, vector<1x128x128xbf16>
    %212 = vector.shape_cast %211 : vector<1x128x128xbf16> to vector<128x128xbf16>
    %cst_181 = arith.constant dense<0.000000e+00> : vector<65x128xf32>
    %213 = tpu.matmul %210, %212, %cst_181 {dimension_numbers = #tpu.dot_dimension_numbers<[1], [0], [0], [1], [0, 0, 1, 1], [], []>} : vector<65x128xbf16>, vector<128x128xbf16>, vector<65x128xf32> -> vector<65x128xf32>
    %214 = arith.addf %208, %213 : vector<65x128xf32>
    %c0_182 = arith.constant 0 : index
    %c0_183 = arith.constant 0 : index
    %215 = vector.load %arg16[%c0_182, %c0_183] : memref<3x128xf32, #tpu.memory_space<vmem>>, vector<1x128xf32>
    %216 = vector.broadcast %215 : vector<1x128xf32> to vector<65x128xf32>
    %217 = arith.addf %214, %216 : vector<65x128xf32>
    %cst_184 = arith.constant 0.000000e+00 : f32
    %218 = vector.broadcast %cst_184 : f32 to vector<65x128xf32>
    %219 = arith.maximumf %217, %218 : vector<65x128xf32>
    %c1_185 = arith.constant 1 : index
    %c0_186 = arith.constant 0 : index
    %220 = vector.load %arg16[%c1_185, %c0_186] : memref<3x128xf32, #tpu.memory_space<vmem>>, vector<1x128xf32>
    %221 = vector.broadcast %220 : vector<1x128xf32> to vector<65x128xf32>
    %222 = arith.mulf %219, %221 : vector<65x128xf32>
    %c2_187 = arith.constant 2 : index
    %c0_188 = arith.constant 0 : index
    %223 = vector.load %arg16[%c2_187, %c0_188] : memref<3x128xf32, #tpu.memory_space<vmem>>, vector<1x128xf32>
    %224 = vector.broadcast %223 : vector<1x128xf32> to vector<65x128xf32>
    %225 = arith.addf %222, %224 : vector<65x128xf32>
    %226 = vector.extract_strided_slice %225 {offsets = [0, 0], sizes = [1, 128], strides = [1, 1]} : vector<65x128xf32> to vector<1x128xf32>
    %227 = vector.extract_strided_slice %225 {offsets = [64, 0], sizes = [1, 128], strides = [1, 1]} : vector<65x128xf32> to vector<1x128xf32>
    %228 = tpu.concatenate %226, %227 in 0 : vector<1x128xf32>, vector<1x128xf32> -> vector<2x128xf32>
    %c0_189 = arith.constant 0 : index
    %c0_190 = arith.constant 0 : index
    %c0_191 = arith.constant 0 : index
    %229 = vector.load %arg17[%c0_189, %c0_190, %c0_191] : memref<1x2x128xf32, #tpu.memory_space<vmem>>, vector<1x2x128xf32>
    %230 = vector.shape_cast %229 : vector<1x2x128xf32> to vector<2x128xf32>
    %231 = vector.shape_cast %228 : vector<2x128xf32> to vector<1x2x128xf32>
    tpu.vector_store %arg17[%c0_189, %c0_190, %c0_191], %231 {strides = array<i32>} : memref<1x2x128xf32, #tpu.memory_space<vmem>>, vector<1x2x128xf32>,
    return
  }
  func.func @transform_0(%arg0: i32) -> (i32, i32, i32) {
    %c0_i32 = arith.constant 0 : i32
    %c0_i32_0 = arith.constant 0 : i32
    %c0_i32_1 = arith.constant 0 : i32
    return %arg0, %c0_i32, %c0_i32_0 : i32, i32, i32
  }
  func.func @transform_1(%arg0: i32) -> (i32, i32, i32) {
    %c0_i32 = arith.constant 0 : i32
    %c0_i32_0 = arith.constant 0 : i32
    %c0_i32_1 = arith.constant 0 : i32
    return %arg0, %c0_i32, %c0_i32_0 : i32, i32, i32
  }
  func.func @transform_2(%arg0: i32) -> (i32, i32, i32) {
    %c0_i32 = arith.constant 0 : i32
    %c0_i32_0 = arith.constant 0 : i32
    %c0_i32_1 = arith.constant 0 : i32
    return %arg0, %c0_i32, %c0_i32_0 : i32, i32, i32
  }
  func.func @transform_3(%arg0: i32) -> (i32, i32, i32) {
    %c0_i32 = arith.constant 0 : i32
    %c0_i32_0 = arith.constant 0 : i32
    %c0_i32_1 = arith.constant 0 : i32
    return %arg0, %c0_i32, %c0_i32_0 : i32, i32, i32
  }
  func.func @transform_4(%arg0: i32) -> (i32, i32) {
    %c0_i32 = arith.constant 0 : i32
    %c0_i32_0 = arith.constant 0 : i32
    %c0_i32_1 = arith.constant 0 : i32
    return %c0_i32, %c0_i32_0 : i32, i32
  }
  func.func @transform_5(%arg0: i32) -> (i32, i32) {
    %c0_i32 = arith.constant 0 : i32
    %c0_i32_0 = arith.constant 0 : i32
    %c0_i32_1 = arith.constant 0 : i32
    return %c0_i32, %c0_i32_0 : i32, i32
  }
  func.func @transform_6(%arg0: i32) -> (i32, i32) {
    %c0_i32 = arith.constant 0 : i32
    %c0_i32_0 = arith.constant 0 : i32
    %c0_i32_1 = arith.constant 0 : i32
    return %c0_i32, %c0_i32_0 : i32, i32
  }
  func.func @transform_7(%arg0: i32) -> (i32, i32) {
    %c0_i32 = arith.constant 0 : i32
    %c0_i32_0 = arith.constant 0 : i32
    %c0_i32_1 = arith.constant 0 : i32
    return %c0_i32, %c0_i32_0 : i32, i32
  }
  func.func @transform_8(%arg0: i32) -> (i32, i32, i32) {
    %c0_i32 = arith.constant 0 : i32
    %c0_i32_0 = arith.constant 0 : i32
    %c0_i32_1 = arith.constant 0 : i32
    %c0_i32_2 = arith.constant 0 : i32
    return %c0_i32, %c0_i32_0, %c0_i32_1 : i32, i32, i32
  }
  func.func @transform_9(%arg0: i32) -> (i32, i32) {
    %c0_i32 = arith.constant 0 : i32
    %c0_i32_0 = arith.constant 0 : i32
    %c0_i32_1 = arith.constant 0 : i32
    return %c0_i32, %c0_i32_0 : i32, i32
  }
  func.func @transform_10(%arg0: i32) -> (i32, i32, i32) {
    %c0_i32 = arith.constant 0 : i32
    %c0_i32_0 = arith.constant 0 : i32
    %c0_i32_1 = arith.constant 0 : i32
    %c0_i32_2 = arith.constant 0 : i32
    return %c0_i32, %c0_i32_0, %c0_i32_1 : i32, i32, i32
  }
  func.func @transform_11(%arg0: i32) -> (i32, i32) {
    %c0_i32 = arith.constant 0 : i32
    %c0_i32_0 = arith.constant 0 : i32
    %c0_i32_1 = arith.constant 0 : i32
    return %c0_i32, %c0_i32_0 : i32, i32
  }
  func.func @transform_12(%arg0: i32) -> (i32, i32, i32) {
    %c0_i32 = arith.constant 0 : i32
    %c0_i32_0 = arith.constant 0 : i32
    %c0_i32_1 = arith.constant 0 : i32
    %c0_i32_2 = arith.constant 0 : i32
    return %c0_i32, %c0_i32_0, %c0_i32_1 : i32, i32, i32
  }
  func.func @transform_13(%arg0: i32) -> (i32, i32) {
    %c0_i32 = arith.constant 0 : i32
    %c0_i32_0 = arith.constant 0 : i32
    %c0_i32_1 = arith.constant 0 : i32
    return %c0_i32, %c0_i32_0 : i32, i32
  }
  func.func @transform_14(%arg0: i32) -> (i32, i32, i32) {
    %c0_i32 = arith.constant 0 : i32
    %c0_i32_0 = arith.constant 0 : i32
    %c0_i32_1 = arith.constant 0 : i32
    %c0_i32_2 = arith.constant 0 : i32
    return %c0_i32, %c0_i32_0, %c0_i32_1 : i32, i32, i32
  }
  func.func @transform_15(%arg0: i32) -> (i32, i32) {
    %c0_i32 = arith.constant 0 : i32
    %c0_i32_0 = arith.constant 0 : i32
    %c0_i32_1 = arith.constant 0 : i32
    return %c0_i32, %c0_i32_0 : i32, i32
  }
  func.func @transform_16(%arg0: i32) -> (i32, i32, i32) {
    %c0_i32 = arith.constant 0 : i32
    %c0_i32_0 = arith.constant 0 : i32
    %c0_i32_1 = arith.constant 0 : i32
    return %arg0, %c0_i32, %c0_i32_0 : i32, i32, i32
  }
}

</mosaic_0001>

<llo_original>
// kernel: _lambda_.1
$region0: #{_lambda_.1}
  #allocation0 [shape = 'u32[]', space=smem, size = 0x4, offset = 0x4, fixed_abs, tag = 'smem constant byte address 0x4 - core index']
  #allocation1 [shape = 'u32[144,128]{1,0:T(1,128)}', space=vmem, size = 0x12000, scoped, tag = 'internal scratch']
  #allocation2 [shape = 'f32[256,128]{1,0:T(8,128)}', space=vmem, size = 0x20000, scoped, tag = 'scratch operand']
  #allocation3 [shape = 'f32[237,128]{1,0:T(8,128)}', space=vmem, size = 0x1e000, scoped, tag = 'scratch operand']
  #allocation4 [shape = 'f32[209,128]{1,0:T(8,128)}', space=vmem, size = 0x1b000, scoped, tag = 'scratch operand']
  #allocation5 [shape = 'f32[161,128]{1,0:T(8,128)}', space=vmem, size = 0x15000, scoped, tag = 'scratch operand']
  %s0 = inlined_call_operand.vmem [shape: f32[2,256,128], index: 0, kind: input, shape index: {}]
  %s1 = inlined_call_operand.vmem [shape: f32[2,256,64], index: 1, kind: input, shape index: {}]
  %s2 = inlined_call_operand.vmem [shape: f32[2,256,1], index: 2, kind: input, shape index: {}]
  %s3 = inlined_call_operand.vmem [shape: f32[2,1,128], index: 3, kind: input, shape index: {}]
  %s4 = inlined_call_operand.hbm [shape: bf16[64,128], index: 4, kind: input, shape index: {}]
  %s5 = inlined_call_operand.hbm [shape: f32[1,128], index: 5, kind: input, shape index: {}]
  %s6 = inlined_call_operand.vmem [shape: bf16[128,128], index: 6, kind: input, shape index: {}]
  %s7 = inlined_call_operand.hbm [shape: f32[1,128], index: 7, kind: input, shape index: {}]
  %s8 = inlined_call_operand.vmem [shape: bf16[8,128,128], index: 8, kind: input, shape index: {}]
  %s9 = inlined_call_operand.hbm [shape: f32[3,128], index: 9, kind: input, shape index: {}]
  %s10 = inlined_call_operand.vmem [shape: bf16[8,128,128], index: 10, kind: input, shape index: {}]
  %s11 = inlined_call_operand.vmem [shape: f32[3,128], index: 11, kind: input, shape index: {}]
  %s12 = inlined_call_operand.hbm [shape: bf16[4,128,128], index: 12, kind: input, shape index: {}]
  %s13 = inlined_call_operand.vmem [shape: f32[3,128], index: 13, kind: input, shape index: {}]
  %s14 = inlined_call_operand.hbm [shape: bf16[4,128,128], index: 14, kind: input, shape index: {}]
  %s15 = inlined_call_operand.vmem [shape: f32[3,128], index: 15, kind: input, shape index: {}]
  %s16 = inlined_call_operand.hbm [shape: f32[2,2,128], index: 16, kind: output, shape index: {}]
  %s17 = sld [smem:[#allocation0]]
  $region121: #{_lambda_.1} parent=0
    _
  %s19 = ssub.s32 1, %s17
  %s20 = scalar_select 0, %s19, %s17
  $region1: #{_lambda_.1} parent=0
    #allocation6 [shape = 'u8[16384]{0}', space=vmem, size = 0x4000, scoped, tag = 'input window, operand 4, single buffered']
    #allocation7 [shape = 's32[2]{0}', space=sflag, size = 0x8, scoped, tag = 'scoped memory for _lambda_.1']
    #allocation8 [shape = 's32[2]{0}', space=sflag, size = 0x8, scoped, tag = 'scoped memory for _lambda_.1']
    #allocation9 [shape = 'u8[512]{0}', space=vmem, size = 0x400, scoped, tag = 'input window, operand 5, single buffered']
    #allocation10 [shape = 's32[1]{0}', space=sflag, size = 0x4, scoped, tag = 'scoped memory for _lambda_.1']
    #allocation11 [shape = 'u8[512]{0}', space=vmem, size = 0x400, scoped, tag = 'input window, operand 7, single buffered']
    #allocation12 [shape = 'u8[2048]{0}', space=vmem, size = 0x800, scoped, tag = 'input window, operand 9, single buffered']
    #allocation13 [shape = 's32[1]{0}', space=sflag, size = 0x4, scoped, tag = 'scoped memory for _lambda_.1']
    #allocation14 [shape = 'u8[131072]{0}', space=vmem, size = 0x20000, scoped, tag = 'input window, operand 12, single buffered']
    #allocation15 [shape = 'u8[131072]{0}', space=vmem, size = 0x20000, scoped, tag = 'input window, operand 14, single buffered']
    #allocation16 [shape = 's32[1]{0}', space=sflag, size = 0x4, scoped, tag = 'scoped memory for _lambda_.1']
    #allocation17 [shape = 'u8[2048]{0}', space=vmem, size = 0x800, scoped, tag = 'output window, operand 0']
    %21 = vsyncpa [#allocation7], 0
    %22 = vsyncpa [#allocation10], 0
    %23 = vsyncpa [#allocation13], 0
    %24 = vsyncpa [#allocation16], 0
    %25 = vsyncpa [#allocation8], 0
    %s26 = scalar_lea.sflag [#allocation8], 1
    %27 = vsyncpa %s26, 0
    loop: start=0, step=1, limit=4
    $region2: #{_lambda_.1} parent=1 // loop_pre_header
      _
    $region3: #{_lambda_.1} parent=1 // loop_header
      %s29 = sphi 0, %s33
      %p30 = scmp.ge.s32.totalorder %s29, 4
      %s39 = sphi 0, %s41
      %s42 = sphi 0, %s39
      %s43 = sphi 0, %s42
      %s59 = sphi 0, %s43
      %s65 = sphi 0, %s67
      %s68 = sphi 0, %s65
      %s69 = sphi 0, %s68
      %s85 = sphi 0, %s69
      %s91 = sphi 0, %s93
      %s94 = sphi 0, %s91
      %s95 = sphi 0, %s94
      %s111 = sphi 0, %s95
      %s117 = sphi 0, %s119
      %s120 = sphi 0, %s117
      %s121 = sphi 0, %s120
      %s137 = sphi 0, %s121
      %s141 = sphi 0, %s141
      %s143 = sphi 0, %s141
      %s144 = sphi 0, %s143
      %s158 = sphi 0, %s144
      %s162 = sphi 0, %s162
      %s164 = sphi 0, %s162
      %s165 = sphi 0, %s164
      %s179 = sphi 0, %s165
      %s183 = sphi 0, %s183
      %s185 = sphi 0, %s183
      %s186 = sphi 0, %s185
      %s200 = sphi 0, %s186
      %s204 = sphi 0, %s204
      %s206 = sphi 0, %s204
      %s207 = sphi 0, %s206
      %s221 = sphi 0, %s207
      %s225 = sphi 0, %s225
      %s227 = sphi 0, %s225
      %s228 = sphi 0, %s227
      %s242 = sphi 0, %s228
      %s246 = sphi 0, %s246
      %s248 = sphi 0, %s246
      %s249 = sphi 0, %s248
      %s263 = sphi 0, %s249
      %s267 = sphi 0, %s267
      %s269 = sphi 0, %s267
      %s270 = sphi 0, %s269
      %s284 = sphi 0, %s270
      %s288 = sphi 0, %s288
      %s290 = sphi 0, %s288
      %s291 = sphi 0, %s290
      %s305 = sphi 0, %s291
      %s309 = sphi 0, %s309
      %s311 = sphi 0, %s309
      %s312 = sphi 0, %s311
      %s326 = sphi 0, %s312
      %s330 = sphi 0, %s330
      %s332 = sphi 0, %s330
      %s333 = sphi 0, %s332
      %s347 = sphi 0, %s333
      %s351 = sphi 0, %s351
      %s353 = sphi 0, %s351
      %s354 = sphi 0, %s353
      %s368 = sphi 0, %s354
      %s372 = sphi 0, %s372
      %s374 = sphi 0, %s372
      %s375 = sphi 0, %s374
      %s389 = sphi 0, %s375
      %s395 = sphi 0, %s397
      %s398 = sphi 0, %s395
      %s399 = sphi 0, %s398
      %s415 = sphi 0, %s399
    $region4: #{_lambda_.1} parent=1 // loop_header_branch
      %32 = sbr.rel (%p30) target = $region8
    $region5: #{_lambda_.1} parent=1 // loop_body
      %s34 = ssub.s32 %s29, 1
      %s35 = ssub.s32 %s29, 2
      %s36 = sadd.s32 %s29, 1
      %s37 = ssub.s32 %s29, %s36
      %p38 = scmp.eq.s32.totalorder %s37, 0
      %s40 = sadd.s32 %s39, 1
      %s41 = scalar_select %p38, %s39, %s40
      %p44 = pneg %p38
      %p45 = scmp.eq.s32.totalorder %s29, 1
      %p46 = por %p44, %p45
      %p47 = scmp.ne.s32.totalorder %s39, %s42
      %p48 = scmp.eq.s32.totalorder %s29, 0
      %p49 = por %p47, %p48
      %p50 = scmp.ne.s32.totalorder %s39, %s42
      %p51 = scmp.eq.s32.totalorder %s34, 1
      %p52 = por %p50, %p51
      %p53 = scmp.ne.s32.totalorder %s42, %s43
      %p54 = scmp.eq.s32.totalorder %s34, 0
      %p55 = por %p53, %p54
      %p56 = scmp.ne.s32.totalorder %s42, %s43
      %p57 = scmp.eq.s32.totalorder %s35, 1
      %p58 = por %p56, %p57
      %p60 = scmp.ne.s32.totalorder %s43, %s59
      %p61 = scmp.eq.s32.totalorder %s35, 0
      %p62 = por %p60, %p61
      %s63 = ssub.s32 %s29, %s36
      %p64 = scmp.eq.s32.totalorder %s63, 0
      %s66 = sadd.s32 %s65, 1
      %s67 = scalar_select %p64, %s65, %s66
      %p70 = pneg %p64
      %p71 = scmp.eq.s32.totalorder %s29, 1
      %p72 = por %p70, %p71
      %p73 = scmp.ne.s32.totalorder %s65, %s68
      %p74 = scmp.eq.s32.totalorder %s29, 0
      %p75 = por %p73, %p74
      %p76 = scmp.ne.s32.totalorder %s65, %s68
      %p77 = scmp.eq.s32.totalorder %s34, 1
      %p78 = por %p76, %p77
      %p79 = scmp.ne.s32.totalorder %s68, %s69
      %p80 = scmp.eq.s32.totalorder %s34, 0
      %p81 = por %p79, %p80
      %p82 = scmp.ne.s32.totalorder %s68, %s69
      %p83 = scmp.eq.s32.totalorder %s35, 1
      %p84 = por %p82, %p83
      %p86 = scmp.ne.s32.totalorder %s69, %s85
      %p87 = scmp.eq.s32.totalorder %s35, 0
      %p88 = por %p86, %p87
      %s89 = ssub.s32 %s29, %s36
      %p90 = scmp.eq.s32.totalorder %s89, 0
      %s92 = sadd.s32 %s91, 1
      %s93 = scalar_select %p90, %s91, %s92
      %p96 = pneg %p90
      %p97 = scmp.eq.s32.totalorder %s29, 1
      %p98 = por %p96, %p97
      %p99 = scmp.ne.s32.totalorder %s91, %s94
      %p100 = scmp.eq.s32.totalorder %s29, 0
      %p101 = por %p99, %p100
      %p102 = scmp.ne.s32.totalorder %s91, %s94
      %p103 = scmp.eq.s32.totalorder %s34, 1
      %p104 = por %p102, %p103
      %p105 = scmp.ne.s32.totalorder %s94, %s95
      %p106 = scmp.eq.s32.totalorder %s34, 0
      %p107 = por %p105, %p106
      %p108 = scmp.ne.s32.totalorder %s94, %s95
      %p109 = scmp.eq.s32.totalorder %s35, 1
      %p110 = por %p108, %p109
      %p112 = scmp.ne.s32.totalorder %s95, %s111
      %p113 = scmp.eq.s32.totalorder %s35, 0
      %p114 = por %p112, %p113
      %s115 = ssub.s32 %s29, %s36
      %p116 = scmp.eq.s32.totalorder %s115, 0
      %s118 = sadd.s32 %s117, 1
      %s119 = scalar_select %p116, %s117, %s118
      %p122 = pneg %p116
      %p123 = scmp.eq.s32.totalorder %s29, 1
      %p124 = por %p122, %p123
      %p125 = scmp.ne.s32.totalorder %s117, %s120
      %p126 = scmp.eq.s32.totalorder %s29, 0
      %p127 = por %p125, %p126
      %p128 = scmp.ne.s32.totalorder %s117, %s120
      %p129 = scmp.eq.s32.totalorder %s34, 1
      %p130 = por %p128, %p129
      %p131 = scmp.ne.s32.totalorder %s120, %s121
      %p132 = scmp.eq.s32.totalorder %s34, 0
      %p133 = por %p131, %p132
      %p134 = scmp.ne.s32.totalorder %s120, %s121
      %p135 = scmp.eq.s32.totalorder %s35, 1
      %p136 = por %p134, %p135
      %p138 = scmp.ne.s32.totalorder %s121, %s137
      %p139 = scmp.eq.s32.totalorder %s35, 0
      %p140 = por %p138, %p139
      %s142 = sadd.s32 %s141, 1
      %p145 = scmp.eq.s32.totalorder %s29, 1
      %p146 = scmp.ne.s32.totalorder %s141, %s143
      %p147 = scmp.eq.s32.totalorder %s29, 0
      %p148 = por %p146, %p147
      %p149 = scmp.ne.s32.totalorder %s141, %s143
      %p150 = scmp.eq.s32.totalorder %s34, 1
      %p151 = por %p149, %p150
      %p152 = scmp.ne.s32.totalorder %s143, %s144
      %p153 = scmp.eq.s32.totalorder %s34, 0
      %p154 = por %p152, %p153
      %p155 = scmp.ne.s32.totalorder %s143, %s144
      %p156 = scmp.eq.s32.totalorder %s35, 1
      %p157 = por %p155, %p156
      %p159 = scmp.ne.s32.totalorder %s144, %s158
      %p160 = scmp.eq.s32.totalorder %s35, 0
      %p161 = por %p159, %p160
      %s163 = sadd.s32 %s162, 1
      %p166 = scmp.eq.s32.totalorder %s29, 1
      %p167 = scmp.ne.s32.totalorder %s162, %s164
      %p168 = scmp.eq.s32.totalorder %s29, 0
      %p169 = por %p167, %p168
      %p170 = scmp.ne.s32.totalorder %s162, %s164
      %p171 = scmp.eq.s32.totalorder %s34, 1
      %p172 = por %p170, %p171
      %p173 = scmp.ne.s32.totalorder %s164, %s165
      %p174 = scmp.eq.s32.totalorder %s34, 0
      %p175 = por %p173, %p174
      %p176 = scmp.ne.s32.totalorder %s164, %s165
      %p177 = scmp.eq.s32.totalorder %s35, 1
      %p178 = por %p176, %p177
      %p180 = scmp.ne.s32.totalorder %s165, %s179
      %p181 = scmp.eq.s32.totalorder %s35, 0
      %p182 = por %p180, %p181
      %s184 = sadd.s32 %s183, 1
      %p187 = scmp.eq.s32.totalorder %s29, 1
      %p188 = scmp.ne.s32.totalorder %s183, %s185
      %p189 = scmp.eq.s32.totalorder %s29, 0
      %p190 = por %p188, %p189
      %p191 = scmp.ne.s32.totalorder %s183, %s185
      %p192 = scmp.eq.s32.totalorder %s34, 1
      %p193 = por %p191, %p192
      %p194 = scmp.ne.s32.totalorder %s185, %s186
      %p195 = scmp.eq.s32.totalorder %s34, 0
      %p196 = por %p194, %p195
      %p197 = scmp.ne.s32.totalorder %s185, %s186
      %p198 = scmp.eq.s32.totalorder %s35, 1
      %p199 = por %p197, %p198
      %p201 = scmp.ne.s32.totalorder %s186, %s200
      %p202 = scmp.eq.s32.totalorder %s35, 0
      %p203 = por %p201, %p202
      %s205 = sadd.s32 %s204, 1
      %p208 = scmp.eq.s32.totalorder %s29, 1
      %p209 = scmp.ne.s32.totalorder %s204, %s206
      %p210 = scmp.eq.s32.totalorder %s29, 0
      %p211 = por %p209, %p210
      %p212 = scmp.ne.s32.totalorder %s204, %s206
      %p213 = scmp.eq.s32.totalorder %s34, 1
      %p214 = por %p212, %p213
      %p215 = scmp.ne.s32.totalorder %s206, %s207
      %p216 = scmp.eq.s32.totalorder %s34, 0
      %p217 = por %p215, %p216
      %p218 = scmp.ne.s32.totalorder %s206, %s207
      %p219 = scmp.eq.s32.totalorder %s35, 1
      %p220 = por %p218, %p219
      %p222 = scmp.ne.s32.totalorder %s207, %s221
      %p223 = scmp.eq.s32.totalorder %s35, 0
      %p224 = por %p222, %p223
      %s226 = sadd.s32 %s225, 1
      %p229 = scmp.eq.s32.totalorder %s29, 1
      %p230 = scmp.ne.s32.totalorder %s225, %s227
      %p231 = scmp.eq.s32.totalorder %s29, 0
      %p232 = por %p230, %p231
      %p233 = scmp.ne.s32.totalorder %s225, %s227
      %p234 = scmp.eq.s32.totalorder %s34, 1
      %p235 = por %p233, %p234
      %p236 = scmp.ne.s32.totalorder %s227, %s228
      %p237 = scmp.eq.s32.totalorder %s34, 0
      %p238 = por %p236, %p237
      %p239 = scmp.ne.s32.totalorder %s227, %s228
      %p240 = scmp.eq.s32.totalorder %s35, 1
      %p241 = por %p239, %p240
      %p243 = scmp.ne.s32.totalorder %s228, %s242
      %p244 = scmp.eq.s32.totalorder %s35, 0
      %p245 = por %p243, %p244
      %s247 = sadd.s32 %s246, 1
      %p250 = scmp.eq.s32.totalorder %s29, 1
      %p251 = scmp.ne.s32.totalorder %s246, %s248
      %p252 = scmp.eq.s32.totalorder %s29, 0
      %p253 = por %p251, %p252
      %p254 = scmp.ne.s32.totalorder %s246, %s248
      %p255 = scmp.eq.s32.totalorder %s34, 1
      %p256 = por %p254, %p255
      %p257 = scmp.ne.s32.totalorder %s248, %s249
      %p258 = scmp.eq.s32.totalorder %s34, 0
      %p259 = por %p257, %p258
      %p260 = scmp.ne.s32.totalorder %s248, %s249
      %p261 = scmp.eq.s32.totalorder %s35, 1
      %p262 = por %p260, %p261
      %p264 = scmp.ne.s32.totalorder %s249, %s263
      %p265 = scmp.eq.s32.totalorder %s35, 0
      %p266 = por %p264, %p265
      %s268 = sadd.s32 %s267, 1
      %p271 = scmp.eq.s32.totalorder %s29, 1
      %p272 = scmp.ne.s32.totalorder %s267, %s269
      %p273 = scmp.eq.s32.totalorder %s29, 0
      %p274 = por %p272, %p273
      %p275 = scmp.ne.s32.totalorder %s267, %s269
      %p276 = scmp.eq.s32.totalorder %s34, 1
      %p277 = por %p275, %p276
      %p278 = scmp.ne.s32.totalorder %s269, %s270
      %p279 = scmp.eq.s32.totalorder %s34, 0
      %p280 = por %p278, %p279
      %p281 = scmp.ne.s32.totalorder %s269, %s270
      %p282 = scmp.eq.s32.totalorder %s35, 1
      %p283 = por %p281, %p282
      %p285 = scmp.ne.s32.totalorder %s270, %s284
      %p286 = scmp.eq.s32.totalorder %s35, 0
      %p287 = por %p285, %p286
      %s289 = sadd.s32 %s288, 1
      %p292 = scmp.eq.s32.totalorder %s29, 1
      %p293 = scmp.ne.s32.totalorder %s288, %s290
      %p294 = scmp.eq.s32.totalorder %s29, 0
      %p295 = por %p293, %p294
      %p296 = scmp.ne.s32.totalorder %s288, %s290
      %p297 = scmp.eq.s32.totalorder %s34, 1
      %p298 = por %p296, %p297
      %p299 = scmp.ne.s32.totalorder %s290, %s291
      %p300 = scmp.eq.s32.totalorder %s34, 0
      %p301 = por %p299, %p300
      %p302 = scmp.ne.s32.totalorder %s290, %s291
      %p303 = scmp.eq.s32.totalorder %s35, 1
      %p304 = por %p302, %p303
      %p306 = scmp.ne.s32.totalorder %s291, %s305
      %p307 = scmp.eq.s32.totalorder %s35, 0
      %p308 = por %p306, %p307
      %s310 = sadd.s32 %s309, 1
      %p313 = scmp.eq.s32.totalorder %s29, 1
      %p314 = scmp.ne.s32.totalorder %s309, %s311
      %p315 = scmp.eq.s32.totalorder %s29, 0
      %p316 = por %p314, %p315
      %p317 = scmp.ne.s32.totalorder %s309, %s311
      %p318 = scmp.eq.s32.totalorder %s34, 1
      %p319 = por %p317, %p318
      %p320 = scmp.ne.s32.totalorder %s311, %s312
      %p321 = scmp.eq.s32.totalorder %s34, 0
      %p322 = por %p320, %p321
      %p323 = scmp.ne.s32.totalorder %s311, %s312
      %p324 = scmp.eq.s32.totalorder %s35, 1
      %p325 = por %p323, %p324
      %p327 = scmp.ne.s32.totalorder %s312, %s326
      %p328 = scmp.eq.s32.totalorder %s35, 0
      %p329 = por %p327, %p328
      %s331 = sadd.s32 %s330, 1
      %p334 = scmp.eq.s32.totalorder %s29, 1
      %p335 = scmp.ne.s32.totalorder %s330, %s332
      %p336 = scmp.eq.s32.totalorder %s29, 0
      %p337 = por %p335, %p336
      %p338 = scmp.ne.s32.totalorder %s330, %s332
      %p339 = scmp.eq.s32.totalorder %s34, 1
      %p340 = por %p338, %p339
      %p341 = scmp.ne.s32.totalorder %s332, %s333
      %p342 = scmp.eq.s32.totalorder %s34, 0
      %p343 = por %p341, %p342
      %p344 = scmp.ne.s32.totalorder %s332, %s333
      %p345 = scmp.eq.s32.totalorder %s35, 1
      %p346 = por %p344, %p345
      %p348 = scmp.ne.s32.totalorder %s333, %s347
      %p349 = scmp.eq.s32.totalorder %s35, 0
      %p350 = por %p348, %p349
      %s352 = sadd.s32 %s351, 1
      %p355 = scmp.eq.s32.totalorder %s29, 1
      %p356 = scmp.ne.s32.totalorder %s351, %s353
      %p357 = scmp.eq.s32.totalorder %s29, 0
      %p358 = por %p356, %p357
      %p359 = scmp.ne.s32.totalorder %s351, %s353
      %p360 = scmp.eq.s32.totalorder %s34, 1
      %p361 = por %p359, %p360
      %p362 = scmp.ne.s32.totalorder %s353, %s354
      %p363 = scmp.eq.s32.totalorder %s34, 0
      %p364 = por %p362, %p363
      %p365 = scmp.ne.s32.totalorder %s353, %s354
      %p366 = scmp.eq.s32.totalorder %s35, 1
      %p367 = por %p365, %p366
      %p369 = scmp.ne.s32.totalorder %s354, %s368
      %p370 = scmp.eq.s32.totalorder %s35, 0
      %p371 = por %p369, %p370
      %s373 = sadd.s32 %s372, 1
      %p376 = scmp.eq.s32.totalorder %s29, 1
      %p377 = scmp.ne.s32.totalorder %s372, %s374
      %p378 = scmp.eq.s32.totalorder %s29, 0
      %p379 = por %p377, %p378
      %p380 = scmp.ne.s32.totalorder %s372, %s374
      %p381 = scmp.eq.s32.totalorder %s34, 1
      %p382 = por %p380, %p381
      %p383 = scmp.ne.s32.totalorder %s374, %s375
      %p384 = scmp.eq.s32.totalorder %s34, 0
      %p385 = por %p383, %p384
      %p386 = scmp.ne.s32.totalorder %s374, %s375
      %p387 = scmp.eq.s32.totalorder %s35, 1
      %p388 = por %p386, %p387
      %p390 = scmp.ne.s32.totalorder %s375, %s389
      %p391 = scmp.eq.s32.totalorder %s35, 0
      %p392 = por %p390, %p391
      %s393 = ssub.s32 %s29, %s36
      %p394 = scmp.eq.s32.totalorder %s393, 0
      %s396 = sadd.s32 %s395, 1
      %s397 = scalar_select %p394, %s395, %s396
      %p400 = pneg %p394
      %p401 = scmp.eq.s32.totalorder %s29, 1
      %p402 = por %p400, %p401
      %p403 = scmp.ne.s32.totalorder %s395, %s398
      %p404 = scmp.eq.s32.totalorder %s29, 0
      %p405 = por %p403, %p404
      %p406 = scmp.ne.s32.totalorder %s395, %s398
      %p407 = scmp.eq.s32.totalorder %s34, 1
      %p408 = por %p406, %p407
      %p409 = scmp.ne.s32.totalorder %s398, %s399
      %p410 = scmp.eq.s32.totalorder %s34, 0
      %p411 = por %p409, %p410
      %p412 = scmp.ne.s32.totalorder %s398, %s399
      %p413 = scmp.eq.s32.totalorder %s35, 1
      %p414 = por %p412, %p413
      %p416 = scmp.ne.s32.totalorder %s399, %s415
      %p417 = scmp.eq.s32.totalorder %s35, 0
      %p418 = por %p416, %p417
      %p419 = scmp.le.s32.totalorder 1, %s29
      %p420 = scmp.lt.s32.totalorder %s29, 3
      %p421 = pnand %p419, %p420
      %p422 = pneg %p421
      // Predicated region
      $region9: #{_lambda_.1} parent=5 // pred_check
        _
      $region10: #{_lambda_.1} parent=5 // pred_check_branch
        %424 = sbr.rel (%p421) target = $region12
      $region11: #{_lambda_.1} parent=5 // pred_region
        %s425 = ssub.s32 %s29, 1
        // Predicated region
        $region13: #{_lambda_.1} parent=11 // pred_check
          %p426 = pneg %p154
        $region14: #{_lambda_.1} parent=11 // pred_check_branch
          %428 = sbr.rel (%p426) target = $region16
        $region15: #{_lambda_.1} parent=11 // pred_region
          %s430 = ssub.s32 512, 512
          %431 = vsyncadd [#allocation7], %s430
          %s432 = sshll.u32 [#allocation6], 4
          %s433 = int_to_ptr.vmem [resolvable:$true] %s432
          %438 = dma.hbm_to_vmem [thread:$0]  %s4, 512, %s433, [#allocation7], 64, 64, 4
        $region16: #{_lambda_.1} parent=11 // pred_fallthru
          _
        // Predicated region
        $region17: #{_lambda_.1} parent=11 // pred_check
          %p439 = pneg %p175
        $region18: #{_lambda_.1} parent=11 // pred_check_branch
          %441 = sbr.rel (%p439) target = $region20
        $region19: #{_lambda_.1} parent=11 // pred_region
          %s443 = ssub.s32 16, 16
          %444 = vsyncadd [#allocation10], %s443
          %s446 = sshll.u32 [#allocation9], 4
          %s447 = int_to_ptr.vmem [resolvable:$true] %s446
          %449 = dma.hbm_to_vmem [thread:$0]  %s5, 16, %s447, [#allocation10]
        $region20: #{_lambda_.1} parent=11 // pred_fallthru
          _
        // Predicated region
        $region21: #{_lambda_.1} parent=11 // pred_check
          %p450 = pneg %p196
        $region22: #{_lambda_.1} parent=11 // pred_check_branch
          %452 = sbr.rel (%p450) target = $region24
        $region23: #{_lambda_.1} parent=11 // pred_region
          _
        $region24: #{_lambda_.1} parent=11 // pred_fallthru
          _
        // Predicated region
        $region25: #{_lambda_.1} parent=11 // pred_check
          %p453 = pneg %p217
        $region26: #{_lambda_.1} parent=11 // pred_check_branch
          %455 = sbr.rel (%p453) target = $region28
        $region27: #{_lambda_.1} parent=11 // pred_region
          %s457 = ssub.s32 16, 16
          %458 = vsyncadd [#allocation10], %s457
          %s460 = sshll.u32 [#allocation11], 4
          %s461 = int_to_ptr.vmem [resolvable:$true] %s460
          %463 = dma.hbm_to_vmem [thread:$0]  %s7, 16, %s461, [#allocation10]
        $region28: #{_lambda_.1} parent=11 // pred_fallthru
          _
        // Predicated region
        $region29: #{_lambda_.1} parent=11 // pred_check
          %p464 = pneg %p238
        $region30: #{_lambda_.1} parent=11 // pred_check_branch
          %466 = sbr.rel (%p464) target = $region32
        $region31: #{_lambda_.1} parent=11 // pred_region
          _
        $region32: #{_lambda_.1} parent=11 // pred_fallthru
          _
        // Predicated region
        $region33: #{_lambda_.1} parent=11 // pred_check
          %p467 = pneg %p259
        $region34: #{_lambda_.1} parent=11 // pred_check_branch
          %469 = sbr.rel (%p467) target = $region36
        $region35: #{_lambda_.1} parent=11 // pred_region
          %s471 = ssub.s32 64, 64
          %472 = vsyncadd [#allocation13], %s471
          %s474 = sshll.u32 [#allocation12], 4
          %s475 = int_to_ptr.vmem [resolvable:$true] %s474
          %477 = dma.hbm_to_vmem [thread:$0]  %s9, 64, %s475, [#allocation13]
        $region36: #{_lambda_.1} parent=11 // pred_fallthru
          _
        // Predicated region
        $region37: #{_lambda_.1} parent=11 // pred_check
          %p478 = pneg %p280
        $region38: #{_lambda_.1} parent=11 // pred_check_branch
          %480 = sbr.rel (%p478) target = $region40
        $region39: #{_lambda_.1} parent=11 // pred_region
          _
        $region40: #{_lambda_.1} parent=11 // pred_fallthru
          _
        // Predicated region
        $region41: #{_lambda_.1} parent=11 // pred_check
          %p481 = pneg %p301
        $region42: #{_lambda_.1} parent=11 // pred_check_branch
          %483 = sbr.rel (%p481) target = $region44
        $region43: #{_lambda_.1} parent=11 // pred_region
          _
        $region44: #{_lambda_.1} parent=11 // pred_fallthru
          _
        // Predicated region
        $region45: #{_lambda_.1} parent=11 // pred_check
          %p484 = pneg %p322
        $region46: #{_lambda_.1} parent=11 // pred_check_branch
          %486 = sbr.rel (%p484) target = $region48
        $region47: #{_lambda_.1} parent=11 // pred_region
          %s488 = ssub.s32 4096, 4096
          %489 = vsyncadd [#allocation13], %s488
          %s490 = sshll.u32 [#allocation14], 4
          %s491 = int_to_ptr.vmem [resolvable:$true] %s490
          %496 = dma.hbm_to_vmem [thread:$0]  %s12, 4096, %s491, [#allocation13], 64, 64, 4
        $region48: #{_lambda_.1} parent=11 // pred_fallthru
          _
        // Predicated region
        $region49: #{_lambda_.1} parent=11 // pred_check
          %p497 = pneg %p343
        $region50: #{_lambda_.1} parent=11 // pred_check_branch
          %499 = sbr.rel (%p497) target = $region52
        $region51: #{_lambda_.1} parent=11 // pred_region
          _
        $region52: #{_lambda_.1} parent=11 // pred_fallthru
          _
        // Predicated region
        $region53: #{_lambda_.1} parent=11 // pred_check
          %p500 = pneg %p364
        $region54: #{_lambda_.1} parent=11 // pred_check_branch
          %502 = sbr.rel (%p500) target = $region56
        $region55: #{_lambda_.1} parent=11 // pred_region
          %s504 = ssub.s32 4096, 4096
          %505 = vsyncadd [#allocation16], %s504
          %s506 = sshll.u32 [#allocation15], 4
          %s507 = int_to_ptr.vmem [resolvable:$true] %s506
          %512 = dma.hbm_to_vmem [thread:$0]  %s14, 4096, %s507, [#allocation16], 64, 64, 4
        $region56: #{_lambda_.1} parent=11 // pred_fallthru
          _
        // Predicated region
        $region57: #{_lambda_.1} parent=11 // pred_check
          %p513 = pneg %p385
        $region58: #{_lambda_.1} parent=11 // pred_check_branch
          %515 = sbr.rel (%p513) target = $region60
        $region59: #{_lambda_.1} parent=11 // pred_region
          _
        $region60: #{_lambda_.1} parent=11 // pred_fallthru
          _
      $region12: #{_lambda_.1} parent=5 // pred_fallthru
        _
      %p516 = scmp.lt.s32.totalorder %s29, 2
      // Predicated region
      $region61: #{_lambda_.1} parent=5 // pred_check
        %p517 = pneg %p516
      $region62: #{_lambda_.1} parent=5 // pred_check_branch
        %519 = sbr.rel (%p517) target = $region64
      $region63: #{_lambda_.1} parent=5 // pred_region
        // Predicated region
        $region65: #{_lambda_.1} parent=63 // pred_check
          %p520 = pneg %p49
        $region66: #{_lambda_.1} parent=63 // pred_check_branch
          %522 = sbr.rel (%p520) target = $region68
        $region67: #{_lambda_.1} parent=63 // pred_region
          %p523 = scmp.lt.s32.totalorder %s29, 1
          %s524 = scalar_select %p523, %s29, 1
          %s525 = smul.addr %s524, 32
          %s526 = smul.addr %s525, 8
          %s527 = scalar_lea.vmem %s0, %s526
        $region68: #{_lambda_.1} parent=63 // pred_fallthru
          _
        // Predicated region
        $region69: #{_lambda_.1} parent=63 // pred_check
          %p528 = pneg %p75
        $region70: #{_lambda_.1} parent=63 // pred_check_branch
          %530 = sbr.rel (%p528) target = $region72
        $region71: #{_lambda_.1} parent=63 // pred_region
          %p531 = scmp.lt.s32.totalorder %s29, 1
          %s532 = scalar_select %p531, %s29, 1
          %s533 = smul.addr %s532, 32
          %s534 = smul.addr %s533, 8
          %s535 = scalar_lea.vmem %s1, %s534
        $region72: #{_lambda_.1} parent=63 // pred_fallthru
          _
        // Predicated region
        $region73: #{_lambda_.1} parent=63 // pred_check
          %p536 = pneg %p101
        $region74: #{_lambda_.1} parent=63 // pred_check_branch
          %538 = sbr.rel (%p536) target = $region76
        $region75: #{_lambda_.1} parent=63 // pred_region
          %p539 = scmp.lt.s32.totalorder %s29, 1
          %s540 = scalar_select %p539, %s29, 1
          %s541 = smul.addr %s540, 32
          %s542 = smul.addr %s541, 8
          %s543 = scalar_lea.vmem %s2, %s542
        $region76: #{_lambda_.1} parent=63 // pred_fallthru
          _
        // Predicated region
        $region77: #{_lambda_.1} parent=63 // pred_check
          %p544 = pneg %p127
        $region78: #{_lambda_.1} parent=63 // pred_check_branch
          %546 = sbr.rel (%p544) target = $region80
        $region79: #{_lambda_.1} parent=63 // pred_region
          %p547 = scmp.lt.s32.totalorder %s29, 1
          %s548 = scalar_select %p547, %s29, 1
          %s549 = scalar_lea.vmem %s3, %s548
        $region80: #{_lambda_.1} parent=63 // pred_fallthru
          _
      $region64: #{_lambda_.1} parent=5 // pred_fallthru
        _
      %p550 = scmp.le.s32.totalorder 1, %s29
      %p551 = scmp.lt.s32.totalorder %s29, 3
      %p552 = pnand %p550, %p551
      %p553 = pneg %p552
      // Predicated region
      $region81: #{_lambda_.1} parent=5 // pred_check
        _
      $region82: #{_lambda_.1} parent=5 // pred_check_branch
        %555 = sbr.rel (%p552) target = $region84
      $region83: #{_lambda_.1} parent=5 // pred_region
        %s556 = ssub.s32 %s29, 1
        // Predicated region
        $region85: #{_lambda_.1} parent=83 // pred_check
          %p557 = pneg %p154
        $region86: #{_lambda_.1} parent=83 // pred_check_branch
          %559 = sbr.rel (%p557) target = $region88
        $region87: #{_lambda_.1} parent=83 // pred_region
          %560 = dma.done [#allocation7], 512
        $region88: #{_lambda_.1} parent=83 // pred_fallthru
          _
        // Predicated region
        $region89: #{_lambda_.1} parent=83 // pred_check
          %p561 = pneg %p175
        $region90: #{_lambda_.1} parent=83 // pred_check_branch
          %563 = sbr.rel (%p561) target = $region92
        $region91: #{_lambda_.1} parent=83 // pred_region
          %564 = dma.done [#allocation10], 16
        $region92: #{_lambda_.1} parent=83 // pred_fallthru
          _
        // Predicated region
        $region93: #{_lambda_.1} parent=83 // pred_check
          %p565 = pneg %p217
        $region94: #{_lambda_.1} parent=83 // pred_check_branch
          %567 = sbr.rel (%p565) target = $region96
        $region95: #{_lambda_.1} parent=83 // pred_region
          %568 = dma.done [#allocation10], 16
        $region96: #{_lambda_.1} parent=83 // pred_fallthru
          _
        // Predicated region
        $region97: #{_lambda_.1} parent=83 // pred_check
          %p569 = pneg %p259
        $region98: #{_lambda_.1} parent=83 // pred_check_branch
          %571 = sbr.rel (%p569) target = $region100
        $region99: #{_lambda_.1} parent=83 // pred_region
          %572 = dma.done [#allocation13], 64
        $region100: #{_lambda_.1} parent=83 // pred_fallthru
          _
        // Predicated region
        $region101: #{_lambda_.1} parent=83 // pred_check
          %p573 = pneg %p322
        $region102: #{_lambda_.1} parent=83 // pred_check_branch
          %575 = sbr.rel (%p573) target = $region104
        $region103: #{_lambda_.1} parent=83 // pred_region
          %576 = dma.done [#allocation13], 4096
        $region104: #{_lambda_.1} parent=83 // pred_fallthru
          _
        // Predicated region
        $region105: #{_lambda_.1} parent=83 // pred_check
          %p577 = pneg %p364
        $region106: #{_lambda_.1} parent=83 // pred_check_branch
          %579 = sbr.rel (%p577) target = $region108
        $region107: #{_lambda_.1} parent=83 // pred_region
          %580 = dma.done [#allocation16], 4096
        $region108: #{_lambda_.1} parent=83 // pred_fallthru
          _
        %p581 = scmp.lt.s32.totalorder %s34, 1
        %s582 = scalar_select %p581, %s34, 1
        %s583 = smul.addr %s582, 32
        %s584 = smul.addr %s583, 8
        %s585 = scalar_lea.vmem %s0, %s584
        %p586 = pneg %p55
        %p587 = pneg %p52
        %p588 = scmp.lt.s32.totalorder %s34, 1
        %s589 = scalar_select %p588, %s34, 1
        %s590 = smul.addr %s589, 32
        %s591 = smul.addr %s590, 8
        %s592 = scalar_lea.vmem %s1, %s591
        %p593 = pneg %p81
        %p594 = pneg %p78
        %p595 = scmp.lt.s32.totalorder %s34, 1
        %s596 = scalar_select %p595, %s34, 1
        %s597 = smul.addr %s596, 32
        %s598 = smul.addr %s597, 8
        %s599 = scalar_lea.vmem %s2, %s598
        %p600 = pneg %p107
        %p601 = pneg %p104
        %p602 = scmp.lt.s32.totalorder %s34, 1
        %s603 = scalar_select %p602, %s34, 1
        %s604 = scalar_lea.vmem %s3, %s603
        %p605 = pneg %p133
        %p606 = pneg %p130
        %p607 = pneg %p154
        %p608 = pneg %p151
        %p609 = pneg %p175
        %p610 = pneg %p172
        %p611 = pneg %p196
        %p612 = pneg %p193
        %p613 = pneg %p217
        %p614 = pneg %p214
        %p615 = pneg %p238
        %p616 = pneg %p235
        %p617 = pneg %p259
        %p618 = pneg %p256
        %p619 = pneg %p280
        %p620 = pneg %p277
        %p621 = pneg %p301
        %p622 = pneg %p298
        %p623 = pneg %p322
        %p624 = pneg %p319
        %p625 = pneg %p343
        %p626 = pneg %p340
        %p627 = pneg %p364
        %p628 = pneg %p361
        %p629 = pneg %p385
        %p630 = pneg %p382
        %p631 = pneg %p411
        %p632 = pneg %p408
        %s633 = sand.u32 %s398, 1
        %s634 = scalar_lea.sflag [#allocation8], %s633
        %s635 = sand.u32 %s398, 1
        %s636 = smul.addr %s635, 2
        %s637 = scalar_lea.vmem [#allocation17], %s636
        %p638 = scmp.lt.s32.totalorder %s34, 1
        %s639 = scalar_select %p638, %s34, 1
        %s640 = smul.addr %s639, 32
        %s641 = smul.addr %s640, 8
        %s642 = scalar_lea.vmem %s0, %s641
        %p643 = scmp.lt.s32.totalorder %s34, 1
        %s644 = scalar_select %p643, %s34, 1
        %s645 = smul.addr %s644, 32
        %s646 = smul.addr %s645, 8
        %s647 = scalar_lea.vmem %s1, %s646
        %p648 = scmp.lt.s32.totalorder %s34, 1
        %s649 = scalar_select %p648, %s34, 1
        %s650 = smul.addr %s649, 32
        %s651 = smul.addr %s650, 8
        %s652 = scalar_lea.vmem %s2, %s651
        %p653 = scmp.lt.s32.totalorder %s34, 1
        %s654 = scalar_select %p653, %s34, 1
        %s655 = scalar_lea.vmem %s3, %s654
        %v657 = vld [vmem:[%s647] sm:$0xff]
        %v658 = vld [vmem:[%s647 + $0x8] sm:$0xff]
        %v659 = vld [vmem:[%s647 + $0x10] sm:$0xff]
        %v660 = vld [vmem:[%s647 + $0x18] sm:$0xff]
        %v661 = vld [vmem:[%s647 + $0x20] sm:$0xff]
        %v662 = vld [vmem:[%s647 + $0x28] sm:$0xff]
        %v663 = vld [vmem:[%s647 + $0x30] sm:$0xff]
        %v664 = vld [vmem:[%s647 + $0x38] sm:$0xff]
        %v665 = vld [vmem:[%s647 + $0x40] sm:$0xff]
        %v666 = vld [vmem:[%s647 + $0x48] sm:$0xff]
        %v667 = vld [vmem:[%s647 + $0x50] sm:$0xff]
        %v668 = vld [vmem:[%s647 + $0x58] sm:$0xff]
        %v669 = vld [vmem:[%s647 + $0x60] sm:$0xff]
        %v670 = vld [vmem:[%s647 + $0x68] sm:$0xff]
        %v671 = vld [vmem:[%s647 + $0x70] sm:$0xff]
        %v672 = vld [vmem:[%s647 + $0x78] sm:$0xff]
        %v673 = vld [vmem:[%s647 + $0x80] sm:$0xff]
        %v674 = vld [vmem:[%s647 + $0x88] sm:$0xff]
        %v675 = vld [vmem:[%s647 + $0x90] sm:$0xff]
        %v676 = vld [vmem:[%s647 + $0x98] sm:$0xff]
        %v677 = vld [vmem:[%s647 + $0xa0] sm:$0xff]
        %v678 = vld [vmem:[%s647 + $0xa8] sm:$0xff]
        %v679 = vld [vmem:[%s647 + $0xb0] sm:$0xff]
        %v680 = vld [vmem:[%s647 + $0xb8] sm:$0xff]
        %v681 = vld [vmem:[%s647 + $0xc0] sm:$0xff]
        %v682 = vld [vmem:[%s647 + $0xc8] sm:$0xff]
        %v683 = vld [vmem:[%s647 + $0xd0] sm:$0xff]
        %v684 = vld [vmem:[%s647 + $0xd8] sm:$0xff]
        %v685 = vld [vmem:[%s647 + $0xe0] sm:$0xff]
        %v686 = vld [vmem:[%s647 + $0xe8] sm:$0xff]
        %v687 = vld [vmem:[%s647 + $0xf0] sm:$0xff]
        %v688 = vld [vmem:[%s647 + $0xf8] sm:$0xff]
        %v689 = vpack.c.bf16 %v658, %v657
        %v690 = vpack.c.bf16 %v660, %v659
        %v691 = vpack.c.bf16 %v662, %v661
        %v692 = vpack.c.bf16 %v664, %v663
        %v693 = vpack.c.bf16 %v666, %v665
        %v694 = vpack.c.bf16 %v668, %v667
        %v695 = vpack.c.bf16 %v670, %v669
        %v696 = vpack.c.bf16 %v672, %v671
        %v697 = vpack.c.bf16 %v674, %v673
        %v698 = vpack.c.bf16 %v676, %v675
        %v699 = vpack.c.bf16 %v678, %v677
        %v700 = vpack.c.bf16 %v680, %v679
        %v701 = vpack.c.bf16 %v682, %v681
        %v702 = vpack.c.bf16 %v684, %v683
        %v703 = vpack.c.bf16 %v686, %v685
        %v704 = vpack.c.bf16 %v688, %v687
        %v705 = vld [vmem:[#allocation6] sm:$0xf]
        %v706 = vld [vmem:[#allocation6 + $0x4] sm:$0xf]
        %v707 = vld [vmem:[#allocation6 + $0x8] sm:$0xf]
        %v708 = vld [vmem:[#allocation6 + $0xc] sm:$0xf]
        %v709 = vld [vmem:[#allocation6 + $0x10] sm:$0xf]
        %v710 = vld [vmem:[#allocation6 + $0x14] sm:$0xf]
        %v711 = vld [vmem:[#allocation6 + $0x18] sm:$0xf]
        %v712 = vld [vmem:[#allocation6 + $0x1c] sm:$0xf]
        %v713 = vld [vmem:[#allocation9] sm:$0x1]
        %v715 = vlaneseq
        %v716 = vshrl.u32 %v715, 7
        %v717 = vsub.s32 0, %v716
        %v718 = vrot.slane %v713, %v717
        %v728 = vunpack.c.l.b16 %v705
        %v729 = vunpack.c.l.b16 %v706
        %v730 = vunpack.c.l.b16 %v707
        %v731 = vunpack.c.l.b16 %v708
        %v732 = vunpack.c.l.b16 %v709
        %v733 = vunpack.c.l.b16 %v710
        %v734 = vunpack.c.l.b16 %v711
        %v735 = vunpack.c.l.b16 %v712
        %v736 = vpack.c.b16 %v729, %v728
        %v737 = vpack.c.b16 %v731, %v730
        %v738 = vpack.c.b16 %v733, %v732
        %v739 = vpack.c.b16 %v735, %v734
        %vm744 = vcmask 523264
        %v746 = vsel %vm744, %v689, 0
        %v749 = vsel %vm744, %v690, 0
        %v752 = vsel %vm744, %v691, 0
        %v755 = vsel %vm744, %v692, 0
        %v758 = vsel %vm744, %v693, 0
        %v761 = vsel %vm744, %v694, 0
        %v764 = vsel %vm744, %v695, 0
        %v767 = vsel %vm744, %v696, 0
        %v770 = vsel %vm744, %v697, 0
        %v773 = vsel %vm744, %v698, 0
        %v776 = vsel %vm744, %v699, 0
        %v779 = vsel %vm744, %v700, 0
        %v782 = vsel %vm744, %v701, 0
        %v785 = vsel %vm744, %v702, 0
        %v788 = vsel %vm744, %v703, 0
        %v791 = vsel %vm744, %v704, 0
        %793 = vmatprep.subr.bf16.mxu0 0
        %794 = vmatpush1.bf16.msra.mxu0 %v736
        %795 = vmatprep.subr.bf16.mxu0 0
        %796 = vmatpush1.bf16.msra.mxu0 %v737
        %797 = vmatprep.subr.bf16.mxu0 0
        %798 = vmatpush1.bf16.msra.mxu0 %v738
        %799 = vmatprep.subr.bf16.mxu0 0
        %800 = vmatpush1.bf16.msra.mxu0 %v739
        %801 = vmatprep.subr.bf16.mxu0 0
        %802 = vmatpush1.bf16.msra.mxu0 0
        %803 = vmatprep.subr.bf16.mxu0 0
        %804 = vmatpush1.bf16.msra.mxu0 0
        %805 = vmatprep.subr.bf16.mxu0 0
        %806 = vmatpush1.bf16.msra.mxu0 0
        %807 = vmatprep.subr.bf16.mxu0 0
        %808 = vmatpush1.bf16.msra.mxu0 0
        %809 = vmatprep.subr.bf16.mxu0 0
        %810 = vmatpush1.bf16.msra.mxu0 0
        %811 = vmatprep.subr.bf16.mxu0 0
        %812 = vmatpush1.bf16.msra.mxu0 0
        %813 = vmatprep.subr.bf16.mxu0 0
        %814 = vmatpush1.bf16.msra.mxu0 0
        %815 = vmatprep.subr.bf16.mxu0 0
        %816 = vmatpush1.bf16.msra.mxu0 0
        %817 = vmatprep.subr.bf16.mxu0 0
        %818 = vmatpush1.bf16.msra.mxu0 0
        %819 = vmatprep.subr.bf16.mxu0 0
        %820 = vmatpush1.bf16.msra.mxu0 0
        %821 = vmatprep.subr.bf16.mxu0 0
        %822 = vmatpush1.bf16.msra.mxu0 0
        %823 = vmatprep.subr.bf16.mxu0 0
        %824 = vmatpush1.bf16.msra.mxu0 0
        %825 = vmatprep.mubr.bf16.mxu0 0
        %826 = vmatmul.mubr.bf16.gmra.mrb[0].mxu0 %v746
        %v827 = vpop.f32.mrb[0].mxu0
        %v828 = vadd.f32 %v718, %v827
        %v829 = vpop.f32.mrb[0].mxu0
        %v830 = vpop.f32.mrb[0].mxu0
        %v831 = vadd.f32 %v718, %v830
        %v832 = vpop.f32.mrb[0].mxu0
        %833 = vmatprep.mubr.bf16.mxu0 0
        %834 = vmatmul.mubr.bf16.gmra.mrb[0].mxu0 %v749
        %v835 = vpop.f32.mrb[0].mxu0
        %v836 = vadd.f32 %v718, %v835
        %v837 = vpop.f32.mrb[0].mxu0
        %v838 = vpop.f32.mrb[0].mxu0
        %v839 = vadd.f32 %v718, %v838
        %v840 = vpop.f32.mrb[0].mxu0
        %841 = vmatprep.mubr.bf16.mxu0 0
        %842 = vmatmul.mubr.bf16.gmra.mrb[0].mxu0 %v752
        %v843 = vpop.f32.mrb[0].mxu0
        %v844 = vadd.f32 %v718, %v843
        %v845 = vpop.f32.mrb[0].mxu0
        %v846 = vpop.f32.mrb[0].mxu0
        %v847 = vadd.f32 %v718, %v846
        %v848 = vpop.f32.mrb[0].mxu0
        %849 = vmatprep.mubr.bf16.mxu0 0
        %850 = vmatmul.mubr.bf16.gmra.mrb[0].mxu0 %v755
        %v851 = vpop.f32.mrb[0].mxu0
        %v852 = vadd.f32 %v718, %v851
        %v853 = vpop.f32.mrb[0].mxu0
        %v854 = vpop.f32.mrb[0].mxu0
        %v855 = vadd.f32 %v718, %v854
        %v856 = vpop.f32.mrb[0].mxu0
        %857 = vmatprep.mubr.bf16.mxu0 0
        %858 = vmatmul.mubr.bf16.gmra.mrb[0].mxu0 %v758
        %v859 = vpop.f32.mrb[0].mxu0
        %v860 = vadd.f32 %v718, %v859
        %v861 = vpop.f32.mrb[0].mxu0
        %v862 = vpop.f32.mrb[0].mxu0
        %v863 = vadd.f32 %v718, %v862
        %v864 = vpop.f32.mrb[0].mxu0
        %865 = vmatprep.mubr.bf16.mxu0 0
        %866 = vmatmul.mubr.bf16.gmra.mrb[0].mxu0 %v761
        %v867 = vpop.f32.mrb[0].mxu0
        %v868 = vadd.f32 %v718, %v867
        %v869 = vpop.f32.mrb[0].mxu0
        %v870 = vpop.f32.mrb[0].mxu0
        %v871 = vadd.f32 %v718, %v870
        %v872 = vpop.f32.mrb[0].mxu0
        %873 = vmatprep.mubr.bf16.mxu0 0
        %874 = vmatmul.mubr.bf16.gmra.mrb[0].mxu0 %v764
        %v875 = vpop.f32.mrb[0].mxu0
        %v876 = vadd.f32 %v718, %v875
        %v877 = vpop.f32.mrb[0].mxu0
        %v878 = vpop.f32.mrb[0].mxu0
        %v879 = vadd.f32 %v718, %v878
        %v880 = vpop.f32.mrb[0].mxu0
        %881 = vmatprep.mubr.bf16.mxu0 0
        %882 = vmatmul.mubr.bf16.gmra.mrb[0].mxu0 %v767
        %v883 = vpop.f32.mrb[0].mxu0
        %v884 = vadd.f32 %v718, %v883
        %v885 = vpop.f32.mrb[0].mxu0
        %v886 = vpop.f32.mrb[0].mxu0
        %v887 = vadd.f32 %v718, %v886
        %v888 = vpop.f32.mrb[0].mxu0
        %889 = vmatprep.mubr.bf16.mxu0 0
        %890 = vmatmul.mubr.bf16.gmra.mrb[0].mxu0 %v770
        %v891 = vpop.f32.mrb[0].mxu0
        %v892 = vadd.f32 %v718, %v891
        %v893 = vpop.f32.mrb[0].mxu0
        %v894 = vpop.f32.mrb[0].mxu0
        %v895 = vadd.f32 %v718, %v894
        %v896 = vpop.f32.mrb[0].mxu0
        %897 = vmatprep.mubr.bf16.mxu0 0
        %898 = vmatmul.mubr.bf16.gmra.mrb[0].mxu0 %v773
        %v899 = vpop.f32.mrb[0].mxu0
        %v900 = vadd.f32 %v718, %v899
        %v901 = vpop.f32.mrb[0].mxu0
        %v902 = vpop.f32.mrb[0].mxu0
        %v903 = vadd.f32 %v718, %v902
        %v904 = vpop.f32.mrb[0].mxu0
        %905 = vmatprep.mubr.bf16.mxu0 0
        %906 = vmatmul.mubr.bf16.gmra.mrb[0].mxu0 %v776
        %v907 = vpop.f32.mrb[0].mxu0
        %v908 = vadd.f32 %v718, %v907
        %v909 = vpop.f32.mrb[0].mxu0
        %v910 = vpop.f32.mrb[0].mxu0
        %v911 = vadd.f32 %v718, %v910
        %v912 = vpop.f32.mrb[0].mxu0
        %913 = vmatprep.mubr.bf16.mxu0 0
        %914 = vmatmul.mubr.bf16.gmra.mrb[0].mxu0 %v779
        %v915 = vpop.f32.mrb[0].mxu0
        %v916 = vadd.f32 %v718, %v915
        %v917 = vpop.f32.mrb[0].mxu0
        %v918 = vpop.f32.mrb[0].mxu0
        %v919 = vadd.f32 %v718, %v918
        %v920 = vpop.f32.mrb[0].mxu0
        %921 = vmatprep.mubr.bf16.mxu0 0
        %922 = vmatmul.mubr.bf16.gmra.mrb[0].mxu0 %v782
        %v923 = vpop.f32.mrb[0].mxu0
        %v924 = vadd.f32 %v718, %v923
        %v925 = vpop.f32.mrb[0].mxu0
        %v926 = vpop.f32.mrb[0].mxu0
        %v927 = vadd.f32 %v718, %v926
        %v928 = vpop.f32.mrb[0].mxu0
        %929 = vmatprep.mubr.bf16.mxu0 0
        %930 = vmatmul.mubr.bf16.gmra.mrb[0].mxu0 %v785
        %v931 = vpop.f32.mrb[0].mxu0
        %v932 = vadd.f32 %v718, %v931
        %v933 = vpop.f32.mrb[0].mxu0
        %v934 = vpop.f32.mrb[0].mxu0
        %v935 = vadd.f32 %v718, %v934
        %v936 = vpop.f32.mrb[0].mxu0
        %937 = vmatprep.mubr.bf16.mxu0 0
        %938 = vmatmul.mubr.bf16.gmra.mrb[0].mxu0 %v788
        %v939 = vpop.f32.mrb[0].mxu0
        %v940 = vadd.f32 %v718, %v939
        %v941 = vpop.f32.mrb[0].mxu0
        %v942 = vpop.f32.mrb[0].mxu0
        %v943 = vadd.f32 %v718, %v942
        %v944 = vpop.f32.mrb[0].mxu0
        %945 = vmatprep.mubr.bf16.mxu0 0
        %946 = vmatmul.mubr.bf16.gmra.mrb[0].mxu0 %v791
        %v947 = vpop.f32.mrb[0].mxu0
        %v948 = vadd.f32 %v718, %v947
        %v949 = vpop.f32.mrb[0].mxu0
        %v950 = vpop.f32.mrb[0].mxu0
        %v951 = vadd.f32 %v718, %v950
        %v952 = vpop.f32.mrb[0].mxu0
        %953 = vdwg.mxu0
        %vm954 = vcmp.ge.f32.partialorder %v828, 0.0
        %vm955 = vcmp.ge.f32.partialorder %v831, 0.0
        %vm956 = vcmp.ge.f32.partialorder %v836, 0.0
        %vm957 = vcmp.ge.f32.partialorder %v839, 0.0
        %vm958 = vcmp.ge.f32.partialorder %v844, 0.0
        %vm959 = vcmp.ge.f32.partialorder %v847, 0.0
        %vm960 = vcmp.ge.f32.partialorder %v852, 0.0
        %vm961 = vcmp.ge.f32.partialorder %v855, 0.0
        %vm962 = vcmp.ge.f32.partialorder %v860, 0.0
        %vm963 = vcmp.ge.f32.partialorder %v863, 0.0
        %vm964 = vcmp.ge.f32.partialorder %v868, 0.0
        %vm965 = vcmp.ge.f32.partialorder %v871, 0.0
        %vm966 = vcmp.ge.f32.partialorder %v876, 0.0
        %vm967 = vcmp.ge.f32.partialorder %v879, 0.0
        %vm968 = vcmp.ge.f32.partialorder %v884, 0.0
        %vm969 = vcmp.ge.f32.partialorder %v887, 0.0
        %vm970 = vcmp.ge.f32.partialorder %v892, 0.0
        %vm971 = vcmp.ge.f32.partialorder %v895, 0.0
        %vm972 = vcmp.ge.f32.partialorder %v900, 0.0
        %vm973 = vcmp.ge.f32.partialorder %v903, 0.0
        %vm974 = vcmp.ge.f32.partialorder %v908, 0.0
        %vm975 = vcmp.ge.f32.partialorder %v911, 0.0
        %vm976 = vcmp.ge.f32.partialorder %v916, 0.0
        %vm977 = vcmp.ge.f32.partialorder %v919, 0.0
        %vm978 = vcmp.ge.f32.partialorder %v924, 0.0
        %vm979 = vcmp.ge.f32.partialorder %v927, 0.0
        %vm980 = vcmp.ge.f32.partialorder %v932, 0.0
        %vm981 = vcmp.ge.f32.partialorder %v935, 0.0
        %vm982 = vcmp.ge.f32.partialorder %v940, 0.0
        %vm983 = vcmp.ge.f32.partialorder %v943, 0.0
        %vm984 = vcmp.ge.f32.partialorder %v948, 0.0
        %vm985 = vcmp.ge.f32.partialorder %v951, 0.0
        %v986 = vmul.f32 %v828, 0.01
        %v987 = vmul.f32 %v831, 0.01
        %v988 = vmul.f32 %v836, 0.01
        %v989 = vmul.f32 %v839, 0.01
        %v990 = vmul.f32 %v844, 0.01
        %v991 = vmul.f32 %v847, 0.01
        %v992 = vmul.f32 %v852, 0.01
        %v993 = vmul.f32 %v855, 0.01
        %v994 = vmul.f32 %v860, 0.01
        %v995 = vmul.f32 %v863, 0.01
        %v996 = vmul.f32 %v868, 0.01
        %v997 = vmul.f32 %v871, 0.01
        %v998 = vmul.f32 %v876, 0.01
        %v999 = vmul.f32 %v879, 0.01
        %v1000 = vmul.f32 %v884, 0.01
        %v1001 = vmul.f32 %v887, 0.01
        %v1002 = vmul.f32 %v892, 0.01
        %v1003 = vmul.f32 %v895, 0.01
        %v1004 = vmul.f32 %v900, 0.01
        %v1005 = vmul.f32 %v903, 0.01
        %v1006 = vmul.f32 %v908, 0.01
        %v1007 = vmul.f32 %v911, 0.01
        %v1008 = vmul.f32 %v916, 0.01
        %v1009 = vmul.f32 %v919, 0.01
        %v1010 = vmul.f32 %v924, 0.01
        %v1011 = vmul.f32 %v927, 0.01
        %v1012 = vmul.f32 %v932, 0.01
        %v1013 = vmul.f32 %v935, 0.01
        %v1014 = vmul.f32 %v940, 0.01
        %v1015 = vmul.f32 %v943, 0.01
        %v1016 = vmul.f32 %v948, 0.01
        %v1017 = vmul.f32 %v951, 0.01
        %v1018 = vsel %vm954, %v828, %v986
        %v1019 = vsel %vm955, %v831, %v987
        %v1020 = vsel %vm956, %v836, %v988
        %v1021 = vsel %vm957, %v839, %v989
        %v1022 = vsel %vm958, %v844, %v990
        %v1023 = vsel %vm959, %v847, %v991
        %v1024 = vsel %vm960, %v852, %v992
        %v1025 = vsel %vm961, %v855, %v993
        %v1026 = vsel %vm962, %v860, %v994
        %v1027 = vsel %vm963, %v863, %v995
        %v1028 = vsel %vm964, %v868, %v996
        %v1029 = vsel %vm965, %v871, %v997
        %v1030 = vsel %vm966, %v876, %v998
        %v1031 = vsel %vm967, %v879, %v999
        %v1032 = vsel %vm968, %v884, %v1000
        %v1033 = vsel %vm969, %v887, %v1001
        %v1034 = vsel %vm970, %v892, %v1002
        %v1035 = vsel %vm971, %v895, %v1003
        %v1036 = vsel %vm972, %v900, %v1004
        %v1037 = vsel %vm973, %v903, %v1005
        %v1038 = vsel %vm974, %v908, %v1006
        %v1039 = vsel %vm975, %v911, %v1007
        %v1040 = vsel %vm976, %v916, %v1008
        %v1041 = vsel %vm977, %v919, %v1009
        %v1042 = vsel %vm978, %v924, %v1010
        %v1043 = vsel %vm979, %v927, %v1011
        %v1044 = vsel %vm980, %v932, %v1012
        %v1045 = vsel %vm981, %v935, %v1013
        %v1046 = vsel %vm982, %v940, %v1014
        %v1047 = vsel %vm983, %v943, %v1015
        %v1048 = vsel %vm984, %v948, %v1016
        %v1049 = vsel %vm985, %v951, %v1017
        %v1050 = vpack.c.bf16 %v1019, %v1018
        %v1051 = vpack.c.bf16 %v1021, %v1020
        %v1052 = vpack.c.bf16 %v1023, %v1022
        %v1053 = vpack.c.bf16 %v1025, %v1024
        %v1054 = vpack.c.bf16 %v1027, %v1026
        %v1055 = vpack.c.bf16 %v1029, %v1028
        %v1056 = vpack.c.bf16 %v1031, %v1030
        %v1057 = vpack.c.bf16 %v1033, %v1032
        %v1058 = vpack.c.bf16 %v1035, %v1034
        %v1059 = vpack.c.bf16 %v1037, %v1036
        %v1060 = vpack.c.bf16 %v1039, %v1038
        %v1061 = vpack.c.bf16 %v1041, %v1040
        %v1062 = vpack.c.bf16 %v1043, %v1042
        %v1063 = vpack.c.bf16 %v1045, %v1044
        %v1064 = vpack.c.bf16 %v1047, %v1046
        %v1065 = vpack.c.bf16 %v1049, %v1048
        %v1066 = vld [vmem:[%s6] sm:$0xf]
        %v1067 = vld [vmem:[%s6 + $0x4] sm:$0xf]
        %v1068 = vld [vmem:[%s6 + $0x8] sm:$0xf]
        %v1069 = vld [vmem:[%s6 + $0xc] sm:$0xf]
        %v1070 = vld [vmem:[%s6 + $0x10] sm:$0xf]
        %v1071 = vld [vmem:[%s6 + $0x14] sm:$0xf]
        %v1072 = vld [vmem:[%s6 + $0x18] sm:$0xf]
        %v1073 = vld [vmem:[%s6 + $0x1c] sm:$0xf]
        %v1074 = vld [vmem:[%s6 + $0x20] sm:$0xf]
        %v1075 = vld [vmem:[%s6 + $0x24] sm:$0xf]
        %v1076 = vld [vmem:[%s6 + $0x28] sm:$0xf]
        %v1077 = vld [vmem:[%s6 + $0x2c] sm:$0xf]
        %v1078 = vld [vmem:[%s6 + $0x30] sm:$0xf]
        %v1079 = vld [vmem:[%s6 + $0x34] sm:$0xf]
        %v1080 = vld [vmem:[%s6 + $0x38] sm:$0xf]
        %v1081 = vld [vmem:[%s6 + $0x3c] sm:$0xf]
        %v1082 = vld [vmem:[#allocation11] sm:$0x1]
        %v1084 = vlaneseq
        %v1085 = vshrl.u32 %v1084, 7
        %v1086 = vsub.s32 0, %v1085
        %v1087 = vrot.slane %v1082, %v1086
        %v1105 = vunpack.c.l.b16 %v1066
        %v1106 = vunpack.c.l.b16 %v1067
        %v1107 = vunpack.c.l.b16 %v1068
        %v1108 = vunpack.c.l.b16 %v1069
        %v1109 = vunpack.c.l.b16 %v1070
        %v1110 = vunpack.c.l.b16 %v1071
        %v1111 = vunpack.c.l.b16 %v1072
        %v1112 = vunpack.c.l.b16 %v1073
        %v1113 = vunpack.c.l.b16 %v1074
        %v1114 = vunpack.c.l.b16 %v1075
        %v1115 = vunpack.c.l.b16 %v1076
        %v1116 = vunpack.c.l.b16 %v1077
        %v1117 = vunpack.c.l.b16 %v1078
        %v1118 = vunpack.c.l.b16 %v1079
        %v1119 = vunpack.c.l.b16 %v1080
        %v1120 = vunpack.c.l.b16 %v1081
        %v1121 = vpack.c.b16 %v1106, %v1105
        %v1122 = vpack.c.b16 %v1108, %v1107
        %v1123 = vpack.c.b16 %v1110, %v1109
        %v1124 = vpack.c.b16 %v1112, %v1111
        %v1125 = vpack.c.b16 %v1114, %v1113
        %v1126 = vpack.c.b16 %v1116, %v1115
        %v1127 = vpack.c.b16 %v1118, %v1117
        %v1128 = vpack.c.b16 %v1120, %v1119
        %1137 = vmatprep.subr.bf16.mxu0 0
        %1138 = vmatpush1.bf16.msra.mxu0 %v1121
        %1139 = vmatprep.subr.bf16.mxu0 0
        %1140 = vmatpush1.bf16.msra.mxu0 %v1122
        %1141 = vmatprep.subr.bf16.mxu0 0
        %1142 = vmatpush1.bf16.msra.mxu0 %v1123
        %1143 = vmatprep.subr.bf16.mxu0 0
        %1144 = vmatpush1.bf16.msra.mxu0 %v1124
        %1145 = vmatprep.subr.bf16.mxu0 0
        %1146 = vmatpush1.bf16.msra.mxu0 %v1125
        %1147 = vmatprep.subr.bf16.mxu0 0
        %1148 = vmatpush1.bf16.msra.mxu0 %v1126
        %1149 = vmatprep.subr.bf16.mxu0 0
        %1150 = vmatpush1.bf16.msra.mxu0 %v1127
        %1151 = vmatprep.subr.bf16.mxu0 0
        %1152 = vmatpush1.bf16.msra.mxu0 %v1128
        %1153 = vmatprep.subr.bf16.mxu0 0
        %1154 = vmatpush1.bf16.msra.mxu0 0
        %1155 = vmatprep.subr.bf16.mxu0 0
        %1156 = vmatpush1.bf16.msra.mxu0 0
        %1157 = vmatprep.subr.bf16.mxu0 0
        %1158 = vmatpush1.bf16.msra.mxu0 0
        %1159 = vmatprep.subr.bf16.mxu0 0
        %1160 = vmatpush1.bf16.msra.mxu0 0
        %1161 = vmatprep.subr.bf16.mxu0 0
        %1162 = vmatpush1.bf16.msra.mxu0 0
        %1163 = vmatprep.subr.bf16.mxu0 0
        %1164 = vmatpush1.bf16.msra.mxu0 0
        %1165 = vmatprep.subr.bf16.mxu0 0
        %1166 = vmatpush1.bf16.msra.mxu0 0
        %1167 = vmatprep.subr.bf16.mxu0 0
        %1168 = vmatpush1.bf16.msra.mxu0 0
        %1169 = vmatprep.mubr.bf16.mxu0 0
        %1170 = vmatmul.mubr.bf16.gmra.mrb[0].mxu0 %v1050
        %v1171 = vpop.f32.mrb[0].mxu0
        %v1172 = vadd.f32 %v1087, %v1171
        %v1173 = vpop.f32.mrb[0].mxu0
        %v1174 = vpop.f32.mrb[0].mxu0
        %v1175 = vadd.f32 %v1087, %v1174
        %v1176 = vpop.f32.mrb[0].mxu0
        %1177 = vmatprep.mubr.bf16.mxu0 0
        %1178 = vmatmul.mubr.bf16.gmra.mrb[0].mxu0 %v1051
        %v1179 = vpop.f32.mrb[0].mxu0
        %v1180 = vadd.f32 %v1087, %v1179
        %v1181 = vpop.f32.mrb[0].mxu0
        %v1182 = vpop.f32.mrb[0].mxu0
        %v1183 = vadd.f32 %v1087, %v1182
        %v1184 = vpop.f32.mrb[0].mxu0
        %1185 = vmatprep.mubr.bf16.mxu0 0
        %1186 = vmatmul.mubr.bf16.gmra.mrb[0].mxu0 %v1052
        %v1187 = vpop.f32.mrb[0].mxu0
        %v1188 = vadd.f32 %v1087, %v1187
        %v1189 = vpop.f32.mrb[0].mxu0
        %v1190 = vpop.f32.mrb[0].mxu0
        %v1191 = vadd.f32 %v1087, %v1190
        %v1192 = vpop.f32.mrb[0].mxu0
        %1193 = vmatprep.mubr.bf16.mxu0 0
        %1194 = vmatmul.mubr.bf16.gmra.mrb[0].mxu0 %v1053
        %v1195 = vpop.f32.mrb[0].mxu0
        %v1196 = vadd.f32 %v1087, %v1195
        %v1197 = vpop.f32.mrb[0].mxu0
        %v1198 = vpop.f32.mrb[0].mxu0
        %v1199 = vadd.f32 %v1087, %v1198
        %v1200 = vpop.f32.mrb[0].mxu0
        %1201 = vmatprep.mubr.bf16.mxu0 0
        %1202 = vmatmul.mubr.bf16.gmra.mrb[0].mxu0 %v1054
        %v1203 = vpop.f32.mrb[0].mxu0
        %v1204 = vadd.f32 %v1087, %v1203
        %v1205 = vpop.f32.mrb[0].mxu0
        %v1206 = vpop.f32.mrb[0].mxu0
        %v1207 = vadd.f32 %v1087, %v1206
        %v1208 = vpop.f32.mrb[0].mxu0
        %1209 = vmatprep.mubr.bf16.mxu0 0
        %1210 = vmatmul.mubr.bf16.gmra.mrb[0].mxu0 %v1055
        %v1211 = vpop.f32.mrb[0].mxu0
        %v1212 = vadd.f32 %v1087, %v1211
        %v1213 = vpop.f32.mrb[0].mxu0
        %v1214 = vpop.f32.mrb[0].mxu0
        %v1215 = vadd.f32 %v1087, %v1214
        %v1216 = vpop.f32.mrb[0].mxu0
        %1217 = vmatprep.mubr.bf16.mxu0 0
        %1218 = vmatmul.mubr.bf16.gmra.mrb[0].mxu0 %v1056
        %v1219 = vpop.f32.mrb[0].mxu0
        %v1220 = vadd.f32 %v1087, %v1219
        %v1221 = vpop.f32.mrb[0].mxu0
        %v1222 = vpop.f32.mrb[0].mxu0
        %v1223 = vadd.f32 %v1087, %v1222
        %v1224 = vpop.f32.mrb[0].mxu0
        %1225 = vmatprep.mubr.bf16.mxu0 0
        %1226 = vmatmul.mubr.bf16.gmra.mrb[0].mxu0 %v1057
        %v1227 = vpop.f32.mrb[0].mxu0
        %v1228 = vadd.f32 %v1087, %v1227
        %v1229 = vpop.f32.mrb[0].mxu0
        %v1230 = vpop.f32.mrb[0].mxu0
        %v1231 = vadd.f32 %v1087, %v1230
        %v1232 = vpop.f32.mrb[0].mxu0
        %1233 = vmatprep.mubr.bf16.mxu0 0
        %1234 = vmatmul.mubr.bf16.gmra.mrb[0].mxu0 %v1058
        %v1235 = vpop.f32.mrb[0].mxu0
        %v1236 = vadd.f32 %v1087, %v1235
        %v1237 = vpop.f32.mrb[0].mxu0
        %v1238 = vpop.f32.mrb[0].mxu0
        %v1239 = vadd.f32 %v1087, %v1238
        %v1240 = vpop.f32.mrb[0].mxu0
        %1241 = vmatprep.mubr.bf16.mxu0 0
        %1242 = vmatmul.mubr.bf16.gmra.mrb[0].mxu0 %v1059
        %v1243 = vpop.f32.mrb[0].mxu0
        %v1244 = vadd.f32 %v1087, %v1243
        %v1245 = vpop.f32.mrb[0].mxu0
        %v1246 = vpop.f32.mrb[0].mxu0
        %v1247 = vadd.f32 %v1087, %v1246
        %v1248 = vpop.f32.mrb[0].mxu0
        %1249 = vmatprep.mubr.bf16.mxu0 0
        %1250 = vmatmul.mubr.bf16.gmra.mrb[0].mxu0 %v1060
        %v1251 = vpop.f32.mrb[0].mxu0
        %v1252 = vadd.f32 %v1087, %v1251
        %v1253 = vpop.f32.mrb[0].mxu0
        %v1254 = vpop.f32.mrb[0].mxu0
        %v1255 = vadd.f32 %v1087, %v1254
        %v1256 = vpop.f32.mrb[0].mxu0
        %1257 = vmatprep.mubr.bf16.mxu0 0
        %1258 = vmatmul.mubr.bf16.gmra.mrb[0].mxu0 %v1061
        %v1259 = vpop.f32.mrb[0].mxu0
        %v1260 = vadd.f32 %v1087, %v1259
        %v1261 = vpop.f32.mrb[0].mxu0
        %v1262 = vpop.f32.mrb[0].mxu0
        %v1263 = vadd.f32 %v1087, %v1262
        %v1264 = vpop.f32.mrb[0].mxu0
        %1265 = vmatprep.mubr.bf16.mxu0 0
        %1266 = vmatmul.mubr.bf16.gmra.mrb[0].mxu0 %v1062
        %v1267 = vpop.f32.mrb[0].mxu0
        %v1268 = vadd.f32 %v1087, %v1267
        %v1269 = vpop.f32.mrb[0].mxu0
        %v1270 = vpop.f32.mrb[0].mxu0
        %v1271 = vadd.f32 %v1087, %v1270
        %v1272 = vpop.f32.mrb[0].mxu0
        %1273 = vmatprep.mubr.bf16.mxu0 0
        %1274 = vmatmul.mubr.bf16.gmra.mrb[0].mxu0 %v1063
        %v1275 = vpop.f32.mrb[0].mxu0
        %v1276 = vadd.f32 %v1087, %v1275
        %v1277 = vpop.f32.mrb[0].mxu0
        %v1278 = vpop.f32.mrb[0].mxu0
        %v1279 = vadd.f32 %v1087, %v1278
        %v1280 = vpop.f32.mrb[0].mxu0
        %1281 = vmatprep.mubr.bf16.mxu0 0
        %1282 = vmatmul.mubr.bf16.gmra.mrb[0].mxu0 %v1064
        %v1283 = vpop.f32.mrb[0].mxu0
        %v1284 = vadd.f32 %v1087, %v1283
        %v1285 = vpop.f32.mrb[0].mxu0
        %v1286 = vpop.f32.mrb[0].mxu0
        %v1287 = vadd.f32 %v1087, %v1286
        %v1288 = vpop.f32.mrb[0].mxu0
        %1289 = vmatprep.mubr.bf16.mxu0 0
        %1290 = vmatmul.mubr.bf16.gmra.mrb[0].mxu0 %v1065
        %v1291 = vpop.f32.mrb[0].mxu0
        %v1292 = vadd.f32 %v1087, %v1291
        %v1293 = vpop.f32.mrb[0].mxu0
        %v1294 = vpop.f32.mrb[0].mxu0
        %v1295 = vadd.f32 %v1087, %v1294
        %v1296 = vpop.f32.mrb[0].mxu0
        %1297 = vdwg.mxu0
        %v1298 = vld [vmem:[%s642] sm:$0xff]
        %v1299 = vld [vmem:[%s642 + $0x8] sm:$0xff]
        %v1300 = vld [vmem:[%s642 + $0x10] sm:$0xff]
        %v1301 = vld [vmem:[%s642 + $0x18] sm:$0xff]
        %v1302 = vld [vmem:[%s642 + $0x20] sm:$0xff]
        %v1303 = vld [vmem:[%s642 + $0x28] sm:$0xff]
        %v1304 = vld [vmem:[%s642 + $0x30] sm:$0xff]
        %v1305 = vld [vmem:[%s642 + $0x38] sm:$0xff]
        %v1306 = vld [vmem:[%s642 + $0x40] sm:$0xff]
        %v1307 = vld [vmem:[%s642 + $0x48] sm:$0xff]
        %v1308 = vld [vmem:[%s642 + $0x50] sm:$0xff]
        %v1309 = vld [vmem:[%s642 + $0x58] sm:$0xff]
        %v1310 = vld [vmem:[%s642 + $0x60] sm:$0xff]
        %v1311 = vld [vmem:[%s642 + $0x68] sm:$0xff]
        %v1312 = vld [vmem:[%s642 + $0x70] sm:$0xff]
        %v1313 = vld [vmem:[%s642 + $0x78] sm:$0xff]
        %v1314 = vld [vmem:[%s642 + $0x80] sm:$0xff]
        %v1315 = vld [vmem:[%s642 + $0x88] sm:$0xff]
        %v1316 = vld [vmem:[%s642 + $0x90] sm:$0xff]
        %v1317 = vld [vmem:[%s642 + $0x98] sm:$0xff]
        %v1318 = vld [vmem:[%s642 + $0xa0] sm:$0xff]
        %v1319 = vld [vmem:[%s642 + $0xa8] sm:$0xff]
        %v1320 = vld [vmem:[%s642 + $0xb0] sm:$0xff]
        %v1321 = vld [vmem:[%s642 + $0xb8] sm:$0xff]
        %v1322 = vld [vmem:[%s642 + $0xc0] sm:$0xff]
        %v1323 = vld [vmem:[%s642 + $0xc8] sm:$0xff]
        %v1324 = vld [vmem:[%s642 + $0xd0] sm:$0xff]
        %v1325 = vld [vmem:[%s642 + $0xd8] sm:$0xff]
        %v1326 = vld [vmem:[%s642 + $0xe0] sm:$0xff]
        %v1327 = vld [vmem:[%s642 + $0xe8] sm:$0xff]
        %v1328 = vld [vmem:[%s642 + $0xf0] sm:$0xff]
        %v1329 = vld [vmem:[%s642 + $0xf8] sm:$0xff]
        %v1330 = vadd.f32 %v1298, %v1172
        %v1331 = vadd.f32 %v1299, %v1175
        %v1332 = vadd.f32 %v1300, %v1180
        %v1333 = vadd.f32 %v1301, %v1183
        %v1334 = vadd.f32 %v1302, %v1188
        %v1335 = vadd.f32 %v1303, %v1191
        %v1336 = vadd.f32 %v1304, %v1196
        %v1337 = vadd.f32 %v1305, %v1199
        %v1338 = vadd.f32 %v1306, %v1204
        %v1339 = vadd.f32 %v1307, %v1207
        %v1340 = vadd.f32 %v1308, %v1212
        %v1341 = vadd.f32 %v1309, %v1215
        %v1342 = vadd.f32 %v1310, %v1220
        %v1343 = vadd.f32 %v1311, %v1223
        %v1344 = vadd.f32 %v1312, %v1228
        %v1345 = vadd.f32 %v1313, %v1231
        %v1346 = vadd.f32 %v1314, %v1236
        %v1347 = vadd.f32 %v1315, %v1239
        %v1348 = vadd.f32 %v1316, %v1244
        %v1349 = vadd.f32 %v1317, %v1247
        %v1350 = vadd.f32 %v1318, %v1252
        %v1351 = vadd.f32 %v1319, %v1255
        %v1352 = vadd.f32 %v1320, %v1260
        %v1353 = vadd.f32 %v1321, %v1263
        %v1354 = vadd.f32 %v1322, %v1268
        %v1355 = vadd.f32 %v1323, %v1271
        %v1356 = vadd.f32 %v1324, %v1276
        %v1357 = vadd.f32 %v1325, %v1279
        %v1358 = vadd.f32 %v1326, %v1284
        %v1359 = vadd.f32 %v1327, %v1287
        %v1360 = vadd.f32 %v1328, %v1292
        %v1361 = vadd.f32 %v1329, %v1295
        %v1362 = vld [vmem:[%s652] sm:$0xff]
        %v1363 = vld [vmem:[%s652 + $0x8] sm:$0xff]
        %v1364 = vld [vmem:[%s652 + $0x10] sm:$0xff]
        %v1365 = vld [vmem:[%s652 + $0x18] sm:$0xff]
        %v1366 = vld [vmem:[%s652 + $0x20] sm:$0xff]
        %v1367 = vld [vmem:[%s652 + $0x28] sm:$0xff]
        %v1368 = vld [vmem:[%s652 + $0x30] sm:$0xff]
        %v1369 = vld [vmem:[%s652 + $0x38] sm:$0xff]
        %v1370 = vld [vmem:[%s652 + $0x40] sm:$0xff]
        %v1371 = vld [vmem:[%s652 + $0x48] sm:$0xff]
        %v1372 = vld [vmem:[%s652 + $0x50] sm:$0xff]
        %v1373 = vld [vmem:[%s652 + $0x58] sm:$0xff]
        %v1374 = vld [vmem:[%s652 + $0x60] sm:$0xff]
        %v1375 = vld [vmem:[%s652 + $0x68] sm:$0xff]
        %v1376 = vld [vmem:[%s652 + $0x70] sm:$0xff]
        %v1377 = vld [vmem:[%s652 + $0x78] sm:$0xff]
        %v1378 = vld [vmem:[%s652 + $0x80] sm:$0xff]
        %v1379 = vld [vmem:[%s652 + $0x88] sm:$0xff]
        %v1380 = vld [vmem:[%s652 + $0x90] sm:$0xff]
        %v1381 = vld [vmem:[%s652 + $0x98] sm:$0xff]
        %v1382 = vld [vmem:[%s652 + $0xa0] sm:$0xff]
        %v1383 = vld [vmem:[%s652 + $0xa8] sm:$0xff]
        %v1384 = vld [vmem:[%s652 + $0xb0] sm:$0xff]
        %v1385 = vld [vmem:[%s652 + $0xb8] sm:$0xff]
        %v1386 = vld [vmem:[%s652 + $0xc0] sm:$0xff]
        %v1387 = vld [vmem:[%s652 + $0xc8] sm:$0xff]
        %v1388 = vld [vmem:[%s652 + $0xd0] sm:$0xff]
        %v1389 = vld [vmem:[%s652 + $0xd8] sm:$0xff]
        %v1390 = vld [vmem:[%s652 + $0xe0] sm:$0xff]
        %v1391 = vld [vmem:[%s652 + $0xe8] sm:$0xff]
        %v1392 = vld [vmem:[%s652 + $0xf0] sm:$0xff]
        %v1393 = vld [vmem:[%s652 + $0xf8] sm:$0xff]
        %1395 = vset.pattern.permute.xlu0 0
        %1396 = vperm.xlu0 %1395, %v1362
        %v1397 = vpop.permute.xlu0 %1396
        %1400 = vset.pattern.permute.xlu0 0
        %1401 = vperm.xlu0 %1400, %v1363
        %v1402 = vpop.permute.xlu0 %1401
        %1405 = vset.pattern.permute.xlu0 0
        %1406 = vperm.xlu0 %1405, %v1364
        %v1407 = vpop.permute.xlu0 %1406
        %1410 = vset.pattern.permute.xlu0 0
        %1411 = vperm.xlu0 %1410, %v1365
        %v1412 = vpop.permute.xlu0 %1411
        %1415 = vset.pattern.permute.xlu0 0
        %1416 = vperm.xlu0 %1415, %v1366
        %v1417 = vpop.permute.xlu0 %1416
        %1420 = vset.pattern.permute.xlu0 0
        %1421 = vperm.xlu0 %1420, %v1367
        %v1422 = vpop.permute.xlu0 %1421
        %1425 = vset.pattern.permute.xlu0 0
        %1426 = vperm.xlu0 %1425, %v1368
        %v1427 = vpop.permute.xlu0 %1426
        %1430 = vset.pattern.permute.xlu0 0
        %1431 = vperm.xlu0 %1430, %v1369
        %v1432 = vpop.permute.xlu0 %1431
        %1435 = vset.pattern.permute.xlu0 0
        %1436 = vperm.xlu0 %1435, %v1370
        %v1437 = vpop.permute.xlu0 %1436
        %1440 = vset.pattern.permute.xlu0 0
        %1441 = vperm.xlu0 %1440, %v1371
        %v1442 = vpop.permute.xlu0 %1441
        %1445 = vset.pattern.permute.xlu0 0
        %1446 = vperm.xlu0 %1445, %v1372
        %v1447 = vpop.permute.xlu0 %1446
        %1450 = vset.pattern.permute.xlu0 0
        %1451 = vperm.xlu0 %1450, %v1373
        %v1452 = vpop.permute.xlu0 %1451
        %1455 = vset.pattern.permute.xlu0 0
        %1456 = vperm.xlu0 %1455, %v1374
        %v1457 = vpop.permute.xlu0 %1456
        %1460 = vset.pattern.permute.xlu0 0
        %1461 = vperm.xlu0 %1460, %v1375
        %v1462 = vpop.permute.xlu0 %1461
        %1465 = vset.pattern.permute.xlu0 0
        %1466 = vperm.xlu0 %1465, %v1376
        %v1467 = vpop.permute.xlu0 %1466
        %1470 = vset.pattern.permute.xlu0 0
        %1471 = vperm.xlu0 %1470, %v1377
        %v1472 = vpop.permute.xlu0 %1471
        %1475 = vset.pattern.permute.xlu0 0
        %1476 = vperm.xlu0 %1475, %v1378
        %v1477 = vpop.permute.xlu0 %1476
        %1480 = vset.pattern.permute.xlu0 0
        %1481 = vperm.xlu0 %1480, %v1379
        %v1482 = vpop.permute.xlu0 %1481
        %1485 = vset.pattern.permute.xlu0 0
        %1486 = vperm.xlu0 %1485, %v1380
        %v1487 = vpop.permute.xlu0 %1486
        %1490 = vset.pattern.permute.xlu0 0
        %1491 = vperm.xlu0 %1490, %v1381
        %v1492 = vpop.permute.xlu0 %1491
        %1495 = vset.pattern.permute.xlu0 0
        %1496 = vperm.xlu0 %1495, %v1382
        %v1497 = vpop.permute.xlu0 %1496
        %1500 = vset.pattern.permute.xlu0 0
        %1501 = vperm.xlu0 %1500, %v1383
        %v1502 = vpop.permute.xlu0 %1501
        %1505 = vset.pattern.permute.xlu0 0
        %1506 = vperm.xlu0 %1505, %v1384
        %v1507 = vpop.permute.xlu0 %1506
        %1510 = vset.pattern.permute.xlu0 0
        %1511 = vperm.xlu0 %1510, %v1385
        %v1512 = vpop.permute.xlu0 %1511
        %1515 = vset.pattern.permute.xlu0 0
        %1516 = vperm.xlu0 %1515, %v1386
        %v1517 = vpop.permute.xlu0 %1516
        %1520 = vset.pattern.permute.xlu0 0
        %1521 = vperm.xlu0 %1520, %v1387
        %v1522 = vpop.permute.xlu0 %1521
        %1525 = vset.pattern.permute.xlu0 0
        %1526 = vperm.xlu0 %1525, %v1388
        %v1527 = vpop.permute.xlu0 %1526
        %1530 = vset.pattern.permute.xlu0 0
        %1531 = vperm.xlu0 %1530, %v1389
        %v1532 = vpop.permute.xlu0 %1531
        %1535 = vset.pattern.permute.xlu0 0
        %1536 = vperm.xlu0 %1535, %v1390
        %v1537 = vpop.permute.xlu0 %1536
        %1540 = vset.pattern.permute.xlu0 0
        %1541 = vperm.xlu0 %1540, %v1391
        %v1542 = vpop.permute.xlu0 %1541
        %1545 = vset.pattern.permute.xlu0 0
        %1546 = vperm.xlu0 %1545, %v1392
        %v1547 = vpop.permute.xlu0 %1546
        %1550 = vset.pattern.permute.xlu0 0
        %1551 = vperm.xlu0 %1550, %v1393
        %v1552 = vpop.permute.xlu0 %1551
        %v1554 = vmul.f32 %v1330, %v1397
        %v1555 = vmul.f32 %v1331, %v1402
        %v1556 = vmul.f32 %v1332, %v1407
        %v1557 = vmul.f32 %v1333, %v1412
        %v1558 = vmul.f32 %v1334, %v1417
        %v1559 = vmul.f32 %v1335, %v1422
        %v1560 = vmul.f32 %v1336, %v1427
        %v1561 = vmul.f32 %v1337, %v1432
        %v1562 = vmul.f32 %v1338, %v1437
        %v1563 = vmul.f32 %v1339, %v1442
        %v1564 = vmul.f32 %v1340, %v1447
        %v1565 = vmul.f32 %v1341, %v1452
        %v1566 = vmul.f32 %v1342, %v1457
        %v1567 = vmul.f32 %v1343, %v1462
        %v1568 = vmul.f32 %v1344, %v1467
        %v1569 = vmul.f32 %v1345, %v1472
        %v1570 = vmul.f32 %v1346, %v1477
        %v1571 = vmul.f32 %v1347, %v1482
        %v1572 = vmul.f32 %v1348, %v1487
        %v1573 = vmul.f32 %v1349, %v1492
        %v1574 = vmul.f32 %v1350, %v1497
        %v1575 = vmul.f32 %v1351, %v1502
        %v1576 = vmul.f32 %v1352, %v1507
        %v1577 = vmul.f32 %v1353, %v1512
        %v1578 = vmul.f32 %v1354, %v1517
        %v1579 = vmul.f32 %v1355, %v1522
        %v1580 = vmul.f32 %v1356, %v1527
        %v1581 = vmul.f32 %v1357, %v1532
        %v1582 = vmul.f32 %v1358, %v1537
        %v1583 = vmul.f32 %v1359, %v1542
        %v1584 = vmul.f32 %v1360, %v1547
        %v1585 = vmul.f32 %v1361, %v1552
        %v1586 = vld [vmem:[%s655] sm:$0x1]
        %v1588 = vlaneseq
        %v1589 = vshrl.u32 %v1588, 7
        %v1590 = vsub.s32 0, %v1589
        %v1591 = vrot.slane %v1586, %v1590
        %v1593 = vadd.f32 %v1554, %v1591
        %v1594 = vadd.f32 %v1555, %v1591
        %v1595 = vadd.f32 %v1556, %v1591
        %v1596 = vadd.f32 %v1557, %v1591
        %v1597 = vadd.f32 %v1558, %v1591
        %v1598 = vadd.f32 %v1559, %v1591
        %v1599 = vadd.f32 %v1560, %v1591
        %v1600 = vadd.f32 %v1561, %v1591
        %v1601 = vadd.f32 %v1562, %v1591
        %v1602 = vadd.f32 %v1563, %v1591
        %v1603 = vadd.f32 %v1564, %v1591
        %v1604 = vadd.f32 %v1565, %v1591
        %v1605 = vadd.f32 %v1566, %v1591
        %v1606 = vadd.f32 %v1567, %v1591
        %v1607 = vadd.f32 %v1568, %v1591
        %v1608 = vadd.f32 %v1569, %v1591
        %v1609 = vadd.f32 %v1570, %v1591
        %v1610 = vadd.f32 %v1571, %v1591
        %v1611 = vadd.f32 %v1572, %v1591
        %v1612 = vadd.f32 %v1573, %v1591
        %v1613 = vadd.f32 %v1574, %v1591
        %v1614 = vadd.f32 %v1575, %v1591
        %v1615 = vadd.f32 %v1576, %v1591
        %v1616 = vadd.f32 %v1577, %v1591
        %v1617 = vadd.f32 %v1578, %v1591
        %v1618 = vadd.f32 %v1579, %v1591
        %v1619 = vadd.f32 %v1580, %v1591
        %v1620 = vadd.f32 %v1581, %v1591
        %v1621 = vadd.f32 %v1582, %v1591
        %v1622 = vadd.f32 %v1583, %v1591
        %v1623 = vadd.f32 %v1584, %v1591
        %v1624 = vadd.f32 %v1585, %v1591
        %1625 = vst [vmem:[#allocation2] sm:$0xff] %v1593
        %1626 = vst [vmem:[#allocation2 + $0x8] sm:$0xff] %v1594
        %1627 = vst [vmem:[#allocation2 + $0x10] sm:$0xff] %v1595
        %1628 = vst [vmem:[#allocation2 + $0x18] sm:$0xff] %v1596
        %1629 = vst [vmem:[#allocation2 + $0x20] sm:$0xff] %v1597
        %1630 = vst [vmem:[#allocation2 + $0x28] sm:$0xff] %v1598
        %1631 = vst [vmem:[#allocation2 + $0x30] sm:$0xff] %v1599
        %1632 = vst [vmem:[#allocation2 + $0x38] sm:$0xff] %v1600
        %1633 = vst [vmem:[#allocation2 + $0x40] sm:$0xff] %v1601
        %1634 = vst [vmem:[#allocation2 + $0x48] sm:$0xff] %v1602
        %1635 = vst [vmem:[#allocation2 + $0x50] sm:$0xff] %v1603
        %1636 = vst [vmem:[#allocation2 + $0x58] sm:$0xff] %v1604
        %1637 = vst [vmem:[#allocation2 + $0x60] sm:$0xff] %v1605
        %1638 = vst [vmem:[#allocation2 + $0x68] sm:$0xff] %v1606
        %1639 = vst [vmem:[#allocation2 + $0x70] sm:$0xff] %v1607
        %1640 = vst [vmem:[#allocation2 + $0x78] sm:$0xff] %v1608
        %1641 = vst [vmem:[#allocation2 + $0x80] sm:$0xff] %v1609
        %1642 = vst [vmem:[#allocation2 + $0x88] sm:$0xff] %v1610
        %1643 = vst [vmem:[#allocation2 + $0x90] sm:$0xff] %v1611
        %1644 = vst [vmem:[#allocation2 + $0x98] sm:$0xff] %v1612
        %1645 = vst [vmem:[#allocation2 + $0xa0] sm:$0xff] %v1613
        %1646 = vst [vmem:[#allocation2 + $0xa8] sm:$0xff] %v1614
        %1647 = vst [vmem:[#allocation2 + $0xb0] sm:$0xff] %v1615
        %1648 = vst [vmem:[#allocation2 + $0xb8] sm:$0xff] %v1616
        %1649 = vst [vmem:[#allocation2 + $0xc0] sm:$0xff] %v1617
        %1650 = vst [vmem:[#allocation2 + $0xc8] sm:$0xff] %v1618
        %1651 = vst [vmem:[#allocation2 + $0xd0] sm:$0xff] %v1619
        %1652 = vst [vmem:[#allocation2 + $0xd8] sm:$0xff] %v1620
        %1653 = vst [vmem:[#allocation2 + $0xe0] sm:$0xff] %v1621
        %1654 = vst [vmem:[#allocation2 + $0xe8] sm:$0xff] %v1622
        %1655 = vst [vmem:[#allocation2 + $0xf0] sm:$0xff] %v1623
        %1656 = vst [vmem:[#allocation2 + $0xf8] sm:$0xff] %v1624
        %v1657 = vld [vmem:[#allocation2] sm:$0xff]
        %v1658 = vld [vmem:[#allocation2 + $0x8] sm:$0xff]
        %v1659 = vld [vmem:[#allocation2 + $0x10] sm:$0xff]
        %v1660 = vld [vmem:[#allocation2 + $0x18] sm:$0xff]
        %v1661 = vld [vmem:[#allocation2 + $0x20] sm:$0xff]
        %v1662 = vld [vmem:[#allocation2 + $0x28] sm:$0xff]
        %v1663 = vld [vmem:[#allocation2 + $0x30] sm:$0xff]
        %v1664 = vld [vmem:[#allocation2 + $0x38] sm:$0xff]
        %v1665 = vld [vmem:[#allocation2 + $0x40] sm:$0xff]
        %v1666 = vld [vmem:[#allocation2 + $0x48] sm:$0xff]
        %v1667 = vld [vmem:[#allocation2 + $0x50] sm:$0xff]
        %v1668 = vld [vmem:[#allocation2 + $0x58] sm:$0xff]
        %v1669 = vld [vmem:[#allocation2 + $0x60] sm:$0xff]
        %v1670 = vld [vmem:[#allocation2 + $0x68] sm:$0xff]
        %v1671 = vld [vmem:[#allocation2 + $0x70] sm:$0xff]
        %v1672 = vld [vmem:[#allocation2 + $0x78] sm:$0xff]
        %v1673 = vld [vmem:[#allocation2 + $0x80] sm:$0xff]
        %v1674 = vld [vmem:[#allocation2 + $0x88] sm:$0xff]
        %v1675 = vld [vmem:[#allocation2 + $0x90] sm:$0xff]
        %v1676 = vld [vmem:[#allocation2 + $0x98] sm:$0xff]
        %v1677 = vld [vmem:[#allocation2 + $0xa0] sm:$0xff]
        %v1678 = vld [vmem:[#allocation2 + $0xa8] sm:$0xff]
        %v1679 = vld [vmem:[#allocation2 + $0xb0] sm:$0xff]
        %v1680 = vld [vmem:[#allocation2 + $0xb8] sm:$0xff]
        %v1681 = vld [vmem:[#allocation2 + $0xc0] sm:$0xff]
        %v1682 = vld [vmem:[#allocation2 + $0xc8] sm:$0xff]
        %v1683 = vld [vmem:[#allocation2 + $0xd0] sm:$0xff]
        %v1684 = vld [vmem:[#allocation2 + $0xd8] sm:$0xff]
        %v1685 = vld [vmem:[#allocation2 + $0xe0] sm:$0xff]
        %v1686 = vld [vmem:[#allocation2 + $0xe8] sm:$0x1f]
        %v1687 = vpack.c.bf16 %v1658, %v1657
        %v1688 = vpack.c.bf16 %v1660, %v1659
        %v1689 = vpack.c.bf16 %v1662, %v1661
        %v1690 = vpack.c.bf16 %v1664, %v1663
        %v1691 = vpack.c.bf16 %v1666, %v1665
        %v1692 = vpack.c.bf16 %v1668, %v1667
        %v1693 = vpack.c.bf16 %v1670, %v1669
        %v1694 = vpack.c.bf16 %v1672, %v1671
        %v1695 = vpack.c.bf16 %v1674, %v1673
        %v1696 = vpack.c.bf16 %v1676, %v1675
        %v1697 = vpack.c.bf16 %v1678, %v1677
        %v1698 = vpack.c.bf16 %v1680, %v1679
        %v1699 = vpack.c.bf16 %v1682, %v1681
        %v1700 = vpack.c.bf16 %v1684, %v1683
        %v1701 = vpack.c.bf16 %v1686, %v1685
        %v1702 = vld [vmem:[%s8] sm:$0xf]
        %v1703 = vld [vmem:[%s8 + $0x4] sm:$0xf]
        %v1704 = vld [vmem:[%s8 + $0x8] sm:$0xf]
        %v1705 = vld [vmem:[%s8 + $0xc] sm:$0xf]
        %v1706 = vld [vmem:[%s8 + $0x10] sm:$0xf]
        %v1707 = vld [vmem:[%s8 + $0x14] sm:$0xf]
        %v1708 = vld [vmem:[%s8 + $0x18] sm:$0xf]
        %v1709 = vld [vmem:[%s8 + $0x1c] sm:$0xf]
        %v1710 = vld [vmem:[%s8 + $0x20] sm:$0xf]
        %v1711 = vld [vmem:[%s8 + $0x24] sm:$0xf]
        %v1712 = vld [vmem:[%s8 + $0x28] sm:$0xf]
        %v1713 = vld [vmem:[%s8 + $0x2c] sm:$0xf]
        %v1714 = vld [vmem:[%s8 + $0x30] sm:$0xf]
        %v1715 = vld [vmem:[%s8 + $0x34] sm:$0xf]
        %v1716 = vld [vmem:[%s8 + $0x38] sm:$0xf]
        %v1717 = vld [vmem:[%s8 + $0x3c] sm:$0xf]
        %v1718 = vld [vmem:[#allocation2 + $0x1] sm:$0xff]
        %v1719 = vld [vmem:[#allocation2 + $0x9] sm:$0xff]
        %v1720 = vld [vmem:[#allocation2 + $0x11] sm:$0xff]
        %v1721 = vld [vmem:[#allocation2 + $0x19] sm:$0xff]
        %v1722 = vld [vmem:[#allocation2 + $0x21] sm:$0xff]
        %v1723 = vld [vmem:[#allocation2 + $0x29] sm:$0xff]
        %v1724 = vld [vmem:[#allocation2 + $0x31] sm:$0xff]
        %v1725 = vld [vmem:[#allocation2 + $0x39] sm:$0xff]
        %v1726 = vld [vmem:[#allocation2 + $0x41] sm:$0xff]
        %v1727 = vld [vmem:[#allocation2 + $0x49] sm:$0xff]
        %v1728 = vld [vmem:[#allocation2 + $0x51] sm:$0xff]
        %v1729 = vld [vmem:[#allocation2 + $0x59] sm:$0xff]
        %v1730 = vld [vmem:[#allocation2 + $0x61] sm:$0xff]
        %v1731 = vld [vmem:[#allocation2 + $0x69] sm:$0xff]
        %v1732 = vld [vmem:[#allocation2 + $0x71] sm:$0xff]
        %v1733 = vld [vmem:[#allocation2 + $0x79] sm:$0xff]
        %v1734 = vld [vmem:[#allocation2 + $0x81] sm:$0xff]
        %v1735 = vld [vmem:[#allocation2 + $0x89] sm:$0xff]
        %v1736 = vld [vmem:[#allocation2 + $0x91] sm:$0xff]
        %v1737 = vld [vmem:[#allocation2 + $0x99] sm:$0xff]
        %v1738 = vld [vmem:[#allocation2 + $0xa1] sm:$0xff]
        %v1739 = vld [vmem:[#allocation2 + $0xa9] sm:$0xff]
        %v1740 = vld [vmem:[#allocation2 + $0xb1] sm:$0xff]
        %v1741 = vld [vmem:[#allocation2 + $0xb9] sm:$0xff]
        %v1742 = vld [vmem:[#allocation2 + $0xc1] sm:$0xff]
        %v1743 = vld [vmem:[#allocation2 + $0xc9] sm:$0xff]
        %v1744 = vld [vmem:[#allocation2 + $0xd1] sm:$0xff]
        %v1745 = vld [vmem:[#allocation2 + $0xd9] sm:$0xff]
        %v1746 = vld [vmem:[#allocation2 + $0xe1] sm:$0xff]
        %v1747 = vld [vmem:[#allocation2 + $0xe9] sm:$0x1f]
        %v1748 = vpack.c.bf16 %v1719, %v1718
        %v1749 = vpack.c.bf16 %v1721, %v1720
        %v1750 = vpack.c.bf16 %v1723, %v1722
        %v1751 = vpack.c.bf16 %v1725, %v1724
        %v1752 = vpack.c.bf16 %v1727, %v1726
        %v1753 = vpack.c.bf16 %v1729, %v1728
        %v1754 = vpack.c.bf16 %v1731, %v1730
        %v1755 = vpack.c.bf16 %v1733, %v1732
        %v1756 = vpack.c.bf16 %v1735, %v1734
        %v1757 = vpack.c.bf16 %v1737, %v1736
        %v1758 = vpack.c.bf16 %v1739, %v1738
        %v1759 = vpack.c.bf16 %v1741, %v1740
        %v1760 = vpack.c.bf16 %v1743, %v1742
        %v1761 = vpack.c.bf16 %v1745, %v1744
        %v1762 = vpack.c.bf16 %v1747, %v1746
        %s1763 = scalar_lea.vmem %s8, 64
        %v1764 = vld [vmem:[%s1763] sm:$0xf]
        %v1765 = vld [vmem:[%s1763 + $0x4] sm:$0xf]
        %v1766 = vld [vmem:[%s1763 + $0x8] sm:$0xf]
        %v1767 = vld [vmem:[%s1763 + $0xc] sm:$0xf]
        %v1768 = vld [vmem:[%s1763 + $0x10] sm:$0xf]
        %v1769 = vld [vmem:[%s1763 + $0x14] sm:$0xf]
        %v1770 = vld [vmem:[%s1763 + $0x18] sm:$0xf]
        %v1771 = vld [vmem:[%s1763 + $0x1c] sm:$0xf]
        %v1772 = vld [vmem:[%s1763 + $0x20] sm:$0xf]
        %v1773 = vld [vmem:[%s1763 + $0x24] sm:$0xf]
        %v1774 = vld [vmem:[%s1763 + $0x28] sm:$0xf]
        %v1775 = vld [vmem:[%s1763 + $0x2c] sm:$0xf]
        %v1776 = vld [vmem:[%s1763 + $0x30] sm:$0xf]
        %v1777 = vld [vmem:[%s1763 + $0x34] sm:$0xf]
        %v1778 = vld [vmem:[%s1763 + $0x38] sm:$0xf]
        %v1779 = vld [vmem:[%s1763 + $0x3c] sm:$0xf]
        %v1796 = vunpack.c.l.b16 %v1764
        %v1797 = vunpack.c.l.b16 %v1765
        %v1798 = vunpack.c.l.b16 %v1766
        %v1799 = vunpack.c.l.b16 %v1767
        %v1800 = vunpack.c.l.b16 %v1768
        %v1801 = vunpack.c.l.b16 %v1769
        %v1802 = vunpack.c.l.b16 %v1770
        %v1803 = vunpack.c.l.b16 %v1771
        %v1804 = vunpack.c.l.b16 %v1772
        %v1805 = vunpack.c.l.b16 %v1773
        %v1806 = vunpack.c.l.b16 %v1774
        %v1807 = vunpack.c.l.b16 %v1775
        %v1808 = vunpack.c.l.b16 %v1776
        %v1809 = vunpack.c.l.b16 %v1777
        %v1810 = vunpack.c.l.b16 %v1778
        %v1811 = vunpack.c.l.b16 %v1779
        %v1812 = vpack.c.b16 %v1797, %v1796
        %v1813 = vpack.c.b16 %v1799, %v1798
        %v1814 = vpack.c.b16 %v1801, %v1800
        %v1815 = vpack.c.b16 %v1803, %v1802
        %v1816 = vpack.c.b16 %v1805, %v1804
        %v1817 = vpack.c.b16 %v1807, %v1806
        %v1818 = vpack.c.b16 %v1809, %v1808
        %v1819 = vpack.c.b16 %v1811, %v1810
        %1828 = vmatprep.subr.bf16.mxu0 0
        %1829 = vmatpush1.bf16.msra.mxu0 %v1812
        %1830 = vmatprep.subr.bf16.mxu0 0
        %1831 = vmatpush1.bf16.msra.mxu0 %v1813
        %1832 = vmatprep.subr.bf16.mxu0 0
        %1833 = vmatpush1.bf16.msra.mxu0 %v1814
        %1834 = vmatprep.subr.bf16.mxu0 0
        %1835 = vmatpush1.bf16.msra.mxu0 %v1815
        %1836 = vmatprep.subr.bf16.mxu0 0
        %1837 = vmatpush1.bf16.msra.mxu0 %v1816
        %1838 = vmatprep.subr.bf16.mxu0 0
        %1839 = vmatpush1.bf16.msra.mxu0 %v1817
        %1840 = vmatprep.subr.bf16.mxu0 0
        %1841 = vmatpush1.bf16.msra.mxu0 %v1818
        %1842 = vmatprep.subr.bf16.mxu0 0
        %1843 = vmatpush1.bf16.msra.mxu0 %v1819
        %1844 = vmatprep.subr.bf16.mxu0 0
        %1845 = vmatpush1.bf16.msra.mxu0 0
        %1846 = vmatprep.subr.bf16.mxu0 0
        %1847 = vmatpush1.bf16.msra.mxu0 0
        %1848 = vmatprep.subr.bf16.mxu0 0
        %1849 = vmatpush1.bf16.msra.mxu0 0
        %1850 = vmatprep.subr.bf16.mxu0 0
        %1851 = vmatpush1.bf16.msra.mxu0 0
        %1852 = vmatprep.subr.bf16.mxu0 0
        %1853 = vmatpush1.bf16.msra.mxu0 0
        %1854 = vmatprep.subr.bf16.mxu0 0
        %1855 = vmatpush1.bf16.msra.mxu0 0
        %1856 = vmatprep.subr.bf16.mxu0 0
        %1857 = vmatpush1.bf16.msra.mxu0 0
        %1858 = vmatprep.subr.bf16.mxu0 0
        %1859 = vmatpush1.bf16.msra.mxu0 0
        %1860 = vmatprep.mubr.bf16.mxu0 0
        %1861 = vmatmul.mubr.bf16.gmra.mrb[0].mxu0 %v1748
        %v1862 = vpop.f32.mrb[0].mxu0
        %v1863 = vadd.f32 0.0, %v1862
        %v1864 = vpop.f32.mrb[0].mxu0
        %v1865 = vpop.f32.mrb[0].mxu0
        %v1866 = vadd.f32 0.0, %v1865
        %v1867 = vpop.f32.mrb[0].mxu0
        %1868 = vmatprep.mubr.bf16.mxu0 0
        %1869 = vmatmul.mubr.bf16.gmra.mrb[0].mxu0 %v1749
        %v1870 = vpop.f32.mrb[0].mxu0
        %v1871 = vadd.f32 0.0, %v1870
        %v1872 = vpop.f32.mrb[0].mxu0
        %v1873 = vpop.f32.mrb[0].mxu0
        %v1874 = vadd.f32 0.0, %v1873
        %v1875 = vpop.f32.mrb[0].mxu0
        %1876 = vmatprep.mubr.bf16.mxu0 0
        %1877 = vmatmul.mubr.bf16.gmra.mrb[0].mxu0 %v1750
        %v1878 = vpop.f32.mrb[0].mxu0
        %v1879 = vadd.f32 0.0, %v1878
        %v1880 = vpop.f32.mrb[0].mxu0
        %v1881 = vpop.f32.mrb[0].mxu0
        %v1882 = vadd.f32 0.0, %v1881
        %v1883 = vpop.f32.mrb[0].mxu0
        %1884 = vmatprep.mubr.bf16.mxu0 0
        %1885 = vmatmul.mubr.bf16.gmra.mrb[0].mxu0 %v1751
        %v1886 = vpop.f32.mrb[0].mxu0
        %v1887 = vadd.f32 0.0, %v1886
        %v1888 = vpop.f32.mrb[0].mxu0
        %v1889 = vpop.f32.mrb[0].mxu0
        %v1890 = vadd.f32 0.0, %v1889
        %v1891 = vpop.f32.mrb[0].mxu0
        %1892 = vmatprep.mubr.bf16.mxu0 0
        %1893 = vmatmul.mubr.bf16.gmra.mrb[0].mxu0 %v1752
        %v1894 = vpop.f32.mrb[0].mxu0
        %v1895 = vadd.f32 0.0, %v1894
        %v1896 = vpop.f32.mrb[0].mxu0
        %v1897 = vpop.f32.mrb[0].mxu0
        %v1898 = vadd.f32 0.0, %v1897
        %v1899 = vpop.f32.mrb[0].mxu0
        %1900 = vmatprep.mubr.bf16.mxu0 0
        %1901 = vmatmul.mubr.bf16.gmra.mrb[0].mxu0 %v1753
        %v1902 = vpop.f32.mrb[0].mxu0
        %v1903 = vadd.f32 0.0, %v1902
        %v1904 = vpop.f32.mrb[0].mxu0
        %v1905 = vpop.f32.mrb[0].mxu0
        %v1906 = vadd.f32 0.0, %v1905
        %v1907 = vpop.f32.mrb[0].mxu0
        %1908 = vmatprep.mubr.bf16.mxu0 0
        %1909 = vmatmul.mubr.bf16.gmra.mrb[0].mxu0 %v1754
        %v1910 = vpop.f32.mrb[0].mxu0
        %v1911 = vadd.f32 0.0, %v1910
        %v1912 = vpop.f32.mrb[0].mxu0
        %v1913 = vpop.f32.mrb[0].mxu0
        %v1914 = vadd.f32 0.0, %v1913
        %v1915 = vpop.f32.mrb[0].mxu0
        %1916 = vmatprep.mubr.bf16.mxu0 0
        %1917 = vmatmul.mubr.bf16.gmra.mrb[0].mxu0 %v1755
        %v1918 = vpop.f32.mrb[0].mxu0
        %v1919 = vadd.f32 0.0, %v1918
        %v1920 = vpop.f32.mrb[0].mxu0
        %v1921 = vpop.f32.mrb[0].mxu0
        %v1922 = vadd.f32 0.0, %v1921
        %v1923 = vpop.f32.mrb[0].mxu0
        %1924 = vmatprep.mubr.bf16.mxu0 0
        %1925 = vmatmul.mubr.bf16.gmra.mrb[0].mxu0 %v1756
        %v1926 = vpop.f32.mrb[0].mxu0
        %v1927 = vadd.f32 0.0, %v1926
        %v1928 = vpop.f32.mrb[0].mxu0
        %v1929 = vpop.f32.mrb[0].mxu0
        %v1930 = vadd.f32 0.0, %v1929
        %v1931 = vpop.f32.mrb[0].mxu0
        %1932 = vmatprep.mubr.bf16.mxu0 0
        %1933 = vmatmul.mubr.bf16.gmra.mrb[0].mxu0 %v1757
        %v1934 = vpop.f32.mrb[0].mxu0
        %v1935 = vadd.f32 0.0, %v1934
        %v1936 = vpop.f32.mrb[0].mxu0
        %v1937 = vpop.f32.mrb[0].mxu0
        %v1938 = vadd.f32 0.0, %v1937
        %v1939 = vpop.f32.mrb[0].mxu0
        %1940 = vmatprep.mubr.bf16.mxu0 0
        %1941 = vmatmul.mubr.bf16.gmra.mrb[0].mxu0 %v1758
        %v1942 = vpop.f32.mrb[0].mxu0
        %v1943 = vadd.f32 0.0, %v1942
        %v1944 = vpop.f32.mrb[0].mxu0
        %v1945 = vpop.f32.mrb[0].mxu0
        %v1946 = vadd.f32 0.0, %v1945
        %v1947 = vpop.f32.mrb[0].mxu0
        %1948 = vmatprep.mubr.bf16.mxu0 0
        %1949 = vmatmul.mubr.bf16.gmra.mrb[0].mxu0 %v1759
        %v1950 = vpop.f32.mrb[0].mxu0
        %v1951 = vadd.f32 0.0, %v1950
        %v1952 = vpop.f32.mrb[0].mxu0
        %v1953 = vpop.f32.mrb[0].mxu0
        %v1954 = vadd.f32 0.0, %v1953
        %v1955 = vpop.f32.mrb[0].mxu0
        %1956 = vmatprep.mubr.bf16.mxu0 0
        %1957 = vmatmul.mubr.bf16.gmra.mrb[0].mxu0 %v1760
        %v1958 = vpop.f32.mrb[0].mxu0
        %v1959 = vadd.f32 0.0, %v1958
        %v1960 = vpop.f32.mrb[0].mxu0
        %v1961 = vpop.f32.mrb[0].mxu0
        %v1962 = vadd.f32 0.0, %v1961
        %v1963 = vpop.f32.mrb[0].mxu0
        %1964 = vmatprep.mubr.bf16.mxu0 0
        %1965 = vmatmul.mubr.bf16.gmra.mrb[0].mxu0 %v1761
        %v1966 = vpop.f32.mrb[0].mxu0
        %v1967 = vadd.f32 0.0, %v1966
        %v1968 = vpop.f32.mrb[0].mxu0
        %v1969 = vpop.f32.mrb[0].mxu0
        %v1970 = vadd.f32 0.0, %v1969
        %v1971 = vpop.f32.mrb[0].mxu0
        %1972 = vmatprep.mubr.bf16.mxu0 0
        %1973 = vmatmul.mubr.bf16.gmra.mrb[0].mxu0 %v1762
        %v1974 = vpop.f32.mrb[0].mxu0
        %v1975 = vadd.f32 0.0, %v1974
        %v1976 = vpop.f32.mrb[0].mxu0
        %v1977 = vpop.f32.mrb[0].mxu0
        %v1978 = vadd.f32 0.0, %v1977
        %v1979 = vpop.f32.mrb[0].mxu0
        %1980 = vdwg.mxu0
        %v1997 = vunpack.c.l.b16 %v1702
        %v1998 = vunpack.c.l.b16 %v1703
        %v1999 = vunpack.c.l.b16 %v1704
        %v2000 = vunpack.c.l.b16 %v1705
        %v2001 = vunpack.c.l.b16 %v1706
        %v2002 = vunpack.c.l.b16 %v1707
        %v2003 = vunpack.c.l.b16 %v1708
        %v2004 = vunpack.c.l.b16 %v1709
        %v2005 = vunpack.c.l.b16 %v1710
        %v2006 = vunpack.c.l.b16 %v1711
        %v2007 = vunpack.c.l.b16 %v1712
        %v2008 = vunpack.c.l.b16 %v1713
        %v2009 = vunpack.c.l.b16 %v1714
        %v2010 = vunpack.c.l.b16 %v1715
        %v2011 = vunpack.c.l.b16 %v1716
        %v2012 = vunpack.c.l.b16 %v1717
        %v2013 = vpack.c.b16 %v1998, %v1997
        %v2014 = vpack.c.b16 %v2000, %v1999
        %v2015 = vpack.c.b16 %v2002, %v2001
        %v2016 = vpack.c.b16 %v2004, %v2003
        %v2017 = vpack.c.b16 %v2006, %v2005
        %v2018 = vpack.c.b16 %v2008, %v2007
        %v2019 = vpack.c.b16 %v2010, %v2009
        %v2020 = vpack.c.b16 %v2012, %v2011
        %2029 = vmatprep.subr.bf16.mxu0 0
        %2030 = vmatpush1.bf16.msra.mxu0 %v2013
        %2031 = vmatprep.subr.bf16.mxu0 0
        %2032 = vmatpush1.bf16.msra.mxu0 %v2014
        %2033 = vmatprep.subr.bf16.mxu0 0
        %2034 = vmatpush1.bf16.msra.mxu0 %v2015
        %2035 = vmatprep.subr.bf16.mxu0 0
        %2036 = vmatpush1.bf16.msra.mxu0 %v2016
        %2037 = vmatprep.subr.bf16.mxu0 0
        %2038 = vmatpush1.bf16.msra.mxu0 %v2017
        %2039 = vmatprep.subr.bf16.mxu0 0
        %2040 = vmatpush1.bf16.msra.mxu0 %v2018
        %2041 = vmatprep.subr.bf16.mxu0 0
        %2042 = vmatpush1.bf16.msra.mxu0 %v2019
        %2043 = vmatprep.subr.bf16.mxu0 0
        %2044 = vmatpush1.bf16.msra.mxu0 %v2020
        %2045 = vmatprep.subr.bf16.mxu0 0
        %2046 = vmatpush1.bf16.msra.mxu0 0
        %2047 = vmatprep.subr.bf16.mxu0 0
        %2048 = vmatpush1.bf16.msra.mxu0 0
        %2049 = vmatprep.subr.bf16.mxu0 0
        %2050 = vmatpush1.bf16.msra.mxu0 0
        %2051 = vmatprep.subr.bf16.mxu0 0
        %2052 = vmatpush1.bf16.msra.mxu0 0
        %2053 = vmatprep.subr.bf16.mxu0 0
        %2054 = vmatpush1.bf16.msra.mxu0 0
        %2055 = vmatprep.subr.bf16.mxu0 0
        %2056 = vmatpush1.bf16.msra.mxu0 0
        %2057 = vmatprep.subr.bf16.mxu0 0
        %2058 = vmatpush1.bf16.msra.mxu0 0
        %2059 = vmatprep.subr.bf16.mxu0 0
        %2060 = vmatpush1.bf16.msra.mxu0 0
        %2061 = vmatprep.mubr.bf16.mxu0 0
        %2062 = vmatmul.mubr.bf16.gmra.mrb[0].mxu0 %v1687
        %v2063 = vpop.f32.mrb[0].mxu0
        %v2064 = vadd.f32 %v1863, %v2063
        %v2065 = vpop.f32.mrb[0].mxu0
        %v2066 = vpop.f32.mrb[0].mxu0
        %v2067 = vadd.f32 %v1866, %v2066
        %v2068 = vpop.f32.mrb[0].mxu0
        %2069 = vmatprep.mubr.bf16.mxu0 0
        %2070 = vmatmul.mubr.bf16.gmra.mrb[0].mxu0 %v1688
        %v2071 = vpop.f32.mrb[0].mxu0
        %v2072 = vadd.f32 %v1871, %v2071
        %v2073 = vpop.f32.mrb[0].mxu0
        %v2074 = vpop.f32.mrb[0].mxu0
        %v2075 = vadd.f32 %v1874, %v2074
        %v2076 = vpop.f32.mrb[0].mxu0
        %2077 = vmatprep.mubr.bf16.mxu0 0
        %2078 = vmatmul.mubr.bf16.gmra.mrb[0].mxu0 %v1689
        %v2079 = vpop.f32.mrb[0].mxu0
        %v2080 = vadd.f32 %v1879, %v2079
        %v2081 = vpop.f32.mrb[0].mxu0
        %v2082 = vpop.f32.mrb[0].mxu0
        %v2083 = vadd.f32 %v1882, %v2082
        %v2084 = vpop.f32.mrb[0].mxu0
        %2085 = vmatprep.mubr.bf16.mxu0 0
        %2086 = vmatmul.mubr.bf16.gmra.mrb[0].mxu0 %v1690
        %v2087 = vpop.f32.mrb[0].mxu0
        %v2088 = vadd.f32 %v1887, %v2087
        %v2089 = vpop.f32.mrb[0].mxu0
        %v2090 = vpop.f32.mrb[0].mxu0
        %v2091 = vadd.f32 %v1890, %v2090
        %v2092 = vpop.f32.mrb[0].mxu0
        %2093 = vmatprep.mubr.bf16.mxu0 0
        %2094 = vmatmul.mubr.bf16.gmra.mrb[0].mxu0 %v1691
        %v2095 = vpop.f32.mrb[0].mxu0
        %v2096 = vadd.f32 %v1895, %v2095
        %v2097 = vpop.f32.mrb[0].mxu0
        %v2098 = vpop.f32.mrb[0].mxu0
        %v2099 = vadd.f32 %v1898, %v2098
        %v2100 = vpop.f32.mrb[0].mxu0
        %2101 = vmatprep.mubr.bf16.mxu0 0
        %2102 = vmatmul.mubr.bf16.gmra.mrb[0].mxu0 %v1692
        %v2103 = vpop.f32.mrb[0].mxu0
        %v2104 = vadd.f32 %v1903, %v2103
        %v2105 = vpop.f32.mrb[0].mxu0
        %v2106 = vpop.f32.mrb[0].mxu0
        %v2107 = vadd.f32 %v1906, %v2106
        %v2108 = vpop.f32.mrb[0].mxu0
        %2109 = vmatprep.mubr.bf16.mxu0 0
        %2110 = vmatmul.mubr.bf16.gmra.mrb[0].mxu0 %v1693
        %v2111 = vpop.f32.mrb[0].mxu0
        %v2112 = vadd.f32 %v1911, %v2111
        %v2113 = vpop.f32.mrb[0].mxu0
        %v2114 = vpop.f32.mrb[0].mxu0
        %v2115 = vadd.f32 %v1914, %v2114
        %v2116 = vpop.f32.mrb[0].mxu0
        %2117 = vmatprep.mubr.bf16.mxu0 0
        %2118 = vmatmul.mubr.bf16.gmra.mrb[0].mxu0 %v1694
        %v2119 = vpop.f32.mrb[0].mxu0
        %v2120 = vadd.f32 %v1919, %v2119
        %v2121 = vpop.f32.mrb[0].mxu0
        %v2122 = vpop.f32.mrb[0].mxu0
        %v2123 = vadd.f32 %v1922, %v2122
        %v2124 = vpop.f32.mrb[0].mxu0
        %2125 = vmatprep.mubr.bf16.mxu0 0
        %2126 = vmatmul.mubr.bf16.gmra.mrb[0].mxu0 %v1695
        %v2127 = vpop.f32.mrb[0].mxu0
        %v2128 = vadd.f32 %v1927, %v2127
        %v2129 = vpop.f32.mrb[0].mxu0
        %v2130 = vpop.f32.mrb[0].mxu0
        %v2131 = vadd.f32 %v1930, %v2130
        %v2132 = vpop.f32.mrb[0].mxu0
        %2133 = vmatprep.mubr.bf16.mxu0 0
        %2134 = vmatmul.mubr.bf16.gmra.mrb[0].mxu0 %v1696
        %v2135 = vpop.f32.mrb[0].mxu0
        %v2136 = vadd.f32 %v1935, %v2135
        %v2137 = vpop.f32.mrb[0].mxu0
        %v2138 = vpop.f32.mrb[0].mxu0
        %v2139 = vadd.f32 %v1938, %v2138
        %v2140 = vpop.f32.mrb[0].mxu0
        %2141 = vmatprep.mubr.bf16.mxu0 0
        %2142 = vmatmul.mubr.bf16.gmra.mrb[0].mxu0 %v1697
        %v2143 = vpop.f32.mrb[0].mxu0
        %v2144 = vadd.f32 %v1943, %v2143
        %v2145 = vpop.f32.mrb[0].mxu0
        %v2146 = vpop.f32.mrb[0].mxu0
        %v2147 = vadd.f32 %v1946, %v2146
        %v2148 = vpop.f32.mrb[0].mxu0
        %2149 = vmatprep.mubr.bf16.mxu0 0
        %2150 = vmatmul.mubr.bf16.gmra.mrb[0].mxu0 %v1698
        %v2151 = vpop.f32.mrb[0].mxu0
        %v2152 = vadd.f32 %v1951, %v2151
        %v2153 = vpop.f32.mrb[0].mxu0
        %v2154 = vpop.f32.mrb[0].mxu0
        %v2155 = vadd.f32 %v1954, %v2154
        %v2156 = vpop.f32.mrb[0].mxu0
        %2157 = vmatprep.mubr.bf16.mxu0 0
        %2158 = vmatmul.mubr.bf16.gmra.mrb[0].mxu0 %v1699
        %v2159 = vpop.f32.mrb[0].mxu0
        %v2160 = vadd.f32 %v1959, %v2159
        %v2161 = vpop.f32.mrb[0].mxu0
        %v2162 = vpop.f32.mrb[0].mxu0
        %v2163 = vadd.f32 %v1962, %v2162
        %v2164 = vpop.f32.mrb[0].mxu0
        %2165 = vmatprep.mubr.bf16.mxu0 0
        %2166 = vmatmul.mubr.bf16.gmra.mrb[0].mxu0 %v1700
        %v2167 = vpop.f32.mrb[0].mxu0
        %v2168 = vadd.f32 %v1967, %v2167
        %v2169 = vpop.f32.mrb[0].mxu0
        %v2170 = vpop.f32.mrb[0].mxu0
        %v2171 = vadd.f32 %v1970, %v2170
        %v2172 = vpop.f32.mrb[0].mxu0
        %2173 = vmatprep.mubr.bf16.mxu0 0
        %2174 = vmatmul.mubr.bf16.gmra.mrb[0].mxu0 %v1701
        %v2175 = vpop.f32.mrb[0].mxu0
        %v2176 = vadd.f32 %v1975, %v2175
        %v2177 = vpop.f32.mrb[0].mxu0
        %v2178 = vpop.f32.mrb[0].mxu0
        %v2179 = vadd.f32 %v1978, %v2178
        %v2180 = vpop.f32.mrb[0].mxu0
        %2181 = vdwg.mxu0
        %v2182 = vld [vmem:[#allocation2 + $0x2] sm:$0xff]
        %v2183 = vld [vmem:[#allocation2 + $0xa] sm:$0xff]
        %v2184 = vld [vmem:[#allocation2 + $0x12] sm:$0xff]
        %v2185 = vld [vmem:[#allocation2 + $0x1a] sm:$0xff]
        %v2186 = vld [vmem:[#allocation2 + $0x22] sm:$0xff]
        %v2187 = vld [vmem:[#allocation2 + $0x2a] sm:$0xff]
        %v2188 = vld [vmem:[#allocation2 + $0x32] sm:$0xff]
        %v2189 = vld [vmem:[#allocation2 + $0x3a] sm:$0xff]
        %v2190 = vld [vmem:[#allocation2 + $0x42] sm:$0xff]
        %v2191 = vld [vmem:[#allocation2 + $0x4a] sm:$0xff]
        %v2192 = vld [vmem:[#allocation2 + $0x52] sm:$0xff]
        %v2193 = vld [vmem:[#allocation2 + $0x5a] sm:$0xff]
        %v2194 = vld [vmem:[#allocation2 + $0x62] sm:$0xff]
        %v2195 = vld [vmem:[#allocation2 + $0x6a] sm:$0xff]
        %v2196 = vld [vmem:[#allocation2 + $0x72] sm:$0xff]
        %v2197 = vld [vmem:[#allocation2 + $0x7a] sm:$0xff]
        %v2198 = vld [vmem:[#allocation2 + $0x82] sm:$0xff]
        %v2199 = vld [vmem:[#allocation2 + $0x8a] sm:$0xff]
        %v2200 = vld [vmem:[#allocation2 + $0x92] sm:$0xff]
        %v2201 = vld [vmem:[#allocation2 + $0x9a] sm:$0xff]
        %v2202 = vld [vmem:[#allocation2 + $0xa2] sm:$0xff]
        %v2203 = vld [vmem:[#allocation2 + $0xaa] sm:$0xff]
        %v2204 = vld [vmem:[#allocation2 + $0xb2] sm:$0xff]
        %v2205 = vld [vmem:[#allocation2 + $0xba] sm:$0xff]
        %v2206 = vld [vmem:[#allocation2 + $0xc2] sm:$0xff]
        %v2207 = vld [vmem:[#allocation2 + $0xca] sm:$0xff]
        %v2208 = vld [vmem:[#allocation2 + $0xd2] sm:$0xff]
        %v2209 = vld [vmem:[#allocation2 + $0xda] sm:$0xff]
        %v2210 = vld [vmem:[#allocation2 + $0xe2] sm:$0xff]
        %v2211 = vld [vmem:[#allocation2 + $0xea] sm:$0x1f]
        %v2212 = vpack.c.bf16 %v2183, %v2182
        %v2213 = vpack.c.bf16 %v2185, %v2184
        %v2214 = vpack.c.bf16 %v2187, %v2186
        %v2215 = vpack.c.bf16 %v2189, %v2188
        %v2216 = vpack.c.bf16 %v2191, %v2190
        %v2217 = vpack.c.bf16 %v2193, %v2192
        %v2218 = vpack.c.bf16 %v2195, %v2194
        %v2219 = vpack.c.bf16 %v2197, %v2196
        %v2220 = vpack.c.bf16 %v2199, %v2198
        %v2221 = vpack.c.bf16 %v2201, %v2200
        %v2222 = vpack.c.bf16 %v2203, %v2202
        %v2223 = vpack.c.bf16 %v2205, %v2204
        %v2224 = vpack.c.bf16 %v2207, %v2206
        %v2225 = vpack.c.bf16 %v2209, %v2208
        %v2226 = vpack.c.bf16 %v2211, %v2210
        %s2227 = scalar_lea.vmem %s8, 128
        %v2228 = vld [vmem:[%s2227] sm:$0xf]
        %v2229 = vld [vmem:[%s2227 + $0x4] sm:$0xf]
        %v2230 = vld [vmem:[%s2227 + $0x8] sm:$0xf]
        %v2231 = vld [vmem:[%s2227 + $0xc] sm:$0xf]
        %v2232 = vld [vmem:[%s2227 + $0x10] sm:$0xf]
        %v2233 = vld [vmem:[%s2227 + $0x14] sm:$0xf]
        %v2234 = vld [vmem:[%s2227 + $0x18] sm:$0xf]
        %v2235 = vld [vmem:[%s2227 + $0x1c] sm:$0xf]
        %v2236 = vld [vmem:[%s2227 + $0x20] sm:$0xf]
        %v2237 = vld [vmem:[%s2227 + $0x24] sm:$0xf]
        %v2238 = vld [vmem:[%s2227 + $0x28] sm:$0xf]
        %v2239 = vld [vmem:[%s2227 + $0x2c] sm:$0xf]
        %v2240 = vld [vmem:[%s2227 + $0x30] sm:$0xf]
        %v2241 = vld [vmem:[%s2227 + $0x34] sm:$0xf]
        %v2242 = vld [vmem:[%s2227 + $0x38] sm:$0xf]
        %v2243 = vld [vmem:[%s2227 + $0x3c] sm:$0xf]
        %v2260 = vunpack.c.l.b16 %v2228
        %v2261 = vunpack.c.l.b16 %v2229
        %v2262 = vunpack.c.l.b16 %v2230
        %v2263 = vunpack.c.l.b16 %v2231
        %v2264 = vunpack.c.l.b16 %v2232
        %v2265 = vunpack.c.l.b16 %v2233
        %v2266 = vunpack.c.l.b16 %v2234
        %v2267 = vunpack.c.l.b16 %v2235
        %v2268 = vunpack.c.l.b16 %v2236
        %v2269 = vunpack.c.l.b16 %v2237
        %v2270 = vunpack.c.l.b16 %v2238
        %v2271 = vunpack.c.l.b16 %v2239
        %v2272 = vunpack.c.l.b16 %v2240
        %v2273 = vunpack.c.l.b16 %v2241
        %v2274 = vunpack.c.l.b16 %v2242
        %v2275 = vunpack.c.l.b16 %v2243
        %v2276 = vpack.c.b16 %v2261, %v2260
        %v2277 = vpack.c.b16 %v2263, %v2262
        %v2278 = vpack.c.b16 %v2265, %v2264
        %v2279 = vpack.c.b16 %v2267, %v2266
        %v2280 = vpack.c.b16 %v2269, %v2268
        %v2281 = vpack.c.b16 %v2271, %v2270
        %v2282 = vpack.c.b16 %v2273, %v2272
        %v2283 = vpack.c.b16 %v2275, %v2274
        %2292 = vmatprep.subr.bf16.mxu0 0
        %2293 = vmatpush1.bf16.msra.mxu0 %v2276
        %2294 = vmatprep.subr.bf16.mxu0 0
        %2295 = vmatpush1.bf16.msra.mxu0 %v2277
        %2296 = vmatprep.subr.bf16.mxu0 0
        %2297 = vmatpush1.bf16.msra.mxu0 %v2278
        %2298 = vmatprep.subr.bf16.mxu0 0
        %2299 = vmatpush1.bf16.msra.mxu0 %v2279
        %2300 = vmatprep.subr.bf16.mxu0 0
        %2301 = vmatpush1.bf16.msra.mxu0 %v2280
        %2302 = vmatprep.subr.bf16.mxu0 0
        %2303 = vmatpush1.bf16.msra.mxu0 %v2281
        %2304 = vmatprep.subr.bf16.mxu0 0
        %2305 = vmatpush1.bf16.msra.mxu0 %v2282
        %2306 = vmatprep.subr.bf16.mxu0 0
        %2307 = vmatpush1.bf16.msra.mxu0 %v2283
        %2308 = vmatprep.subr.bf16.mxu0 0
        %2309 = vmatpush1.bf16.msra.mxu0 0
        %2310 = vmatprep.subr.bf16.mxu0 0
        %2311 = vmatpush1.bf16.msra.mxu0 0
        %2312 = vmatprep.subr.bf16.mxu0 0
        %2313 = vmatpush1.bf16.msra.mxu0 0
        %2314 = vmatprep.subr.bf16.mxu0 0
        %2315 = vmatpush1.bf16.msra.mxu0 0
        %2316 = vmatprep.subr.bf16.mxu0 0
        %2317 = vmatpush1.bf16.msra.mxu0 0
        %2318 = vmatprep.subr.bf16.mxu0 0
        %2319 = vmatpush1.bf16.msra.mxu0 0
        %2320 = vmatprep.subr.bf16.mxu0 0
        %2321 = vmatpush1.bf16.msra.mxu0 0
        %2322 = vmatprep.subr.bf16.mxu0 0
        %2323 = vmatpush1.bf16.msra.mxu0 0
        %2324 = vmatprep.mubr.bf16.mxu0 0
        %2325 = vmatmul.mubr.bf16.gmra.mrb[0].mxu0 %v2212
        %v2326 = vpop.f32.mrb[0].mxu0
        %v2327 = vadd.f32 0.0, %v2326
        %v2328 = vpop.f32.mrb[0].mxu0
        %v2329 = vpop.f32.mrb[0].mxu0
        %v2330 = vadd.f32 0.0, %v2329
        %v2331 = vpop.f32.mrb[0].mxu0
        %2332 = vmatprep.mubr.bf16.mxu0 0
        %2333 = vmatmul.mubr.bf16.gmra.mrb[0].mxu0 %v2213
        %v2334 = vpop.f32.mrb[0].mxu0
        %v2335 = vadd.f32 0.0, %v2334
        %v2336 = vpop.f32.mrb[0].mxu0
        %v2337 = vpop.f32.mrb[0].mxu0
        %v2338 = vadd.f32 0.0, %v2337
        %v2339 = vpop.f32.mrb[0].mxu0
        %2340 = vmatprep.mubr.bf16.mxu0 0
        %2341 = vmatmul.mubr.bf16.gmra.mrb[0].mxu0 %v2214
        %v2342 = vpop.f32.mrb[0].mxu0
        %v2343 = vadd.f32 0.0, %v2342
        %v2344 = vpop.f32.mrb[0].mxu0
        %v2345 = vpop.f32.mrb[0].mxu0
        %v2346 = vadd.f32 0.0, %v2345
        %v2347 = vpop.f32.mrb[0].mxu0
        %2348 = vmatprep.mubr.bf16.mxu0 0
        %2349 = vmatmul.mubr.bf16.gmra.mrb[0].mxu0 %v2215
        %v2350 = vpop.f32.mrb[0].mxu0
        %v2351 = vadd.f32 0.0, %v2350
        %v2352 = vpop.f32.mrb[0].mxu0
        %v2353 = vpop.f32.mrb[0].mxu0
        %v2354 = vadd.f32 0.0, %v2353
        %v2355 = vpop.f32.mrb[0].mxu0
        %2356 = vmatprep.mubr.bf16.mxu0 0
        %2357 = vmatmul.mubr.bf16.gmra.mrb[0].mxu0 %v2216
        %v2358 = vpop.f32.mrb[0].mxu0
        %v2359 = vadd.f32 0.0, %v2358
        %v2360 = vpop.f32.mrb[0].mxu0
        %v2361 = vpop.f32.mrb[0].mxu0
        %v2362 = vadd.f32 0.0, %v2361
        %v2363 = vpop.f32.mrb[0].mxu0
        %2364 = vmatprep.mubr.bf16.mxu0 0
        %2365 = vmatmul.mubr.bf16.gmra.mrb[0].mxu0 %v2217
        %v2366 = vpop.f32.mrb[0].mxu0
        %v2367 = vadd.f32 0.0, %v2366
        %v2368 = vpop.f32.mrb[0].mxu0
        %v2369 = vpop.f32.mrb[0].mxu0
        %v2370 = vadd.f32 0.0, %v2369
        %v2371 = vpop.f32.mrb[0].mxu0
        %2372 = vmatprep.mubr.bf16.mxu0 0
        %2373 = vmatmul.mubr.bf16.gmra.mrb[0].mxu0 %v2218
        %v2374 = vpop.f32.mrb[0].mxu0
        %v2375 = vadd.f32 0.0, %v2374
        %v2376 = vpop.f32.mrb[0].mxu0
        %v2377 = vpop.f32.mrb[0].mxu0
        %v2378 = vadd.f32 0.0, %v2377
        %v2379 = vpop.f32.mrb[0].mxu0
        %2380 = vmatprep.mubr.bf16.mxu0 0
        %2381 = vmatmul.mubr.bf16.gmra.mrb[0].mxu0 %v2219
        %v2382 = vpop.f32.mrb[0].mxu0
        %v2383 = vadd.f32 0.0, %v2382
        %v2384 = vpop.f32.mrb[0].mxu0
        %v2385 = vpop.f32.mrb[0].mxu0
        %v2386 = vadd.f32 0.0, %v2385
        %v2387 = vpop.f32.mrb[0].mxu0
        %2388 = vmatprep.mubr.bf16.mxu0 0
        %2389 = vmatmul.mubr.bf16.gmra.mrb[0].mxu0 %v2220
        %v2390 = vpop.f32.mrb[0].mxu0
        %v2391 = vadd.f32 0.0, %v2390
        %v2392 = vpop.f32.mrb[0].mxu0
        %v2393 = vpop.f32.mrb[0].mxu0
        %v2394 = vadd.f32 0.0, %v2393
        %v2395 = vpop.f32.mrb[0].mxu0
        %2396 = vmatprep.mubr.bf16.mxu0 0
        %2397 = vmatmul.mubr.bf16.gmra.mrb[0].mxu0 %v2221
        %v2398 = vpop.f32.mrb[0].mxu0
        %v2399 = vadd.f32 0.0, %v2398
        %v2400 = vpop.f32.mrb[0].mxu0
        %v2401 = vpop.f32.mrb[0].mxu0
        %v2402 = vadd.f32 0.0, %v2401
        %v2403 = vpop.f32.mrb[0].mxu0
        %2404 = vmatprep.mubr.bf16.mxu0 0
        %2405 = vmatmul.mubr.bf16.gmra.mrb[0].mxu0 %v2222
        %v2406 = vpop.f32.mrb[0].mxu0
        %v2407 = vadd.f32 0.0, %v2406
        %v2408 = vpop.f32.mrb[0].mxu0
        %v2409 = vpop.f32.mrb[0].mxu0
        %v2410 = vadd.f32 0.0, %v2409
        %v2411 = vpop.f32.mrb[0].mxu0
        %2412 = vmatprep.mubr.bf16.mxu0 0
        %2413 = vmatmul.mubr.bf16.gmra.mrb[0].mxu0 %v2223
        %v2414 = vpop.f32.mrb[0].mxu0
        %v2415 = vadd.f32 0.0, %v2414
        %v2416 = vpop.f32.mrb[0].mxu0
        %v2417 = vpop.f32.mrb[0].mxu0
        %v2418 = vadd.f32 0.0, %v2417
        %v2419 = vpop.f32.mrb[0].mxu0
        %2420 = vmatprep.mubr.bf16.mxu0 0
        %2421 = vmatmul.mubr.bf16.gmra.mrb[0].mxu0 %v2224
        %v2422 = vpop.f32.mrb[0].mxu0
        %v2423 = vadd.f32 0.0, %v2422
        %v2424 = vpop.f32.mrb[0].mxu0
        %v2425 = vpop.f32.mrb[0].mxu0
        %v2426 = vadd.f32 0.0, %v2425
        %v2427 = vpop.f32.mrb[0].mxu0
        %2428 = vmatprep.mubr.bf16.mxu0 0
        %2429 = vmatmul.mubr.bf16.gmra.mrb[0].mxu0 %v2225
        %v2430 = vpop.f32.mrb[0].mxu0
        %v2431 = vadd.f32 0.0, %v2430
        %v2432 = vpop.f32.mrb[0].mxu0
        %v2433 = vpop.f32.mrb[0].mxu0
        %v2434 = vadd.f32 0.0, %v2433
        %v2435 = vpop.f32.mrb[0].mxu0
        %2436 = vmatprep.mubr.bf16.mxu0 0
        %2437 = vmatmul.mubr.bf16.gmra.mrb[0].mxu0 %v2226
        %v2438 = vpop.f32.mrb[0].mxu0
        %v2439 = vadd.f32 0.0, %v2438
        %v2440 = vpop.f32.mrb[0].mxu0
        %v2441 = vpop.f32.mrb[0].mxu0
        %v2442 = vadd.f32 0.0, %v2441
        %v2443 = vpop.f32.mrb[0].mxu0
        %2444 = vdwg.mxu0
        %v2445 = vadd.f32 %v2064, %v2327
        %v2446 = vadd.f32 %v2067, %v2330
        %v2447 = vadd.f32 %v2072, %v2335
        %v2448 = vadd.f32 %v2075, %v2338
        %v2449 = vadd.f32 %v2080, %v2343
        %v2450 = vadd.f32 %v2083, %v2346
        %v2451 = vadd.f32 %v2088, %v2351
        %v2452 = vadd.f32 %v2091, %v2354
        %v2453 = vadd.f32 %v2096, %v2359
        %v2454 = vadd.f32 %v2099, %v2362
        %v2455 = vadd.f32 %v2104, %v2367
        %v2456 = vadd.f32 %v2107, %v2370
        %v2457 = vadd.f32 %v2112, %v2375
        %v2458 = vadd.f32 %v2115, %v2378
        %v2459 = vadd.f32 %v2120, %v2383
        %v2460 = vadd.f32 %v2123, %v2386
        %v2461 = vadd.f32 %v2128, %v2391
        %v2462 = vadd.f32 %v2131, %v2394
        %v2463 = vadd.f32 %v2136, %v2399
        %v2464 = vadd.f32 %v2139, %v2402
        %v2465 = vadd.f32 %v2144, %v2407
        %v2466 = vadd.f32 %v2147, %v2410
        %v2467 = vadd.f32 %v2152, %v2415
        %v2468 = vadd.f32 %v2155, %v2418
        %v2469 = vadd.f32 %v2160, %v2423
        %v2470 = vadd.f32 %v2163, %v2426
        %v2471 = vadd.f32 %v2168, %v2431
        %v2472 = vadd.f32 %v2171, %v2434
        %v2473 = vadd.f32 %v2176, %v2439
        %v2474 = vadd.f32 %v2179, %v2442
        %v2475 = vld [vmem:[#allocation2 + $0x3] sm:$0xff]
        %v2476 = vld [vmem:[#allocation2 + $0xb] sm:$0xff]
        %v2477 = vld [vmem:[#allocation2 + $0x13] sm:$0xff]
        %v2478 = vld [vmem:[#allocation2 + $0x1b] sm:$0xff]
        %v2479 = vld [vmem:[#allocation2 + $0x23] sm:$0xff]
        %v2480 = vld [vmem:[#allocation2 + $0x2b] sm:$0xff]
        %v2481 = vld [vmem:[#allocation2 + $0x33] sm:$0xff]
        %v2482 = vld [vmem:[#allocation2 + $0x3b] sm:$0xff]
        %v2483 = vld [vmem:[#allocation2 + $0x43] sm:$0xff]
        %v2484 = vld [vmem:[#allocation2 + $0x4b] sm:$0xff]
        %v2485 = vld [vmem:[#allocation2 + $0x53] sm:$0xff]
        %v2486 = vld [vmem:[#allocation2 + $0x5b] sm:$0xff]
        %v2487 = vld [vmem:[#allocation2 + $0x63] sm:$0xff]
        %v2488 = vld [vmem:[#allocation2 + $0x6b] sm:$0xff]
        %v2489 = vld [vmem:[#allocation2 + $0x73] sm:$0xff]
        %v2490 = vld [vmem:[#allocation2 + $0x7b] sm:$0xff]
        %v2491 = vld [vmem:[#allocation2 + $0x83] sm:$0xff]
        %v2492 = vld [vmem:[#allocation2 + $0x8b] sm:$0xff]
        %v2493 = vld [vmem:[#allocation2 + $0x93] sm:$0xff]
        %v2494 = vld [vmem:[#allocation2 + $0x9b] sm:$0xff]
        %v2495 = vld [vmem:[#allocation2 + $0xa3] sm:$0xff]
        %v2496 = vld [vmem:[#allocation2 + $0xab] sm:$0xff]
        %v2497 = vld [vmem:[#allocation2 + $0xb3] sm:$0xff]
        %v2498 = vld [vmem:[#allocation2 + $0xbb] sm:$0xff]
        %v2499 = vld [vmem:[#allocation2 + $0xc3] sm:$0xff]
        %v2500 = vld [vmem:[#allocation2 + $0xcb] sm:$0xff]
        %v2501 = vld [vmem:[#allocation2 + $0xd3] sm:$0xff]
        %v2502 = vld [vmem:[#allocation2 + $0xdb] sm:$0xff]
        %v2503 = vld [vmem:[#allocation2 + $0xe3] sm:$0xff]
        %v2504 = vld [vmem:[#allocation2 + $0xeb] sm:$0x1f]
        %v2505 = vpack.c.bf16 %v2476, %v2475
        %v2506 = vpack.c.bf16 %v2478, %v2477
        %v2507 = vpack.c.bf16 %v2480, %v2479
        %v2508 = vpack.c.bf16 %v2482, %v2481
        %v2509 = vpack.c.bf16 %v2484, %v2483
        %v2510 = vpack.c.bf16 %v2486, %v2485
        %v2511 = vpack.c.bf16 %v2488, %v2487
        %v2512 = vpack.c.bf16 %v2490, %v2489
        %v2513 = vpack.c.bf16 %v2492, %v2491
        %v2514 = vpack.c.bf16 %v2494, %v2493
        %v2515 = vpack.c.bf16 %v2496, %v2495
        %v2516 = vpack.c.bf16 %v2498, %v2497
        %v2517 = vpack.c.bf16 %v2500, %v2499
        %v2518 = vpack.c.bf16 %v2502, %v2501
        %v2519 = vpack.c.bf16 %v2504, %v2503
        %s2520 = scalar_lea.vmem %s8, 192
        %v2521 = vld [vmem:[%s2520] sm:$0xf]
        %v2522 = vld [vmem:[%s2520 + $0x4] sm:$0xf]
        %v2523 = vld [vmem:[%s2520 + $0x8] sm:$0xf]
        %v2524 = vld [vmem:[%s2520 + $0xc] sm:$0xf]
        %v2525 = vld [vmem:[%s2520 + $0x10] sm:$0xf]
        %v2526 = vld [vmem:[%s2520 + $0x14] sm:$0xf]
        %v2527 = vld [vmem:[%s2520 + $0x18] sm:$0xf]
        %v2528 = vld [vmem:[%s2520 + $0x1c] sm:$0xf]
        %v2529 = vld [vmem:[%s2520 + $0x20] sm:$0xf]
        %v2530 = vld [vmem:[%s2520 + $0x24] sm:$0xf]
        %v2531 = vld [vmem:[%s2520 + $0x28] sm:$0xf]
        %v2532 = vld [vmem:[%s2520 + $0x2c] sm:$0xf]
        %v2533 = vld [vmem:[%s2520 + $0x30] sm:$0xf]
        %v2534 = vld [vmem:[%s2520 + $0x34] sm:$0xf]
        %v2535 = vld [vmem:[%s2520 + $0x38] sm:$0xf]
        %v2536 = vld [vmem:[%s2520 + $0x3c] sm:$0xf]
        %v2553 = vunpack.c.l.b16 %v2521
        %v2554 = vunpack.c.l.b16 %v2522
        %v2555 = vunpack.c.l.b16 %v2523
        %v2556 = vunpack.c.l.b16 %v2524
        %v2557 = vunpack.c.l.b16 %v2525
        %v2558 = vunpack.c.l.b16 %v2526
        %v2559 = vunpack.c.l.b16 %v2527
        %v2560 = vunpack.c.l.b16 %v2528
        %v2561 = vunpack.c.l.b16 %v2529
        %v2562 = vunpack.c.l.b16 %v2530
        %v2563 = vunpack.c.l.b16 %v2531
        %v2564 = vunpack.c.l.b16 %v2532
        %v2565 = vunpack.c.l.b16 %v2533
        %v2566 = vunpack.c.l.b16 %v2534
        %v2567 = vunpack.c.l.b16 %v2535
        %v2568 = vunpack.c.l.b16 %v2536
        %v2569 = vpack.c.b16 %v2554, %v2553
        %v2570 = vpack.c.b16 %v2556, %v2555
        %v2571 = vpack.c.b16 %v2558, %v2557
        %v2572 = vpack.c.b16 %v2560, %v2559
        %v2573 = vpack.c.b16 %v2562, %v2561
        %v2574 = vpack.c.b16 %v2564, %v2563
        %v2575 = vpack.c.b16 %v2566, %v2565
        %v2576 = vpack.c.b16 %v2568, %v2567
        %2585 = vmatprep.subr.bf16.mxu0 0
        %2586 = vmatpush1.bf16.msra.mxu0 %v2569
        %2587 = vmatprep.subr.bf16.mxu0 0
        %2588 = vmatpush1.bf16.msra.mxu0 %v2570
        %2589 = vmatprep.subr.bf16.mxu0 0
        %2590 = vmatpush1.bf16.msra.mxu0 %v2571
        %2591 = vmatprep.subr.bf16.mxu0 0
        %2592 = vmatpush1.bf16.msra.mxu0 %v2572
        %2593 = vmatprep.subr.bf16.mxu0 0
        %2594 = vmatpush1.bf16.msra.mxu0 %v2573
        %2595 = vmatprep.subr.bf16.mxu0 0
        %2596 = vmatpush1.bf16.msra.mxu0 %v2574
        %2597 = vmatprep.subr.bf16.mxu0 0
        %2598 = vmatpush1.bf16.msra.mxu0 %v2575
        %2599 = vmatprep.subr.bf16.mxu0 0
        %2600 = vmatpush1.bf16.msra.mxu0 %v2576
        %2601 = vmatprep.subr.bf16.mxu0 0
        %2602 = vmatpush1.bf16.msra.mxu0 0
        %2603 = vmatprep.subr.bf16.mxu0 0
        %2604 = vmatpush1.bf16.msra.mxu0 0
        %2605 = vmatprep.subr.bf16.mxu0 0
        %2606 = vmatpush1.bf16.msra.mxu0 0
        %2607 = vmatprep.subr.bf16.mxu0 0
        %2608 = vmatpush1.bf16.msra.mxu0 0
        %2609 = vmatprep.subr.bf16.mxu0 0
        %2610 = vmatpush1.bf16.msra.mxu0 0
        %2611 = vmatprep.subr.bf16.mxu0 0
        %2612 = vmatpush1.bf16.msra.mxu0 0
        %2613 = vmatprep.subr.bf16.mxu0 0
        %2614 = vmatpush1.bf16.msra.mxu0 0
        %2615 = vmatprep.subr.bf16.mxu0 0
        %2616 = vmatpush1.bf16.msra.mxu0 0
        %2617 = vmatprep.mubr.bf16.mxu0 0
        %2618 = vmatmul.mubr.bf16.gmra.mrb[0].mxu0 %v2505
        %v2619 = vpop.f32.mrb[0].mxu0
        %v2620 = vadd.f32 0.0, %v2619
        %v2621 = vpop.f32.mrb[0].mxu0
        %v2622 = vpop.f32.mrb[0].mxu0
        %v2623 = vadd.f32 0.0, %v2622
        %v2624 = vpop.f32.mrb[0].mxu0
        %2625 = vmatprep.mubr.bf16.mxu0 0
        %2626 = vmatmul.mubr.bf16.gmra.mrb[0].mxu0 %v2506
        %v2627 = vpop.f32.mrb[0].mxu0
        %v2628 = vadd.f32 0.0, %v2627
        %v2629 = vpop.f32.mrb[0].mxu0
        %v2630 = vpop.f32.mrb[0].mxu0
        %v2631 = vadd.f32 0.0, %v2630
        %v2632 = vpop.f32.mrb[0].mxu0
        %2633 = vmatprep.mubr.bf16.mxu0 0
        %2634 = vmatmul.mubr.bf16.gmra.mrb[0].mxu0 %v2507
        %v2635 = vpop.f32.mrb[0].mxu0
        %v2636 = vadd.f32 0.0, %v2635
        %v2637 = vpop.f32.mrb[0].mxu0
        %v2638 = vpop.f32.mrb[0].mxu0
        %v2639 = vadd.f32 0.0, %v2638
        %v2640 = vpop.f32.mrb[0].mxu0
        %2641 = vmatprep.mubr.bf16.mxu0 0
        %2642 = vmatmul.mubr.bf16.gmra.mrb[0].mxu0 %v2508
        %v2643 = vpop.f32.mrb[0].mxu0
        %v2644 = vadd.f32 0.0, %v2643
        %v2645 = vpop.f32.mrb[0].mxu0
        %v2646 = vpop.f32.mrb[0].mxu0
        %v2647 = vadd.f32 0.0, %v2646
        %v2648 = vpop.f32.mrb[0].mxu0
        %2649 = vmatprep.mubr.bf16.mxu0 0
        %2650 = vmatmul.mubr.bf16.gmra.mrb[0].mxu0 %v2509
        %v2651 = vpop.f32.mrb[0].mxu0
        %v2652 = vadd.f32 0.0, %v2651
        %v2653 = vpop.f32.mrb[0].mxu0
        %v2654 = vpop.f32.mrb[0].mxu0
        %v2655 = vadd.f32 0.0, %v2654
        %v2656 = vpop.f32.mrb[0].mxu0
        %2657 = vmatprep.mubr.bf16.mxu0 0
        %2658 = vmatmul.mubr.bf16.gmra.mrb[0].mxu0 %v2510
        %v2659 = vpop.f32.mrb[0].mxu0
        %v2660 = vadd.f32 0.0, %v2659
        %v2661 = vpop.f32.mrb[0].mxu0
        %v2662 = vpop.f32.mrb[0].mxu0
        %v2663 = vadd.f32 0.0, %v2662
        %v2664 = vpop.f32.mrb[0].mxu0
        %2665 = vmatprep.mubr.bf16.mxu0 0
        %2666 = vmatmul.mubr.bf16.gmra.mrb[0].mxu0 %v2511
        %v2667 = vpop.f32.mrb[0].mxu0
        %v2668 = vadd.f32 0.0, %v2667
        %v2669 = vpop.f32.mrb[0].mxu0
        %v2670 = vpop.f32.mrb[0].mxu0
        %v2671 = vadd.f32 0.0, %v2670
        %v2672 = vpop.f32.mrb[0].mxu0
        %2673 = vmatprep.mubr.bf16.mxu0 0
        %2674 = vmatmul.mubr.bf16.gmra.mrb[0].mxu0 %v2512
        %v2675 = vpop.f32.mrb[0].mxu0
        %v2676 = vadd.f32 0.0, %v2675
        %v2677 = vpop.f32.mrb[0].mxu0
        %v2678 = vpop.f32.mrb[0].mxu0
        %v2679 = vadd.f32 0.0, %v2678
        %v2680 = vpop.f32.mrb[0].mxu0
        %2681 = vmatprep.mubr.bf16.mxu0 0
        %2682 = vmatmul.mubr.bf16.gmra.mrb[0].mxu0 %v2513
        %v2683 = vpop.f32.mrb[0].mxu0
        %v2684 = vadd.f32 0.0, %v2683
        %v2685 = vpop.f32.mrb[0].mxu0
        %v2686 = vpop.f32.mrb[0].mxu0
        %v2687 = vadd.f32 0.0, %v2686
        %v2688 = vpop.f32.mrb[0].mxu0
        %2689 = vmatprep.mubr.bf16.mxu0 0
        %2690 = vmatmul.mubr.bf16.gmra.mrb[0].mxu0 %v2514
        %v2691 = vpop.f32.mrb[0].mxu0
        %v2692 = vadd.f32 0.0, %v2691
        %v2693 = vpop.f32.mrb[0].mxu0
        %v2694 = vpop.f32.mrb[0].mxu0
        %v2695 = vadd.f32 0.0, %v2694
        %v2696 = vpop.f32.mrb[0].mxu0
        %2697 = vmatprep.mubr.bf16.mxu0 0
        %2698 = vmatmul.mubr.bf16.gmra.mrb[0].mxu0 %v2515
        %v2699 = vpop.f32.mrb[0].mxu0
        %v2700 = vadd.f32 0.0, %v2699
        %v2701 = vpop.f32.mrb[0].mxu0
        %v2702 = vpop.f32.mrb[0].mxu0
        %v2703 = vadd.f32 0.0, %v2702
        %v2704 = vpop.f32.mrb[0].mxu0
        %2705 = vmatprep.mubr.bf16.mxu0 0
        %2706 = vmatmul.mubr.bf16.gmra.mrb[0].mxu0 %v2516
        %v2707 = vpop.f32.mrb[0].mxu0
        %v2708 = vadd.f32 0.0, %v2707
        %v2709 = vpop.f32.mrb[0].mxu0
        %v2710 = vpop.f32.mrb[0].mxu0
        %v2711 = vadd.f32 0.0, %v2710
        %v2712 = vpop.f32.mrb[0].mxu0
        %2713 = vmatprep.mubr.bf16.mxu0 0
        %2714 = vmatmul.mubr.bf16.gmra.mrb[0].mxu0 %v2517
        %v2715 = vpop.f32.mrb[0].mxu0
        %v2716 = vadd.f32 0.0, %v2715
        %v2717 = vpop.f32.mrb[0].mxu0
        %v2718 = vpop.f32.mrb[0].mxu0
        %v2719 = vadd.f32 0.0, %v2718
        %v2720 = vpop.f32.mrb[0].mxu0
        %2721 = vmatprep.mubr.bf16.mxu0 0
        %2722 = vmatmul.mubr.bf16.gmra.mrb[0].mxu0 %v2518
        %v2723 = vpop.f32.mrb[0].mxu0
        %v2724 = vadd.f32 0.0, %v2723
        %v2725 = vpop.f32.mrb[0].mxu0
        %v2726 = vpop.f32.mrb[0].mxu0
        %v2727 = vadd.f32 0.0, %v2726
        %v2728 = vpop.f32.mrb[0].mxu0
        %2729 = vmatprep.mubr.bf16.mxu0 0
        %2730 = vmatmul.mubr.bf16.gmra.mrb[0].mxu0 %v2519
        %v2731 = vpop.f32.mrb[0].mxu0
        %v2732 = vadd.f32 0.0, %v2731
        %v2733 = vpop.f32.mrb[0].mxu0
        %v2734 = vpop.f32.mrb[0].mxu0
        %v2735 = vadd.f32 0.0, %v2734
        %v2736 = vpop.f32.mrb[0].mxu0
        %2737 = vdwg.mxu0
        %v2738 = vadd.f32 %v2445, %v2620
        %v2739 = vadd.f32 %v2446, %v2623
        %v2740 = vadd.f32 %v2447, %v2628
        %v2741 = vadd.f32 %v2448, %v2631
        %v2742 = vadd.f32 %v2449, %v2636
        %v2743 = vadd.f32 %v2450, %v2639
        %v2744 = vadd.f32 %v2451, %v2644
        %v2745 = vadd.f32 %v2452, %v2647
        %v2746 = vadd.f32 %v2453, %v2652
        %v2747 = vadd.f32 %v2454, %v2655
        %v2748 = vadd.f32 %v2455, %v2660
        %v2749 = vadd.f32 %v2456, %v2663
        %v2750 = vadd.f32 %v2457, %v2668
        %v2751 = vadd.f32 %v2458, %v2671
        %v2752 = vadd.f32 %v2459, %v2676
        %v2753 = vadd.f32 %v2460, %v2679
        %v2754 = vadd.f32 %v2461, %v2684
        %v2755 = vadd.f32 %v2462, %v2687
        %v2756 = vadd.f32 %v2463, %v2692
        %v2757 = vadd.f32 %v2464, %v2695
        %v2758 = vadd.f32 %v2465, %v2700
        %v2759 = vadd.f32 %v2466, %v2703
        %v2760 = vadd.f32 %v2467, %v2708
        %v2761 = vadd.f32 %v2468, %v2711
        %v2762 = vadd.f32 %v2469, %v2716
        %v2763 = vadd.f32 %v2470, %v2719
        %v2764 = vadd.f32 %v2471, %v2724
        %v2765 = vadd.f32 %v2472, %v2727
        %v2766 = vadd.f32 %v2473, %v2732
        %v2767 = vadd.f32 %v2474, %v2735
        %v2768 = vld [vmem:[#allocation2 + $0x4] sm:$0xff]
        %v2769 = vld [vmem:[#allocation2 + $0xc] sm:$0xff]
        %v2770 = vld [vmem:[#allocation2 + $0x14] sm:$0xff]
        %v2771 = vld [vmem:[#allocation2 + $0x1c] sm:$0xff]
        %v2772 = vld [vmem:[#allocation2 + $0x24] sm:$0xff]
        %v2773 = vld [vmem:[#allocation2 + $0x2c] sm:$0xff]
        %v2774 = vld [vmem:[#allocation2 + $0x34] sm:$0xff]
        %v2775 = vld [vmem:[#allocation2 + $0x3c] sm:$0xff]
        %v2776 = vld [vmem:[#allocation2 + $0x44] sm:$0xff]
        %v2777 = vld [vmem:[#allocation2 + $0x4c] sm:$0xff]
        %v2778 = vld [vmem:[#allocation2 + $0x54] sm:$0xff]
        %v2779 = vld [vmem:[#allocation2 + $0x5c] sm:$0xff]
        %v2780 = vld [vmem:[#allocation2 + $0x64] sm:$0xff]
        %v2781 = vld [vmem:[#allocation2 + $0x6c] sm:$0xff]
        %v2782 = vld [vmem:[#allocation2 + $0x74] sm:$0xff]
        %v2783 = vld [vmem:[#allocation2 + $0x7c] sm:$0xff]
        %v2784 = vld [vmem:[#allocation2 + $0x84] sm:$0xff]
        %v2785 = vld [vmem:[#allocation2 + $0x8c] sm:$0xff]
        %v2786 = vld [vmem:[#allocation2 + $0x94] sm:$0xff]
        %v2787 = vld [vmem:[#allocation2 + $0x9c] sm:$0xff]
        %v2788 = vld [vmem:[#allocation2 + $0xa4] sm:$0xff]
        %v2789 = vld [vmem:[#allocation2 + $0xac] sm:$0xff]
        %v2790 = vld [vmem:[#allocation2 + $0xb4] sm:$0xff]
        %v2791 = vld [vmem:[#allocation2 + $0xbc] sm:$0xff]
        %v2792 = vld [vmem:[#allocation2 + $0xc4] sm:$0xff]
        %v2793 = vld [vmem:[#allocation2 + $0xcc] sm:$0xff]
        %v2794 = vld [vmem:[#allocation2 + $0xd4] sm:$0xff]
        %v2795 = vld [vmem:[#allocation2 + $0xdc] sm:$0xff]
        %v2796 = vld [vmem:[#allocation2 + $0xe4] sm:$0xff]
        %v2797 = vld [vmem:[#allocation2 + $0xec] sm:$0x1f]
        %v2798 = vpack.c.bf16 %v2769, %v2768
        %v2799 = vpack.c.bf16 %v2771, %v2770
        %v2800 = vpack.c.bf16 %v2773, %v2772
        %v2801 = vpack.c.bf16 %v2775, %v2774
        %v2802 = vpack.c.bf16 %v2777, %v2776
        %v2803 = vpack.c.bf16 %v2779, %v2778
        %v2804 = vpack.c.bf16 %v2781, %v2780
        %v2805 = vpack.c.bf16 %v2783, %v2782
        %v2806 = vpack.c.bf16 %v2785, %v2784
        %v2807 = vpack.c.bf16 %v2787, %v2786
        %v2808 = vpack.c.bf16 %v2789, %v2788
        %v2809 = vpack.c.bf16 %v2791, %v2790
        %v2810 = vpack.c.bf16 %v2793, %v2792
        %v2811 = vpack.c.bf16 %v2795, %v2794
        %v2812 = vpack.c.bf16 %v2797, %v2796
        %s2813 = scalar_lea.vmem %s8, 256
        %v2814 = vld [vmem:[%s2813] sm:$0xf]
        %v2815 = vld [vmem:[%s2813 + $0x4] sm:$0xf]
        %v2816 = vld [vmem:[%s2813 + $0x8] sm:$0xf]
        %v2817 = vld [vmem:[%s2813 + $0xc] sm:$0xf]
        %v2818 = vld [vmem:[%s2813 + $0x10] sm:$0xf]
        %v2819 = vld [vmem:[%s2813 + $0x14] sm:$0xf]
        %v2820 = vld [vmem:[%s2813 + $0x18] sm:$0xf]
        %v2821 = vld [vmem:[%s2813 + $0x1c] sm:$0xf]
        %v2822 = vld [vmem:[%s2813 + $0x20] sm:$0xf]
        %v2823 = vld [vmem:[%s2813 + $0x24] sm:$0xf]
        %v2824 = vld [vmem:[%s2813 + $0x28] sm:$0xf]
        %v2825 = vld [vmem:[%s2813 + $0x2c] sm:$0xf]
        %v2826 = vld [vmem:[%s2813 + $0x30] sm:$0xf]
        %v2827 = vld [vmem:[%s2813 + $0x34] sm:$0xf]
        %v2828 = vld [vmem:[%s2813 + $0x38] sm:$0xf]
        %v2829 = vld [vmem:[%s2813 + $0x3c] sm:$0xf]
        %v2846 = vunpack.c.l.b16 %v2814
        %v2847 = vunpack.c.l.b16 %v2815
        %v2848 = vunpack.c.l.b16 %v2816
        %v2849 = vunpack.c.l.b16 %v2817
        %v2850 = vunpack.c.l.b16 %v2818
        %v2851 = vunpack.c.l.b16 %v2819
        %v2852 = vunpack.c.l.b16 %v2820
        %v2853 = vunpack.c.l.b16 %v2821
        %v2854 = vunpack.c.l.b16 %v2822
        %v2855 = vunpack.c.l.b16 %v2823
        %v2856 = vunpack.c.l.b16 %v2824
        %v2857 = vunpack.c.l.b16 %v2825
        %v2858 = vunpack.c.l.b16 %v2826
        %v2859 = vunpack.c.l.b16 %v2827
        %v2860 = vunpack.c.l.b16 %v2828
        %v2861 = vunpack.c.l.b16 %v2829
        %v2862 = vpack.c.b16 %v2847, %v2846
        %v2863 = vpack.c.b16 %v2849, %v2848
        %v2864 = vpack.c.b16 %v2851, %v2850
        %v2865 = vpack.c.b16 %v2853, %v2852
        %v2866 = vpack.c.b16 %v2855, %v2854
        %v2867 = vpack.c.b16 %v2857, %v2856
        %v2868 = vpack.c.b16 %v2859, %v2858
        %v2869 = vpack.c.b16 %v2861, %v2860
        %2878 = vmatprep.subr.bf16.mxu0 0
        %2879 = vmatpush1.bf16.msra.mxu0 %v2862
        %2880 = vmatprep.subr.bf16.mxu0 0
        %2881 = vmatpush1.bf16.msra.mxu0 %v2863
        %2882 = vmatprep.subr.bf16.mxu0 0
        %2883 = vmatpush1.bf16.msra.mxu0 %v2864
        %2884 = vmatprep.subr.bf16.mxu0 0
        %2885 = vmatpush1.bf16.msra.mxu0 %v2865
        %2886 = vmatprep.subr.bf16.mxu0 0
        %2887 = vmatpush1.bf16.msra.mxu0 %v2866
        %2888 = vmatprep.subr.bf16.mxu0 0
        %2889 = vmatpush1.bf16.msra.mxu0 %v2867
        %2890 = vmatprep.subr.bf16.mxu0 0
        %2891 = vmatpush1.bf16.msra.mxu0 %v2868
        %2892 = vmatprep.subr.bf16.mxu0 0
        %2893 = vmatpush1.bf16.msra.mxu0 %v2869
        %2894 = vmatprep.subr.bf16.mxu0 0
        %2895 = vmatpush1.bf16.msra.mxu0 0
        %2896 = vmatprep.subr.bf16.mxu0 0
        %2897 = vmatpush1.bf16.msra.mxu0 0
        %2898 = vmatprep.subr.bf16.mxu0 0
        %2899 = vmatpush1.bf16.msra.mxu0 0
        %2900 = vmatprep.subr.bf16.mxu0 0
        %2901 = vmatpush1.bf16.msra.mxu0 0
        %2902 = vmatprep.subr.bf16.mxu0 0
        %2903 = vmatpush1.bf16.msra.mxu0 0
        %2904 = vmatprep.subr.bf16.mxu0 0
        %2905 = vmatpush1.bf16.msra.mxu0 0
        %2906 = vmatprep.subr.bf16.mxu0 0
        %2907 = vmatpush1.bf16.msra.mxu0 0
        %2908 = vmatprep.subr.bf16.mxu0 0
        %2909 = vmatpush1.bf16.msra.mxu0 0
        %2910 = vmatprep.mubr.bf16.mxu0 0
        %2911 = vmatmul.mubr.bf16.gmra.mrb[0].mxu0 %v2798
        %v2912 = vpop.f32.mrb[0].mxu0
        %v2913 = vadd.f32 0.0, %v2912
        %v2914 = vpop.f32.mrb[0].mxu0
        %v2915 = vpop.f32.mrb[0].mxu0
        %v2916 = vadd.f32 0.0, %v2915
        %v2917 = vpop.f32.mrb[0].mxu0
        %2918 = vmatprep.mubr.bf16.mxu0 0
        %2919 = vmatmul.mubr.bf16.gmra.mrb[0].mxu0 %v2799
        %v2920 = vpop.f32.mrb[0].mxu0
        %v2921 = vadd.f32 0.0, %v2920
        %v2922 = vpop.f32.mrb[0].mxu0
        %v2923 = vpop.f32.mrb[0].mxu0
        %v2924 = vadd.f32 0.0, %v2923
        %v2925 = vpop.f32.mrb[0].mxu0
        %2926 = vmatprep.mubr.bf16.mxu0 0
        %2927 = vmatmul.mubr.bf16.gmra.mrb[0].mxu0 %v2800
        %v2928 = vpop.f32.mrb[0].mxu0
        %v2929 = vadd.f32 0.0, %v2928
        %v2930 = vpop.f32.mrb[0].mxu0
        %v2931 = vpop.f32.mrb[0].mxu0
        %v2932 = vadd.f32 0.0, %v2931
        %v2933 = vpop.f32.mrb[0].mxu0
        %2934 = vmatprep.mubr.bf16.mxu0 0
        %2935 = vmatmul.mubr.bf16.gmra.mrb[0].mxu0 %v2801
        %v2936 = vpop.f32.mrb[0].mxu0
        %v2937 = vadd.f32 0.0, %v2936
        %v2938 = vpop.f32.mrb[0].mxu0
        %v2939 = vpop.f32.mrb[0].mxu0
        %v2940 = vadd.f32 0.0, %v2939
        %v2941 = vpop.f32.mrb[0].mxu0
        %2942 = vmatprep.mubr.bf16.mxu0 0
        %2943 = vmatmul.mubr.bf16.gmra.mrb[0].mxu0 %v2802
        %v2944 = vpop.f32.mrb[0].mxu0
        %v2945 = vadd.f32 0.0, %v2944
        %v2946 = vpop.f32.mrb[0].mxu0
        %v2947 = vpop.f32.mrb[0].mxu0
        %v2948 = vadd.f32 0.0, %v2947
        %v2949 = vpop.f32.mrb[0].mxu0
        %2950 = vmatprep.mubr.bf16.mxu0 0
        %2951 = vmatmul.mubr.bf16.gmra.mrb[0].mxu0 %v2803
        %v2952 = vpop.f32.mrb[0].mxu0
        %v2953 = vadd.f32 0.0, %v2952
        %v2954 = vpop.f32.mrb[0].mxu0
        %v2955 = vpop.f32.mrb[0].mxu0
        %v2956 = vadd.f32 0.0, %v2955
        %v2957 = vpop.f32.mrb[0].mxu0
        %2958 = vmatprep.mubr.bf16.mxu0 0
        %2959 = vmatmul.mubr.bf16.gmra.mrb[0].mxu0 %v2804
        %v2960 = vpop.f32.mrb[0].mxu0
        %v2961 = vadd.f32 0.0, %v2960
        %v2962 = vpop.f32.mrb[0].mxu0
        %v2963 = vpop.f32.mrb[0].mxu0
        %v2964 = vadd.f32 0.0, %v2963
        %v2965 = vpop.f32.mrb[0].mxu0
        %2966 = vmatprep.mubr.bf16.mxu0 0
        %2967 = vmatmul.mubr.bf16.gmra.mrb[0].mxu0 %v2805
        %v2968 = vpop.f32.mrb[0].mxu0
        %v2969 = vadd.f32 0.0, %v2968
        %v2970 = vpop.f32.mrb[0].mxu0
        %v2971 = vpop.f32.mrb[0].mxu0
        %v2972 = vadd.f32 0.0, %v2971
        %v2973 = vpop.f32.mrb[0].mxu0
        %2974 = vmatprep.mubr.bf16.mxu0 0
        %2975 = vmatmul.mubr.bf16.gmra.mrb[0].mxu0 %v2806
        %v2976 = vpop.f32.mrb[0].mxu0
        %v2977 = vadd.f32 0.0, %v2976
        %v2978 = vpop.f32.mrb[0].mxu0
        %v2979 = vpop.f32.mrb[0].mxu0
        %v2980 = vadd.f32 0.0, %v2979
        %v2981 = vpop.f32.mrb[0].mxu0
        %2982 = vmatprep.mubr.bf16.mxu0 0
        %2983 = vmatmul.mubr.bf16.gmra.mrb[0].mxu0 %v2807
        %v2984 = vpop.f32.mrb[0].mxu0
        %v2985 = vadd.f32 0.0, %v2984
        %v2986 = vpop.f32.mrb[0].mxu0
        %v2987 = vpop.f32.mrb[0].mxu0
        %v2988 = vadd.f32 0.0, %v2987
        %v2989 = vpop.f32.mrb[0].mxu0
        %2990 = vmatprep.mubr.bf16.mxu0 0
        %2991 = vmatmul.mubr.bf16.gmra.mrb[0].mxu0 %v2808
        %v2992 = vpop.f32.mrb[0].mxu0
        %v2993 = vadd.f32 0.0, %v2992
        %v2994 = vpop.f32.mrb[0].mxu0
        %v2995 = vpop.f32.mrb[0].mxu0
        %v2996 = vadd.f32 0.0, %v2995
        %v2997 = vpop.f32.mrb[0].mxu0
        %2998 = vmatprep.mubr.bf16.mxu0 0
        %2999 = vmatmul.mubr.bf16.gmra.mrb[0].mxu0 %v2809
        %v3000 = vpop.f32.mrb[0].mxu0
        %v3001 = vadd.f32 0.0, %v3000
        %v3002 = vpop.f32.mrb[0].mxu0
        %v3003 = vpop.f32.mrb[0].mxu0
        %v3004 = vadd.f32 0.0, %v3003
        %v3005 = vpop.f32.mrb[0].mxu0
        %3006 = vmatprep.mubr.bf16.mxu0 0
        %3007 = vmatmul.mubr.bf16.gmra.mrb[0].mxu0 %v2810
        %v3008 = vpop.f32.mrb[0].mxu0
        %v3009 = vadd.f32 0.0, %v3008
        %v3010 = vpop.f32.mrb[0].mxu0
        %v3011 = vpop.f32.mrb[0].mxu0
        %v3012 = vadd.f32 0.0, %v3011
        %v3013 = vpop.f32.mrb[0].mxu0
        %3014 = vmatprep.mubr.bf16.mxu0 0
        %3015 = vmatmul.mubr.bf16.gmra.mrb[0].mxu0 %v2811
        %v3016 = vpop.f32.mrb[0].mxu0
        %v3017 = vadd.f32 0.0, %v3016
        %v3018 = vpop.f32.mrb[0].mxu0
        %v3019 = vpop.f32.mrb[0].mxu0
        %v3020 = vadd.f32 0.0, %v3019
        %v3021 = vpop.f32.mrb[0].mxu0
        %3022 = vmatprep.mubr.bf16.mxu0 0
        %3023 = vmatmul.mubr.bf16.gmra.mrb[0].mxu0 %v2812
        %v3024 = vpop.f32.mrb[0].mxu0
        %v3025 = vadd.f32 0.0, %v3024
        %v3026 = vpop.f32.mrb[0].mxu0
        %v3027 = vpop.f32.mrb[0].mxu0
        %v3028 = vadd.f32 0.0, %v3027
        %v3029 = vpop.f32.mrb[0].mxu0
        %3030 = vdwg.mxu0
        %v3031 = vadd.f32 %v2738, %v2913
        %v3032 = vadd.f32 %v2739, %v2916
        %v3033 = vadd.f32 %v2740, %v2921
        %v3034 = vadd.f32 %v2741, %v2924
        %v3035 = vadd.f32 %v2742, %v2929
        %v3036 = vadd.f32 %v2743, %v2932
        %v3037 = vadd.f32 %v2744, %v2937
        %v3038 = vadd.f32 %v2745, %v2940
        %v3039 = vadd.f32 %v2746, %v2945
        %v3040 = vadd.f32 %v2747, %v2948
        %v3041 = vadd.f32 %v2748, %v2953
        %v3042 = vadd.f32 %v2749, %v2956
        %v3043 = vadd.f32 %v2750, %v2961
        %v3044 = vadd.f32 %v2751, %v2964
        %v3045 = vadd.f32 %v2752, %v2969
        %v3046 = vadd.f32 %v2753, %v2972
        %v3047 = vadd.f32 %v2754, %v2977
        %v3048 = vadd.f32 %v2755, %v2980
        %v3049 = vadd.f32 %v2756, %v2985
        %v3050 = vadd.f32 %v2757, %v2988
        %v3051 = vadd.f32 %v2758, %v2993
        %v3052 = vadd.f32 %v2759, %v2996
        %v3053 = vadd.f32 %v2760, %v3001
        %v3054 = vadd.f32 %v2761, %v3004
        %v3055 = vadd.f32 %v2762, %v3009
        %v3056 = vadd.f32 %v2763, %v3012
        %v3057 = vadd.f32 %v2764, %v3017
        %v3058 = vadd.f32 %v2765, %v3020
        %v3059 = vadd.f32 %v2766, %v3025
        %v3060 = vadd.f32 %v2767, %v3028
        %v3061 = vld [vmem:[#allocation2 + $0x5] sm:$0xff]
        %v3062 = vld [vmem:[#allocation2 + $0xd] sm:$0xff]
        %v3063 = vld [vmem:[#allocation2 + $0x15] sm:$0xff]
        %v3064 = vld [vmem:[#allocation2 + $0x1d] sm:$0xff]
        %v3065 = vld [vmem:[#allocation2 + $0x25] sm:$0xff]
        %v3066 = vld [vmem:[#allocation2 + $0x2d] sm:$0xff]
        %v3067 = vld [vmem:[#allocation2 + $0x35] sm:$0xff]
        %v3068 = vld [vmem:[#allocation2 + $0x3d] sm:$0xff]
        %v3069 = vld [vmem:[#allocation2 + $0x45] sm:$0xff]
        %v3070 = vld [vmem:[#allocation2 + $0x4d] sm:$0xff]
        %v3071 = vld [vmem:[#allocation2 + $0x55] sm:$0xff]
        %v3072 = vld [vmem:[#allocation2 + $0x5d] sm:$0xff]
        %v3073 = vld [vmem:[#allocation2 + $0x65] sm:$0xff]
        %v3074 = vld [vmem:[#allocation2 + $0x6d] sm:$0xff]
        %v3075 = vld [vmem:[#allocation2 + $0x75] sm:$0xff]
        %v3076 = vld [vmem:[#allocation2 + $0x7d] sm:$0xff]
        %v3077 = vld [vmem:[#allocation2 + $0x85] sm:$0xff]
        %v3078 = vld [vmem:[#allocation2 + $0x8d] sm:$0xff]
        %v3079 = vld [vmem:[#allocation2 + $0x95] sm:$0xff]
        %v3080 = vld [vmem:[#allocation2 + $0x9d] sm:$0xff]
        %v3081 = vld [vmem:[#allocation2 + $0xa5] sm:$0xff]
        %v3082 = vld [vmem:[#allocation2 + $0xad] sm:$0xff]
        %v3083 = vld [vmem:[#allocation2 + $0xb5] sm:$0xff]
        %v3084 = vld [vmem:[#allocation2 + $0xbd] sm:$0xff]
        %v3085 = vld [vmem:[#allocation2 + $0xc5] sm:$0xff]
        %v3086 = vld [vmem:[#allocation2 + $0xcd] sm:$0xff]
        %v3087 = vld [vmem:[#allocation2 + $0xd5] sm:$0xff]
        %v3088 = vld [vmem:[#allocation2 + $0xdd] sm:$0xff]
        %v3089 = vld [vmem:[#allocation2 + $0xe5] sm:$0xff]
        %v3090 = vld [vmem:[#allocation2 + $0xed] sm:$0x1f]
        %v3091 = vpack.c.bf16 %v3062, %v3061
        %v3092 = vpack.c.bf16 %v3064, %v3063
        %v3093 = vpack.c.bf16 %v3066, %v3065
        %v3094 = vpack.c.bf16 %v3068, %v3067
        %v3095 = vpack.c.bf16 %v3070, %v3069
        %v3096 = vpack.c.bf16 %v3072, %v3071
        %v3097 = vpack.c.bf16 %v3074, %v3073
        %v3098 = vpack.c.bf16 %v3076, %v3075
        %v3099 = vpack.c.bf16 %v3078, %v3077
        %v3100 = vpack.c.bf16 %v3080, %v3079
        %v3101 = vpack.c.bf16 %v3082, %v3081
        %v3102 = vpack.c.bf16 %v3084, %v3083
        %v3103 = vpack.c.bf16 %v3086, %v3085
        %v3104 = vpack.c.bf16 %v3088, %v3087
        %v3105 = vpack.c.bf16 %v3090, %v3089
        %s3106 = scalar_lea.vmem %s8, 320
        %v3107 = vld [vmem:[%s3106] sm:$0xf]
        %v3108 = vld [vmem:[%s3106 + $0x4] sm:$0xf]
        %v3109 = vld [vmem:[%s3106 + $0x8] sm:$0xf]
        %v3110 = vld [vmem:[%s3106 + $0xc] sm:$0xf]
        %v3111 = vld [vmem:[%s3106 + $0x10] sm:$0xf]
        %v3112 = vld [vmem:[%s3106 + $0x14] sm:$0xf]
        %v3113 = vld [vmem:[%s3106 + $0x18] sm:$0xf]
        %v3114 = vld [vmem:[%s3106 + $0x1c] sm:$0xf]
        %v3115 = vld [vmem:[%s3106 + $0x20] sm:$0xf]
        %v3116 = vld [vmem:[%s3106 + $0x24] sm:$0xf]
        %v3117 = vld [vmem:[%s3106 + $0x28] sm:$0xf]
        %v3118 = vld [vmem:[%s3106 + $0x2c] sm:$0xf]
        %v3119 = vld [vmem:[%s3106 + $0x30] sm:$0xf]
        %v3120 = vld [vmem:[%s3106 + $0x34] sm:$0xf]
        %v3121 = vld [vmem:[%s3106 + $0x38] sm:$0xf]
        %v3122 = vld [vmem:[%s3106 + $0x3c] sm:$0xf]
        %v3139 = vunpack.c.l.b16 %v3107
        %v3140 = vunpack.c.l.b16 %v3108
        %v3141 = vunpack.c.l.b16 %v3109
        %v3142 = vunpack.c.l.b16 %v3110
        %v3143 = vunpack.c.l.b16 %v3111
        %v3144 = vunpack.c.l.b16 %v3112
        %v3145 = vunpack.c.l.b16 %v3113
        %v3146 = vunpack.c.l.b16 %v3114
        %v3147 = vunpack.c.l.b16 %v3115
        %v3148 = vunpack.c.l.b16 %v3116
        %v3149 = vunpack.c.l.b16 %v3117
        %v3150 = vunpack.c.l.b16 %v3118
        %v3151 = vunpack.c.l.b16 %v3119
        %v3152 = vunpack.c.l.b16 %v3120
        %v3153 = vunpack.c.l.b16 %v3121
        %v3154 = vunpack.c.l.b16 %v3122
        %v3155 = vpack.c.b16 %v3140, %v3139
        %v3156 = vpack.c.b16 %v3142, %v3141
        %v3157 = vpack.c.b16 %v3144, %v3143
        %v3158 = vpack.c.b16 %v3146, %v3145
        %v3159 = vpack.c.b16 %v3148, %v3147
        %v3160 = vpack.c.b16 %v3150, %v3149
        %v3161 = vpack.c.b16 %v3152, %v3151
        %v3162 = vpack.c.b16 %v3154, %v3153
        %3171 = vmatprep.subr.bf16.mxu0 0
        %3172 = vmatpush1.bf16.msra.mxu0 %v3155
        %3173 = vmatprep.subr.bf16.mxu0 0
        %3174 = vmatpush1.bf16.msra.mxu0 %v3156
        %3175 = vmatprep.subr.bf16.mxu0 0
        %3176 = vmatpush1.bf16.msra.mxu0 %v3157
        %3177 = vmatprep.subr.bf16.mxu0 0
        %3178 = vmatpush1.bf16.msra.mxu0 %v3158
        %3179 = vmatprep.subr.bf16.mxu0 0
        %3180 = vmatpush1.bf16.msra.mxu0 %v3159
        %3181 = vmatprep.subr.bf16.mxu0 0
        %3182 = vmatpush1.bf16.msra.mxu0 %v3160
        %3183 = vmatprep.subr.bf16.mxu0 0
        %3184 = vmatpush1.bf16.msra.mxu0 %v3161
        %3185 = vmatprep.subr.bf16.mxu0 0
        %3186 = vmatpush1.bf16.msra.mxu0 %v3162
        %3187 = vmatprep.subr.bf16.mxu0 0
        %3188 = vmatpush1.bf16.msra.mxu0 0
        %3189 = vmatprep.subr.bf16.mxu0 0
        %3190 = vmatpush1.bf16.msra.mxu0 0
        %3191 = vmatprep.subr.bf16.mxu0 0
        %3192 = vmatpush1.bf16.msra.mxu0 0
        %3193 = vmatprep.subr.bf16.mxu0 0
        %3194 = vmatpush1.bf16.msra.mxu0 0
        %3195 = vmatprep.subr.bf16.mxu0 0
        %3196 = vmatpush1.bf16.msra.mxu0 0
        %3197 = vmatprep.subr.bf16.mxu0 0
        %3198 = vmatpush1.bf16.msra.mxu0 0
        %3199 = vmatprep.subr.bf16.mxu0 0
        %3200 = vmatpush1.bf16.msra.mxu0 0
        %3201 = vmatprep.subr.bf16.mxu0 0
        %3202 = vmatpush1.bf16.msra.mxu0 0
        %3203 = vmatprep.mubr.bf16.mxu0 0
        %3204 = vmatmul.mubr.bf16.gmra.mrb[0].mxu0 %v3091
        %v3205 = vpop.f32.mrb[0].mxu0
        %v3206 = vadd.f32 0.0, %v3205
        %v3207 = vpop.f32.mrb[0].mxu0
        %v3208 = vpop.f32.mrb[0].mxu0
        %v3209 = vadd.f32 0.0, %v3208
        %v3210 = vpop.f32.mrb[0].mxu0
        %3211 = vmatprep.mubr.bf16.mxu0 0
        %3212 = vmatmul.mubr.bf16.gmra.mrb[0].mxu0 %v3092
        %v3213 = vpop.f32.mrb[0].mxu0
        %v3214 = vadd.f32 0.0, %v3213
        %v3215 = vpop.f32.mrb[0].mxu0
        %v3216 = vpop.f32.mrb[0].mxu0
        %v3217 = vadd.f32 0.0, %v3216
        %v3218 = vpop.f32.mrb[0].mxu0
        %3219 = vmatprep.mubr.bf16.mxu0 0
        %3220 = vmatmul.mubr.bf16.gmra.mrb[0].mxu0 %v3093
        %v3221 = vpop.f32.mrb[0].mxu0
        %v3222 = vadd.f32 0.0, %v3221
        %v3223 = vpop.f32.mrb[0].mxu0
        %v3224 = vpop.f32.mrb[0].mxu0
        %v3225 = vadd.f32 0.0, %v3224
        %v3226 = vpop.f32.mrb[0].mxu0
        %3227 = vmatprep.mubr.bf16.mxu0 0
        %3228 = vmatmul.mubr.bf16.gmra.mrb[0].mxu0 %v3094
        %v3229 = vpop.f32.mrb[0].mxu0
        %v3230 = vadd.f32 0.0, %v3229
        %v3231 = vpop.f32.mrb[0].mxu0
        %v3232 = vpop.f32.mrb[0].mxu0
        %v3233 = vadd.f32 0.0, %v3232
        %v3234 = vpop.f32.mrb[0].mxu0
        %3235 = vmatprep.mubr.bf16.mxu0 0
        %3236 = vmatmul.mubr.bf16.gmra.mrb[0].mxu0 %v3095
        %v3237 = vpop.f32.mrb[0].mxu0
        %v3238 = vadd.f32 0.0, %v3237
        %v3239 = vpop.f32.mrb[0].mxu0
        %v3240 = vpop.f32.mrb[0].mxu0
        %v3241 = vadd.f32 0.0, %v3240
        %v3242 = vpop.f32.mrb[0].mxu0
        %3243 = vmatprep.mubr.bf16.mxu0 0
        %3244 = vmatmul.mubr.bf16.gmra.mrb[0].mxu0 %v3096
        %v3245 = vpop.f32.mrb[0].mxu0
        %v3246 = vadd.f32 0.0, %v3245
        %v3247 = vpop.f32.mrb[0].mxu0
        %v3248 = vpop.f32.mrb[0].mxu0
        %v3249 = vadd.f32 0.0, %v3248
        %v3250 = vpop.f32.mrb[0].mxu0
        %3251 = vmatprep.mubr.bf16.mxu0 0
        %3252 = vmatmul.mubr.bf16.gmra.mrb[0].mxu0 %v3097
        %v3253 = vpop.f32.mrb[0].mxu0
        %v3254 = vadd.f32 0.0, %v3253
        %v3255 = vpop.f32.mrb[0].mxu0
        %v3256 = vpop.f32.mrb[0].mxu0
        %v3257 = vadd.f32 0.0, %v3256
        %v3258 = vpop.f32.mrb[0].mxu0
        %3259 = vmatprep.mubr.bf16.mxu0 0
        %3260 = vmatmul.mubr.bf16.gmra.mrb[0].mxu0 %v3098
        %v3261 = vpop.f32.mrb[0].mxu0
        %v3262 = vadd.f32 0.0, %v3261
        %v3263 = vpop.f32.mrb[0].mxu0
        %v3264 = vpop.f32.mrb[0].mxu0
        %v3265 = vadd.f32 0.0, %v3264
        %v3266 = vpop.f32.mrb[0].mxu0
        %3267 = vmatprep.mubr.bf16.mxu0 0
        %3268 = vmatmul.mubr.bf16.gmra.mrb[0].mxu0 %v3099
        %v3269 = vpop.f32.mrb[0].mxu0
        %v3270 = vadd.f32 0.0, %v3269
        %v3271 = vpop.f32.mrb[0].mxu0
        %v3272 = vpop.f32.mrb[0].mxu0
        %v3273 = vadd.f32 0.0, %v3272
        %v3274 = vpop.f32.mrb[0].mxu0
        %3275 = vmatprep.mubr.bf16.mxu0 0
        %3276 = vmatmul.mubr.bf16.gmra.mrb[0].mxu0 %v3100
        %v3277 = vpop.f32.mrb[0].mxu0
        %v3278 = vadd.f32 0.0, %v3277
        %v3279 = vpop.f32.mrb[0].mxu0
        %v3280 = vpop.f32.mrb[0].mxu0
        %v3281 = vadd.f32 0.0, %v3280
        %v3282 = vpop.f32.mrb[0].mxu0
        %3283 = vmatprep.mubr.bf16.mxu0 0
        %3284 = vmatmul.mubr.bf16.gmra.mrb[0].mxu0 %v3101
        %v3285 = vpop.f32.mrb[0].mxu0
        %v3286 = vadd.f32 0.0, %v3285
        %v3287 = vpop.f32.mrb[0].mxu0
        %v3288 = vpop.f32.mrb[0].mxu0
        %v3289 = vadd.f32 0.0, %v3288
        %v3290 = vpop.f32.mrb[0].mxu0
        %3291 = vmatprep.mubr.bf16.mxu0 0
        %3292 = vmatmul.mubr.bf16.gmra.mrb[0].mxu0 %v3102
        %v3293 = vpop.f32.mrb[0].mxu0
        %v3294 = vadd.f32 0.0, %v3293
        %v3295 = vpop.f32.mrb[0].mxu0
        %v3296 = vpop.f32.mrb[0].mxu0
        %v3297 = vadd.f32 0.0, %v3296
        %v3298 = vpop.f32.mrb[0].mxu0
        %3299 = vmatprep.mubr.bf16.mxu0 0
        %3300 = vmatmul.mubr.bf16.gmra.mrb[0].mxu0 %v3103
        %v3301 = vpop.f32.mrb[0].mxu0
        %v3302 = vadd.f32 0.0, %v3301
        %v3303 = vpop.f32.mrb[0].mxu0
        %v3304 = vpop.f32.mrb[0].mxu0
        %v3305 = vadd.f32 0.0, %v3304
        %v3306 = vpop.f32.mrb[0].mxu0
        %3307 = vmatprep.mubr.bf16.mxu0 0
        %3308 = vmatmul.mubr.bf16.gmra.mrb[0].mxu0 %v3104
        %v3309 = vpop.f32.mrb[0].mxu0
        %v3310 = vadd.f32 0.0, %v3309
        %v3311 = vpop.f32.mrb[0].mxu0
        %v3312 = vpop.f32.mrb[0].mxu0
        %v3313 = vadd.f32 0.0, %v3312
        %v3314 = vpop.f32.mrb[0].mxu0
        %3315 = vmatprep.mubr.bf16.mxu0 0
        %3316 = vmatmul.mubr.bf16.gmra.mrb[0].mxu0 %v3105
        %v3317 = vpop.f32.mrb[0].mxu0
        %v3318 = vadd.f32 0.0, %v3317
        %v3319 = vpop.f32.mrb[0].mxu0
        %v3320 = vpop.f32.mrb[0].mxu0
        %v3321 = vadd.f32 0.0, %v3320
        %v3322 = vpop.f32.mrb[0].mxu0
        %3323 = vdwg.mxu0
        %v3324 = vadd.f32 %v3031, %v3206
        %v3325 = vadd.f32 %v3032, %v3209
        %v3326 = vadd.f32 %v3033, %v3214
        %v3327 = vadd.f32 %v3034, %v3217
        %v3328 = vadd.f32 %v3035, %v3222
        %v3329 = vadd.f32 %v3036, %v3225
        %v3330 = vadd.f32 %v3037, %v3230
        %v3331 = vadd.f32 %v3038, %v3233
        %v3332 = vadd.f32 %v3039, %v3238
        %v3333 = vadd.f32 %v3040, %v3241
        %v3334 = vadd.f32 %v3041, %v3246
        %v3335 = vadd.f32 %v3042, %v3249
        %v3336 = vadd.f32 %v3043, %v3254
        %v3337 = vadd.f32 %v3044, %v3257
        %v3338 = vadd.f32 %v3045, %v3262
        %v3339 = vadd.f32 %v3046, %v3265
        %v3340 = vadd.f32 %v3047, %v3270
        %v3341 = vadd.f32 %v3048, %v3273
        %v3342 = vadd.f32 %v3049, %v3278
        %v3343 = vadd.f32 %v3050, %v3281
        %v3344 = vadd.f32 %v3051, %v3286
        %v3345 = vadd.f32 %v3052, %v3289
        %v3346 = vadd.f32 %v3053, %v3294
        %v3347 = vadd.f32 %v3054, %v3297
        %v3348 = vadd.f32 %v3055, %v3302
        %v3349 = vadd.f32 %v3056, %v3305
        %v3350 = vadd.f32 %v3057, %v3310
        %v3351 = vadd.f32 %v3058, %v3313
        %v3352 = vadd.f32 %v3059, %v3318
        %v3353 = vadd.f32 %v3060, %v3321
        %v3354 = vld [vmem:[#allocation2 + $0x6] sm:$0xff]
        %v3355 = vld [vmem:[#allocation2 + $0xe] sm:$0xff]
        %v3356 = vld [vmem:[#allocation2 + $0x16] sm:$0xff]
        %v3357 = vld [vmem:[#allocation2 + $0x1e] sm:$0xff]
        %v3358 = vld [vmem:[#allocation2 + $0x26] sm:$0xff]
        %v3359 = vld [vmem:[#allocation2 + $0x2e] sm:$0xff]
        %v3360 = vld [vmem:[#allocation2 + $0x36] sm:$0xff]
        %v3361 = vld [vmem:[#allocation2 + $0x3e] sm:$0xff]
        %v3362 = vld [vmem:[#allocation2 + $0x46] sm:$0xff]
        %v3363 = vld [vmem:[#allocation2 + $0x4e] sm:$0xff]
        %v3364 = vld [vmem:[#allocation2 + $0x56] sm:$0xff]
        %v3365 = vld [vmem:[#allocation2 + $0x5e] sm:$0xff]
        %v3366 = vld [vmem:[#allocation2 + $0x66] sm:$0xff]
        %v3367 = vld [vmem:[#allocation2 + $0x6e] sm:$0xff]
        %v3368 = vld [vmem:[#allocation2 + $0x76] sm:$0xff]
        %v3369 = vld [vmem:[#allocation2 + $0x7e] sm:$0xff]
        %v3370 = vld [vmem:[#allocation2 + $0x86] sm:$0xff]
        %v3371 = vld [vmem:[#allocation2 + $0x8e] sm:$0xff]
        %v3372 = vld [vmem:[#allocation2 + $0x96] sm:$0xff]
        %v3373 = vld [vmem:[#allocation2 + $0x9e] sm:$0xff]
        %v3374 = vld [vmem:[#allocation2 + $0xa6] sm:$0xff]
        %v3375 = vld [vmem:[#allocation2 + $0xae] sm:$0xff]
        %v3376 = vld [vmem:[#allocation2 + $0xb6] sm:$0xff]
        %v3377 = vld [vmem:[#allocation2 + $0xbe] sm:$0xff]
        %v3378 = vld [vmem:[#allocation2 + $0xc6] sm:$0xff]
        %v3379 = vld [vmem:[#allocation2 + $0xce] sm:$0xff]
        %v3380 = vld [vmem:[#allocation2 + $0xd6] sm:$0xff]
        %v3381 = vld [vmem:[#allocation2 + $0xde] sm:$0xff]
        %v3382 = vld [vmem:[#allocation2 + $0xe6] sm:$0xff]
        %v3383 = vld [vmem:[#allocation2 + $0xee] sm:$0x1f]
        %v3384 = vpack.c.bf16 %v3355, %v3354
        %v3385 = vpack.c.bf16 %v3357, %v3356
        %v3386 = vpack.c.bf16 %v3359, %v3358
        %v3387 = vpack.c.bf16 %v3361, %v3360
        %v3388 = vpack.c.bf16 %v3363, %v3362
        %v3389 = vpack.c.bf16 %v3365, %v3364
        %v3390 = vpack.c.bf16 %v3367, %v3366
        %v3391 = vpack.c.bf16 %v3369, %v3368
        %v3392 = vpack.c.bf16 %v3371, %v3370
        %v3393 = vpack.c.bf16 %v3373, %v3372
        %v3394 = vpack.c.bf16 %v3375, %v3374
        %v3395 = vpack.c.bf16 %v3377, %v3376
        %v3396 = vpack.c.bf16 %v3379, %v3378
        %v3397 = vpack.c.bf16 %v3381, %v3380
        %v3398 = vpack.c.bf16 %v3383, %v3382
        %s3399 = scalar_lea.vmem %s8, 384
        %v3400 = vld [vmem:[%s3399] sm:$0xf]
        %v3401 = vld [vmem:[%s3399 + $0x4] sm:$0xf]
        %v3402 = vld [vmem:[%s3399 + $0x8] sm:$0xf]
        %v3403 = vld [vmem:[%s3399 + $0xc] sm:$0xf]
        %v3404 = vld [vmem:[%s3399 + $0x10] sm:$0xf]
        %v3405 = vld [vmem:[%s3399 + $0x14] sm:$0xf]
        %v3406 = vld [vmem:[%s3399 + $0x18] sm:$0xf]
        %v3407 = vld [vmem:[%s3399 + $0x1c] sm:$0xf]
        %v3408 = vld [vmem:[%s3399 + $0x20] sm:$0xf]
        %v3409 = vld [vmem:[%s3399 + $0x24] sm:$0xf]
        %v3410 = vld [vmem:[%s3399 + $0x28] sm:$0xf]
        %v3411 = vld [vmem:[%s3399 + $0x2c] sm:$0xf]
        %v3412 = vld [vmem:[%s3399 + $0x30] sm:$0xf]
        %v3413 = vld [vmem:[%s3399 + $0x34] sm:$0xf]
        %v3414 = vld [vmem:[%s3399 + $0x38] sm:$0xf]
        %v3415 = vld [vmem:[%s3399 + $0x3c] sm:$0xf]
        %v3432 = vunpack.c.l.b16 %v3400
        %v3433 = vunpack.c.l.b16 %v3401
        %v3434 = vunpack.c.l.b16 %v3402
        %v3435 = vunpack.c.l.b16 %v3403
        %v3436 = vunpack.c.l.b16 %v3404
        %v3437 = vunpack.c.l.b16 %v3405
        %v3438 = vunpack.c.l.b16 %v3406
        %v3439 = vunpack.c.l.b16 %v3407
        %v3440 = vunpack.c.l.b16 %v3408
        %v3441 = vunpack.c.l.b16 %v3409
        %v3442 = vunpack.c.l.b16 %v3410
        %v3443 = vunpack.c.l.b16 %v3411
        %v3444 = vunpack.c.l.b16 %v3412
        %v3445 = vunpack.c.l.b16 %v3413
        %v3446 = vunpack.c.l.b16 %v3414
        %v3447 = vunpack.c.l.b16 %v3415
        %v3448 = vpack.c.b16 %v3433, %v3432
        %v3449 = vpack.c.b16 %v3435, %v3434
        %v3450 = vpack.c.b16 %v3437, %v3436
        %v3451 = vpack.c.b16 %v3439, %v3438
        %v3452 = vpack.c.b16 %v3441, %v3440
        %v3453 = vpack.c.b16 %v3443, %v3442
        %v3454 = vpack.c.b16 %v3445, %v3444
        %v3455 = vpack.c.b16 %v3447, %v3446
        %3464 = vmatprep.subr.bf16.mxu0 0
        %3465 = vmatpush1.bf16.msra.mxu0 %v3448
        %3466 = vmatprep.subr.bf16.mxu0 0
        %3467 = vmatpush1.bf16.msra.mxu0 %v3449
        %3468 = vmatprep.subr.bf16.mxu0 0
        %3469 = vmatpush1.bf16.msra.mxu0 %v3450
        %3470 = vmatprep.subr.bf16.mxu0 0
        %3471 = vmatpush1.bf16.msra.mxu0 %v3451
        %3472 = vmatprep.subr.bf16.mxu0 0
        %3473 = vmatpush1.bf16.msra.mxu0 %v3452
        %3474 = vmatprep.subr.bf16.mxu0 0
        %3475 = vmatpush1.bf16.msra.mxu0 %v3453
        %3476 = vmatprep.subr.bf16.mxu0 0
        %3477 = vmatpush1.bf16.msra.mxu0 %v3454
        %3478 = vmatprep.subr.bf16.mxu0 0
        %3479 = vmatpush1.bf16.msra.mxu0 %v3455
        %3480 = vmatprep.subr.bf16.mxu0 0
        %3481 = vmatpush1.bf16.msra.mxu0 0
        %3482 = vmatprep.subr.bf16.mxu0 0
        %3483 = vmatpush1.bf16.msra.mxu0 0
        %3484 = vmatprep.subr.bf16.mxu0 0
        %3485 = vmatpush1.bf16.msra.mxu0 0
        %3486 = vmatprep.subr.bf16.mxu0 0
        %3487 = vmatpush1.bf16.msra.mxu0 0
        %3488 = vmatprep.subr.bf16.mxu0 0
        %3489 = vmatpush1.bf16.msra.mxu0 0
        %3490 = vmatprep.subr.bf16.mxu0 0
        %3491 = vmatpush1.bf16.msra.mxu0 0
        %3492 = vmatprep.subr.bf16.mxu0 0
        %3493 = vmatpush1.bf16.msra.mxu0 0
        %3494 = vmatprep.subr.bf16.mxu0 0
        %3495 = vmatpush1.bf16.msra.mxu0 0
        %3496 = vmatprep.mubr.bf16.mxu0 0
        %3497 = vmatmul.mubr.bf16.gmra.mrb[0].mxu0 %v3384
        %v3498 = vpop.f32.mrb[0].mxu0
        %v3499 = vadd.f32 0.0, %v3498
        %v3500 = vpop.f32.mrb[0].mxu0
        %v3501 = vpop.f32.mrb[0].mxu0
        %v3502 = vadd.f32 0.0, %v3501
        %v3503 = vpop.f32.mrb[0].mxu0
        %3504 = vmatprep.mubr.bf16.mxu0 0
        %3505 = vmatmul.mubr.bf16.gmra.mrb[0].mxu0 %v3385
        %v3506 = vpop.f32.mrb[0].mxu0
        %v3507 = vadd.f32 0.0, %v3506
        %v3508 = vpop.f32.mrb[0].mxu0
        %v3509 = vpop.f32.mrb[0].mxu0
        %v3510 = vadd.f32 0.0, %v3509
        %v3511 = vpop.f32.mrb[0].mxu0
        %3512 = vmatprep.mubr.bf16.mxu0 0
        %3513 = vmatmul.mubr.bf16.gmra.mrb[0].mxu0 %v3386
        %v3514 = vpop.f32.mrb[0].mxu0
        %v3515 = vadd.f32 0.0, %v3514
        %v3516 = vpop.f32.mrb[0].mxu0
        %v3517 = vpop.f32.mrb[0].mxu0
        %v3518 = vadd.f32 0.0, %v3517
        %v3519 = vpop.f32.mrb[0].mxu0
        %3520 = vmatprep.mubr.bf16.mxu0 0
        %3521 = vmatmul.mubr.bf16.gmra.mrb[0].mxu0 %v3387
        %v3522 = vpop.f32.mrb[0].mxu0
        %v3523 = vadd.f32 0.0, %v3522
        %v3524 = vpop.f32.mrb[0].mxu0
        %v3525 = vpop.f32.mrb[0].mxu0
        %v3526 = vadd.f32 0.0, %v3525
        %v3527 = vpop.f32.mrb[0].mxu0
        %3528 = vmatprep.mubr.bf16.mxu0 0
        %3529 = vmatmul.mubr.bf16.gmra.mrb[0].mxu0 %v3388
        %v3530 = vpop.f32.mrb[0].mxu0
        %v3531 = vadd.f32 0.0, %v3530
        %v3532 = vpop.f32.mrb[0].mxu0
        %v3533 = vpop.f32.mrb[0].mxu0
        %v3534 = vadd.f32 0.0, %v3533
        %v3535 = vpop.f32.mrb[0].mxu0
        %3536 = vmatprep.mubr.bf16.mxu0 0
        %3537 = vmatmul.mubr.bf16.gmra.mrb[0].mxu0 %v3389
        %v3538 = vpop.f32.mrb[0].mxu0
        %v3539 = vadd.f32 0.0, %v3538
        %v3540 = vpop.f32.mrb[0].mxu0
        %v3541 = vpop.f32.mrb[0].mxu0
        %v3542 = vadd.f32 0.0, %v3541
        %v3543 = vpop.f32.mrb[0].mxu0
        %3544 = vmatprep.mubr.bf16.mxu0 0
        %3545 = vmatmul.mubr.bf16.gmra.mrb[0].mxu0 %v3390
        %v3546 = vpop.f32.mrb[0].mxu0
        %v3547 = vadd.f32 0.0, %v3546
        %v3548 = vpop.f32.mrb[0].mxu0
        %v3549 = vpop.f32.mrb[0].mxu0
        %v3550 = vadd.f32 0.0, %v3549
        %v3551 = vpop.f32.mrb[0].mxu0
        %3552 = vmatprep.mubr.bf16.mxu0 0
        %3553 = vmatmul.mubr.bf16.gmra.mrb[0].mxu0 %v3391
        %v3554 = vpop.f32.mrb[0].mxu0
        %v3555 = vadd.f32 0.0, %v3554
        %v3556 = vpop.f32.mrb[0].mxu0
        %v3557 = vpop.f32.mrb[0].mxu0
        %v3558 = vadd.f32 0.0, %v3557
        %v3559 = vpop.f32.mrb[0].mxu0
        %3560 = vmatprep.mubr.bf16.mxu0 0
        %3561 = vmatmul.mubr.bf16.gmra.mrb[0].mxu0 %v3392
        %v3562 = vpop.f32.mrb[0].mxu0
        %v3563 = vadd.f32 0.0, %v3562
        %v3564 = vpop.f32.mrb[0].mxu0
        %v3565 = vpop.f32.mrb[0].mxu0
        %v3566 = vadd.f32 0.0, %v3565
        %v3567 = vpop.f32.mrb[0].mxu0
        %3568 = vmatprep.mubr.bf16.mxu0 0
        %3569 = vmatmul.mubr.bf16.gmra.mrb[0].mxu0 %v3393
        %v3570 = vpop.f32.mrb[0].mxu0
        %v3571 = vadd.f32 0.0, %v3570
        %v3572 = vpop.f32.mrb[0].mxu0
        %v3573 = vpop.f32.mrb[0].mxu0
        %v3574 = vadd.f32 0.0, %v3573
        %v3575 = vpop.f32.mrb[0].mxu0
        %3576 = vmatprep.mubr.bf16.mxu0 0
        %3577 = vmatmul.mubr.bf16.gmra.mrb[0].mxu0 %v3394
        %v3578 = vpop.f32.mrb[0].mxu0
        %v3579 = vadd.f32 0.0, %v3578
        %v3580 = vpop.f32.mrb[0].mxu0
        %v3581 = vpop.f32.mrb[0].mxu0
        %v3582 = vadd.f32 0.0, %v3581
        %v3583 = vpop.f32.mrb[0].mxu0
        %3584 = vmatprep.mubr.bf16.mxu0 0
        %3585 = vmatmul.mubr.bf16.gmra.mrb[0].mxu0 %v3395
        %v3586 = vpop.f32.mrb[0].mxu0
        %v3587 = vadd.f32 0.0, %v3586
        %v3588 = vpop.f32.mrb[0].mxu0
        %v3589 = vpop.f32.mrb[0].mxu0
        %v3590 = vadd.f32 0.0, %v3589
        %v3591 = vpop.f32.mrb[0].mxu0
        %3592 = vmatprep.mubr.bf16.mxu0 0
        %3593 = vmatmul.mubr.bf16.gmra.mrb[0].mxu0 %v3396
        %v3594 = vpop.f32.mrb[0].mxu0
        %v3595 = vadd.f32 0.0, %v3594
        %v3596 = vpop.f32.mrb[0].mxu0
        %v3597 = vpop.f32.mrb[0].mxu0
        %v3598 = vadd.f32 0.0, %v3597
        %v3599 = vpop.f32.mrb[0].mxu0
        %3600 = vmatprep.mubr.bf16.mxu0 0
        %3601 = vmatmul.mubr.bf16.gmra.mrb[0].mxu0 %v3397
        %v3602 = vpop.f32.mrb[0].mxu0
        %v3603 = vadd.f32 0.0, %v3602
        %v3604 = vpop.f32.mrb[0].mxu0
        %v3605 = vpop.f32.mrb[0].mxu0
        %v3606 = vadd.f32 0.0, %v3605
        %v3607 = vpop.f32.mrb[0].mxu0
        %3608 = vmatprep.mubr.bf16.mxu0 0
        %3609 = vmatmul.mubr.bf16.gmra.mrb[0].mxu0 %v3398
        %v3610 = vpop.f32.mrb[0].mxu0
        %v3611 = vadd.f32 0.0, %v3610
        %v3612 = vpop.f32.mrb[0].mxu0
        %v3613 = vpop.f32.mrb[0].mxu0
        %v3614 = vadd.f32 0.0, %v3613
        %v3615 = vpop.f32.mrb[0].mxu0
        %3616 = vdwg.mxu0
        %v3617 = vadd.f32 %v3324, %v3499
        %v3618 = vadd.f32 %v3325, %v3502
        %v3619 = vadd.f32 %v3326, %v3507
        %v3620 = vadd.f32 %v3327, %v3510
        %v3621 = vadd.f32 %v3328, %v3515
        %v3622 = vadd.f32 %v3329, %v3518
        %v3623 = vadd.f32 %v3330, %v3523
        %v3624 = vadd.f32 %v3331, %v3526
        %v3625 = vadd.f32 %v3332, %v3531
        %v3626 = vadd.f32 %v3333, %v3534
        %v3627 = vadd.f32 %v3334, %v3539
        %v3628 = vadd.f32 %v3335, %v3542
        %v3629 = vadd.f32 %v3336, %v3547
        %v3630 = vadd.f32 %v3337, %v3550
        %v3631 = vadd.f32 %v3338, %v3555
        %v3632 = vadd.f32 %v3339, %v3558
        %v3633 = vadd.f32 %v3340, %v3563
        %v3634 = vadd.f32 %v3341, %v3566
        %v3635 = vadd.f32 %v3342, %v3571
        %v3636 = vadd.f32 %v3343, %v3574
        %v3637 = vadd.f32 %v3344, %v3579
        %v3638 = vadd.f32 %v3345, %v3582
        %v3639 = vadd.f32 %v3346, %v3587
        %v3640 = vadd.f32 %v3347, %v3590
        %v3641 = vadd.f32 %v3348, %v3595
        %v3642 = vadd.f32 %v3349, %v3598
        %v3643 = vadd.f32 %v3350, %v3603
        %v3644 = vadd.f32 %v3351, %v3606
        %v3645 = vadd.f32 %v3352, %v3611
        %v3646 = vadd.f32 %v3353, %v3614
        %v3647 = vld [vmem:[#allocation2 + $0x7] sm:$0xff]
        %v3648 = vld [vmem:[#allocation2 + $0xf] sm:$0xff]
        %v3649 = vld [vmem:[#allocation2 + $0x17] sm:$0xff]
        %v3650 = vld [vmem:[#allocation2 + $0x1f] sm:$0xff]
        %v3651 = vld [vmem:[#allocation2 + $0x27] sm:$0xff]
        %v3652 = vld [vmem:[#allocation2 + $0x2f] sm:$0xff]
        %v3653 = vld [vmem:[#allocation2 + $0x37] sm:$0xff]
        %v3654 = vld [vmem:[#allocation2 + $0x3f] sm:$0xff]
        %v3655 = vld [vmem:[#allocation2 + $0x47] sm:$0xff]
        %v3656 = vld [vmem:[#allocation2 + $0x4f] sm:$0xff]
        %v3657 = vld [vmem:[#allocation2 + $0x57] sm:$0xff]
        %v3658 = vld [vmem:[#allocation2 + $0x5f] sm:$0xff]
        %v3659 = vld [vmem:[#allocation2 + $0x67] sm:$0xff]
        %v3660 = vld [vmem:[#allocation2 + $0x6f] sm:$0xff]
        %v3661 = vld [vmem:[#allocation2 + $0x77] sm:$0xff]
        %v3662 = vld [vmem:[#allocation2 + $0x7f] sm:$0xff]
        %v3663 = vld [vmem:[#allocation2 + $0x87] sm:$0xff]
        %v3664 = vld [vmem:[#allocation2 + $0x8f] sm:$0xff]
        %v3665 = vld [vmem:[#allocation2 + $0x97] sm:$0xff]
        %v3666 = vld [vmem:[#allocation2 + $0x9f] sm:$0xff]
        %v3667 = vld [vmem:[#allocation2 + $0xa7] sm:$0xff]
        %v3668 = vld [vmem:[#allocation2 + $0xaf] sm:$0xff]
        %v3669 = vld [vmem:[#allocation2 + $0xb7] sm:$0xff]
        %v3670 = vld [vmem:[#allocation2 + $0xbf] sm:$0xff]
        %v3671 = vld [vmem:[#allocation2 + $0xc7] sm:$0xff]
        %v3672 = vld [vmem:[#allocation2 + $0xcf] sm:$0xff]
        %v3673 = vld [vmem:[#allocation2 + $0xd7] sm:$0xff]
        %v3674 = vld [vmem:[#allocation2 + $0xdf] sm:$0xff]
        %v3675 = vld [vmem:[#allocation2 + $0xe7] sm:$0xff]
        %v3676 = vld [vmem:[#allocation2 + $0xef] sm:$0x1f]
        %v3677 = vpack.c.bf16 %v3648, %v3647
        %v3678 = vpack.c.bf16 %v3650, %v3649
        %v3679 = vpack.c.bf16 %v3652, %v3651
        %v3680 = vpack.c.bf16 %v3654, %v3653
        %v3681 = vpack.c.bf16 %v3656, %v3655
        %v3682 = vpack.c.bf16 %v3658, %v3657
        %v3683 = vpack.c.bf16 %v3660, %v3659
        %v3684 = vpack.c.bf16 %v3662, %v3661
        %v3685 = vpack.c.bf16 %v3664, %v3663
        %v3686 = vpack.c.bf16 %v3666, %v3665
        %v3687 = vpack.c.bf16 %v3668, %v3667
        %v3688 = vpack.c.bf16 %v3670, %v3669
        %v3689 = vpack.c.bf16 %v3672, %v3671
        %v3690 = vpack.c.bf16 %v3674, %v3673
        %v3691 = vpack.c.bf16 %v3676, %v3675
        %s3692 = scalar_lea.vmem %s8, 448
        %v3693 = vld [vmem:[%s3692] sm:$0xf]
        %v3694 = vld [vmem:[%s3692 + $0x4] sm:$0xf]
        %v3695 = vld [vmem:[%s3692 + $0x8] sm:$0xf]
        %v3696 = vld [vmem:[%s3692 + $0xc] sm:$0xf]
        %v3697 = vld [vmem:[%s3692 + $0x10] sm:$0xf]
        %v3698 = vld [vmem:[%s3692 + $0x14] sm:$0xf]
        %v3699 = vld [vmem:[%s3692 + $0x18] sm:$0xf]
        %v3700 = vld [vmem:[%s3692 + $0x1c] sm:$0xf]
        %v3701 = vld [vmem:[%s3692 + $0x20] sm:$0xf]
        %v3702 = vld [vmem:[%s3692 + $0x24] sm:$0xf]
        %v3703 = vld [vmem:[%s3692 + $0x28] sm:$0xf]
        %v3704 = vld [vmem:[%s3692 + $0x2c] sm:$0xf]
        %v3705 = vld [vmem:[%s3692 + $0x30] sm:$0xf]
        %v3706 = vld [vmem:[%s3692 + $0x34] sm:$0xf]
        %v3707 = vld [vmem:[%s3692 + $0x38] sm:$0xf]
        %v3708 = vld [vmem:[%s3692 + $0x3c] sm:$0xf]
        %v3725 = vunpack.c.l.b16 %v3693
        %v3726 = vunpack.c.l.b16 %v3694
        %v3727 = vunpack.c.l.b16 %v3695
        %v3728 = vunpack.c.l.b16 %v3696
        %v3729 = vunpack.c.l.b16 %v3697
        %v3730 = vunpack.c.l.b16 %v3698
        %v3731 = vunpack.c.l.b16 %v3699
        %v3732 = vunpack.c.l.b16 %v3700
        %v3733 = vunpack.c.l.b16 %v3701
        %v3734 = vunpack.c.l.b16 %v3702
        %v3735 = vunpack.c.l.b16 %v3703
        %v3736 = vunpack.c.l.b16 %v3704
        %v3737 = vunpack.c.l.b16 %v3705
        %v3738 = vunpack.c.l.b16 %v3706
        %v3739 = vunpack.c.l.b16 %v3707
        %v3740 = vunpack.c.l.b16 %v3708
        %v3741 = vpack.c.b16 %v3726, %v3725
        %v3742 = vpack.c.b16 %v3728, %v3727
        %v3743 = vpack.c.b16 %v3730, %v3729
        %v3744 = vpack.c.b16 %v3732, %v3731
        %v3745 = vpack.c.b16 %v3734, %v3733
        %v3746 = vpack.c.b16 %v3736, %v3735
        %v3747 = vpack.c.b16 %v3738, %v3737
        %v3748 = vpack.c.b16 %v3740, %v3739
        %3757 = vmatprep.subr.bf16.mxu0 0
        %3758 = vmatpush1.bf16.msra.mxu0 %v3741
        %3759 = vmatprep.subr.bf16.mxu0 0
        %3760 = vmatpush1.bf16.msra.mxu0 %v3742
        %3761 = vmatprep.subr.bf16.mxu0 0
        %3762 = vmatpush1.bf16.msra.mxu0 %v3743
        %3763 = vmatprep.subr.bf16.mxu0 0
        %3764 = vmatpush1.bf16.msra.mxu0 %v3744
        %3765 = vmatprep.subr.bf16.mxu0 0
        %3766 = vmatpush1.bf16.msra.mxu0 %v3745
        %3767 = vmatprep.subr.bf16.mxu0 0
        %3768 = vmatpush1.bf16.msra.mxu0 %v3746
        %3769 = vmatprep.subr.bf16.mxu0 0
        %3770 = vmatpush1.bf16.msra.mxu0 %v3747
        %3771 = vmatprep.subr.bf16.mxu0 0
        %3772 = vmatpush1.bf16.msra.mxu0 %v3748
        %3773 = vmatprep.subr.bf16.mxu0 0
        %3774 = vmatpush1.bf16.msra.mxu0 0
        %3775 = vmatprep.subr.bf16.mxu0 0
        %3776 = vmatpush1.bf16.msra.mxu0 0
        %3777 = vmatprep.subr.bf16.mxu0 0
        %3778 = vmatpush1.bf16.msra.mxu0 0
        %3779 = vmatprep.subr.bf16.mxu0 0
        %3780 = vmatpush1.bf16.msra.mxu0 0
        %3781 = vmatprep.subr.bf16.mxu0 0
        %3782 = vmatpush1.bf16.msra.mxu0 0
        %3783 = vmatprep.subr.bf16.mxu0 0
        %3784 = vmatpush1.bf16.msra.mxu0 0
        %3785 = vmatprep.subr.bf16.mxu0 0
        %3786 = vmatpush1.bf16.msra.mxu0 0
        %3787 = vmatprep.subr.bf16.mxu0 0
        %3788 = vmatpush1.bf16.msra.mxu0 0
        %3789 = vmatprep.mubr.bf16.mxu0 0
        %3790 = vmatmul.mubr.bf16.gmra.mrb[0].mxu0 %v3677
        %v3791 = vpop.f32.mrb[0].mxu0
        %v3792 = vadd.f32 0.0, %v3791
        %v3793 = vpop.f32.mrb[0].mxu0
        %v3794 = vpop.f32.mrb[0].mxu0
        %v3795 = vadd.f32 0.0, %v3794
        %v3796 = vpop.f32.mrb[0].mxu0
        %3797 = vmatprep.mubr.bf16.mxu0 0
        %3798 = vmatmul.mubr.bf16.gmra.mrb[0].mxu0 %v3678
        %v3799 = vpop.f32.mrb[0].mxu0
        %v3800 = vadd.f32 0.0, %v3799
        %v3801 = vpop.f32.mrb[0].mxu0
        %v3802 = vpop.f32.mrb[0].mxu0
        %v3803 = vadd.f32 0.0, %v3802
        %v3804 = vpop.f32.mrb[0].mxu0
        %3805 = vmatprep.mubr.bf16.mxu0 0
        %3806 = vmatmul.mubr.bf16.gmra.mrb[0].mxu0 %v3679
        %v3807 = vpop.f32.mrb[0].mxu0
        %v3808 = vadd.f32 0.0, %v3807
        %v3809 = vpop.f32.mrb[0].mxu0
        %v3810 = vpop.f32.mrb[0].mxu0
        %v3811 = vadd.f32 0.0, %v3810
        %v3812 = vpop.f32.mrb[0].mxu0
        %3813 = vmatprep.mubr.bf16.mxu0 0
        %3814 = vmatmul.mubr.bf16.gmra.mrb[0].mxu0 %v3680
        %v3815 = vpop.f32.mrb[0].mxu0
        %v3816 = vadd.f32 0.0, %v3815
        %v3817 = vpop.f32.mrb[0].mxu0
        %v3818 = vpop.f32.mrb[0].mxu0
        %v3819 = vadd.f32 0.0, %v3818
        %v3820 = vpop.f32.mrb[0].mxu0
        %3821 = vmatprep.mubr.bf16.mxu0 0
        %3822 = vmatmul.mubr.bf16.gmra.mrb[0].mxu0 %v3681
        %v3823 = vpop.f32.mrb[0].mxu0
        %v3824 = vadd.f32 0.0, %v3823
        %v3825 = vpop.f32.mrb[0].mxu0
        %v3826 = vpop.f32.mrb[0].mxu0
        %v3827 = vadd.f32 0.0, %v3826
        %v3828 = vpop.f32.mrb[0].mxu0
        %3829 = vmatprep.mubr.bf16.mxu0 0
        %3830 = vmatmul.mubr.bf16.gmra.mrb[0].mxu0 %v3682
        %v3831 = vpop.f32.mrb[0].mxu0
        %v3832 = vadd.f32 0.0, %v3831
        %v3833 = vpop.f32.mrb[0].mxu0
        %v3834 = vpop.f32.mrb[0].mxu0
        %v3835 = vadd.f32 0.0, %v3834
        %v3836 = vpop.f32.mrb[0].mxu0
        %3837 = vmatprep.mubr.bf16.mxu0 0
        %3838 = vmatmul.mubr.bf16.gmra.mrb[0].mxu0 %v3683
        %v3839 = vpop.f32.mrb[0].mxu0
        %v3840 = vadd.f32 0.0, %v3839
        %v3841 = vpop.f32.mrb[0].mxu0
        %v3842 = vpop.f32.mrb[0].mxu0
        %v3843 = vadd.f32 0.0, %v3842
        %v3844 = vpop.f32.mrb[0].mxu0
        %3845 = vmatprep.mubr.bf16.mxu0 0
        %3846 = vmatmul.mubr.bf16.gmra.mrb[0].mxu0 %v3684
        %v3847 = vpop.f32.mrb[0].mxu0
        %v3848 = vadd.f32 0.0, %v3847
        %v3849 = vpop.f32.mrb[0].mxu0
        %v3850 = vpop.f32.mrb[0].mxu0
        %v3851 = vadd.f32 0.0, %v3850
        %v3852 = vpop.f32.mrb[0].mxu0
        %3853 = vmatprep.mubr.bf16.mxu0 0
        %3854 = vmatmul.mubr.bf16.gmra.mrb[0].mxu0 %v3685
        %v3855 = vpop.f32.mrb[0].mxu0
        %v3856 = vadd.f32 0.0, %v3855
        %v3857 = vpop.f32.mrb[0].mxu0
        %v3858 = vpop.f32.mrb[0].mxu0
        %v3859 = vadd.f32 0.0, %v3858
        %v3860 = vpop.f32.mrb[0].mxu0
        %3861 = vmatprep.mubr.bf16.mxu0 0
        %3862 = vmatmul.mubr.bf16.gmra.mrb[0].mxu0 %v3686
        %v3863 = vpop.f32.mrb[0].mxu0
        %v3864 = vadd.f32 0.0, %v3863
        %v3865 = vpop.f32.mrb[0].mxu0
        %v3866 = vpop.f32.mrb[0].mxu0
        %v3867 = vadd.f32 0.0, %v3866
        %v3868 = vpop.f32.mrb[0].mxu0
        %3869 = vmatprep.mubr.bf16.mxu0 0
        %3870 = vmatmul.mubr.bf16.gmra.mrb[0].mxu0 %v3687
        %v3871 = vpop.f32.mrb[0].mxu0
        %v3872 = vadd.f32 0.0, %v3871
        %v3873 = vpop.f32.mrb[0].mxu0
        %v3874 = vpop.f32.mrb[0].mxu0
        %v3875 = vadd.f32 0.0, %v3874
        %v3876 = vpop.f32.mrb[0].mxu0
        %3877 = vmatprep.mubr.bf16.mxu0 0
        %3878 = vmatmul.mubr.bf16.gmra.mrb[0].mxu0 %v3688
        %v3879 = vpop.f32.mrb[0].mxu0
        %v3880 = vadd.f32 0.0, %v3879
        %v3881 = vpop.f32.mrb[0].mxu0
        %v3882 = vpop.f32.mrb[0].mxu0
        %v3883 = vadd.f32 0.0, %v3882
        %v3884 = vpop.f32.mrb[0].mxu0
        %3885 = vmatprep.mubr.bf16.mxu0 0
        %3886 = vmatmul.mubr.bf16.gmra.mrb[0].mxu0 %v3689
        %v3887 = vpop.f32.mrb[0].mxu0
        %v3888 = vadd.f32 0.0, %v3887
        %v3889 = vpop.f32.mrb[0].mxu0
        %v3890 = vpop.f32.mrb[0].mxu0
        %v3891 = vadd.f32 0.0, %v3890
        %v3892 = vpop.f32.mrb[0].mxu0
        %3893 = vmatprep.mubr.bf16.mxu0 0
        %3894 = vmatmul.mubr.bf16.gmra.mrb[0].mxu0 %v3690
        %v3895 = vpop.f32.mrb[0].mxu0
        %v3896 = vadd.f32 0.0, %v3895
        %v3897 = vpop.f32.mrb[0].mxu0
        %v3898 = vpop.f32.mrb[0].mxu0
        %v3899 = vadd.f32 0.0, %v3898
        %v3900 = vpop.f32.mrb[0].mxu0
        %3901 = vmatprep.mubr.bf16.mxu0 0
        %3902 = vmatmul.mubr.bf16.gmra.mrb[0].mxu0 %v3691
        %v3903 = vpop.f32.mrb[0].mxu0
        %v3904 = vadd.f32 0.0, %v3903
        %v3905 = vpop.f32.mrb[0].mxu0
        %v3906 = vpop.f32.mrb[0].mxu0
        %v3907 = vadd.f32 0.0, %v3906
        %v3908 = vpop.f32.mrb[0].mxu0
        %3909 = vdwg.mxu0
        %v3910 = vadd.f32 %v3617, %v3792
        %v3911 = vadd.f32 %v3618, %v3795
        %v3912 = vadd.f32 %v3619, %v3800
        %v3913 = vadd.f32 %v3620, %v3803
        %v3914 = vadd.f32 %v3621, %v3808
        %v3915 = vadd.f32 %v3622, %v3811
        %v3916 = vadd.f32 %v3623, %v3816
        %v3917 = vadd.f32 %v3624, %v3819
        %v3918 = vadd.f32 %v3625, %v3824
        %v3919 = vadd.f32 %v3626, %v3827
        %v3920 = vadd.f32 %v3627, %v3832
        %v3921 = vadd.f32 %v3628, %v3835
        %v3922 = vadd.f32 %v3629, %v3840
        %v3923 = vadd.f32 %v3630, %v3843
        %v3924 = vadd.f32 %v3631, %v3848
        %v3925 = vadd.f32 %v3632, %v3851
        %v3926 = vadd.f32 %v3633, %v3856
        %v3927 = vadd.f32 %v3634, %v3859
        %v3928 = vadd.f32 %v3635, %v3864
        %v3929 = vadd.f32 %v3636, %v3867
        %v3930 = vadd.f32 %v3637, %v3872
        %v3931 = vadd.f32 %v3638, %v3875
        %v3932 = vadd.f32 %v3639, %v3880
        %v3933 = vadd.f32 %v3640, %v3883
        %v3934 = vadd.f32 %v3641, %v3888
        %v3935 = vadd.f32 %v3642, %v3891
        %v3936 = vadd.f32 %v3643, %v3896
        %v3937 = vadd.f32 %v3644, %v3899
        %v3938 = vadd.f32 %v3645, %v3904
        %v3939 = vadd.f32 %v3646, %v3907
        %v3940 = vld [vmem:[#allocation12] sm:$0x1]
        %v3941 = vlaneseq
        %v3942 = vshrl.u32 %v3941, 7
        %v3943 = vsub.s32 0, %v3942
        %v3944 = vrot.slane %v3940, %v3943
        %v3945 = vadd.f32 %v3910, %v3944
        %v3946 = vadd.f32 %v3911, %v3944
        %v3947 = vadd.f32 %v3912, %v3944
        %v3948 = vadd.f32 %v3913, %v3944
        %v3949 = vadd.f32 %v3914, %v3944
        %v3950 = vadd.f32 %v3915, %v3944
        %v3951 = vadd.f32 %v3916, %v3944
        %v3952 = vadd.f32 %v3917, %v3944
        %v3953 = vadd.f32 %v3918, %v3944
        %v3954 = vadd.f32 %v3919, %v3944
        %v3955 = vadd.f32 %v3920, %v3944
        %v3956 = vadd.f32 %v3921, %v3944
        %v3957 = vadd.f32 %v3922, %v3944
        %v3958 = vadd.f32 %v3923, %v3944
        %v3959 = vadd.f32 %v3924, %v3944
        %v3960 = vadd.f32 %v3925, %v3944
        %v3961 = vadd.f32 %v3926, %v3944
        %v3962 = vadd.f32 %v3927, %v3944
        %v3963 = vadd.f32 %v3928, %v3944
        %v3964 = vadd.f32 %v3929, %v3944
        %v3965 = vadd.f32 %v3930, %v3944
        %v3966 = vadd.f32 %v3931, %v3944
        %v3967 = vadd.f32 %v3932, %v3944
        %v3968 = vadd.f32 %v3933, %v3944
        %v3969 = vadd.f32 %v3934, %v3944
        %v3970 = vadd.f32 %v3935, %v3944
        %v3971 = vadd.f32 %v3936, %v3944
        %v3972 = vadd.f32 %v3937, %v3944
        %v3973 = vadd.f32 %v3938, %v3944
        %v3974 = vadd.f32 %v3939, %v3944
        %v3975 = vmax.f32 %v3945, 0.0
        %v3976 = vmax.f32 %v3946, 0.0
        %v3977 = vmax.f32 %v3947, 0.0
        %v3978 = vmax.f32 %v3948, 0.0
        %v3979 = vmax.f32 %v3949, 0.0
        %v3980 = vmax.f32 %v3950, 0.0
        %v3981 = vmax.f32 %v3951, 0.0
        %v3982 = vmax.f32 %v3952, 0.0
        %v3983 = vmax.f32 %v3953, 0.0
        %v3984 = vmax.f32 %v3954, 0.0
        %v3985 = vmax.f32 %v3955, 0.0
        %v3986 = vmax.f32 %v3956, 0.0
        %v3987 = vmax.f32 %v3957, 0.0
        %v3988 = vmax.f32 %v3958, 0.0
        %v3989 = vmax.f32 %v3959, 0.0
        %v3990 = vmax.f32 %v3960, 0.0
        %v3991 = vmax.f32 %v3961, 0.0
        %v3992 = vmax.f32 %v3962, 0.0
        %v3993 = vmax.f32 %v3963, 0.0
        %v3994 = vmax.f32 %v3964, 0.0
        %v3995 = vmax.f32 %v3965, 0.0
        %v3996 = vmax.f32 %v3966, 0.0
        %v3997 = vmax.f32 %v3967, 0.0
        %v3998 = vmax.f32 %v3968, 0.0
        %v3999 = vmax.f32 %v3969, 0.0
        %v4000 = vmax.f32 %v3970, 0.0
        %v4001 = vmax.f32 %v3971, 0.0
        %v4002 = vmax.f32 %v3972, 0.0
        %v4003 = vmax.f32 %v3973, 0.0
        %v4004 = vmax.f32 %v3974, 0.0
        %v4005 = vld [vmem:[#allocation12 + $0x1] sm:$0x1]
        %v4006 = vlaneseq
        %v4007 = vshrl.u32 %v4006, 7
        %v4008 = vsub.s32 0, %v4007
        %v4009 = vrot.slane %v4005, %v4008
        %v4010 = vmul.f32 %v3975, %v4009
        %v4011 = vmul.f32 %v3976, %v4009
        %v4012 = vmul.f32 %v3977, %v4009
        %v4013 = vmul.f32 %v3978, %v4009
        %v4014 = vmul.f32 %v3979, %v4009
        %v4015 = vmul.f32 %v3980, %v4009
        %v4016 = vmul.f32 %v3981, %v4009
        %v4017 = vmul.f32 %v3982, %v4009
        %v4018 = vmul.f32 %v3983, %v4009
        %v4019 = vmul.f32 %v3984, %v4009
        %v4020 = vmul.f32 %v3985, %v4009
        %v4021 = vmul.f32 %v3986, %v4009
        %v4022 = vmul.f32 %v3987, %v4009
        %v4023 = vmul.f32 %v3988, %v4009
        %v4024 = vmul.f32 %v3989, %v4009
        %v4025 = vmul.f32 %v3990, %v4009
        %v4026 = vmul.f32 %v3991, %v4009
        %v4027 = vmul.f32 %v3992, %v4009
        %v4028 = vmul.f32 %v3993, %v4009
        %v4029 = vmul.f32 %v3994, %v4009
        %v4030 = vmul.f32 %v3995, %v4009
        %v4031 = vmul.f32 %v3996, %v4009
        %v4032 = vmul.f32 %v3997, %v4009
        %v4033 = vmul.f32 %v3998, %v4009
        %v4034 = vmul.f32 %v3999, %v4009
        %v4035 = vmul.f32 %v4000, %v4009
        %v4036 = vmul.f32 %v4001, %v4009
        %v4037 = vmul.f32 %v4002, %v4009
        %v4038 = vmul.f32 %v4003, %v4009
        %v4039 = vmul.f32 %v4004, %v4009
        %v4040 = vld [vmem:[#allocation12 + $0x2] sm:$0x1]
        %v4041 = vlaneseq
        %v4042 = vshrl.u32 %v4041, 7
        %v4043 = vsub.s32 0, %v4042
        %v4044 = vrot.slane %v4040, %v4043
        %v4045 = vadd.f32 %v4010, %v4044
        %v4046 = vadd.f32 %v4011, %v4044
        %v4047 = vadd.f32 %v4012, %v4044
        %v4048 = vadd.f32 %v4013, %v4044
        %v4049 = vadd.f32 %v4014, %v4044
        %v4050 = vadd.f32 %v4015, %v4044
        %v4051 = vadd.f32 %v4016, %v4044
        %v4052 = vadd.f32 %v4017, %v4044
        %v4053 = vadd.f32 %v4018, %v4044
        %v4054 = vadd.f32 %v4019, %v4044
        %v4055 = vadd.f32 %v4020, %v4044
        %v4056 = vadd.f32 %v4021, %v4044
        %v4057 = vadd.f32 %v4022, %v4044
        %v4058 = vadd.f32 %v4023, %v4044
        %v4059 = vadd.f32 %v4024, %v4044
        %v4060 = vadd.f32 %v4025, %v4044
        %v4061 = vadd.f32 %v4026, %v4044
        %v4062 = vadd.f32 %v4027, %v4044
        %v4063 = vadd.f32 %v4028, %v4044
        %v4064 = vadd.f32 %v4029, %v4044
        %v4065 = vadd.f32 %v4030, %v4044
        %v4066 = vadd.f32 %v4031, %v4044
        %v4067 = vadd.f32 %v4032, %v4044
        %v4068 = vadd.f32 %v4033, %v4044
        %v4069 = vadd.f32 %v4034, %v4044
        %v4070 = vadd.f32 %v4035, %v4044
        %v4071 = vadd.f32 %v4036, %v4044
        %v4072 = vadd.f32 %v4037, %v4044
        %v4073 = vadd.f32 %v4038, %v4044
        %v4074 = vadd.f32 %v4039, %v4044
        %4075 = vst [vmem:[#allocation3] sm:$0xff] %v4045
        %4076 = vst [vmem:[#allocation3 + $0x8] sm:$0xff] %v4046
        %4077 = vst [vmem:[#allocation3 + $0x10] sm:$0xff] %v4047
        %4078 = vst [vmem:[#allocation3 + $0x18] sm:$0xff] %v4048
        %4079 = vst [vmem:[#allocation3 + $0x20] sm:$0xff] %v4049
        %4080 = vst [vmem:[#allocation3 + $0x28] sm:$0xff] %v4050
        %4081 = vst [vmem:[#allocation3 + $0x30] sm:$0xff] %v4051
        %4082 = vst [vmem:[#allocation3 + $0x38] sm:$0xff] %v4052
        %4083 = vst [vmem:[#allocation3 + $0x40] sm:$0xff] %v4053
        %4084 = vst [vmem:[#allocation3 + $0x48] sm:$0xff] %v4054
        %4085 = vst [vmem:[#allocation3 + $0x50] sm:$0xff] %v4055
        %4086 = vst [vmem:[#allocation3 + $0x58] sm:$0xff] %v4056
        %4087 = vst [vmem:[#allocation3 + $0x60] sm:$0xff] %v4057
        %4088 = vst [vmem:[#allocation3 + $0x68] sm:$0xff] %v4058
        %4089 = vst [vmem:[#allocation3 + $0x70] sm:$0xff] %v4059
        %4090 = vst [vmem:[#allocation3 + $0x78] sm:$0xff] %v4060
        %4091 = vst [vmem:[#allocation3 + $0x80] sm:$0xff] %v4061
        %4092 = vst [vmem:[#allocation3 + $0x88] sm:$0xff] %v4062
        %4093 = vst [vmem:[#allocation3 + $0x90] sm:$0xff] %v4063
        %4094 = vst [vmem:[#allocation3 + $0x98] sm:$0xff] %v4064
        %4095 = vst [vmem:[#allocation3 + $0xa0] sm:$0xff] %v4065
        %4096 = vst [vmem:[#allocation3 + $0xa8] sm:$0xff] %v4066
        %4097 = vst [vmem:[#allocation3 + $0xb0] sm:$0xff] %v4067
        %4098 = vst [vmem:[#allocation3 + $0xb8] sm:$0xff] %v4068
        %4099 = vst [vmem:[#allocation3 + $0xc0] sm:$0xff] %v4069
        %4100 = vst [vmem:[#allocation3 + $0xc8] sm:$0xff] %v4070
        %4101 = vst [vmem:[#allocation3 + $0xd0] sm:$0xff] %v4071
        %4102 = vst [vmem:[#allocation3 + $0xd8] sm:$0xff] %v4072
        %4103 = vst [vmem:[#allocation3 + $0xe0] sm:$0xff] %v4073
        %4104 = vst [vmem:[#allocation3 + $0xe8] sm:$0x1f] %v4074
        %v4105 = vld [vmem:[#allocation3] sm:$0xff]
        %v4106 = vld [vmem:[#allocation3 + $0x8] sm:$0xff]
        %v4107 = vld [vmem:[#allocation3 + $0x10] sm:$0xff]
        %v4108 = vld [vmem:[#allocation3 + $0x18] sm:$0xff]
        %v4109 = vld [vmem:[#allocation3 + $0x20] sm:$0xff]
        %v4110 = vld [vmem:[#allocation3 + $0x28] sm:$0xff]
        %v4111 = vld [vmem:[#allocation3 + $0x30] sm:$0xff]
        %v4112 = vld [vmem:[#allocation3 + $0x38] sm:$0xff]
        %v4113 = vld [vmem:[#allocation3 + $0x40] sm:$0xff]
        %v4114 = vld [vmem:[#allocation3 + $0x48] sm:$0xff]
        %v4115 = vld [vmem:[#allocation3 + $0x50] sm:$0xff]
        %v4116 = vld [vmem:[#allocation3 + $0x58] sm:$0xff]
        %v4117 = vld [vmem:[#allocation3 + $0x60] sm:$0xff]
        %v4118 = vld [vmem:[#allocation3 + $0x68] sm:$0xff]
        %v4119 = vld [vmem:[#allocation3 + $0x70] sm:$0xff]
        %v4120 = vld [vmem:[#allocation3 + $0x78] sm:$0xff]
        %v4121 = vld [vmem:[#allocation3 + $0x80] sm:$0xff]
        %v4122 = vld [vmem:[#allocation3 + $0x88] sm:$0xff]
        %v4123 = vld [vmem:[#allocation3 + $0x90] sm:$0xff]
        %v4124 = vld [vmem:[#allocation3 + $0x98] sm:$0xff]
        %v4125 = vld [vmem:[#allocation3 + $0xa0] sm:$0xff]
        %v4126 = vld [vmem:[#allocation3 + $0xa8] sm:$0xff]
        %v4127 = vld [vmem:[#allocation3 + $0xb0] sm:$0xff]
        %v4128 = vld [vmem:[#allocation3 + $0xb8] sm:$0xff]
        %v4129 = vld [vmem:[#allocation3 + $0xc0] sm:$0xff]
        %v4130 = vld [vmem:[#allocation3 + $0xc8] sm:$0xff]
        %v4131 = vld [vmem:[#allocation3 + $0xd0] sm:$0x1]
        %v4132 = vpack.c.bf16 %v4106, %v4105
        %v4133 = vpack.c.bf16 %v4108, %v4107
        %v4134 = vpack.c.bf16 %v4110, %v4109
        %v4135 = vpack.c.bf16 %v4112, %v4111
        %v4136 = vpack.c.bf16 %v4114, %v4113
        %v4137 = vpack.c.bf16 %v4116, %v4115
        %v4138 = vpack.c.bf16 %v4118, %v4117
        %v4139 = vpack.c.bf16 %v4120, %v4119
        %v4140 = vpack.c.bf16 %v4122, %v4121
        %v4141 = vpack.c.bf16 %v4124, %v4123
        %v4142 = vpack.c.bf16 %v4126, %v4125
        %v4143 = vpack.c.bf16 %v4128, %v4127
        %v4144 = vpack.c.bf16 %v4130, %v4129
        %v4145 = vpack.c.bf16 %v4131, %v4131
        %v4146 = vld [vmem:[%s10] sm:$0xf]
        %v4147 = vld [vmem:[%s10 + $0x4] sm:$0xf]
        %v4148 = vld [vmem:[%s10 + $0x8] sm:$0xf]
        %v4149 = vld [vmem:[%s10 + $0xc] sm:$0xf]
        %v4150 = vld [vmem:[%s10 + $0x10] sm:$0xf]
        %v4151 = vld [vmem:[%s10 + $0x14] sm:$0xf]
        %v4152 = vld [vmem:[%s10 + $0x18] sm:$0xf]
        %v4153 = vld [vmem:[%s10 + $0x1c] sm:$0xf]
        %v4154 = vld [vmem:[%s10 + $0x20] sm:$0xf]
        %v4155 = vld [vmem:[%s10 + $0x24] sm:$0xf]
        %v4156 = vld [vmem:[%s10 + $0x28] sm:$0xf]
        %v4157 = vld [vmem:[%s10 + $0x2c] sm:$0xf]
        %v4158 = vld [vmem:[%s10 + $0x30] sm:$0xf]
        %v4159 = vld [vmem:[%s10 + $0x34] sm:$0xf]
        %v4160 = vld [vmem:[%s10 + $0x38] sm:$0xf]
        %v4161 = vld [vmem:[%s10 + $0x3c] sm:$0xf]
        %v4162 = vld [vmem:[#allocation3 + $0x4] sm:$0xff]
        %v4163 = vld [vmem:[#allocation3 + $0xc] sm:$0xff]
        %v4164 = vld [vmem:[#allocation3 + $0x14] sm:$0xff]
        %v4165 = vld [vmem:[#allocation3 + $0x1c] sm:$0xff]
        %v4166 = vld [vmem:[#allocation3 + $0x24] sm:$0xff]
        %v4167 = vld [vmem:[#allocation3 + $0x2c] sm:$0xff]
        %v4168 = vld [vmem:[#allocation3 + $0x34] sm:$0xff]
        %v4169 = vld [vmem:[#allocation3 + $0x3c] sm:$0xff]
        %v4170 = vld [vmem:[#allocation3 + $0x44] sm:$0xff]
        %v4171 = vld [vmem:[#allocation3 + $0x4c] sm:$0xff]
        %v4172 = vld [vmem:[#allocation3 + $0x54] sm:$0xff]
        %v4173 = vld [vmem:[#allocation3 + $0x5c] sm:$0xff]
        %v4174 = vld [vmem:[#allocation3 + $0x64] sm:$0xff]
        %v4175 = vld [vmem:[#allocation3 + $0x6c] sm:$0xff]
        %v4176 = vld [vmem:[#allocation3 + $0x74] sm:$0xff]
        %v4177 = vld [vmem:[#allocation3 + $0x7c] sm:$0xff]
        %v4178 = vld [vmem:[#allocation3 + $0x84] sm:$0xff]
        %v4179 = vld [vmem:[#allocation3 + $0x8c] sm:$0xff]
        %v4180 = vld [vmem:[#allocation3 + $0x94] sm:$0xff]
        %v4181 = vld [vmem:[#allocation3 + $0x9c] sm:$0xff]
        %v4182 = vld [vmem:[#allocation3 + $0xa4] sm:$0xff]
        %v4183 = vld [vmem:[#allocation3 + $0xac] sm:$0xff]
        %v4184 = vld [vmem:[#allocation3 + $0xb4] sm:$0xff]
        %v4185 = vld [vmem:[#allocation3 + $0xbc] sm:$0xff]
        %v4186 = vld [vmem:[#allocation3 + $0xc4] sm:$0xff]
        %v4187 = vld [vmem:[#allocation3 + $0xcc] sm:$0xff]
        %v4188 = vld [vmem:[#allocation3 + $0xd4] sm:$0x1]
        %v4189 = vpack.c.bf16 %v4163, %v4162
        %v4190 = vpack.c.bf16 %v4165, %v4164
        %v4191 = vpack.c.bf16 %v4167, %v4166
        %v4192 = vpack.c.bf16 %v4169, %v4168
        %v4193 = vpack.c.bf16 %v4171, %v4170
        %v4194 = vpack.c.bf16 %v4173, %v4172
        %v4195 = vpack.c.bf16 %v4175, %v4174
        %v4196 = vpack.c.bf16 %v4177, %v4176
        %v4197 = vpack.c.bf16 %v4179, %v4178
        %v4198 = vpack.c.bf16 %v4181, %v4180
        %v4199 = vpack.c.bf16 %v4183, %v4182
        %v4200 = vpack.c.bf16 %v4185, %v4184
        %v4201 = vpack.c.bf16 %v4187, %v4186
        %v4202 = vpack.c.bf16 %v4188, %v4188
        %s4203 = scalar_lea.vmem %s10, 64
        %v4204 = vld [vmem:[%s4203] sm:$0xf]
        %v4205 = vld [vmem:[%s4203 + $0x4] sm:$0xf]
        %v4206 = vld [vmem:[%s4203 + $0x8] sm:$0xf]
        %v4207 = vld [vmem:[%s4203 + $0xc] sm:$0xf]
        %v4208 = vld [vmem:[%s4203 + $0x10] sm:$0xf]
        %v4209 = vld [vmem:[%s4203 + $0x14] sm:$0xf]
        %v4210 = vld [vmem:[%s4203 + $0x18] sm:$0xf]
        %v4211 = vld [vmem:[%s4203 + $0x1c] sm:$0xf]
        %v4212 = vld [vmem:[%s4203 + $0x20] sm:$0xf]
        %v4213 = vld [vmem:[%s4203 + $0x24] sm:$0xf]
        %v4214 = vld [vmem:[%s4203 + $0x28] sm:$0xf]
        %v4215 = vld [vmem:[%s4203 + $0x2c] sm:$0xf]
        %v4216 = vld [vmem:[%s4203 + $0x30] sm:$0xf]
        %v4217 = vld [vmem:[%s4203 + $0x34] sm:$0xf]
        %v4218 = vld [vmem:[%s4203 + $0x38] sm:$0xf]
        %v4219 = vld [vmem:[%s4203 + $0x3c] sm:$0xf]
        %v4236 = vunpack.c.l.b16 %v4204
        %v4237 = vunpack.c.l.b16 %v4205
        %v4238 = vunpack.c.l.b16 %v4206
        %v4239 = vunpack.c.l.b16 %v4207
        %v4240 = vunpack.c.l.b16 %v4208
        %v4241 = vunpack.c.l.b16 %v4209
        %v4242 = vunpack.c.l.b16 %v4210
        %v4243 = vunpack.c.l.b16 %v4211
        %v4244 = vunpack.c.l.b16 %v4212
        %v4245 = vunpack.c.l.b16 %v4213
        %v4246 = vunpack.c.l.b16 %v4214
        %v4247 = vunpack.c.l.b16 %v4215
        %v4248 = vunpack.c.l.b16 %v4216
        %v4249 = vunpack.c.l.b16 %v4217
        %v4250 = vunpack.c.l.b16 %v4218
        %v4251 = vunpack.c.l.b16 %v4219
        %v4252 = vpack.c.b16 %v4237, %v4236
        %v4253 = vpack.c.b16 %v4239, %v4238
        %v4254 = vpack.c.b16 %v4241, %v4240
        %v4255 = vpack.c.b16 %v4243, %v4242
        %v4256 = vpack.c.b16 %v4245, %v4244
        %v4257 = vpack.c.b16 %v4247, %v4246
        %v4258 = vpack.c.b16 %v4249, %v4248
        %v4259 = vpack.c.b16 %v4251, %v4250
        %4268 = vmatprep.subr.bf16.mxu0 0
        %4269 = vmatpush1.bf16.msra.mxu0 %v4252
        %4270 = vmatprep.subr.bf16.mxu0 0
        %4271 = vmatpush1.bf16.msra.mxu0 %v4253
        %4272 = vmatprep.subr.bf16.mxu0 0
        %4273 = vmatpush1.bf16.msra.mxu0 %v4254
        %4274 = vmatprep.subr.bf16.mxu0 0
        %4275 = vmatpush1.bf16.msra.mxu0 %v4255
        %4276 = vmatprep.subr.bf16.mxu0 0
        %4277 = vmatpush1.bf16.msra.mxu0 %v4256
        %4278 = vmatprep.subr.bf16.mxu0 0
        %4279 = vmatpush1.bf16.msra.mxu0 %v4257
        %4280 = vmatprep.subr.bf16.mxu0 0
        %4281 = vmatpush1.bf16.msra.mxu0 %v4258
        %4282 = vmatprep.subr.bf16.mxu0 0
        %4283 = vmatpush1.bf16.msra.mxu0 %v4259
        %4284 = vmatprep.subr.bf16.mxu0 0
        %4285 = vmatpush1.bf16.msra.mxu0 0
        %4286 = vmatprep.subr.bf16.mxu0 0
        %4287 = vmatpush1.bf16.msra.mxu0 0
        %4288 = vmatprep.subr.bf16.mxu0 0
        %4289 = vmatpush1.bf16.msra.mxu0 0
        %4290 = vmatprep.subr.bf16.mxu0 0
        %4291 = vmatpush1.bf16.msra.mxu0 0
        %4292 = vmatprep.subr.bf16.mxu0 0
        %4293 = vmatpush1.bf16.msra.mxu0 0
        %4294 = vmatprep.subr.bf16.mxu0 0
        %4295 = vmatpush1.bf16.msra.mxu0 0
        %4296 = vmatprep.subr.bf16.mxu0 0
        %4297 = vmatpush1.bf16.msra.mxu0 0
        %4298 = vmatprep.subr.bf16.mxu0 0
        %4299 = vmatpush1.bf16.msra.mxu0 0
        %4300 = vmatprep.mubr.bf16.mxu0 0
        %4301 = vmatmul.mubr.bf16.gmra.mrb[0].mxu0 %v4189
        %v4302 = vpop.f32.mrb[0].mxu0
        %v4303 = vadd.f32 0.0, %v4302
        %v4304 = vpop.f32.mrb[0].mxu0
        %v4305 = vpop.f32.mrb[0].mxu0
        %v4306 = vadd.f32 0.0, %v4305
        %v4307 = vpop.f32.mrb[0].mxu0
        %4308 = vmatprep.mubr.bf16.mxu0 0
        %4309 = vmatmul.mubr.bf16.gmra.mrb[0].mxu0 %v4190
        %v4310 = vpop.f32.mrb[0].mxu0
        %v4311 = vadd.f32 0.0, %v4310
        %v4312 = vpop.f32.mrb[0].mxu0
        %v4313 = vpop.f32.mrb[0].mxu0
        %v4314 = vadd.f32 0.0, %v4313
        %v4315 = vpop.f32.mrb[0].mxu0
        %4316 = vmatprep.mubr.bf16.mxu0 0
        %4317 = vmatmul.mubr.bf16.gmra.mrb[0].mxu0 %v4191
        %v4318 = vpop.f32.mrb[0].mxu0
        %v4319 = vadd.f32 0.0, %v4318
        %v4320 = vpop.f32.mrb[0].mxu0
        %v4321 = vpop.f32.mrb[0].mxu0
        %v4322 = vadd.f32 0.0, %v4321
        %v4323 = vpop.f32.mrb[0].mxu0
        %4324 = vmatprep.mubr.bf16.mxu0 0
        %4325 = vmatmul.mubr.bf16.gmra.mrb[0].mxu0 %v4192
        %v4326 = vpop.f32.mrb[0].mxu0
        %v4327 = vadd.f32 0.0, %v4326
        %v4328 = vpop.f32.mrb[0].mxu0
        %v4329 = vpop.f32.mrb[0].mxu0
        %v4330 = vadd.f32 0.0, %v4329
        %v4331 = vpop.f32.mrb[0].mxu0
        %4332 = vmatprep.mubr.bf16.mxu0 0
        %4333 = vmatmul.mubr.bf16.gmra.mrb[0].mxu0 %v4193
        %v4334 = vpop.f32.mrb[0].mxu0
        %v4335 = vadd.f32 0.0, %v4334
        %v4336 = vpop.f32.mrb[0].mxu0
        %v4337 = vpop.f32.mrb[0].mxu0
        %v4338 = vadd.f32 0.0, %v4337
        %v4339 = vpop.f32.mrb[0].mxu0
        %4340 = vmatprep.mubr.bf16.mxu0 0
        %4341 = vmatmul.mubr.bf16.gmra.mrb[0].mxu0 %v4194
        %v4342 = vpop.f32.mrb[0].mxu0
        %v4343 = vadd.f32 0.0, %v4342
        %v4344 = vpop.f32.mrb[0].mxu0
        %v4345 = vpop.f32.mrb[0].mxu0
        %v4346 = vadd.f32 0.0, %v4345
        %v4347 = vpop.f32.mrb[0].mxu0
        %4348 = vmatprep.mubr.bf16.mxu0 0
        %4349 = vmatmul.mubr.bf16.gmra.mrb[0].mxu0 %v4195
        %v4350 = vpop.f32.mrb[0].mxu0
        %v4351 = vadd.f32 0.0, %v4350
        %v4352 = vpop.f32.mrb[0].mxu0
        %v4353 = vpop.f32.mrb[0].mxu0
        %v4354 = vadd.f32 0.0, %v4353
        %v4355 = vpop.f32.mrb[0].mxu0
        %4356 = vmatprep.mubr.bf16.mxu0 0
        %4357 = vmatmul.mubr.bf16.gmra.mrb[0].mxu0 %v4196
        %v4358 = vpop.f32.mrb[0].mxu0
        %v4359 = vadd.f32 0.0, %v4358
        %v4360 = vpop.f32.mrb[0].mxu0
        %v4361 = vpop.f32.mrb[0].mxu0
        %v4362 = vadd.f32 0.0, %v4361
        %v4363 = vpop.f32.mrb[0].mxu0
        %4364 = vmatprep.mubr.bf16.mxu0 0
        %4365 = vmatmul.mubr.bf16.gmra.mrb[0].mxu0 %v4197
        %v4366 = vpop.f32.mrb[0].mxu0
        %v4367 = vadd.f32 0.0, %v4366
        %v4368 = vpop.f32.mrb[0].mxu0
        %v4369 = vpop.f32.mrb[0].mxu0
        %v4370 = vadd.f32 0.0, %v4369
        %v4371 = vpop.f32.mrb[0].mxu0
        %4372 = vmatprep.mubr.bf16.mxu0 0
        %4373 = vmatmul.mubr.bf16.gmra.mrb[0].mxu0 %v4198
        %v4374 = vpop.f32.mrb[0].mxu0
        %v4375 = vadd.f32 0.0, %v4374
        %v4376 = vpop.f32.mrb[0].mxu0
        %v4377 = vpop.f32.mrb[0].mxu0
        %v4378 = vadd.f32 0.0, %v4377
        %v4379 = vpop.f32.mrb[0].mxu0
        %4380 = vmatprep.mubr.bf16.mxu0 0
        %4381 = vmatmul.mubr.bf16.gmra.mrb[0].mxu0 %v4199
        %v4382 = vpop.f32.mrb[0].mxu0
        %v4383 = vadd.f32 0.0, %v4382
        %v4384 = vpop.f32.mrb[0].mxu0
        %v4385 = vpop.f32.mrb[0].mxu0
        %v4386 = vadd.f32 0.0, %v4385
        %v4387 = vpop.f32.mrb[0].mxu0
        %4388 = vmatprep.mubr.bf16.mxu0 0
        %4389 = vmatmul.mubr.bf16.gmra.mrb[0].mxu0 %v4200
        %v4390 = vpop.f32.mrb[0].mxu0
        %v4391 = vadd.f32 0.0, %v4390
        %v4392 = vpop.f32.mrb[0].mxu0
        %v4393 = vpop.f32.mrb[0].mxu0
        %v4394 = vadd.f32 0.0, %v4393
        %v4395 = vpop.f32.mrb[0].mxu0
        %4396 = vmatprep.mubr.bf16.mxu0 0
        %4397 = vmatmul.mubr.bf16.gmra.mrb[0].mxu0 %v4201
        %v4398 = vpop.f32.mrb[0].mxu0
        %v4399 = vadd.f32 0.0, %v4398
        %v4400 = vpop.f32.mrb[0].mxu0
        %v4401 = vpop.f32.mrb[0].mxu0
        %v4402 = vadd.f32 0.0, %v4401
        %v4403 = vpop.f32.mrb[0].mxu0
        %4404 = vmatprep.mubr.bf16.mxu0 0
        %4405 = vmatmul.mubr.bf16.gmra.mrb[0].mxu0 %v4202
        %v4406 = vpop.f32.mrb[0].mxu0
        %v4407 = vadd.f32 0.0, %v4406
        %v4408 = vpop.f32.mrb[0].mxu0
        %v4409 = vpop.f32.mrb[0].mxu0
        %v4410 = vpop.f32.mrb[0].mxu0
        %4411 = vdwg.mxu0
        %v4428 = vunpack.c.l.b16 %v4146
        %v4429 = vunpack.c.l.b16 %v4147
        %v4430 = vunpack.c.l.b16 %v4148
        %v4431 = vunpack.c.l.b16 %v4149
        %v4432 = vunpack.c.l.b16 %v4150
        %v4433 = vunpack.c.l.b16 %v4151
        %v4434 = vunpack.c.l.b16 %v4152
        %v4435 = vunpack.c.l.b16 %v4153
        %v4436 = vunpack.c.l.b16 %v4154
        %v4437 = vunpack.c.l.b16 %v4155
        %v4438 = vunpack.c.l.b16 %v4156
        %v4439 = vunpack.c.l.b16 %v4157
        %v4440 = vunpack.c.l.b16 %v4158
        %v4441 = vunpack.c.l.b16 %v4159
        %v4442 = vunpack.c.l.b16 %v4160
        %v4443 = vunpack.c.l.b16 %v4161
        %v4444 = vpack.c.b16 %v4429, %v4428
        %v4445 = vpack.c.b16 %v4431, %v4430
        %v4446 = vpack.c.b16 %v4433, %v4432
        %v4447 = vpack.c.b16 %v4435, %v4434
        %v4448 = vpack.c.b16 %v4437, %v4436
        %v4449 = vpack.c.b16 %v4439, %v4438
        %v4450 = vpack.c.b16 %v4441, %v4440
        %v4451 = vpack.c.b16 %v4443, %v4442
        %4460 = vmatprep.subr.bf16.mxu0 0
        %4461 = vmatpush1.bf16.msra.mxu0 %v4444
        %4462 = vmatprep.subr.bf16.mxu0 0
        %4463 = vmatpush1.bf16.msra.mxu0 %v4445
        %4464 = vmatprep.subr.bf16.mxu0 0
        %4465 = vmatpush1.bf16.msra.mxu0 %v4446
        %4466 = vmatprep.subr.bf16.mxu0 0
        %4467 = vmatpush1.bf16.msra.mxu0 %v4447
        %4468 = vmatprep.subr.bf16.mxu0 0
        %4469 = vmatpush1.bf16.msra.mxu0 %v4448
        %4470 = vmatprep.subr.bf16.mxu0 0
        %4471 = vmatpush1.bf16.msra.mxu0 %v4449
        %4472 = vmatprep.subr.bf16.mxu0 0
        %4473 = vmatpush1.bf16.msra.mxu0 %v4450
        %4474 = vmatprep.subr.bf16.mxu0 0
        %4475 = vmatpush1.bf16.msra.mxu0 %v4451
        %4476 = vmatprep.subr.bf16.mxu0 0
        %4477 = vmatpush1.bf16.msra.mxu0 0
        %4478 = vmatprep.subr.bf16.mxu0 0
        %4479 = vmatpush1.bf16.msra.mxu0 0
        %4480 = vmatprep.subr.bf16.mxu0 0
        %4481 = vmatpush1.bf16.msra.mxu0 0
        %4482 = vmatprep.subr.bf16.mxu0 0
        %4483 = vmatpush1.bf16.msra.mxu0 0
        %4484 = vmatprep.subr.bf16.mxu0 0
        %4485 = vmatpush1.bf16.msra.mxu0 0
        %4486 = vmatprep.subr.bf16.mxu0 0
        %4487 = vmatpush1.bf16.msra.mxu0 0
        %4488 = vmatprep.subr.bf16.mxu0 0
        %4489 = vmatpush1.bf16.msra.mxu0 0
        %4490 = vmatprep.subr.bf16.mxu0 0
        %4491 = vmatpush1.bf16.msra.mxu0 0
        %4492 = vmatprep.mubr.bf16.mxu0 0
        %4493 = vmatmul.mubr.bf16.gmra.mrb[0].mxu0 %v4132
        %v4494 = vpop.f32.mrb[0].mxu0
        %v4495 = vadd.f32 %v4303, %v4494
        %v4496 = vpop.f32.mrb[0].mxu0
        %v4497 = vpop.f32.mrb[0].mxu0
        %v4498 = vadd.f32 %v4306, %v4497
        %v4499 = vpop.f32.mrb[0].mxu0
        %4500 = vmatprep.mubr.bf16.mxu0 0
        %4501 = vmatmul.mubr.bf16.gmra.mrb[0].mxu0 %v4133
        %v4502 = vpop.f32.mrb[0].mxu0
        %v4503 = vadd.f32 %v4311, %v4502
        %v4504 = vpop.f32.mrb[0].mxu0
        %v4505 = vpop.f32.mrb[0].mxu0
        %v4506 = vadd.f32 %v4314, %v4505
        %v4507 = vpop.f32.mrb[0].mxu0
        %4508 = vmatprep.mubr.bf16.mxu0 0
        %4509 = vmatmul.mubr.bf16.gmra.mrb[0].mxu0 %v4134
        %v4510 = vpop.f32.mrb[0].mxu0
        %v4511 = vadd.f32 %v4319, %v4510
        %v4512 = vpop.f32.mrb[0].mxu0
        %v4513 = vpop.f32.mrb[0].mxu0
        %v4514 = vadd.f32 %v4322, %v4513
        %v4515 = vpop.f32.mrb[0].mxu0
        %4516 = vmatprep.mubr.bf16.mxu0 0
        %4517 = vmatmul.mubr.bf16.gmra.mrb[0].mxu0 %v4135
        %v4518 = vpop.f32.mrb[0].mxu0
        %v4519 = vadd.f32 %v4327, %v4518
        %v4520 = vpop.f32.mrb[0].mxu0
        %v4521 = vpop.f32.mrb[0].mxu0
        %v4522 = vadd.f32 %v4330, %v4521
        %v4523 = vpop.f32.mrb[0].mxu0
        %4524 = vmatprep.mubr.bf16.mxu0 0
        %4525 = vmatmul.mubr.bf16.gmra.mrb[0].mxu0 %v4136
        %v4526 = vpop.f32.mrb[0].mxu0
        %v4527 = vadd.f32 %v4335, %v4526
        %v4528 = vpop.f32.mrb[0].mxu0
        %v4529 = vpop.f32.mrb[0].mxu0
        %v4530 = vadd.f32 %v4338, %v4529
        %v4531 = vpop.f32.mrb[0].mxu0
        %4532 = vmatprep.mubr.bf16.mxu0 0
        %4533 = vmatmul.mubr.bf16.gmra.mrb[0].mxu0 %v4137
        %v4534 = vpop.f32.mrb[0].mxu0
        %v4535 = vadd.f32 %v4343, %v4534
        %v4536 = vpop.f32.mrb[0].mxu0
        %v4537 = vpop.f32.mrb[0].mxu0
        %v4538 = vadd.f32 %v4346, %v4537
        %v4539 = vpop.f32.mrb[0].mxu0
        %4540 = vmatprep.mubr.bf16.mxu0 0
        %4541 = vmatmul.mubr.bf16.gmra.mrb[0].mxu0 %v4138
        %v4542 = vpop.f32.mrb[0].mxu0
        %v4543 = vadd.f32 %v4351, %v4542
        %v4544 = vpop.f32.mrb[0].mxu0
        %v4545 = vpop.f32.mrb[0].mxu0
        %v4546 = vadd.f32 %v4354, %v4545
        %v4547 = vpop.f32.mrb[0].mxu0
        %4548 = vmatprep.mubr.bf16.mxu0 0
        %4549 = vmatmul.mubr.bf16.gmra.mrb[0].mxu0 %v4139
        %v4550 = vpop.f32.mrb[0].mxu0
        %v4551 = vadd.f32 %v4359, %v4550
        %v4552 = vpop.f32.mrb[0].mxu0
        %v4553 = vpop.f32.mrb[0].mxu0
        %v4554 = vadd.f32 %v4362, %v4553
        %v4555 = vpop.f32.mrb[0].mxu0
        %4556 = vmatprep.mubr.bf16.mxu0 0
        %4557 = vmatmul.mubr.bf16.gmra.mrb[0].mxu0 %v4140
        %v4558 = vpop.f32.mrb[0].mxu0
        %v4559 = vadd.f32 %v4367, %v4558
        %v4560 = vpop.f32.mrb[0].mxu0
        %v4561 = vpop.f32.mrb[0].mxu0
        %v4562 = vadd.f32 %v4370, %v4561
        %v4563 = vpop.f32.mrb[0].mxu0
        %4564 = vmatprep.mubr.bf16.mxu0 0
        %4565 = vmatmul.mubr.bf16.gmra.mrb[0].mxu0 %v4141
        %v4566 = vpop.f32.mrb[0].mxu0
        %v4567 = vadd.f32 %v4375, %v4566
        %v4568 = vpop.f32.mrb[0].mxu0
        %v4569 = vpop.f32.mrb[0].mxu0
        %v4570 = vadd.f32 %v4378, %v4569
        %v4571 = vpop.f32.mrb[0].mxu0
        %4572 = vmatprep.mubr.bf16.mxu0 0
        %4573 = vmatmul.mubr.bf16.gmra.mrb[0].mxu0 %v4142
        %v4574 = vpop.f32.mrb[0].mxu0
        %v4575 = vadd.f32 %v4383, %v4574
        %v4576 = vpop.f32.mrb[0].mxu0
        %v4577 = vpop.f32.mrb[0].mxu0
        %v4578 = vadd.f32 %v4386, %v4577
        %v4579 = vpop.f32.mrb[0].mxu0
        %4580 = vmatprep.mubr.bf16.mxu0 0
        %4581 = vmatmul.mubr.bf16.gmra.mrb[0].mxu0 %v4143
        %v4582 = vpop.f32.mrb[0].mxu0
        %v4583 = vadd.f32 %v4391, %v4582
        %v4584 = vpop.f32.mrb[0].mxu0
        %v4585 = vpop.f32.mrb[0].mxu0
        %v4586 = vadd.f32 %v4394, %v4585
        %v4587 = vpop.f32.mrb[0].mxu0
        %4588 = vmatprep.mubr.bf16.mxu0 0
        %4589 = vmatmul.mubr.bf16.gmra.mrb[0].mxu0 %v4144
        %v4590 = vpop.f32.mrb[0].mxu0
        %v4591 = vadd.f32 %v4399, %v4590
        %v4592 = vpop.f32.mrb[0].mxu0
        %v4593 = vpop.f32.mrb[0].mxu0
        %v4594 = vadd.f32 %v4402, %v4593
        %v4595 = vpop.f32.mrb[0].mxu0
        %4596 = vmatprep.mubr.bf16.mxu0 0
        %4597 = vmatmul.mubr.bf16.gmra.mrb[0].mxu0 %v4145
        %v4598 = vpop.f32.mrb[0].mxu0
        %v4599 = vadd.f32 %v4407, %v4598
        %v4600 = vpop.f32.mrb[0].mxu0
        %v4601 = vpop.f32.mrb[0].mxu0
        %v4602 = vpop.f32.mrb[0].mxu0
        %4603 = vdwg.mxu0
        %v4604 = vld [vmem:[#allocation3 + $0x8] sm:$0xff]
        %v4605 = vld [vmem:[#allocation3 + $0x10] sm:$0xff]
        %v4606 = vld [vmem:[#allocation3 + $0x18] sm:$0xff]
        %v4607 = vld [vmem:[#allocation3 + $0x20] sm:$0xff]
        %v4608 = vld [vmem:[#allocation3 + $0x28] sm:$0xff]
        %v4609 = vld [vmem:[#allocation3 + $0x30] sm:$0xff]
        %v4610 = vld [vmem:[#allocation3 + $0x38] sm:$0xff]
        %v4611 = vld [vmem:[#allocation3 + $0x40] sm:$0xff]
        %v4612 = vld [vmem:[#allocation3 + $0x48] sm:$0xff]
        %v4613 = vld [vmem:[#allocation3 + $0x50] sm:$0xff]
        %v4614 = vld [vmem:[#allocation3 + $0x58] sm:$0xff]
        %v4615 = vld [vmem:[#allocation3 + $0x60] sm:$0xff]
        %v4616 = vld [vmem:[#allocation3 + $0x68] sm:$0xff]
        %v4617 = vld [vmem:[#allocation3 + $0x70] sm:$0xff]
        %v4618 = vld [vmem:[#allocation3 + $0x78] sm:$0xff]
        %v4619 = vld [vmem:[#allocation3 + $0x80] sm:$0xff]
        %v4620 = vld [vmem:[#allocation3 + $0x88] sm:$0xff]
        %v4621 = vld [vmem:[#allocation3 + $0x90] sm:$0xff]
        %v4622 = vld [vmem:[#allocation3 + $0x98] sm:$0xff]
        %v4623 = vld [vmem:[#allocation3 + $0xa0] sm:$0xff]
        %v4624 = vld [vmem:[#allocation3 + $0xa8] sm:$0xff]
        %v4625 = vld [vmem:[#allocation3 + $0xb0] sm:$0xff]
        %v4626 = vld [vmem:[#allocation3 + $0xb8] sm:$0xff]
        %v4627 = vld [vmem:[#allocation3 + $0xc0] sm:$0xff]
        %v4628 = vld [vmem:[#allocation3 + $0xc8] sm:$0xff]
        %v4629 = vld [vmem:[#allocation3 + $0xd0] sm:$0xff]
        %v4630 = vld [vmem:[#allocation3 + $0xd8] sm:$0x1]
        %v4631 = vpack.c.bf16 %v4605, %v4604
        %v4632 = vpack.c.bf16 %v4607, %v4606
        %v4633 = vpack.c.bf16 %v4609, %v4608
        %v4634 = vpack.c.bf16 %v4611, %v4610
        %v4635 = vpack.c.bf16 %v4613, %v4612
        %v4636 = vpack.c.bf16 %v4615, %v4614
        %v4637 = vpack.c.bf16 %v4617, %v4616
        %v4638 = vpack.c.bf16 %v4619, %v4618
        %v4639 = vpack.c.bf16 %v4621, %v4620
        %v4640 = vpack.c.bf16 %v4623, %v4622
        %v4641 = vpack.c.bf16 %v4625, %v4624
        %v4642 = vpack.c.bf16 %v4627, %v4626
        %v4643 = vpack.c.bf16 %v4629, %v4628
        %v4644 = vpack.c.bf16 %v4630, %v4630
        %s4645 = scalar_lea.vmem %s10, 128
        %v4646 = vld [vmem:[%s4645] sm:$0xf]
        %v4647 = vld [vmem:[%s4645 + $0x4] sm:$0xf]
        %v4648 = vld [vmem:[%s4645 + $0x8] sm:$0xf]
        %v4649 = vld [vmem:[%s4645 + $0xc] sm:$0xf]
        %v4650 = vld [vmem:[%s4645 + $0x10] sm:$0xf]
        %v4651 = vld [vmem:[%s4645 + $0x14] sm:$0xf]
        %v4652 = vld [vmem:[%s4645 + $0x18] sm:$0xf]
        %v4653 = vld [vmem:[%s4645 + $0x1c] sm:$0xf]
        %v4654 = vld [vmem:[%s4645 + $0x20] sm:$0xf]
        %v4655 = vld [vmem:[%s4645 + $0x24] sm:$0xf]
        %v4656 = vld [vmem:[%s4645 + $0x28] sm:$0xf]
        %v4657 = vld [vmem:[%s4645 + $0x2c] sm:$0xf]
        %v4658 = vld [vmem:[%s4645 + $0x30] sm:$0xf]
        %v4659 = vld [vmem:[%s4645 + $0x34] sm:$0xf]
        %v4660 = vld [vmem:[%s4645 + $0x38] sm:$0xf]
        %v4661 = vld [vmem:[%s4645 + $0x3c] sm:$0xf]
        %v4678 = vunpack.c.l.b16 %v4646
        %v4679 = vunpack.c.l.b16 %v4647
        %v4680 = vunpack.c.l.b16 %v4648
        %v4681 = vunpack.c.l.b16 %v4649
        %v4682 = vunpack.c.l.b16 %v4650
        %v4683 = vunpack.c.l.b16 %v4651
        %v4684 = vunpack.c.l.b16 %v4652
        %v4685 = vunpack.c.l.b16 %v4653
        %v4686 = vunpack.c.l.b16 %v4654
        %v4687 = vunpack.c.l.b16 %v4655
        %v4688 = vunpack.c.l.b16 %v4656
        %v4689 = vunpack.c.l.b16 %v4657
        %v4690 = vunpack.c.l.b16 %v4658
        %v4691 = vunpack.c.l.b16 %v4659
        %v4692 = vunpack.c.l.b16 %v4660
        %v4693 = vunpack.c.l.b16 %v4661
        %v4694 = vpack.c.b16 %v4679, %v4678
        %v4695 = vpack.c.b16 %v4681, %v4680
        %v4696 = vpack.c.b16 %v4683, %v4682
        %v4697 = vpack.c.b16 %v4685, %v4684
        %v4698 = vpack.c.b16 %v4687, %v4686
        %v4699 = vpack.c.b16 %v4689, %v4688
        %v4700 = vpack.c.b16 %v4691, %v4690
        %v4701 = vpack.c.b16 %v4693, %v4692
        %4710 = vmatprep.subr.bf16.mxu0 0
        %4711 = vmatpush1.bf16.msra.mxu0 %v4694
        %4712 = vmatprep.subr.bf16.mxu0 0
        %4713 = vmatpush1.bf16.msra.mxu0 %v4695
        %4714 = vmatprep.subr.bf16.mxu0 0
        %4715 = vmatpush1.bf16.msra.mxu0 %v4696
        %4716 = vmatprep.subr.bf16.mxu0 0
        %4717 = vmatpush1.bf16.msra.mxu0 %v4697
        %4718 = vmatprep.subr.bf16.mxu0 0
        %4719 = vmatpush1.bf16.msra.mxu0 %v4698
        %4720 = vmatprep.subr.bf16.mxu0 0
        %4721 = vmatpush1.bf16.msra.mxu0 %v4699
        %4722 = vmatprep.subr.bf16.mxu0 0
        %4723 = vmatpush1.bf16.msra.mxu0 %v4700
        %4724 = vmatprep.subr.bf16.mxu0 0
        %4725 = vmatpush1.bf16.msra.mxu0 %v4701
        %4726 = vmatprep.subr.bf16.mxu0 0
        %4727 = vmatpush1.bf16.msra.mxu0 0
        %4728 = vmatprep.subr.bf16.mxu0 0
        %4729 = vmatpush1.bf16.msra.mxu0 0
        %4730 = vmatprep.subr.bf16.mxu0 0
        %4731 = vmatpush1.bf16.msra.mxu0 0
        %4732 = vmatprep.subr.bf16.mxu0 0
        %4733 = vmatpush1.bf16.msra.mxu0 0
        %4734 = vmatprep.subr.bf16.mxu0 0
        %4735 = vmatpush1.bf16.msra.mxu0 0
        %4736 = vmatprep.subr.bf16.mxu0 0
        %4737 = vmatpush1.bf16.msra.mxu0 0
        %4738 = vmatprep.subr.bf16.mxu0 0
        %4739 = vmatpush1.bf16.msra.mxu0 0
        %4740 = vmatprep.subr.bf16.mxu0 0
        %4741 = vmatpush1.bf16.msra.mxu0 0
        %4742 = vmatprep.mubr.bf16.mxu0 0
        %4743 = vmatmul.mubr.bf16.gmra.mrb[0].mxu0 %v4631
        %v4744 = vpop.f32.mrb[0].mxu0
        %v4745 = vadd.f32 0.0, %v4744
        %v4746 = vpop.f32.mrb[0].mxu0
        %v4747 = vpop.f32.mrb[0].mxu0
        %v4748 = vadd.f32 0.0, %v4747
        %v4749 = vpop.f32.mrb[0].mxu0
        %4750 = vmatprep.mubr.bf16.mxu0 0
        %4751 = vmatmul.mubr.bf16.gmra.mrb[0].mxu0 %v4632
        %v4752 = vpop.f32.mrb[0].mxu0
        %v4753 = vadd.f32 0.0, %v4752
        %v4754 = vpop.f32.mrb[0].mxu0
        %v4755 = vpop.f32.mrb[0].mxu0
        %v4756 = vadd.f32 0.0, %v4755
        %v4757 = vpop.f32.mrb[0].mxu0
        %4758 = vmatprep.mubr.bf16.mxu0 0
        %4759 = vmatmul.mubr.bf16.gmra.mrb[0].mxu0 %v4633
        %v4760 = vpop.f32.mrb[0].mxu0
        %v4761 = vadd.f32 0.0, %v4760
        %v4762 = vpop.f32.mrb[0].mxu0
        %v4763 = vpop.f32.mrb[0].mxu0
        %v4764 = vadd.f32 0.0, %v4763
        %v4765 = vpop.f32.mrb[0].mxu0
        %4766 = vmatprep.mubr.bf16.mxu0 0
        %4767 = vmatmul.mubr.bf16.gmra.mrb[0].mxu0 %v4634
        %v4768 = vpop.f32.mrb[0].mxu0
        %v4769 = vadd.f32 0.0, %v4768
        %v4770 = vpop.f32.mrb[0].mxu0
        %v4771 = vpop.f32.mrb[0].mxu0
        %v4772 = vadd.f32 0.0, %v4771
        %v4773 = vpop.f32.mrb[0].mxu0
        %4774 = vmatprep.mubr.bf16.mxu0 0
        %4775 = vmatmul.mubr.bf16.gmra.mrb[0].mxu0 %v4635
        %v4776 = vpop.f32.mrb[0].mxu0
        %v4777 = vadd.f32 0.0, %v4776
        %v4778 = vpop.f32.mrb[0].mxu0
        %v4779 = vpop.f32.mrb[0].mxu0
        %v4780 = vadd.f32 0.0, %v4779
        %v4781 = vpop.f32.mrb[0].mxu0
        %4782 = vmatprep.mubr.bf16.mxu0 0
        %4783 = vmatmul.mubr.bf16.gmra.mrb[0].mxu0 %v4636
        %v4784 = vpop.f32.mrb[0].mxu0
        %v4785 = vadd.f32 0.0, %v4784
        %v4786 = vpop.f32.mrb[0].mxu0
        %v4787 = vpop.f32.mrb[0].mxu0
        %v4788 = vadd.f32 0.0, %v4787
        %v4789 = vpop.f32.mrb[0].mxu0
        %4790 = vmatprep.mubr.bf16.mxu0 0
        %4791 = vmatmul.mubr.bf16.gmra.mrb[0].mxu0 %v4637
        %v4792 = vpop.f32.mrb[0].mxu0
        %v4793 = vadd.f32 0.0, %v4792
        %v4794 = vpop.f32.mrb[0].mxu0
        %v4795 = vpop.f32.mrb[0].mxu0
        %v4796 = vadd.f32 0.0, %v4795
        %v4797 = vpop.f32.mrb[0].mxu0
        %4798 = vmatprep.mubr.bf16.mxu0 0
        %4799 = vmatmul.mubr.bf16.gmra.mrb[0].mxu0 %v4638
        %v4800 = vpop.f32.mrb[0].mxu0
        %v4801 = vadd.f32 0.0, %v4800
        %v4802 = vpop.f32.mrb[0].mxu0
        %v4803 = vpop.f32.mrb[0].mxu0
        %v4804 = vadd.f32 0.0, %v4803
        %v4805 = vpop.f32.mrb[0].mxu0
        %4806 = vmatprep.mubr.bf16.mxu0 0
        %4807 = vmatmul.mubr.bf16.gmra.mrb[0].mxu0 %v4639
        %v4808 = vpop.f32.mrb[0].mxu0
        %v4809 = vadd.f32 0.0, %v4808
        %v4810 = vpop.f32.mrb[0].mxu0
        %v4811 = vpop.f32.mrb[0].mxu0
        %v4812 = vadd.f32 0.0, %v4811
        %v4813 = vpop.f32.mrb[0].mxu0
        %4814 = vmatprep.mubr.bf16.mxu0 0
        %4815 = vmatmul.mubr.bf16.gmra.mrb[0].mxu0 %v4640
        %v4816 = vpop.f32.mrb[0].mxu0
        %v4817 = vadd.f32 0.0, %v4816
        %v4818 = vpop.f32.mrb[0].mxu0
        %v4819 = vpop.f32.mrb[0].mxu0
        %v4820 = vadd.f32 0.0, %v4819
        %v4821 = vpop.f32.mrb[0].mxu0
        %4822 = vmatprep.mubr.bf16.mxu0 0
        %4823 = vmatmul.mubr.bf16.gmra.mrb[0].mxu0 %v4641
        %v4824 = vpop.f32.mrb[0].mxu0
        %v4825 = vadd.f32 0.0, %v4824
        %v4826 = vpop.f32.mrb[0].mxu0
        %v4827 = vpop.f32.mrb[0].mxu0
        %v4828 = vadd.f32 0.0, %v4827
        %v4829 = vpop.f32.mrb[0].mxu0
        %4830 = vmatprep.mubr.bf16.mxu0 0
        %4831 = vmatmul.mubr.bf16.gmra.mrb[0].mxu0 %v4642
        %v4832 = vpop.f32.mrb[0].mxu0
        %v4833 = vadd.f32 0.0, %v4832
        %v4834 = vpop.f32.mrb[0].mxu0
        %v4835 = vpop.f32.mrb[0].mxu0
        %v4836 = vadd.f32 0.0, %v4835
        %v4837 = vpop.f32.mrb[0].mxu0
        %4838 = vmatprep.mubr.bf16.mxu0 0
        %4839 = vmatmul.mubr.bf16.gmra.mrb[0].mxu0 %v4643
        %v4840 = vpop.f32.mrb[0].mxu0
        %v4841 = vadd.f32 0.0, %v4840
        %v4842 = vpop.f32.mrb[0].mxu0
        %v4843 = vpop.f32.mrb[0].mxu0
        %v4844 = vadd.f32 0.0, %v4843
        %v4845 = vpop.f32.mrb[0].mxu0
        %4846 = vmatprep.mubr.bf16.mxu0 0
        %4847 = vmatmul.mubr.bf16.gmra.mrb[0].mxu0 %v4644
        %v4848 = vpop.f32.mrb[0].mxu0
        %v4849 = vadd.f32 0.0, %v4848
        %v4850 = vpop.f32.mrb[0].mxu0
        %v4851 = vpop.f32.mrb[0].mxu0
        %v4852 = vpop.f32.mrb[0].mxu0
        %4853 = vdwg.mxu0
        %v4854 = vadd.f32 %v4495, %v4745
        %v4855 = vadd.f32 %v4498, %v4748
        %v4856 = vadd.f32 %v4503, %v4753
        %v4857 = vadd.f32 %v4506, %v4756
        %v4858 = vadd.f32 %v4511, %v4761
        %v4859 = vadd.f32 %v4514, %v4764
        %v4860 = vadd.f32 %v4519, %v4769
        %v4861 = vadd.f32 %v4522, %v4772
        %v4862 = vadd.f32 %v4527, %v4777
        %v4863 = vadd.f32 %v4530, %v4780
        %v4864 = vadd.f32 %v4535, %v4785
        %v4865 = vadd.f32 %v4538, %v4788
        %v4866 = vadd.f32 %v4543, %v4793
        %v4867 = vadd.f32 %v4546, %v4796
        %v4868 = vadd.f32 %v4551, %v4801
        %v4869 = vadd.f32 %v4554, %v4804
        %v4870 = vadd.f32 %v4559, %v4809
        %v4871 = vadd.f32 %v4562, %v4812
        %v4872 = vadd.f32 %v4567, %v4817
        %v4873 = vadd.f32 %v4570, %v4820
        %v4874 = vadd.f32 %v4575, %v4825
        %v4875 = vadd.f32 %v4578, %v4828
        %v4876 = vadd.f32 %v4583, %v4833
        %v4877 = vadd.f32 %v4586, %v4836
        %v4878 = vadd.f32 %v4591, %v4841
        %v4879 = vadd.f32 %v4594, %v4844
        %v4880 = vadd.f32 %v4599, %v4849
        %v4881 = vld [vmem:[#allocation3 + $0xc] sm:$0xff]
        %v4882 = vld [vmem:[#allocation3 + $0x14] sm:$0xff]
        %v4883 = vld [vmem:[#allocation3 + $0x1c] sm:$0xff]
        %v4884 = vld [vmem:[#allocation3 + $0x24] sm:$0xff]
        %v4885 = vld [vmem:[#allocation3 + $0x2c] sm:$0xff]
        %v4886 = vld [vmem:[#allocation3 + $0x34] sm:$0xff]
        %v4887 = vld [vmem:[#allocation3 + $0x3c] sm:$0xff]
        %v4888 = vld [vmem:[#allocation3 + $0x44] sm:$0xff]
        %v4889 = vld [vmem:[#allocation3 + $0x4c] sm:$0xff]
        %v4890 = vld [vmem:[#allocation3 + $0x54] sm:$0xff]
        %v4891 = vld [vmem:[#allocation3 + $0x5c] sm:$0xff]
        %v4892 = vld [vmem:[#allocation3 + $0x64] sm:$0xff]
        %v4893 = vld [vmem:[#allocation3 + $0x6c] sm:$0xff]
        %v4894 = vld [vmem:[#allocation3 + $0x74] sm:$0xff]
        %v4895 = vld [vmem:[#allocation3 + $0x7c] sm:$0xff]
        %v4896 = vld [vmem:[#allocation3 + $0x84] sm:$0xff]
        %v4897 = vld [vmem:[#allocation3 + $0x8c] sm:$0xff]
        %v4898 = vld [vmem:[#allocation3 + $0x94] sm:$0xff]
        %v4899 = vld [vmem:[#allocation3 + $0x9c] sm:$0xff]
        %v4900 = vld [vmem:[#allocation3 + $0xa4] sm:$0xff]
        %v4901 = vld [vmem:[#allocation3 + $0xac] sm:$0xff]
        %v4902 = vld [vmem:[#allocation3 + $0xb4] sm:$0xff]
        %v4903 = vld [vmem:[#allocation3 + $0xbc] sm:$0xff]
        %v4904 = vld [vmem:[#allocation3 + $0xc4] sm:$0xff]
        %v4905 = vld [vmem:[#allocation3 + $0xcc] sm:$0xff]
        %v4906 = vld [vmem:[#allocation3 + $0xd4] sm:$0xff]
        %v4907 = vld [vmem:[#allocation3 + $0xdc] sm:$0x1]
        %v4908 = vpack.c.bf16 %v4882, %v4881
        %v4909 = vpack.c.bf16 %v4884, %v4883
        %v4910 = vpack.c.bf16 %v4886, %v4885
        %v4911 = vpack.c.bf16 %v4888, %v4887
        %v4912 = vpack.c.bf16 %v4890, %v4889
        %v4913 = vpack.c.bf16 %v4892, %v4891
        %v4914 = vpack.c.bf16 %v4894, %v4893
        %v4915 = vpack.c.bf16 %v4896, %v4895
        %v4916 = vpack.c.bf16 %v4898, %v4897
        %v4917 = vpack.c.bf16 %v4900, %v4899
        %v4918 = vpack.c.bf16 %v4902, %v4901
        %v4919 = vpack.c.bf16 %v4904, %v4903
        %v4920 = vpack.c.bf16 %v4906, %v4905
        %v4921 = vpack.c.bf16 %v4907, %v4907
        %s4922 = scalar_lea.vmem %s10, 192
        %v4923 = vld [vmem:[%s4922] sm:$0xf]
        %v4924 = vld [vmem:[%s4922 + $0x4] sm:$0xf]
        %v4925 = vld [vmem:[%s4922 + $0x8] sm:$0xf]
        %v4926 = vld [vmem:[%s4922 + $0xc] sm:$0xf]
        %v4927 = vld [vmem:[%s4922 + $0x10] sm:$0xf]
        %v4928 = vld [vmem:[%s4922 + $0x14] sm:$0xf]
        %v4929 = vld [vmem:[%s4922 + $0x18] sm:$0xf]
        %v4930 = vld [vmem:[%s4922 + $0x1c] sm:$0xf]
        %v4931 = vld [vmem:[%s4922 + $0x20] sm:$0xf]
        %v4932 = vld [vmem:[%s4922 + $0x24] sm:$0xf]
        %v4933 = vld [vmem:[%s4922 + $0x28] sm:$0xf]
        %v4934 = vld [vmem:[%s4922 + $0x2c] sm:$0xf]
        %v4935 = vld [vmem:[%s4922 + $0x30] sm:$0xf]
        %v4936 = vld [vmem:[%s4922 + $0x34] sm:$0xf]
        %v4937 = vld [vmem:[%s4922 + $0x38] sm:$0xf]
        %v4938 = vld [vmem:[%s4922 + $0x3c] sm:$0xf]
        %v4955 = vunpack.c.l.b16 %v4923
        %v4956 = vunpack.c.l.b16 %v4924
        %v4957 = vunpack.c.l.b16 %v4925
        %v4958 = vunpack.c.l.b16 %v4926
        %v4959 = vunpack.c.l.b16 %v4927
        %v4960 = vunpack.c.l.b16 %v4928
        %v4961 = vunpack.c.l.b16 %v4929
        %v4962 = vunpack.c.l.b16 %v4930
        %v4963 = vunpack.c.l.b16 %v4931
        %v4964 = vunpack.c.l.b16 %v4932
        %v4965 = vunpack.c.l.b16 %v4933
        %v4966 = vunpack.c.l.b16 %v4934
        %v4967 = vunpack.c.l.b16 %v4935
        %v4968 = vunpack.c.l.b16 %v4936
        %v4969 = vunpack.c.l.b16 %v4937
        %v4970 = vunpack.c.l.b16 %v4938
        %v4971 = vpack.c.b16 %v4956, %v4955
        %v4972 = vpack.c.b16 %v4958, %v4957
        %v4973 = vpack.c.b16 %v4960, %v4959
        %v4974 = vpack.c.b16 %v4962, %v4961
        %v4975 = vpack.c.b16 %v4964, %v4963
        %v4976 = vpack.c.b16 %v4966, %v4965
        %v4977 = vpack.c.b16 %v4968, %v4967
        %v4978 = vpack.c.b16 %v4970, %v4969
        %4987 = vmatprep.subr.bf16.mxu0 0
        %4988 = vmatpush1.bf16.msra.mxu0 %v4971
        %4989 = vmatprep.subr.bf16.mxu0 0
        %4990 = vmatpush1.bf16.msra.mxu0 %v4972
        %4991 = vmatprep.subr.bf16.mxu0 0
        %4992 = vmatpush1.bf16.msra.mxu0 %v4973
        %4993 = vmatprep.subr.bf16.mxu0 0
        %4994 = vmatpush1.bf16.msra.mxu0 %v4974
        %4995 = vmatprep.subr.bf16.mxu0 0
        %4996 = vmatpush1.bf16.msra.mxu0 %v4975
        %4997 = vmatprep.subr.bf16.mxu0 0
        %4998 = vmatpush1.bf16.msra.mxu0 %v4976
        %4999 = vmatprep.subr.bf16.mxu0 0
        %5000 = vmatpush1.bf16.msra.mxu0 %v4977
        %5001 = vmatprep.subr.bf16.mxu0 0
        %5002 = vmatpush1.bf16.msra.mxu0 %v4978
        %5003 = vmatprep.subr.bf16.mxu0 0
        %5004 = vmatpush1.bf16.msra.mxu0 0
        %5005 = vmatprep.subr.bf16.mxu0 0
        %5006 = vmatpush1.bf16.msra.mxu0 0
        %5007 = vmatprep.subr.bf16.mxu0 0
        %5008 = vmatpush1.bf16.msra.mxu0 0
        %5009 = vmatprep.subr.bf16.mxu0 0
        %5010 = vmatpush1.bf16.msra.mxu0 0
        %5011 = vmatprep.subr.bf16.mxu0 0
        %5012 = vmatpush1.bf16.msra.mxu0 0
        %5013 = vmatprep.subr.bf16.mxu0 0
        %5014 = vmatpush1.bf16.msra.mxu0 0
        %5015 = vmatprep.subr.bf16.mxu0 0
        %5016 = vmatpush1.bf16.msra.mxu0 0
        %5017 = vmatprep.subr.bf16.mxu0 0
        %5018 = vmatpush1.bf16.msra.mxu0 0
        %5019 = vmatprep.mubr.bf16.mxu0 0
        %5020 = vmatmul.mubr.bf16.gmra.mrb[0].mxu0 %v4908
        %v5021 = vpop.f32.mrb[0].mxu0
        %v5022 = vadd.f32 0.0, %v5021
        %v5023 = vpop.f32.mrb[0].mxu0
        %v5024 = vpop.f32.mrb[0].mxu0
        %v5025 = vadd.f32 0.0, %v5024
        %v5026 = vpop.f32.mrb[0].mxu0
        %5027 = vmatprep.mubr.bf16.mxu0 0
        %5028 = vmatmul.mubr.bf16.gmra.mrb[0].mxu0 %v4909
        %v5029 = vpop.f32.mrb[0].mxu0
        %v5030 = vadd.f32 0.0, %v5029
        %v5031 = vpop.f32.mrb[0].mxu0
        %v5032 = vpop.f32.mrb[0].mxu0
        %v5033 = vadd.f32 0.0, %v5032
        %v5034 = vpop.f32.mrb[0].mxu0
        %5035 = vmatprep.mubr.bf16.mxu0 0
        %5036 = vmatmul.mubr.bf16.gmra.mrb[0].mxu0 %v4910
        %v5037 = vpop.f32.mrb[0].mxu0
        %v5038 = vadd.f32 0.0, %v5037
        %v5039 = vpop.f32.mrb[0].mxu0
        %v5040 = vpop.f32.mrb[0].mxu0
        %v5041 = vadd.f32 0.0, %v5040
        %v5042 = vpop.f32.mrb[0].mxu0
        %5043 = vmatprep.mubr.bf16.mxu0 0
        %5044 = vmatmul.mubr.bf16.gmra.mrb[0].mxu0 %v4911
        %v5045 = vpop.f32.mrb[0].mxu0
        %v5046 = vadd.f32 0.0, %v5045
        %v5047 = vpop.f32.mrb[0].mxu0
        %v5048 = vpop.f32.mrb[0].mxu0
        %v5049 = vadd.f32 0.0, %v5048
        %v5050 = vpop.f32.mrb[0].mxu0
        %5051 = vmatprep.mubr.bf16.mxu0 0
        %5052 = vmatmul.mubr.bf16.gmra.mrb[0].mxu0 %v4912
        %v5053 = vpop.f32.mrb[0].mxu0
        %v5054 = vadd.f32 0.0, %v5053
        %v5055 = vpop.f32.mrb[0].mxu0
        %v5056 = vpop.f32.mrb[0].mxu0
        %v5057 = vadd.f32 0.0, %v5056
        %v5058 = vpop.f32.mrb[0].mxu0
        %5059 = vmatprep.mubr.bf16.mxu0 0
        %5060 = vmatmul.mubr.bf16.gmra.mrb[0].mxu0 %v4913
        %v5061 = vpop.f32.mrb[0].mxu0
        %v5062 = vadd.f32 0.0, %v5061
        %v5063 = vpop.f32.mrb[0].mxu0
        %v5064 = vpop.f32.mrb[0].mxu0
        %v5065 = vadd.f32 0.0, %v5064
        %v5066 = vpop.f32.mrb[0].mxu0
        %5067 = vmatprep.mubr.bf16.mxu0 0
        %5068 = vmatmul.mubr.bf16.gmra.mrb[0].mxu0 %v4914
        %v5069 = vpop.f32.mrb[0].mxu0
        %v5070 = vadd.f32 0.0, %v5069
        %v5071 = vpop.f32.mrb[0].mxu0
        %v5072 = vpop.f32.mrb[0].mxu0
        %v5073 = vadd.f32 0.0, %v5072
        %v5074 = vpop.f32.mrb[0].mxu0
        %5075 = vmatprep.mubr.bf16.mxu0 0
        %5076 = vmatmul.mubr.bf16.gmra.mrb[0].mxu0 %v4915
        %v5077 = vpop.f32.mrb[0].mxu0
        %v5078 = vadd.f32 0.0, %v5077
        %v5079 = vpop.f32.mrb[0].mxu0
        %v5080 = vpop.f32.mrb[0].mxu0
        %v5081 = vadd.f32 0.0, %v5080
        %v5082 = vpop.f32.mrb[0].mxu0
        %5083 = vmatprep.mubr.bf16.mxu0 0
        %5084 = vmatmul.mubr.bf16.gmra.mrb[0].mxu0 %v4916
        %v5085 = vpop.f32.mrb[0].mxu0
        %v5086 = vadd.f32 0.0, %v5085
        %v5087 = vpop.f32.mrb[0].mxu0
        %v5088 = vpop.f32.mrb[0].mxu0
        %v5089 = vadd.f32 0.0, %v5088
        %v5090 = vpop.f32.mrb[0].mxu0
        %5091 = vmatprep.mubr.bf16.mxu0 0
        %5092 = vmatmul.mubr.bf16.gmra.mrb[0].mxu0 %v4917
        %v5093 = vpop.f32.mrb[0].mxu0
        %v5094 = vadd.f32 0.0, %v5093
        %v5095 = vpop.f32.mrb[0].mxu0
        %v5096 = vpop.f32.mrb[0].mxu0
        %v5097 = vadd.f32 0.0, %v5096
        %v5098 = vpop.f32.mrb[0].mxu0
        %5099 = vmatprep.mubr.bf16.mxu0 0
        %5100 = vmatmul.mubr.bf16.gmra.mrb[0].mxu0 %v4918
        %v5101 = vpop.f32.mrb[0].mxu0
        %v5102 = vadd.f32 0.0, %v5101
        %v5103 = vpop.f32.mrb[0].mxu0
        %v5104 = vpop.f32.mrb[0].mxu0
        %v5105 = vadd.f32 0.0, %v5104
        %v5106 = vpop.f32.mrb[0].mxu0
        %5107 = vmatprep.mubr.bf16.mxu0 0
        %5108 = vmatmul.mubr.bf16.gmra.mrb[0].mxu0 %v4919
        %v5109 = vpop.f32.mrb[0].mxu0
        %v5110 = vadd.f32 0.0, %v5109
        %v5111 = vpop.f32.mrb[0].mxu0
        %v5112 = vpop.f32.mrb[0].mxu0
        %v5113 = vadd.f32 0.0, %v5112
        %v5114 = vpop.f32.mrb[0].mxu0
        %5115 = vmatprep.mubr.bf16.mxu0 0
        %5116 = vmatmul.mubr.bf16.gmra.mrb[0].mxu0 %v4920
        %v5117 = vpop.f32.mrb[0].mxu0
        %v5118 = vadd.f32 0.0, %v5117
        %v5119 = vpop.f32.mrb[0].mxu0
        %v5120 = vpop.f32.mrb[0].mxu0
        %v5121 = vadd.f32 0.0, %v5120
        %v5122 = vpop.f32.mrb[0].mxu0
        %5123 = vmatprep.mubr.bf16.mxu0 0
        %5124 = vmatmul.mubr.bf16.gmra.mrb[0].mxu0 %v4921
        %v5125 = vpop.f32.mrb[0].mxu0
        %v5126 = vadd.f32 0.0, %v5125
        %v5127 = vpop.f32.mrb[0].mxu0
        %v5128 = vpop.f32.mrb[0].mxu0
        %v5129 = vpop.f32.mrb[0].mxu0
        %5130 = vdwg.mxu0
        %v5131 = vadd.f32 %v4854, %v5022
        %v5132 = vadd.f32 %v4855, %v5025
        %v5133 = vadd.f32 %v4856, %v5030
        %v5134 = vadd.f32 %v4857, %v5033
        %v5135 = vadd.f32 %v4858, %v5038
        %v5136 = vadd.f32 %v4859, %v5041
        %v5137 = vadd.f32 %v4860, %v5046
        %v5138 = vadd.f32 %v4861, %v5049
        %v5139 = vadd.f32 %v4862, %v5054
        %v5140 = vadd.f32 %v4863, %v5057
        %v5141 = vadd.f32 %v4864, %v5062
        %v5142 = vadd.f32 %v4865, %v5065
        %v5143 = vadd.f32 %v4866, %v5070
        %v5144 = vadd.f32 %v4867, %v5073
        %v5145 = vadd.f32 %v4868, %v5078
        %v5146 = vadd.f32 %v4869, %v5081
        %v5147 = vadd.f32 %v4870, %v5086
        %v5148 = vadd.f32 %v4871, %v5089
        %v5149 = vadd.f32 %v4872, %v5094
        %v5150 = vadd.f32 %v4873, %v5097
        %v5151 = vadd.f32 %v4874, %v5102
        %v5152 = vadd.f32 %v4875, %v5105
        %v5153 = vadd.f32 %v4876, %v5110
        %v5154 = vadd.f32 %v4877, %v5113
        %v5155 = vadd.f32 %v4878, %v5118
        %v5156 = vadd.f32 %v4879, %v5121
        %v5157 = vadd.f32 %v4880, %v5126
        %v5158 = vld [vmem:[#allocation3 + $0x10] sm:$0xff]
        %v5159 = vld [vmem:[#allocation3 + $0x18] sm:$0xff]
        %v5160 = vld [vmem:[#allocation3 + $0x20] sm:$0xff]
        %v5161 = vld [vmem:[#allocation3 + $0x28] sm:$0xff]
        %v5162 = vld [vmem:[#allocation3 + $0x30] sm:$0xff]
        %v5163 = vld [vmem:[#allocation3 + $0x38] sm:$0xff]
        %v5164 = vld [vmem:[#allocation3 + $0x40] sm:$0xff]
        %v5165 = vld [vmem:[#allocation3 + $0x48] sm:$0xff]
        %v5166 = vld [vmem:[#allocation3 + $0x50] sm:$0xff]
        %v5167 = vld [vmem:[#allocation3 + $0x58] sm:$0xff]
        %v5168 = vld [vmem:[#allocation3 + $0x60] sm:$0xff]
        %v5169 = vld [vmem:[#allocation3 + $0x68] sm:$0xff]
        %v5170 = vld [vmem:[#allocation3 + $0x70] sm:$0xff]
        %v5171 = vld [vmem:[#allocation3 + $0x78] sm:$0xff]
        %v5172 = vld [vmem:[#allocation3 + $0x80] sm:$0xff]
        %v5173 = vld [vmem:[#allocation3 + $0x88] sm:$0xff]
        %v5174 = vld [vmem:[#allocation3 + $0x90] sm:$0xff]
        %v5175 = vld [vmem:[#allocation3 + $0x98] sm:$0xff]
        %v5176 = vld [vmem:[#allocation3 + $0xa0] sm:$0xff]
        %v5177 = vld [vmem:[#allocation3 + $0xa8] sm:$0xff]
        %v5178 = vld [vmem:[#allocation3 + $0xb0] sm:$0xff]
        %v5179 = vld [vmem:[#allocation3 + $0xb8] sm:$0xff]
        %v5180 = vld [vmem:[#allocation3 + $0xc0] sm:$0xff]
        %v5181 = vld [vmem:[#allocation3 + $0xc8] sm:$0xff]
        %v5182 = vld [vmem:[#allocation3 + $0xd0] sm:$0xff]
        %v5183 = vld [vmem:[#allocation3 + $0xd8] sm:$0xff]
        %v5184 = vld [vmem:[#allocation3 + $0xe0] sm:$0x1]
        %v5185 = vpack.c.bf16 %v5159, %v5158
        %v5186 = vpack.c.bf16 %v5161, %v5160
        %v5187 = vpack.c.bf16 %v5163, %v5162
        %v5188 = vpack.c.bf16 %v5165, %v5164
        %v5189 = vpack.c.bf16 %v5167, %v5166
        %v5190 = vpack.c.bf16 %v5169, %v5168
        %v5191 = vpack.c.bf16 %v5171, %v5170
        %v5192 = vpack.c.bf16 %v5173, %v5172
        %v5193 = vpack.c.bf16 %v5175, %v5174
        %v5194 = vpack.c.bf16 %v5177, %v5176
        %v5195 = vpack.c.bf16 %v5179, %v5178
        %v5196 = vpack.c.bf16 %v5181, %v5180
        %v5197 = vpack.c.bf16 %v5183, %v5182
        %v5198 = vpack.c.bf16 %v5184, %v5184
        %s5199 = scalar_lea.vmem %s10, 256
        %v5200 = vld [vmem:[%s5199] sm:$0xf]
        %v5201 = vld [vmem:[%s5199 + $0x4] sm:$0xf]
        %v5202 = vld [vmem:[%s5199 + $0x8] sm:$0xf]
        %v5203 = vld [vmem:[%s5199 + $0xc] sm:$0xf]
        %v5204 = vld [vmem:[%s5199 + $0x10] sm:$0xf]
        %v5205 = vld [vmem:[%s5199 + $0x14] sm:$0xf]
        %v5206 = vld [vmem:[%s5199 + $0x18] sm:$0xf]
        %v5207 = vld [vmem:[%s5199 + $0x1c] sm:$0xf]
        %v5208 = vld [vmem:[%s5199 + $0x20] sm:$0xf]
        %v5209 = vld [vmem:[%s5199 + $0x24] sm:$0xf]
        %v5210 = vld [vmem:[%s5199 + $0x28] sm:$0xf]
        %v5211 = vld [vmem:[%s5199 + $0x2c] sm:$0xf]
        %v5212 = vld [vmem:[%s5199 + $0x30] sm:$0xf]
        %v5213 = vld [vmem:[%s5199 + $0x34] sm:$0xf]
        %v5214 = vld [vmem:[%s5199 + $0x38] sm:$0xf]
        %v5215 = vld [vmem:[%s5199 + $0x3c] sm:$0xf]
        %v5232 = vunpack.c.l.b16 %v5200
        %v5233 = vunpack.c.l.b16 %v5201
        %v5234 = vunpack.c.l.b16 %v5202
        %v5235 = vunpack.c.l.b16 %v5203
        %v5236 = vunpack.c.l.b16 %v5204
        %v5237 = vunpack.c.l.b16 %v5205
        %v5238 = vunpack.c.l.b16 %v5206
        %v5239 = vunpack.c.l.b16 %v5207
        %v5240 = vunpack.c.l.b16 %v5208
        %v5241 = vunpack.c.l.b16 %v5209
        %v5242 = vunpack.c.l.b16 %v5210
        %v5243 = vunpack.c.l.b16 %v5211
        %v5244 = vunpack.c.l.b16 %v5212
        %v5245 = vunpack.c.l.b16 %v5213
        %v5246 = vunpack.c.l.b16 %v5214
        %v5247 = vunpack.c.l.b16 %v5215
        %v5248 = vpack.c.b16 %v5233, %v5232
        %v5249 = vpack.c.b16 %v5235, %v5234
        %v5250 = vpack.c.b16 %v5237, %v5236
        %v5251 = vpack.c.b16 %v5239, %v5238
        %v5252 = vpack.c.b16 %v5241, %v5240
        %v5253 = vpack.c.b16 %v5243, %v5242
        %v5254 = vpack.c.b16 %v5245, %v5244
        %v5255 = vpack.c.b16 %v5247, %v5246
        %5264 = vmatprep.subr.bf16.mxu0 0
        %5265 = vmatpush1.bf16.msra.mxu0 %v5248
        %5266 = vmatprep.subr.bf16.mxu0 0
        %5267 = vmatpush1.bf16.msra.mxu0 %v5249
        %5268 = vmatprep.subr.bf16.mxu0 0
        %5269 = vmatpush1.bf16.msra.mxu0 %v5250
        %5270 = vmatprep.subr.bf16.mxu0 0
        %5271 = vmatpush1.bf16.msra.mxu0 %v5251
        %5272 = vmatprep.subr.bf16.mxu0 0
        %5273 = vmatpush1.bf16.msra.mxu0 %v5252
        %5274 = vmatprep.subr.bf16.mxu0 0
        %5275 = vmatpush1.bf16.msra.mxu0 %v5253
        %5276 = vmatprep.subr.bf16.mxu0 0
        %5277 = vmatpush1.bf16.msra.mxu0 %v5254
        %5278 = vmatprep.subr.bf16.mxu0 0
        %5279 = vmatpush1.bf16.msra.mxu0 %v5255
        %5280 = vmatprep.subr.bf16.mxu0 0
        %5281 = vmatpush1.bf16.msra.mxu0 0
        %5282 = vmatprep.subr.bf16.mxu0 0
        %5283 = vmatpush1.bf16.msra.mxu0 0
        %5284 = vmatprep.subr.bf16.mxu0 0
        %5285 = vmatpush1.bf16.msra.mxu0 0
        %5286 = vmatprep.subr.bf16.mxu0 0
        %5287 = vmatpush1.bf16.msra.mxu0 0
        %5288 = vmatprep.subr.bf16.mxu0 0
        %5289 = vmatpush1.bf16.msra.mxu0 0
        %5290 = vmatprep.subr.bf16.mxu0 0
        %5291 = vmatpush1.bf16.msra.mxu0 0
        %5292 = vmatprep.subr.bf16.mxu0 0
        %5293 = vmatpush1.bf16.msra.mxu0 0
        %5294 = vmatprep.subr.bf16.mxu0 0
        %5295 = vmatpush1.bf16.msra.mxu0 0
        %5296 = vmatprep.mubr.bf16.mxu0 0
        %5297 = vmatmul.mubr.bf16.gmra.mrb[0].mxu0 %v5185
        %v5298 = vpop.f32.mrb[0].mxu0
        %v5299 = vadd.f32 0.0, %v5298
        %v5300 = vpop.f32.mrb[0].mxu0
        %v5301 = vpop.f32.mrb[0].mxu0
        %v5302 = vadd.f32 0.0, %v5301
        %v5303 = vpop.f32.mrb[0].mxu0
        %5304 = vmatprep.mubr.bf16.mxu0 0
        %5305 = vmatmul.mubr.bf16.gmra.mrb[0].mxu0 %v5186
        %v5306 = vpop.f32.mrb[0].mxu0
        %v5307 = vadd.f32 0.0, %v5306
        %v5308 = vpop.f32.mrb[0].mxu0
        %v5309 = vpop.f32.mrb[0].mxu0
        %v5310 = vadd.f32 0.0, %v5309
        %v5311 = vpop.f32.mrb[0].mxu0
        %5312 = vmatprep.mubr.bf16.mxu0 0
        %5313 = vmatmul.mubr.bf16.gmra.mrb[0].mxu0 %v5187
        %v5314 = vpop.f32.mrb[0].mxu0
        %v5315 = vadd.f32 0.0, %v5314
        %v5316 = vpop.f32.mrb[0].mxu0
        %v5317 = vpop.f32.mrb[0].mxu0
        %v5318 = vadd.f32 0.0, %v5317
        %v5319 = vpop.f32.mrb[0].mxu0
        %5320 = vmatprep.mubr.bf16.mxu0 0
        %5321 = vmatmul.mubr.bf16.gmra.mrb[0].mxu0 %v5188
        %v5322 = vpop.f32.mrb[0].mxu0
        %v5323 = vadd.f32 0.0, %v5322
        %v5324 = vpop.f32.mrb[0].mxu0
        %v5325 = vpop.f32.mrb[0].mxu0
        %v5326 = vadd.f32 0.0, %v5325
        %v5327 = vpop.f32.mrb[0].mxu0
        %5328 = vmatprep.mubr.bf16.mxu0 0
        %5329 = vmatmul.mubr.bf16.gmra.mrb[0].mxu0 %v5189
        %v5330 = vpop.f32.mrb[0].mxu0
        %v5331 = vadd.f32 0.0, %v5330
        %v5332 = vpop.f32.mrb[0].mxu0
        %v5333 = vpop.f32.mrb[0].mxu0
        %v5334 = vadd.f32 0.0, %v5333
        %v5335 = vpop.f32.mrb[0].mxu0
        %5336 = vmatprep.mubr.bf16.mxu0 0
        %5337 = vmatmul.mubr.bf16.gmra.mrb[0].mxu0 %v5190
        %v5338 = vpop.f32.mrb[0].mxu0
        %v5339 = vadd.f32 0.0, %v5338
        %v5340 = vpop.f32.mrb[0].mxu0
        %v5341 = vpop.f32.mrb[0].mxu0
        %v5342 = vadd.f32 0.0, %v5341
        %v5343 = vpop.f32.mrb[0].mxu0
        %5344 = vmatprep.mubr.bf16.mxu0 0
        %5345 = vmatmul.mubr.bf16.gmra.mrb[0].mxu0 %v5191
        %v5346 = vpop.f32.mrb[0].mxu0
        %v5347 = vadd.f32 0.0, %v5346
        %v5348 = vpop.f32.mrb[0].mxu0
        %v5349 = vpop.f32.mrb[0].mxu0
        %v5350 = vadd.f32 0.0, %v5349
        %v5351 = vpop.f32.mrb[0].mxu0
        %5352 = vmatprep.mubr.bf16.mxu0 0
        %5353 = vmatmul.mubr.bf16.gmra.mrb[0].mxu0 %v5192
        %v5354 = vpop.f32.mrb[0].mxu0
        %v5355 = vadd.f32 0.0, %v5354
        %v5356 = vpop.f32.mrb[0].mxu0
        %v5357 = vpop.f32.mrb[0].mxu0
        %v5358 = vadd.f32 0.0, %v5357
        %v5359 = vpop.f32.mrb[0].mxu0
        %5360 = vmatprep.mubr.bf16.mxu0 0
        %5361 = vmatmul.mubr.bf16.gmra.mrb[0].mxu0 %v5193
        %v5362 = vpop.f32.mrb[0].mxu0
        %v5363 = vadd.f32 0.0, %v5362
        %v5364 = vpop.f32.mrb[0].mxu0
        %v5365 = vpop.f32.mrb[0].mxu0
        %v5366 = vadd.f32 0.0, %v5365
        %v5367 = vpop.f32.mrb[0].mxu0
        %5368 = vmatprep.mubr.bf16.mxu0 0
        %5369 = vmatmul.mubr.bf16.gmra.mrb[0].mxu0 %v5194
        %v5370 = vpop.f32.mrb[0].mxu0
        %v5371 = vadd.f32 0.0, %v5370
        %v5372 = vpop.f32.mrb[0].mxu0
        %v5373 = vpop.f32.mrb[0].mxu0
        %v5374 = vadd.f32 0.0, %v5373
        %v5375 = vpop.f32.mrb[0].mxu0
        %5376 = vmatprep.mubr.bf16.mxu0 0
        %5377 = vmatmul.mubr.bf16.gmra.mrb[0].mxu0 %v5195
        %v5378 = vpop.f32.mrb[0].mxu0
        %v5379 = vadd.f32 0.0, %v5378
        %v5380 = vpop.f32.mrb[0].mxu0
        %v5381 = vpop.f32.mrb[0].mxu0
        %v5382 = vadd.f32 0.0, %v5381
        %v5383 = vpop.f32.mrb[0].mxu0
        %5384 = vmatprep.mubr.bf16.mxu0 0
        %5385 = vmatmul.mubr.bf16.gmra.mrb[0].mxu0 %v5196
        %v5386 = vpop.f32.mrb[0].mxu0
        %v5387 = vadd.f32 0.0, %v5386
        %v5388 = vpop.f32.mrb[0].mxu0
        %v5389 = vpop.f32.mrb[0].mxu0
        %v5390 = vadd.f32 0.0, %v5389
        %v5391 = vpop.f32.mrb[0].mxu0
        %5392 = vmatprep.mubr.bf16.mxu0 0
        %5393 = vmatmul.mubr.bf16.gmra.mrb[0].mxu0 %v5197
        %v5394 = vpop.f32.mrb[0].mxu0
        %v5395 = vadd.f32 0.0, %v5394
        %v5396 = vpop.f32.mrb[0].mxu0
        %v5397 = vpop.f32.mrb[0].mxu0
        %v5398 = vadd.f32 0.0, %v5397
        %v5399 = vpop.f32.mrb[0].mxu0
        %5400 = vmatprep.mubr.bf16.mxu0 0
        %5401 = vmatmul.mubr.bf16.gmra.mrb[0].mxu0 %v5198
        %v5402 = vpop.f32.mrb[0].mxu0
        %v5403 = vadd.f32 0.0, %v5402
        %v5404 = vpop.f32.mrb[0].mxu0
        %v5405 = vpop.f32.mrb[0].mxu0
        %v5406 = vpop.f32.mrb[0].mxu0
        %5407 = vdwg.mxu0
        %v5408 = vadd.f32 %v5131, %v5299
        %v5409 = vadd.f32 %v5132, %v5302
        %v5410 = vadd.f32 %v5133, %v5307
        %v5411 = vadd.f32 %v5134, %v5310
        %v5412 = vadd.f32 %v5135, %v5315
        %v5413 = vadd.f32 %v5136, %v5318
        %v5414 = vadd.f32 %v5137, %v5323
        %v5415 = vadd.f32 %v5138, %v5326
        %v5416 = vadd.f32 %v5139, %v5331
        %v5417 = vadd.f32 %v5140, %v5334
        %v5418 = vadd.f32 %v5141, %v5339
        %v5419 = vadd.f32 %v5142, %v5342
        %v5420 = vadd.f32 %v5143, %v5347
        %v5421 = vadd.f32 %v5144, %v5350
        %v5422 = vadd.f32 %v5145, %v5355
        %v5423 = vadd.f32 %v5146, %v5358
        %v5424 = vadd.f32 %v5147, %v5363
        %v5425 = vadd.f32 %v5148, %v5366
        %v5426 = vadd.f32 %v5149, %v5371
        %v5427 = vadd.f32 %v5150, %v5374
        %v5428 = vadd.f32 %v5151, %v5379
        %v5429 = vadd.f32 %v5152, %v5382
        %v5430 = vadd.f32 %v5153, %v5387
        %v5431 = vadd.f32 %v5154, %v5390
        %v5432 = vadd.f32 %v5155, %v5395
        %v5433 = vadd.f32 %v5156, %v5398
        %v5434 = vadd.f32 %v5157, %v5403
        %v5435 = vld [vmem:[#allocation3 + $0x14] sm:$0xff]
        %v5436 = vld [vmem:[#allocation3 + $0x1c] sm:$0xff]
        %v5437 = vld [vmem:[#allocation3 + $0x24] sm:$0xff]
        %v5438 = vld [vmem:[#allocation3 + $0x2c] sm:$0xff]
        %v5439 = vld [vmem:[#allocation3 + $0x34] sm:$0xff]
        %v5440 = vld [vmem:[#allocation3 + $0x3c] sm:$0xff]
        %v5441 = vld [vmem:[#allocation3 + $0x44] sm:$0xff]
        %v5442 = vld [vmem:[#allocation3 + $0x4c] sm:$0xff]
        %v5443 = vld [vmem:[#allocation3 + $0x54] sm:$0xff]
        %v5444 = vld [vmem:[#allocation3 + $0x5c] sm:$0xff]
        %v5445 = vld [vmem:[#allocation3 + $0x64] sm:$0xff]
        %v5446 = vld [vmem:[#allocation3 + $0x6c] sm:$0xff]
        %v5447 = vld [vmem:[#allocation3 + $0x74] sm:$0xff]
        %v5448 = vld [vmem:[#allocation3 + $0x7c] sm:$0xff]
        %v5449 = vld [vmem:[#allocation3 + $0x84] sm:$0xff]
        %v5450 = vld [vmem:[#allocation3 + $0x8c] sm:$0xff]
        %v5451 = vld [vmem:[#allocation3 + $0x94] sm:$0xff]
        %v5452 = vld [vmem:[#allocation3 + $0x9c] sm:$0xff]
        %v5453 = vld [vmem:[#allocation3 + $0xa4] sm:$0xff]
        %v5454 = vld [vmem:[#allocation3 + $0xac] sm:$0xff]
        %v5455 = vld [vmem:[#allocation3 + $0xb4] sm:$0xff]
        %v5456 = vld [vmem:[#allocation3 + $0xbc] sm:$0xff]
        %v5457 = vld [vmem:[#allocation3 + $0xc4] sm:$0xff]
        %v5458 = vld [vmem:[#allocation3 + $0xcc] sm:$0xff]
        %v5459 = vld [vmem:[#allocation3 + $0xd4] sm:$0xff]
        %v5460 = vld [vmem:[#allocation3 + $0xdc] sm:$0xff]
        %v5461 = vld [vmem:[#allocation3 + $0xe4] sm:$0x1]
        %v5462 = vpack.c.bf16 %v5436, %v5435
        %v5463 = vpack.c.bf16 %v5438, %v5437
        %v5464 = vpack.c.bf16 %v5440, %v5439
        %v5465 = vpack.c.bf16 %v5442, %v5441
        %v5466 = vpack.c.bf16 %v5444, %v5443
        %v5467 = vpack.c.bf16 %v5446, %v5445
        %v5468 = vpack.c.bf16 %v5448, %v5447
        %v5469 = vpack.c.bf16 %v5450, %v5449
        %v5470 = vpack.c.bf16 %v5452, %v5451
        %v5471 = vpack.c.bf16 %v5454, %v5453
        %v5472 = vpack.c.bf16 %v5456, %v5455
        %v5473 = vpack.c.bf16 %v5458, %v5457
        %v5474 = vpack.c.bf16 %v5460, %v5459
        %v5475 = vpack.c.bf16 %v5461, %v5461
        %s5476 = scalar_lea.vmem %s10, 320
        %v5477 = vld [vmem:[%s5476] sm:$0xf]
        %v5478 = vld [vmem:[%s5476 + $0x4] sm:$0xf]
        %v5479 = vld [vmem:[%s5476 + $0x8] sm:$0xf]
        %v5480 = vld [vmem:[%s5476 + $0xc] sm:$0xf]
        %v5481 = vld [vmem:[%s5476 + $0x10] sm:$0xf]
        %v5482 = vld [vmem:[%s5476 + $0x14] sm:$0xf]
        %v5483 = vld [vmem:[%s5476 + $0x18] sm:$0xf]
        %v5484 = vld [vmem:[%s5476 + $0x1c] sm:$0xf]
        %v5485 = vld [vmem:[%s5476 + $0x20] sm:$0xf]
        %v5486 = vld [vmem:[%s5476 + $0x24] sm:$0xf]
        %v5487 = vld [vmem:[%s5476 + $0x28] sm:$0xf]
        %v5488 = vld [vmem:[%s5476 + $0x2c] sm:$0xf]
        %v5489 = vld [vmem:[%s5476 + $0x30] sm:$0xf]
        %v5490 = vld [vmem:[%s5476 + $0x34] sm:$0xf]
        %v5491 = vld [vmem:[%s5476 + $0x38] sm:$0xf]
        %v5492 = vld [vmem:[%s5476 + $0x3c] sm:$0xf]
        %v5509 = vunpack.c.l.b16 %v5477
        %v5510 = vunpack.c.l.b16 %v5478
        %v5511 = vunpack.c.l.b16 %v5479
        %v5512 = vunpack.c.l.b16 %v5480
        %v5513 = vunpack.c.l.b16 %v5481
        %v5514 = vunpack.c.l.b16 %v5482
        %v5515 = vunpack.c.l.b16 %v5483
        %v5516 = vunpack.c.l.b16 %v5484
        %v5517 = vunpack.c.l.b16 %v5485
        %v5518 = vunpack.c.l.b16 %v5486
        %v5519 = vunpack.c.l.b16 %v5487
        %v5520 = vunpack.c.l.b16 %v5488
        %v5521 = vunpack.c.l.b16 %v5489
        %v5522 = vunpack.c.l.b16 %v5490
        %v5523 = vunpack.c.l.b16 %v5491
        %v5524 = vunpack.c.l.b16 %v5492
        %v5525 = vpack.c.b16 %v5510, %v5509
        %v5526 = vpack.c.b16 %v5512, %v5511
        %v5527 = vpack.c.b16 %v5514, %v5513
        %v5528 = vpack.c.b16 %v5516, %v5515
        %v5529 = vpack.c.b16 %v5518, %v5517
        %v5530 = vpack.c.b16 %v5520, %v5519
        %v5531 = vpack.c.b16 %v5522, %v5521
        %v5532 = vpack.c.b16 %v5524, %v5523
        %5541 = vmatprep.subr.bf16.mxu0 0
        %5542 = vmatpush1.bf16.msra.mxu0 %v5525
        %5543 = vmatprep.subr.bf16.mxu0 0
        %5544 = vmatpush1.bf16.msra.mxu0 %v5526
        %5545 = vmatprep.subr.bf16.mxu0 0
        %5546 = vmatpush1.bf16.msra.mxu0 %v5527
        %5547 = vmatprep.subr.bf16.mxu0 0
        %5548 = vmatpush1.bf16.msra.mxu0 %v5528
        %5549 = vmatprep.subr.bf16.mxu0 0
        %5550 = vmatpush1.bf16.msra.mxu0 %v5529
        %5551 = vmatprep.subr.bf16.mxu0 0
        %5552 = vmatpush1.bf16.msra.mxu0 %v5530
        %5553 = vmatprep.subr.bf16.mxu0 0
        %5554 = vmatpush1.bf16.msra.mxu0 %v5531
        %5555 = vmatprep.subr.bf16.mxu0 0
        %5556 = vmatpush1.bf16.msra.mxu0 %v5532
        %5557 = vmatprep.subr.bf16.mxu0 0
        %5558 = vmatpush1.bf16.msra.mxu0 0
        %5559 = vmatprep.subr.bf16.mxu0 0
        %5560 = vmatpush1.bf16.msra.mxu0 0
        %5561 = vmatprep.subr.bf16.mxu0 0
        %5562 = vmatpush1.bf16.msra.mxu0 0
        %5563 = vmatprep.subr.bf16.mxu0 0
        %5564 = vmatpush1.bf16.msra.mxu0 0
        %5565 = vmatprep.subr.bf16.mxu0 0
        %5566 = vmatpush1.bf16.msra.mxu0 0
        %5567 = vmatprep.subr.bf16.mxu0 0
        %5568 = vmatpush1.bf16.msra.mxu0 0
        %5569 = vmatprep.subr.bf16.mxu0 0
        %5570 = vmatpush1.bf16.msra.mxu0 0
        %5571 = vmatprep.subr.bf16.mxu0 0
        %5572 = vmatpush1.bf16.msra.mxu0 0
        %5573 = vmatprep.mubr.bf16.mxu0 0
        %5574 = vmatmul.mubr.bf16.gmra.mrb[0].mxu0 %v5462
        %v5575 = vpop.f32.mrb[0].mxu0
        %v5576 = vadd.f32 0.0, %v5575
        %v5577 = vpop.f32.mrb[0].mxu0
        %v5578 = vpop.f32.mrb[0].mxu0
        %v5579 = vadd.f32 0.0, %v5578
        %v5580 = vpop.f32.mrb[0].mxu0
        %5581 = vmatprep.mubr.bf16.mxu0 0
        %5582 = vmatmul.mubr.bf16.gmra.mrb[0].mxu0 %v5463
        %v5583 = vpop.f32.mrb[0].mxu0
        %v5584 = vadd.f32 0.0, %v5583
        %v5585 = vpop.f32.mrb[0].mxu0
        %v5586 = vpop.f32.mrb[0].mxu0
        %v5587 = vadd.f32 0.0, %v5586
        %v5588 = vpop.f32.mrb[0].mxu0
        %5589 = vmatprep.mubr.bf16.mxu0 0
        %5590 = vmatmul.mubr.bf16.gmra.mrb[0].mxu0 %v5464
        %v5591 = vpop.f32.mrb[0].mxu0
        %v5592 = vadd.f32 0.0, %v5591
        %v5593 = vpop.f32.mrb[0].mxu0
        %v5594 = vpop.f32.mrb[0].mxu0
        %v5595 = vadd.f32 0.0, %v5594
        %v5596 = vpop.f32.mrb[0].mxu0
        %5597 = vmatprep.mubr.bf16.mxu0 0
        %5598 = vmatmul.mubr.bf16.gmra.mrb[0].mxu0 %v5465
        %v5599 = vpop.f32.mrb[0].mxu0
        %v5600 = vadd.f32 0.0, %v5599
        %v5601 = vpop.f32.mrb[0].mxu0
        %v5602 = vpop.f32.mrb[0].mxu0
        %v5603 = vadd.f32 0.0, %v5602
        %v5604 = vpop.f32.mrb[0].mxu0
        %5605 = vmatprep.mubr.bf16.mxu0 0
        %5606 = vmatmul.mubr.bf16.gmra.mrb[0].mxu0 %v5466
        %v5607 = vpop.f32.mrb[0].mxu0
        %v5608 = vadd.f32 0.0, %v5607
        %v5609 = vpop.f32.mrb[0].mxu0
        %v5610 = vpop.f32.mrb[0].mxu0
        %v5611 = vadd.f32 0.0, %v5610
        %v5612 = vpop.f32.mrb[0].mxu0
        %5613 = vmatprep.mubr.bf16.mxu0 0
        %5614 = vmatmul.mubr.bf16.gmra.mrb[0].mxu0 %v5467
        %v5615 = vpop.f32.mrb[0].mxu0
        %v5616 = vadd.f32 0.0, %v5615
        %v5617 = vpop.f32.mrb[0].mxu0
        %v5618 = vpop.f32.mrb[0].mxu0
        %v5619 = vadd.f32 0.0, %v5618
        %v5620 = vpop.f32.mrb[0].mxu0
        %5621 = vmatprep.mubr.bf16.mxu0 0
        %5622 = vmatmul.mubr.bf16.gmra.mrb[0].mxu0 %v5468
        %v5623 = vpop.f32.mrb[0].mxu0
        %v5624 = vadd.f32 0.0, %v5623
        %v5625 = vpop.f32.mrb[0].mxu0
        %v5626 = vpop.f32.mrb[0].mxu0
        %v5627 = vadd.f32 0.0, %v5626
        %v5628 = vpop.f32.mrb[0].mxu0
        %5629 = vmatprep.mubr.bf16.mxu0 0
        %5630 = vmatmul.mubr.bf16.gmra.mrb[0].mxu0 %v5469
        %v5631 = vpop.f32.mrb[0].mxu0
        %v5632 = vadd.f32 0.0, %v5631
        %v5633 = vpop.f32.mrb[0].mxu0
        %v5634 = vpop.f32.mrb[0].mxu0
        %v5635 = vadd.f32 0.0, %v5634
        %v5636 = vpop.f32.mrb[0].mxu0
        %5637 = vmatprep.mubr.bf16.mxu0 0
        %5638 = vmatmul.mubr.bf16.gmra.mrb[0].mxu0 %v5470
        %v5639 = vpop.f32.mrb[0].mxu0
        %v5640 = vadd.f32 0.0, %v5639
        %v5641 = vpop.f32.mrb[0].mxu0
        %v5642 = vpop.f32.mrb[0].mxu0
        %v5643 = vadd.f32 0.0, %v5642
        %v5644 = vpop.f32.mrb[0].mxu0
        %5645 = vmatprep.mubr.bf16.mxu0 0
        %5646 = vmatmul.mubr.bf16.gmra.mrb[0].mxu0 %v5471
        %v5647 = vpop.f32.mrb[0].mxu0
        %v5648 = vadd.f32 0.0, %v5647
        %v5649 = vpop.f32.mrb[0].mxu0
        %v5650 = vpop.f32.mrb[0].mxu0
        %v5651 = vadd.f32 0.0, %v5650
        %v5652 = vpop.f32.mrb[0].mxu0
        %5653 = vmatprep.mubr.bf16.mxu0 0
        %5654 = vmatmul.mubr.bf16.gmra.mrb[0].mxu0 %v5472
        %v5655 = vpop.f32.mrb[0].mxu0
        %v5656 = vadd.f32 0.0, %v5655
        %v5657 = vpop.f32.mrb[0].mxu0
        %v5658 = vpop.f32.mrb[0].mxu0
        %v5659 = vadd.f32 0.0, %v5658
        %v5660 = vpop.f32.mrb[0].mxu0
        %5661 = vmatprep.mubr.bf16.mxu0 0
        %5662 = vmatmul.mubr.bf16.gmra.mrb[0].mxu0 %v5473
        %v5663 = vpop.f32.mrb[0].mxu0
        %v5664 = vadd.f32 0.0, %v5663
        %v5665 = vpop.f32.mrb[0].mxu0
        %v5666 = vpop.f32.mrb[0].mxu0
        %v5667 = vadd.f32 0.0, %v5666
        %v5668 = vpop.f32.mrb[0].mxu0
        %5669 = vmatprep.mubr.bf16.mxu0 0
        %5670 = vmatmul.mubr.bf16.gmra.mrb[0].mxu0 %v5474
        %v5671 = vpop.f32.mrb[0].mxu0
        %v5672 = vadd.f32 0.0, %v5671
        %v5673 = vpop.f32.mrb[0].mxu0
        %v5674 = vpop.f32.mrb[0].mxu0
        %v5675 = vadd.f32 0.0, %v5674
        %v5676 = vpop.f32.mrb[0].mxu0
        %5677 = vmatprep.mubr.bf16.mxu0 0
        %5678 = vmatmul.mubr.bf16.gmra.mrb[0].mxu0 %v5475
        %v5679 = vpop.f32.mrb[0].mxu0
        %v5680 = vadd.f32 0.0, %v5679
        %v5681 = vpop.f32.mrb[0].mxu0
        %v5682 = vpop.f32.mrb[0].mxu0
        %v5683 = vpop.f32.mrb[0].mxu0
        %5684 = vdwg.mxu0
        %v5685 = vadd.f32 %v5408, %v5576
        %v5686 = vadd.f32 %v5409, %v5579
        %v5687 = vadd.f32 %v5410, %v5584
        %v5688 = vadd.f32 %v5411, %v5587
        %v5689 = vadd.f32 %v5412, %v5592
        %v5690 = vadd.f32 %v5413, %v5595
        %v5691 = vadd.f32 %v5414, %v5600
        %v5692 = vadd.f32 %v5415, %v5603
        %v5693 = vadd.f32 %v5416, %v5608
        %v5694 = vadd.f32 %v5417, %v5611
        %v5695 = vadd.f32 %v5418, %v5616
        %v5696 = vadd.f32 %v5419, %v5619
        %v5697 = vadd.f32 %v5420, %v5624
        %v5698 = vadd.f32 %v5421, %v5627
        %v5699 = vadd.f32 %v5422, %v5632
        %v5700 = vadd.f32 %v5423, %v5635
        %v5701 = vadd.f32 %v5424, %v5640
        %v5702 = vadd.f32 %v5425, %v5643
        %v5703 = vadd.f32 %v5426, %v5648
        %v5704 = vadd.f32 %v5427, %v5651
        %v5705 = vadd.f32 %v5428, %v5656
        %v5706 = vadd.f32 %v5429, %v5659
        %v5707 = vadd.f32 %v5430, %v5664
        %v5708 = vadd.f32 %v5431, %v5667
        %v5709 = vadd.f32 %v5432, %v5672
        %v5710 = vadd.f32 %v5433, %v5675
        %v5711 = vadd.f32 %v5434, %v5680
        %v5712 = vld [vmem:[#allocation3 + $0x18] sm:$0xff]
        %v5713 = vld [vmem:[#allocation3 + $0x20] sm:$0xff]
        %v5714 = vld [vmem:[#allocation3 + $0x28] sm:$0xff]
        %v5715 = vld [vmem:[#allocation3 + $0x30] sm:$0xff]
        %v5716 = vld [vmem:[#allocation3 + $0x38] sm:$0xff]
        %v5717 = vld [vmem:[#allocation3 + $0x40] sm:$0xff]
        %v5718 = vld [vmem:[#allocation3 + $0x48] sm:$0xff]
        %v5719 = vld [vmem:[#allocation3 + $0x50] sm:$0xff]
        %v5720 = vld [vmem:[#allocation3 + $0x58] sm:$0xff]
        %v5721 = vld [vmem:[#allocation3 + $0x60] sm:$0xff]
        %v5722 = vld [vmem:[#allocation3 + $0x68] sm:$0xff]
        %v5723 = vld [vmem:[#allocation3 + $0x70] sm:$0xff]
        %v5724 = vld [vmem:[#allocation3 + $0x78] sm:$0xff]
        %v5725 = vld [vmem:[#allocation3 + $0x80] sm:$0xff]
        %v5726 = vld [vmem:[#allocation3 + $0x88] sm:$0xff]
        %v5727 = vld [vmem:[#allocation3 + $0x90] sm:$0xff]
        %v5728 = vld [vmem:[#allocation3 + $0x98] sm:$0xff]
        %v5729 = vld [vmem:[#allocation3 + $0xa0] sm:$0xff]
        %v5730 = vld [vmem:[#allocation3 + $0xa8] sm:$0xff]
        %v5731 = vld [vmem:[#allocation3 + $0xb0] sm:$0xff]
        %v5732 = vld [vmem:[#allocation3 + $0xb8] sm:$0xff]
        %v5733 = vld [vmem:[#allocation3 + $0xc0] sm:$0xff]
        %v5734 = vld [vmem:[#allocation3 + $0xc8] sm:$0xff]
        %v5735 = vld [vmem:[#allocation3 + $0xd0] sm:$0xff]
        %v5736 = vld [vmem:[#allocation3 + $0xd8] sm:$0xff]
        %v5737 = vld [vmem:[#allocation3 + $0xe0] sm:$0xff]
        %v5738 = vld [vmem:[#allocation3 + $0xe8] sm:$0x1]
        %v5739 = vpack.c.bf16 %v5713, %v5712
        %v5740 = vpack.c.bf16 %v5715, %v5714
        %v5741 = vpack.c.bf16 %v5717, %v5716
        %v5742 = vpack.c.bf16 %v5719, %v5718
        %v5743 = vpack.c.bf16 %v5721, %v5720
        %v5744 = vpack.c.bf16 %v5723, %v5722
        %v5745 = vpack.c.bf16 %v5725, %v5724
        %v5746 = vpack.c.bf16 %v5727, %v5726
        %v5747 = vpack.c.bf16 %v5729, %v5728
        %v5748 = vpack.c.bf16 %v5731, %v5730
        %v5749 = vpack.c.bf16 %v5733, %v5732
        %v5750 = vpack.c.bf16 %v5735, %v5734
        %v5751 = vpack.c.bf16 %v5737, %v5736
        %v5752 = vpack.c.bf16 %v5738, %v5738
        %s5753 = scalar_lea.vmem %s10, 384
        %v5754 = vld [vmem:[%s5753] sm:$0xf]
        %v5755 = vld [vmem:[%s5753 + $0x4] sm:$0xf]
        %v5756 = vld [vmem:[%s5753 + $0x8] sm:$0xf]
        %v5757 = vld [vmem:[%s5753 + $0xc] sm:$0xf]
        %v5758 = vld [vmem:[%s5753 + $0x10] sm:$0xf]
        %v5759 = vld [vmem:[%s5753 + $0x14] sm:$0xf]
        %v5760 = vld [vmem:[%s5753 + $0x18] sm:$0xf]
        %v5761 = vld [vmem:[%s5753 + $0x1c] sm:$0xf]
        %v5762 = vld [vmem:[%s5753 + $0x20] sm:$0xf]
        %v5763 = vld [vmem:[%s5753 + $0x24] sm:$0xf]
        %v5764 = vld [vmem:[%s5753 + $0x28] sm:$0xf]
        %v5765 = vld [vmem:[%s5753 + $0x2c] sm:$0xf]
        %v5766 = vld [vmem:[%s5753 + $0x30] sm:$0xf]
        %v5767 = vld [vmem:[%s5753 + $0x34] sm:$0xf]
        %v5768 = vld [vmem:[%s5753 + $0x38] sm:$0xf]
        %v5769 = vld [vmem:[%s5753 + $0x3c] sm:$0xf]
        %v5786 = vunpack.c.l.b16 %v5754
        %v5787 = vunpack.c.l.b16 %v5755
        %v5788 = vunpack.c.l.b16 %v5756
        %v5789 = vunpack.c.l.b16 %v5757
        %v5790 = vunpack.c.l.b16 %v5758
        %v5791 = vunpack.c.l.b16 %v5759
        %v5792 = vunpack.c.l.b16 %v5760
        %v5793 = vunpack.c.l.b16 %v5761
        %v5794 = vunpack.c.l.b16 %v5762
        %v5795 = vunpack.c.l.b16 %v5763
        %v5796 = vunpack.c.l.b16 %v5764
        %v5797 = vunpack.c.l.b16 %v5765
        %v5798 = vunpack.c.l.b16 %v5766
        %v5799 = vunpack.c.l.b16 %v5767
        %v5800 = vunpack.c.l.b16 %v5768
        %v5801 = vunpack.c.l.b16 %v5769
        %v5802 = vpack.c.b16 %v5787, %v5786
        %v5803 = vpack.c.b16 %v5789, %v5788
        %v5804 = vpack.c.b16 %v5791, %v5790
        %v5805 = vpack.c.b16 %v5793, %v5792
        %v5806 = vpack.c.b16 %v5795, %v5794
        %v5807 = vpack.c.b16 %v5797, %v5796
        %v5808 = vpack.c.b16 %v5799, %v5798
        %v5809 = vpack.c.b16 %v5801, %v5800
        %5818 = vmatprep.subr.bf16.mxu0 0
        %5819 = vmatpush1.bf16.msra.mxu0 %v5802
        %5820 = vmatprep.subr.bf16.mxu0 0
        %5821 = vmatpush1.bf16.msra.mxu0 %v5803
        %5822 = vmatprep.subr.bf16.mxu0 0
        %5823 = vmatpush1.bf16.msra.mxu0 %v5804
        %5824 = vmatprep.subr.bf16.mxu0 0
        %5825 = vmatpush1.bf16.msra.mxu0 %v5805
        %5826 = vmatprep.subr.bf16.mxu0 0
        %5827 = vmatpush1.bf16.msra.mxu0 %v5806
        %5828 = vmatprep.subr.bf16.mxu0 0
        %5829 = vmatpush1.bf16.msra.mxu0 %v5807
        %5830 = vmatprep.subr.bf16.mxu0 0
        %5831 = vmatpush1.bf16.msra.mxu0 %v5808
        %5832 = vmatprep.subr.bf16.mxu0 0
        %5833 = vmatpush1.bf16.msra.mxu0 %v5809
        %5834 = vmatprep.subr.bf16.mxu0 0
        %5835 = vmatpush1.bf16.msra.mxu0 0
        %5836 = vmatprep.subr.bf16.mxu0 0
        %5837 = vmatpush1.bf16.msra.mxu0 0
        %5838 = vmatprep.subr.bf16.mxu0 0
        %5839 = vmatpush1.bf16.msra.mxu0 0
        %5840 = vmatprep.subr.bf16.mxu0 0
        %5841 = vmatpush1.bf16.msra.mxu0 0
        %5842 = vmatprep.subr.bf16.mxu0 0
        %5843 = vmatpush1.bf16.msra.mxu0 0
        %5844 = vmatprep.subr.bf16.mxu0 0
        %5845 = vmatpush1.bf16.msra.mxu0 0
        %5846 = vmatprep.subr.bf16.mxu0 0
        %5847 = vmatpush1.bf16.msra.mxu0 0
        %5848 = vmatprep.subr.bf16.mxu0 0
        %5849 = vmatpush1.bf16.msra.mxu0 0
        %5850 = vmatprep.mubr.bf16.mxu0 0
        %5851 = vmatmul.mubr.bf16.gmra.mrb[0].mxu0 %v5739
        %v5852 = vpop.f32.mrb[0].mxu0
        %v5853 = vadd.f32 0.0, %v5852
        %v5854 = vpop.f32.mrb[0].mxu0
        %v5855 = vpop.f32.mrb[0].mxu0
        %v5856 = vadd.f32 0.0, %v5855
        %v5857 = vpop.f32.mrb[0].mxu0
        %5858 = vmatprep.mubr.bf16.mxu0 0
        %5859 = vmatmul.mubr.bf16.gmra.mrb[0].mxu0 %v5740
        %v5860 = vpop.f32.mrb[0].mxu0
        %v5861 = vadd.f32 0.0, %v5860
        %v5862 = vpop.f32.mrb[0].mxu0
        %v5863 = vpop.f32.mrb[0].mxu0
        %v5864 = vadd.f32 0.0, %v5863
        %v5865 = vpop.f32.mrb[0].mxu0
        %5866 = vmatprep.mubr.bf16.mxu0 0
        %5867 = vmatmul.mubr.bf16.gmra.mrb[0].mxu0 %v5741
        %v5868 = vpop.f32.mrb[0].mxu0
        %v5869 = vadd.f32 0.0, %v5868
        %v5870 = vpop.f32.mrb[0].mxu0
        %v5871 = vpop.f32.mrb[0].mxu0
        %v5872 = vadd.f32 0.0, %v5871
        %v5873 = vpop.f32.mrb[0].mxu0
        %5874 = vmatprep.mubr.bf16.mxu0 0
        %5875 = vmatmul.mubr.bf16.gmra.mrb[0].mxu0 %v5742
        %v5876 = vpop.f32.mrb[0].mxu0
        %v5877 = vadd.f32 0.0, %v5876
        %v5878 = vpop.f32.mrb[0].mxu0
        %v5879 = vpop.f32.mrb[0].mxu0
        %v5880 = vadd.f32 0.0, %v5879
        %v5881 = vpop.f32.mrb[0].mxu0
        %5882 = vmatprep.mubr.bf16.mxu0 0
        %5883 = vmatmul.mubr.bf16.gmra.mrb[0].mxu0 %v5743
        %v5884 = vpop.f32.mrb[0].mxu0
        %v5885 = vadd.f32 0.0, %v5884
        %v5886 = vpop.f32.mrb[0].mxu0
        %v5887 = vpop.f32.mrb[0].mxu0
        %v5888 = vadd.f32 0.0, %v5887
        %v5889 = vpop.f32.mrb[0].mxu0
        %5890 = vmatprep.mubr.bf16.mxu0 0
        %5891 = vmatmul.mubr.bf16.gmra.mrb[0].mxu0 %v5744
        %v5892 = vpop.f32.mrb[0].mxu0
        %v5893 = vadd.f32 0.0, %v5892
        %v5894 = vpop.f32.mrb[0].mxu0
        %v5895 = vpop.f32.mrb[0].mxu0
        %v5896 = vadd.f32 0.0, %v5895
        %v5897 = vpop.f32.mrb[0].mxu0
        %5898 = vmatprep.mubr.bf16.mxu0 0
        %5899 = vmatmul.mubr.bf16.gmra.mrb[0].mxu0 %v5745
        %v5900 = vpop.f32.mrb[0].mxu0
        %v5901 = vadd.f32 0.0, %v5900
        %v5902 = vpop.f32.mrb[0].mxu0
        %v5903 = vpop.f32.mrb[0].mxu0
        %v5904 = vadd.f32 0.0, %v5903
        %v5905 = vpop.f32.mrb[0].mxu0
        %5906 = vmatprep.mubr.bf16.mxu0 0
        %5907 = vmatmul.mubr.bf16.gmra.mrb[0].mxu0 %v5746
        %v5908 = vpop.f32.mrb[0].mxu0
        %v5909 = vadd.f32 0.0, %v5908
        %v5910 = vpop.f32.mrb[0].mxu0
        %v5911 = vpop.f32.mrb[0].mxu0
        %v5912 = vadd.f32 0.0, %v5911
        %v5913 = vpop.f32.mrb[0].mxu0
        %5914 = vmatprep.mubr.bf16.mxu0 0
        %5915 = vmatmul.mubr.bf16.gmra.mrb[0].mxu0 %v5747
        %v5916 = vpop.f32.mrb[0].mxu0
        %v5917 = vadd.f32 0.0, %v5916
        %v5918 = vpop.f32.mrb[0].mxu0
        %v5919 = vpop.f32.mrb[0].mxu0
        %v5920 = vadd.f32 0.0, %v5919
        %v5921 = vpop.f32.mrb[0].mxu0
        %5922 = vmatprep.mubr.bf16.mxu0 0
        %5923 = vmatmul.mubr.bf16.gmra.mrb[0].mxu0 %v5748
        %v5924 = vpop.f32.mrb[0].mxu0
        %v5925 = vadd.f32 0.0, %v5924
        %v5926 = vpop.f32.mrb[0].mxu0
        %v5927 = vpop.f32.mrb[0].mxu0
        %v5928 = vadd.f32 0.0, %v5927
        %v5929 = vpop.f32.mrb[0].mxu0
        %5930 = vmatprep.mubr.bf16.mxu0 0
        %5931 = vmatmul.mubr.bf16.gmra.mrb[0].mxu0 %v5749
        %v5932 = vpop.f32.mrb[0].mxu0
        %v5933 = vadd.f32 0.0, %v5932
        %v5934 = vpop.f32.mrb[0].mxu0
        %v5935 = vpop.f32.mrb[0].mxu0
        %v5936 = vadd.f32 0.0, %v5935
        %v5937 = vpop.f32.mrb[0].mxu0
        %5938 = vmatprep.mubr.bf16.mxu0 0
        %5939 = vmatmul.mubr.bf16.gmra.mrb[0].mxu0 %v5750
        %v5940 = vpop.f32.mrb[0].mxu0
        %v5941 = vadd.f32 0.0, %v5940
        %v5942 = vpop.f32.mrb[0].mxu0
        %v5943 = vpop.f32.mrb[0].mxu0
        %v5944 = vadd.f32 0.0, %v5943
        %v5945 = vpop.f32.mrb[0].mxu0
        %5946 = vmatprep.mubr.bf16.mxu0 0
        %5947 = vmatmul.mubr.bf16.gmra.mrb[0].mxu0 %v5751
        %v5948 = vpop.f32.mrb[0].mxu0
        %v5949 = vadd.f32 0.0, %v5948
        %v5950 = vpop.f32.mrb[0].mxu0
        %v5951 = vpop.f32.mrb[0].mxu0
        %v5952 = vadd.f32 0.0, %v5951
        %v5953 = vpop.f32.mrb[0].mxu0
        %5954 = vmatprep.mubr.bf16.mxu0 0
        %5955 = vmatmul.mubr.bf16.gmra.mrb[0].mxu0 %v5752
        %v5956 = vpop.f32.mrb[0].mxu0
        %v5957 = vadd.f32 0.0, %v5956
        %v5958 = vpop.f32.mrb[0].mxu0
        %v5959 = vpop.f32.mrb[0].mxu0
        %v5960 = vpop.f32.mrb[0].mxu0
        %5961 = vdwg.mxu0
        %v5962 = vadd.f32 %v5685, %v5853
        %v5963 = vadd.f32 %v5686, %v5856
        %v5964 = vadd.f32 %v5687, %v5861
        %v5965 = vadd.f32 %v5688, %v5864
        %v5966 = vadd.f32 %v5689, %v5869
        %v5967 = vadd.f32 %v5690, %v5872
        %v5968 = vadd.f32 %v5691, %v5877
        %v5969 = vadd.f32 %v5692, %v5880
        %v5970 = vadd.f32 %v5693, %v5885
        %v5971 = vadd.f32 %v5694, %v5888
        %v5972 = vadd.f32 %v5695, %v5893
        %v5973 = vadd.f32 %v5696, %v5896
        %v5974 = vadd.f32 %v5697, %v5901
        %v5975 = vadd.f32 %v5698, %v5904
        %v5976 = vadd.f32 %v5699, %v5909
        %v5977 = vadd.f32 %v5700, %v5912
        %v5978 = vadd.f32 %v5701, %v5917
        %v5979 = vadd.f32 %v5702, %v5920
        %v5980 = vadd.f32 %v5703, %v5925
        %v5981 = vadd.f32 %v5704, %v5928
        %v5982 = vadd.f32 %v5705, %v5933
        %v5983 = vadd.f32 %v5706, %v5936
        %v5984 = vadd.f32 %v5707, %v5941
        %v5985 = vadd.f32 %v5708, %v5944
        %v5986 = vadd.f32 %v5709, %v5949
        %v5987 = vadd.f32 %v5710, %v5952
        %v5988 = vadd.f32 %v5711, %v5957
        %v5989 = vld [vmem:[#allocation3 + $0x1c] sm:$0xff]
        %v5990 = vld [vmem:[#allocation3 + $0x24] sm:$0xff]
        %v5991 = vld [vmem:[#allocation3 + $0x2c] sm:$0xff]
        %v5992 = vld [vmem:[#allocation3 + $0x34] sm:$0xff]
        %v5993 = vld [vmem:[#allocation3 + $0x3c] sm:$0xff]
        %v5994 = vld [vmem:[#allocation3 + $0x44] sm:$0xff]
        %v5995 = vld [vmem:[#allocation3 + $0x4c] sm:$0xff]
        %v5996 = vld [vmem:[#allocation3 + $0x54] sm:$0xff]
        %v5997 = vld [vmem:[#allocation3 + $0x5c] sm:$0xff]
        %v5998 = vld [vmem:[#allocation3 + $0x64] sm:$0xff]
        %v5999 = vld [vmem:[#allocation3 + $0x6c] sm:$0xff]
        %v6000 = vld [vmem:[#allocation3 + $0x74] sm:$0xff]
        %v6001 = vld [vmem:[#allocation3 + $0x7c] sm:$0xff]
        %v6002 = vld [vmem:[#allocation3 + $0x84] sm:$0xff]
        %v6003 = vld [vmem:[#allocation3 + $0x8c] sm:$0xff]
        %v6004 = vld [vmem:[#allocation3 + $0x94] sm:$0xff]
        %v6005 = vld [vmem:[#allocation3 + $0x9c] sm:$0xff]
        %v6006 = vld [vmem:[#allocation3 + $0xa4] sm:$0xff]
        %v6007 = vld [vmem:[#allocation3 + $0xac] sm:$0xff]
        %v6008 = vld [vmem:[#allocation3 + $0xb4] sm:$0xff]
        %v6009 = vld [vmem:[#allocation3 + $0xbc] sm:$0xff]
        %v6010 = vld [vmem:[#allocation3 + $0xc4] sm:$0xff]
        %v6011 = vld [vmem:[#allocation3 + $0xcc] sm:$0xff]
        %v6012 = vld [vmem:[#allocation3 + $0xd4] sm:$0xff]
        %v6013 = vld [vmem:[#allocation3 + $0xdc] sm:$0xff]
        %v6014 = vld [vmem:[#allocation3 + $0xe4] sm:$0xff]
        %v6015 = vld [vmem:[#allocation3 + $0xec] sm:$0x1]
        %v6016 = vpack.c.bf16 %v5990, %v5989
        %v6017 = vpack.c.bf16 %v5992, %v5991
        %v6018 = vpack.c.bf16 %v5994, %v5993
        %v6019 = vpack.c.bf16 %v5996, %v5995
        %v6020 = vpack.c.bf16 %v5998, %v5997
        %v6021 = vpack.c.bf16 %v6000, %v5999
        %v6022 = vpack.c.bf16 %v6002, %v6001
        %v6023 = vpack.c.bf16 %v6004, %v6003
        %v6024 = vpack.c.bf16 %v6006, %v6005
        %v6025 = vpack.c.bf16 %v6008, %v6007
        %v6026 = vpack.c.bf16 %v6010, %v6009
        %v6027 = vpack.c.bf16 %v6012, %v6011
        %v6028 = vpack.c.bf16 %v6014, %v6013
        %v6029 = vpack.c.bf16 %v6015, %v6015
        %s6030 = scalar_lea.vmem %s10, 448
        %v6031 = vld [vmem:[%s6030] sm:$0xf]
        %v6032 = vld [vmem:[%s6030 + $0x4] sm:$0xf]
        %v6033 = vld [vmem:[%s6030 + $0x8] sm:$0xf]
        %v6034 = vld [vmem:[%s6030 + $0xc] sm:$0xf]
        %v6035 = vld [vmem:[%s6030 + $0x10] sm:$0xf]
        %v6036 = vld [vmem:[%s6030 + $0x14] sm:$0xf]
        %v6037 = vld [vmem:[%s6030 + $0x18] sm:$0xf]
        %v6038 = vld [vmem:[%s6030 + $0x1c] sm:$0xf]
        %v6039 = vld [vmem:[%s6030 + $0x20] sm:$0xf]
        %v6040 = vld [vmem:[%s6030 + $0x24] sm:$0xf]
        %v6041 = vld [vmem:[%s6030 + $0x28] sm:$0xf]
        %v6042 = vld [vmem:[%s6030 + $0x2c] sm:$0xf]
        %v6043 = vld [vmem:[%s6030 + $0x30] sm:$0xf]
        %v6044 = vld [vmem:[%s6030 + $0x34] sm:$0xf]
        %v6045 = vld [vmem:[%s6030 + $0x38] sm:$0xf]
        %v6046 = vld [vmem:[%s6030 + $0x3c] sm:$0xf]
        %v6063 = vunpack.c.l.b16 %v6031
        %v6064 = vunpack.c.l.b16 %v6032
        %v6065 = vunpack.c.l.b16 %v6033
        %v6066 = vunpack.c.l.b16 %v6034
        %v6067 = vunpack.c.l.b16 %v6035
        %v6068 = vunpack.c.l.b16 %v6036
        %v6069 = vunpack.c.l.b16 %v6037
        %v6070 = vunpack.c.l.b16 %v6038
        %v6071 = vunpack.c.l.b16 %v6039
        %v6072 = vunpack.c.l.b16 %v6040
        %v6073 = vunpack.c.l.b16 %v6041
        %v6074 = vunpack.c.l.b16 %v6042
        %v6075 = vunpack.c.l.b16 %v6043
        %v6076 = vunpack.c.l.b16 %v6044
        %v6077 = vunpack.c.l.b16 %v6045
        %v6078 = vunpack.c.l.b16 %v6046
        %v6079 = vpack.c.b16 %v6064, %v6063
        %v6080 = vpack.c.b16 %v6066, %v6065
        %v6081 = vpack.c.b16 %v6068, %v6067
        %v6082 = vpack.c.b16 %v6070, %v6069
        %v6083 = vpack.c.b16 %v6072, %v6071
        %v6084 = vpack.c.b16 %v6074, %v6073
        %v6085 = vpack.c.b16 %v6076, %v6075
        %v6086 = vpack.c.b16 %v6078, %v6077
        %6095 = vmatprep.subr.bf16.mxu0 0
        %6096 = vmatpush1.bf16.msra.mxu0 %v6079
        %6097 = vmatprep.subr.bf16.mxu0 0
        %6098 = vmatpush1.bf16.msra.mxu0 %v6080
        %6099 = vmatprep.subr.bf16.mxu0 0
        %6100 = vmatpush1.bf16.msra.mxu0 %v6081
        %6101 = vmatprep.subr.bf16.mxu0 0
        %6102 = vmatpush1.bf16.msra.mxu0 %v6082
        %6103 = vmatprep.subr.bf16.mxu0 0
        %6104 = vmatpush1.bf16.msra.mxu0 %v6083
        %6105 = vmatprep.subr.bf16.mxu0 0
        %6106 = vmatpush1.bf16.msra.mxu0 %v6084
        %6107 = vmatprep.subr.bf16.mxu0 0
        %6108 = vmatpush1.bf16.msra.mxu0 %v6085
        %6109 = vmatprep.subr.bf16.mxu0 0
        %6110 = vmatpush1.bf16.msra.mxu0 %v6086
        %6111 = vmatprep.subr.bf16.mxu0 0
        %6112 = vmatpush1.bf16.msra.mxu0 0
        %6113 = vmatprep.subr.bf16.mxu0 0
        %6114 = vmatpush1.bf16.msra.mxu0 0
        %6115 = vmatprep.subr.bf16.mxu0 0
        %6116 = vmatpush1.bf16.msra.mxu0 0
        %6117 = vmatprep.subr.bf16.mxu0 0
        %6118 = vmatpush1.bf16.msra.mxu0 0
        %6119 = vmatprep.subr.bf16.mxu0 0
        %6120 = vmatpush1.bf16.msra.mxu0 0
        %6121 = vmatprep.subr.bf16.mxu0 0
        %6122 = vmatpush1.bf16.msra.mxu0 0
        %6123 = vmatprep.subr.bf16.mxu0 0
        %6124 = vmatpush1.bf16.msra.mxu0 0
        %6125 = vmatprep.subr.bf16.mxu0 0
        %6126 = vmatpush1.bf16.msra.mxu0 0
        %6127 = vmatprep.mubr.bf16.mxu0 0
        %6128 = vmatmul.mubr.bf16.gmra.mrb[0].mxu0 %v6016
        %v6129 = vpop.f32.mrb[0].mxu0
        %v6130 = vadd.f32 0.0, %v6129
        %v6131 = vpop.f32.mrb[0].mxu0
        %v6132 = vpop.f32.mrb[0].mxu0
        %v6133 = vadd.f32 0.0, %v6132
        %v6134 = vpop.f32.mrb[0].mxu0
        %6135 = vmatprep.mubr.bf16.mxu0 0
        %6136 = vmatmul.mubr.bf16.gmra.mrb[0].mxu0 %v6017
        %v6137 = vpop.f32.mrb[0].mxu0
        %v6138 = vadd.f32 0.0, %v6137
        %v6139 = vpop.f32.mrb[0].mxu0
        %v6140 = vpop.f32.mrb[0].mxu0
        %v6141 = vadd.f32 0.0, %v6140
        %v6142 = vpop.f32.mrb[0].mxu0
        %6143 = vmatprep.mubr.bf16.mxu0 0
        %6144 = vmatmul.mubr.bf16.gmra.mrb[0].mxu0 %v6018
        %v6145 = vpop.f32.mrb[0].mxu0
        %v6146 = vadd.f32 0.0, %v6145
        %v6147 = vpop.f32.mrb[0].mxu0
        %v6148 = vpop.f32.mrb[0].mxu0
        %v6149 = vadd.f32 0.0, %v6148
        %v6150 = vpop.f32.mrb[0].mxu0
        %6151 = vmatprep.mubr.bf16.mxu0 0
        %6152 = vmatmul.mubr.bf16.gmra.mrb[0].mxu0 %v6019
        %v6153 = vpop.f32.mrb[0].mxu0
        %v6154 = vadd.f32 0.0, %v6153
        %v6155 = vpop.f32.mrb[0].mxu0
        %v6156 = vpop.f32.mrb[0].mxu0
        %v6157 = vadd.f32 0.0, %v6156
        %v6158 = vpop.f32.mrb[0].mxu0
        %6159 = vmatprep.mubr.bf16.mxu0 0
        %6160 = vmatmul.mubr.bf16.gmra.mrb[0].mxu0 %v6020
        %v6161 = vpop.f32.mrb[0].mxu0
        %v6162 = vadd.f32 0.0, %v6161
        %v6163 = vpop.f32.mrb[0].mxu0
        %v6164 = vpop.f32.mrb[0].mxu0
        %v6165 = vadd.f32 0.0, %v6164
        %v6166 = vpop.f32.mrb[0].mxu0
        %6167 = vmatprep.mubr.bf16.mxu0 0
        %6168 = vmatmul.mubr.bf16.gmra.mrb[0].mxu0 %v6021
        %v6169 = vpop.f32.mrb[0].mxu0
        %v6170 = vadd.f32 0.0, %v6169
        %v6171 = vpop.f32.mrb[0].mxu0
        %v6172 = vpop.f32.mrb[0].mxu0
        %v6173 = vadd.f32 0.0, %v6172
        %v6174 = vpop.f32.mrb[0].mxu0
        %6175 = vmatprep.mubr.bf16.mxu0 0
        %6176 = vmatmul.mubr.bf16.gmra.mrb[0].mxu0 %v6022
        %v6177 = vpop.f32.mrb[0].mxu0
        %v6178 = vadd.f32 0.0, %v6177
        %v6179 = vpop.f32.mrb[0].mxu0
        %v6180 = vpop.f32.mrb[0].mxu0
        %v6181 = vadd.f32 0.0, %v6180
        %v6182 = vpop.f32.mrb[0].mxu0
        %6183 = vmatprep.mubr.bf16.mxu0 0
        %6184 = vmatmul.mubr.bf16.gmra.mrb[0].mxu0 %v6023
        %v6185 = vpop.f32.mrb[0].mxu0
        %v6186 = vadd.f32 0.0, %v6185
        %v6187 = vpop.f32.mrb[0].mxu0
        %v6188 = vpop.f32.mrb[0].mxu0
        %v6189 = vadd.f32 0.0, %v6188
        %v6190 = vpop.f32.mrb[0].mxu0
        %6191 = vmatprep.mubr.bf16.mxu0 0
        %6192 = vmatmul.mubr.bf16.gmra.mrb[0].mxu0 %v6024
        %v6193 = vpop.f32.mrb[0].mxu0
        %v6194 = vadd.f32 0.0, %v6193
        %v6195 = vpop.f32.mrb[0].mxu0
        %v6196 = vpop.f32.mrb[0].mxu0
        %v6197 = vadd.f32 0.0, %v6196
        %v6198 = vpop.f32.mrb[0].mxu0
        %6199 = vmatprep.mubr.bf16.mxu0 0
        %6200 = vmatmul.mubr.bf16.gmra.mrb[0].mxu0 %v6025
        %v6201 = vpop.f32.mrb[0].mxu0
        %v6202 = vadd.f32 0.0, %v6201
        %v6203 = vpop.f32.mrb[0].mxu0
        %v6204 = vpop.f32.mrb[0].mxu0
        %v6205 = vadd.f32 0.0, %v6204
        %v6206 = vpop.f32.mrb[0].mxu0
        %6207 = vmatprep.mubr.bf16.mxu0 0
        %6208 = vmatmul.mubr.bf16.gmra.mrb[0].mxu0 %v6026
        %v6209 = vpop.f32.mrb[0].mxu0
        %v6210 = vadd.f32 0.0, %v6209
        %v6211 = vpop.f32.mrb[0].mxu0
        %v6212 = vpop.f32.mrb[0].mxu0
        %v6213 = vadd.f32 0.0, %v6212
        %v6214 = vpop.f32.mrb[0].mxu0
        %6215 = vmatprep.mubr.bf16.mxu0 0
        %6216 = vmatmul.mubr.bf16.gmra.mrb[0].mxu0 %v6027
        %v6217 = vpop.f32.mrb[0].mxu0
        %v6218 = vadd.f32 0.0, %v6217
        %v6219 = vpop.f32.mrb[0].mxu0
        %v6220 = vpop.f32.mrb[0].mxu0
        %v6221 = vadd.f32 0.0, %v6220
        %v6222 = vpop.f32.mrb[0].mxu0
        %6223 = vmatprep.mubr.bf16.mxu0 0
        %6224 = vmatmul.mubr.bf16.gmra.mrb[0].mxu0 %v6028
        %v6225 = vpop.f32.mrb[0].mxu0
        %v6226 = vadd.f32 0.0, %v6225
        %v6227 = vpop.f32.mrb[0].mxu0
        %v6228 = vpop.f32.mrb[0].mxu0
        %v6229 = vadd.f32 0.0, %v6228
        %v6230 = vpop.f32.mrb[0].mxu0
        %6231 = vmatprep.mubr.bf16.mxu0 0
        %6232 = vmatmul.mubr.bf16.gmra.mrb[0].mxu0 %v6029
        %v6233 = vpop.f32.mrb[0].mxu0
        %v6234 = vadd.f32 0.0, %v6233
        %v6235 = vpop.f32.mrb[0].mxu0
        %v6236 = vpop.f32.mrb[0].mxu0
        %v6237 = vpop.f32.mrb[0].mxu0
        %6238 = vdwg.mxu0
        %v6239 = vadd.f32 %v5962, %v6130
        %v6240 = vadd.f32 %v5963, %v6133
        %v6241 = vadd.f32 %v5964, %v6138
        %v6242 = vadd.f32 %v5965, %v6141
        %v6243 = vadd.f32 %v5966, %v6146
        %v6244 = vadd.f32 %v5967, %v6149
        %v6245 = vadd.f32 %v5968, %v6154
        %v6246 = vadd.f32 %v5969, %v6157
        %v6247 = vadd.f32 %v5970, %v6162
        %v6248 = vadd.f32 %v5971, %v6165
        %v6249 = vadd.f32 %v5972, %v6170
        %v6250 = vadd.f32 %v5973, %v6173
        %v6251 = vadd.f32 %v5974, %v6178
        %v6252 = vadd.f32 %v5975, %v6181
        %v6253 = vadd.f32 %v5976, %v6186
        %v6254 = vadd.f32 %v5977, %v6189
        %v6255 = vadd.f32 %v5978, %v6194
        %v6256 = vadd.f32 %v5979, %v6197
        %v6257 = vadd.f32 %v5980, %v6202
        %v6258 = vadd.f32 %v5981, %v6205
        %v6259 = vadd.f32 %v5982, %v6210
        %v6260 = vadd.f32 %v5983, %v6213
        %v6261 = vadd.f32 %v5984, %v6218
        %v6262 = vadd.f32 %v5985, %v6221
        %v6263 = vadd.f32 %v5986, %v6226
        %v6264 = vadd.f32 %v5987, %v6229
        %v6265 = vadd.f32 %v5988, %v6234
        %v6266 = vld [vmem:[%s11] sm:$0x1]
        %v6267 = vlaneseq
        %v6268 = vshrl.u32 %v6267, 7
        %v6269 = vsub.s32 0, %v6268
        %v6270 = vrot.slane %v6266, %v6269
        %v6271 = vadd.f32 %v6239, %v6270
        %v6272 = vadd.f32 %v6240, %v6270
        %v6273 = vadd.f32 %v6241, %v6270
        %v6274 = vadd.f32 %v6242, %v6270
        %v6275 = vadd.f32 %v6243, %v6270
        %v6276 = vadd.f32 %v6244, %v6270
        %v6277 = vadd.f32 %v6245, %v6270
        %v6278 = vadd.f32 %v6246, %v6270
        %v6279 = vadd.f32 %v6247, %v6270
        %v6280 = vadd.f32 %v6248, %v6270
        %v6281 = vadd.f32 %v6249, %v6270
        %v6282 = vadd.f32 %v6250, %v6270
        %v6283 = vadd.f32 %v6251, %v6270
        %v6284 = vadd.f32 %v6252, %v6270
        %v6285 = vadd.f32 %v6253, %v6270
        %v6286 = vadd.f32 %v6254, %v6270
        %v6287 = vadd.f32 %v6255, %v6270
        %v6288 = vadd.f32 %v6256, %v6270
        %v6289 = vadd.f32 %v6257, %v6270
        %v6290 = vadd.f32 %v6258, %v6270
        %v6291 = vadd.f32 %v6259, %v6270
        %v6292 = vadd.f32 %v6260, %v6270
        %v6293 = vadd.f32 %v6261, %v6270
        %v6294 = vadd.f32 %v6262, %v6270
        %v6295 = vadd.f32 %v6263, %v6270
        %v6296 = vadd.f32 %v6264, %v6270
        %v6297 = vadd.f32 %v6265, %v6270
        %v6298 = vmax.f32 %v6271, 0.0
        %v6299 = vmax.f32 %v6272, 0.0
        %v6300 = vmax.f32 %v6273, 0.0
        %v6301 = vmax.f32 %v6274, 0.0
        %v6302 = vmax.f32 %v6275, 0.0
        %v6303 = vmax.f32 %v6276, 0.0
        %v6304 = vmax.f32 %v6277, 0.0
        %v6305 = vmax.f32 %v6278, 0.0
        %v6306 = vmax.f32 %v6279, 0.0
        %v6307 = vmax.f32 %v6280, 0.0
        %v6308 = vmax.f32 %v6281, 0.0
        %v6309 = vmax.f32 %v6282, 0.0
        %v6310 = vmax.f32 %v6283, 0.0
        %v6311 = vmax.f32 %v6284, 0.0
        %v6312 = vmax.f32 %v6285, 0.0
        %v6313 = vmax.f32 %v6286, 0.0
        %v6314 = vmax.f32 %v6287, 0.0
        %v6315 = vmax.f32 %v6288, 0.0
        %v6316 = vmax.f32 %v6289, 0.0
        %v6317 = vmax.f32 %v6290, 0.0
        %v6318 = vmax.f32 %v6291, 0.0
        %v6319 = vmax.f32 %v6292, 0.0
        %v6320 = vmax.f32 %v6293, 0.0
        %v6321 = vmax.f32 %v6294, 0.0
        %v6322 = vmax.f32 %v6295, 0.0
        %v6323 = vmax.f32 %v6296, 0.0
        %v6324 = vmax.f32 %v6297, 0.0
        %v6325 = vld [vmem:[%s11 + $0x1] sm:$0x1]
        %v6326 = vlaneseq
        %v6327 = vshrl.u32 %v6326, 7
        %v6328 = vsub.s32 0, %v6327
        %v6329 = vrot.slane %v6325, %v6328
        %v6330 = vmul.f32 %v6298, %v6329
        %v6331 = vmul.f32 %v6299, %v6329
        %v6332 = vmul.f32 %v6300, %v6329
        %v6333 = vmul.f32 %v6301, %v6329
        %v6334 = vmul.f32 %v6302, %v6329
        %v6335 = vmul.f32 %v6303, %v6329
        %v6336 = vmul.f32 %v6304, %v6329
        %v6337 = vmul.f32 %v6305, %v6329
        %v6338 = vmul.f32 %v6306, %v6329
        %v6339 = vmul.f32 %v6307, %v6329
        %v6340 = vmul.f32 %v6308, %v6329
        %v6341 = vmul.f32 %v6309, %v6329
        %v6342 = vmul.f32 %v6310, %v6329
        %v6343 = vmul.f32 %v6311, %v6329
        %v6344 = vmul.f32 %v6312, %v6329
        %v6345 = vmul.f32 %v6313, %v6329
        %v6346 = vmul.f32 %v6314, %v6329
        %v6347 = vmul.f32 %v6315, %v6329
        %v6348 = vmul.f32 %v6316, %v6329
        %v6349 = vmul.f32 %v6317, %v6329
        %v6350 = vmul.f32 %v6318, %v6329
        %v6351 = vmul.f32 %v6319, %v6329
        %v6352 = vmul.f32 %v6320, %v6329
        %v6353 = vmul.f32 %v6321, %v6329
        %v6354 = vmul.f32 %v6322, %v6329
        %v6355 = vmul.f32 %v6323, %v6329
        %v6356 = vmul.f32 %v6324, %v6329
        %v6357 = vld [vmem:[%s11 + $0x2] sm:$0x1]
        %v6358 = vlaneseq
        %v6359 = vshrl.u32 %v6358, 7
        %v6360 = vsub.s32 0, %v6359
        %v6361 = vrot.slane %v6357, %v6360
        %v6362 = vadd.f32 %v6330, %v6361
        %v6363 = vadd.f32 %v6331, %v6361
        %v6364 = vadd.f32 %v6332, %v6361
        %v6365 = vadd.f32 %v6333, %v6361
        %v6366 = vadd.f32 %v6334, %v6361
        %v6367 = vadd.f32 %v6335, %v6361
        %v6368 = vadd.f32 %v6336, %v6361
        %v6369 = vadd.f32 %v6337, %v6361
        %v6370 = vadd.f32 %v6338, %v6361
        %v6371 = vadd.f32 %v6339, %v6361
        %v6372 = vadd.f32 %v6340, %v6361
        %v6373 = vadd.f32 %v6341, %v6361
        %v6374 = vadd.f32 %v6342, %v6361
        %v6375 = vadd.f32 %v6343, %v6361
        %v6376 = vadd.f32 %v6344, %v6361
        %v6377 = vadd.f32 %v6345, %v6361
        %v6378 = vadd.f32 %v6346, %v6361
        %v6379 = vadd.f32 %v6347, %v6361
        %v6380 = vadd.f32 %v6348, %v6361
        %v6381 = vadd.f32 %v6349, %v6361
        %v6382 = vadd.f32 %v6350, %v6361
        %v6383 = vadd.f32 %v6351, %v6361
        %v6384 = vadd.f32 %v6352, %v6361
        %v6385 = vadd.f32 %v6353, %v6361
        %v6386 = vadd.f32 %v6354, %v6361
        %v6387 = vadd.f32 %v6355, %v6361
        %v6388 = vadd.f32 %v6356, %v6361
        %6389 = vst [vmem:[#allocation4] sm:$0xff] %v6362
        %6390 = vst [vmem:[#allocation4 + $0x8] sm:$0xff] %v6363
        %6391 = vst [vmem:[#allocation4 + $0x10] sm:$0xff] %v6364
        %6392 = vst [vmem:[#allocation4 + $0x18] sm:$0xff] %v6365
        %6393 = vst [vmem:[#allocation4 + $0x20] sm:$0xff] %v6366
        %6394 = vst [vmem:[#allocation4 + $0x28] sm:$0xff] %v6367
        %6395 = vst [vmem:[#allocation4 + $0x30] sm:$0xff] %v6368
        %6396 = vst [vmem:[#allocation4 + $0x38] sm:$0xff] %v6369
        %6397 = vst [vmem:[#allocation4 + $0x40] sm:$0xff] %v6370
        %6398 = vst [vmem:[#allocation4 + $0x48] sm:$0xff] %v6371
        %6399 = vst [vmem:[#allocation4 + $0x50] sm:$0xff] %v6372
        %6400 = vst [vmem:[#allocation4 + $0x58] sm:$0xff] %v6373
        %6401 = vst [vmem:[#allocation4 + $0x60] sm:$0xff] %v6374
        %6402 = vst [vmem:[#allocation4 + $0x68] sm:$0xff] %v6375
        %6403 = vst [vmem:[#allocation4 + $0x70] sm:$0xff] %v6376
        %6404 = vst [vmem:[#allocation4 + $0x78] sm:$0xff] %v6377
        %6405 = vst [vmem:[#allocation4 + $0x80] sm:$0xff] %v6378
        %6406 = vst [vmem:[#allocation4 + $0x88] sm:$0xff] %v6379
        %6407 = vst [vmem:[#allocation4 + $0x90] sm:$0xff] %v6380
        %6408 = vst [vmem:[#allocation4 + $0x98] sm:$0xff] %v6381
        %6409 = vst [vmem:[#allocation4 + $0xa0] sm:$0xff] %v6382
        %6410 = vst [vmem:[#allocation4 + $0xa8] sm:$0xff] %v6383
        %6411 = vst [vmem:[#allocation4 + $0xb0] sm:$0xff] %v6384
        %6412 = vst [vmem:[#allocation4 + $0xb8] sm:$0xff] %v6385
        %6413 = vst [vmem:[#allocation4 + $0xc0] sm:$0xff] %v6386
        %6414 = vst [vmem:[#allocation4 + $0xc8] sm:$0xff] %v6387
        %6415 = vst [vmem:[#allocation4 + $0xd0] sm:$0x1] %v6388
        %v6416 = vld [vmem:[#allocation4] sm:$0xff]
        %v6417 = vld [vmem:[#allocation4 + $0x8] sm:$0xff]
        %v6418 = vld [vmem:[#allocation4 + $0x10] sm:$0xff]
        %v6419 = vld [vmem:[#allocation4 + $0x18] sm:$0xff]
        %v6420 = vld [vmem:[#allocation4 + $0x20] sm:$0xff]
        %v6421 = vld [vmem:[#allocation4 + $0x28] sm:$0xff]
        %v6422 = vld [vmem:[#allocation4 + $0x30] sm:$0xff]
        %v6423 = vld [vmem:[#allocation4 + $0x38] sm:$0xff]
        %v6424 = vld [vmem:[#allocation4 + $0x40] sm:$0xff]
        %v6425 = vld [vmem:[#allocation4 + $0x48] sm:$0xff]
        %v6426 = vld [vmem:[#allocation4 + $0x50] sm:$0xff]
        %v6427 = vld [vmem:[#allocation4 + $0x58] sm:$0xff]
        %v6428 = vld [vmem:[#allocation4 + $0x60] sm:$0xff]
        %v6429 = vld [vmem:[#allocation4 + $0x68] sm:$0xff]
        %v6430 = vld [vmem:[#allocation4 + $0x70] sm:$0xff]
        %v6431 = vld [vmem:[#allocation4 + $0x78] sm:$0xff]
        %v6432 = vld [vmem:[#allocation4 + $0x80] sm:$0xff]
        %v6433 = vld [vmem:[#allocation4 + $0x88] sm:$0xff]
        %v6434 = vld [vmem:[#allocation4 + $0x90] sm:$0xff]
        %v6435 = vld [vmem:[#allocation4 + $0x98] sm:$0xff]
        %v6436 = vld [vmem:[#allocation4 + $0xa0] sm:$0x1]
        %v6437 = vpack.c.bf16 %v6417, %v6416
        %v6438 = vpack.c.bf16 %v6419, %v6418
        %v6439 = vpack.c.bf16 %v6421, %v6420
        %v6440 = vpack.c.bf16 %v6423, %v6422
        %v6441 = vpack.c.bf16 %v6425, %v6424
        %v6442 = vpack.c.bf16 %v6427, %v6426
        %v6443 = vpack.c.bf16 %v6429, %v6428
        %v6444 = vpack.c.bf16 %v6431, %v6430
        %v6445 = vpack.c.bf16 %v6433, %v6432
        %v6446 = vpack.c.bf16 %v6435, %v6434
        %v6447 = vpack.c.bf16 %v6436, %v6436
        %v6448 = vld [vmem:[#allocation14] sm:$0xf]
        %v6449 = vld [vmem:[#allocation14 + $0x4] sm:$0xf]
        %v6450 = vld [vmem:[#allocation14 + $0x8] sm:$0xf]
        %v6451 = vld [vmem:[#allocation14 + $0xc] sm:$0xf]
        %v6452 = vld [vmem:[#allocation14 + $0x10] sm:$0xf]
        %v6453 = vld [vmem:[#allocation14 + $0x14] sm:$0xf]
        %v6454 = vld [vmem:[#allocation14 + $0x18] sm:$0xf]
        %v6455 = vld [vmem:[#allocation14 + $0x1c] sm:$0xf]
        %v6456 = vld [vmem:[#allocation14 + $0x20] sm:$0xf]
        %v6457 = vld [vmem:[#allocation14 + $0x24] sm:$0xf]
        %v6458 = vld [vmem:[#allocation14 + $0x28] sm:$0xf]
        %v6459 = vld [vmem:[#allocation14 + $0x2c] sm:$0xf]
        %v6460 = vld [vmem:[#allocation14 + $0x30] sm:$0xf]
        %v6461 = vld [vmem:[#allocation14 + $0x34] sm:$0xf]
        %v6462 = vld [vmem:[#allocation14 + $0x38] sm:$0xf]
        %v6463 = vld [vmem:[#allocation14 + $0x3c] sm:$0xf]
        %v6464 = vld [vmem:[#allocation4 + $0xa0] sm:$0xff]
        %v6465 = vld [vmem:[#allocation4 + $0xa8] sm:$0xff]
        %v6466 = vld [vmem:[#allocation4 + $0xb0] sm:$0x1]
        %v6467 = vpack.c.bf16 %v6465, %v6464
        %v6468 = vpack.c.bf16 %v6466, %v6466
        %s6469 = scalar_lea.vmem [#allocation14], 64
        %v6470 = vld [vmem:[%s6469] sm:$0xf]
        %v6471 = vld [vmem:[%s6469 + $0x4] sm:$0xf]
        %v6472 = vld [vmem:[%s6469 + $0x8] sm:$0xf]
        %v6473 = vld [vmem:[%s6469 + $0xc] sm:$0xf]
        %v6474 = vld [vmem:[%s6469 + $0x10] sm:$0xf]
        %v6475 = vld [vmem:[%s6469 + $0x14] sm:$0xf]
        %v6476 = vld [vmem:[%s6469 + $0x18] sm:$0xf]
        %v6477 = vld [vmem:[%s6469 + $0x1c] sm:$0xf]
        %v6478 = vld [vmem:[%s6469 + $0x20] sm:$0xf]
        %v6479 = vld [vmem:[%s6469 + $0x24] sm:$0xf]
        %v6480 = vld [vmem:[%s6469 + $0x28] sm:$0xf]
        %v6481 = vld [vmem:[%s6469 + $0x2c] sm:$0xf]
        %v6482 = vld [vmem:[%s6469 + $0x30] sm:$0xf]
        %v6483 = vld [vmem:[%s6469 + $0x34] sm:$0xf]
        %v6484 = vld [vmem:[%s6469 + $0x38] sm:$0xf]
        %v6485 = vld [vmem:[%s6469 + $0x3c] sm:$0xf]
        %v6502 = vunpack.c.l.b16 %v6470
        %v6503 = vunpack.c.l.b16 %v6471
        %v6504 = vunpack.c.l.b16 %v6472
        %v6505 = vunpack.c.l.b16 %v6473
        %v6506 = vunpack.c.l.b16 %v6474
        %v6507 = vunpack.c.l.b16 %v6475
        %v6508 = vunpack.c.l.b16 %v6476
        %v6509 = vunpack.c.l.b16 %v6477
        %v6510 = vunpack.c.l.b16 %v6478
        %v6511 = vunpack.c.l.b16 %v6479
        %v6512 = vunpack.c.l.b16 %v6480
        %v6513 = vunpack.c.l.b16 %v6481
        %v6514 = vunpack.c.l.b16 %v6482
        %v6515 = vunpack.c.l.b16 %v6483
        %v6516 = vunpack.c.l.b16 %v6484
        %v6517 = vunpack.c.l.b16 %v6485
        %v6518 = vpack.c.b16 %v6503, %v6502
        %v6519 = vpack.c.b16 %v6505, %v6504
        %v6520 = vpack.c.b16 %v6507, %v6506
        %v6521 = vpack.c.b16 %v6509, %v6508
        %v6522 = vpack.c.b16 %v6511, %v6510
        %v6523 = vpack.c.b16 %v6513, %v6512
        %v6524 = vpack.c.b16 %v6515, %v6514
        %v6525 = vpack.c.b16 %v6517, %v6516
        %6534 = vmatprep.subr.bf16.mxu0 0
        %6535 = vmatpush1.bf16.msra.mxu0 %v6518
        %6536 = vmatprep.subr.bf16.mxu0 0
        %6537 = vmatpush1.bf16.msra.mxu0 %v6519
        %6538 = vmatprep.subr.bf16.mxu0 0
        %6539 = vmatpush1.bf16.msra.mxu0 %v6520
        %6540 = vmatprep.subr.bf16.mxu0 0
        %6541 = vmatpush1.bf16.msra.mxu0 %v6521
        %6542 = vmatprep.subr.bf16.mxu0 0
        %6543 = vmatpush1.bf16.msra.mxu0 %v6522
        %6544 = vmatprep.subr.bf16.mxu0 0
        %6545 = vmatpush1.bf16.msra.mxu0 %v6523
        %6546 = vmatprep.subr.bf16.mxu0 0
        %6547 = vmatpush1.bf16.msra.mxu0 %v6524
        %6548 = vmatprep.subr.bf16.mxu0 0
        %6549 = vmatpush1.bf16.msra.mxu0 %v6525
        %6550 = vmatprep.subr.bf16.mxu0 0
        %6551 = vmatpush1.bf16.msra.mxu0 0
        %6552 = vmatprep.subr.bf16.mxu0 0
        %6553 = vmatpush1.bf16.msra.mxu0 0
        %6554 = vmatprep.subr.bf16.mxu0 0
        %6555 = vmatpush1.bf16.msra.mxu0 0
        %6556 = vmatprep.subr.bf16.mxu0 0
        %6557 = vmatpush1.bf16.msra.mxu0 0
        %6558 = vmatprep.subr.bf16.mxu0 0
        %6559 = vmatpush1.bf16.msra.mxu0 0
        %6560 = vmatprep.subr.bf16.mxu0 0
        %6561 = vmatpush1.bf16.msra.mxu0 0
        %6562 = vmatprep.subr.bf16.mxu0 0
        %6563 = vmatpush1.bf16.msra.mxu0 0
        %6564 = vmatprep.subr.bf16.mxu0 0
        %6565 = vmatpush1.bf16.msra.mxu0 0
        %6566 = vmatprep.mubr.bf16.mxu0 0
        %6567 = vmatmul.mubr.bf16.gmra.mrb[0].mxu0 %v6438
        %v6568 = vpop.f32.mrb[0].mxu0
        %v6569 = vadd.f32 0.0, %v6568
        %v6570 = vpop.f32.mrb[0].mxu0
        %v6571 = vpop.f32.mrb[0].mxu0
        %v6572 = vadd.f32 0.0, %v6571
        %v6573 = vpop.f32.mrb[0].mxu0
        %6574 = vmatprep.mubr.bf16.mxu0 0
        %6575 = vmatmul.mubr.bf16.gmra.mrb[0].mxu0 %v6439
        %v6576 = vpop.f32.mrb[0].mxu0
        %v6577 = vadd.f32 0.0, %v6576
        %v6578 = vpop.f32.mrb[0].mxu0
        %v6579 = vpop.f32.mrb[0].mxu0
        %v6580 = vadd.f32 0.0, %v6579
        %v6581 = vpop.f32.mrb[0].mxu0
        %6582 = vmatprep.mubr.bf16.mxu0 0
        %6583 = vmatmul.mubr.bf16.gmra.mrb[0].mxu0 %v6440
        %v6584 = vpop.f32.mrb[0].mxu0
        %v6585 = vadd.f32 0.0, %v6584
        %v6586 = vpop.f32.mrb[0].mxu0
        %v6587 = vpop.f32.mrb[0].mxu0
        %v6588 = vadd.f32 0.0, %v6587
        %v6589 = vpop.f32.mrb[0].mxu0
        %6590 = vmatprep.mubr.bf16.mxu0 0
        %6591 = vmatmul.mubr.bf16.gmra.mrb[0].mxu0 %v6441
        %v6592 = vpop.f32.mrb[0].mxu0
        %v6593 = vadd.f32 0.0, %v6592
        %v6594 = vpop.f32.mrb[0].mxu0
        %v6595 = vpop.f32.mrb[0].mxu0
        %v6596 = vadd.f32 0.0, %v6595
        %v6597 = vpop.f32.mrb[0].mxu0
        %6598 = vmatprep.mubr.bf16.mxu0 0
        %6599 = vmatmul.mubr.bf16.gmra.mrb[0].mxu0 %v6442
        %v6600 = vpop.f32.mrb[0].mxu0
        %v6601 = vadd.f32 0.0, %v6600
        %v6602 = vpop.f32.mrb[0].mxu0
        %v6603 = vpop.f32.mrb[0].mxu0
        %v6604 = vadd.f32 0.0, %v6603
        %v6605 = vpop.f32.mrb[0].mxu0
        %6606 = vmatprep.mubr.bf16.mxu0 0
        %6607 = vmatmul.mubr.bf16.gmra.mrb[0].mxu0 %v6443
        %v6608 = vpop.f32.mrb[0].mxu0
        %v6609 = vadd.f32 0.0, %v6608
        %v6610 = vpop.f32.mrb[0].mxu0
        %v6611 = vpop.f32.mrb[0].mxu0
        %v6612 = vadd.f32 0.0, %v6611
        %v6613 = vpop.f32.mrb[0].mxu0
        %6614 = vmatprep.mubr.bf16.mxu0 0
        %6615 = vmatmul.mubr.bf16.gmra.mrb[0].mxu0 %v6444
        %v6616 = vpop.f32.mrb[0].mxu0
        %v6617 = vadd.f32 0.0, %v6616
        %v6618 = vpop.f32.mrb[0].mxu0
        %v6619 = vpop.f32.mrb[0].mxu0
        %v6620 = vadd.f32 0.0, %v6619
        %v6621 = vpop.f32.mrb[0].mxu0
        %6622 = vmatprep.mubr.bf16.mxu0 0
        %6623 = vmatmul.mubr.bf16.gmra.mrb[0].mxu0 %v6445
        %v6624 = vpop.f32.mrb[0].mxu0
        %v6625 = vadd.f32 0.0, %v6624
        %v6626 = vpop.f32.mrb[0].mxu0
        %v6627 = vpop.f32.mrb[0].mxu0
        %v6628 = vadd.f32 0.0, %v6627
        %v6629 = vpop.f32.mrb[0].mxu0
        %6630 = vmatprep.mubr.bf16.mxu0 0
        %6631 = vmatmul.mubr.bf16.gmra.mrb[0].mxu0 %v6446
        %v6632 = vpop.f32.mrb[0].mxu0
        %v6633 = vadd.f32 0.0, %v6632
        %v6634 = vpop.f32.mrb[0].mxu0
        %v6635 = vpop.f32.mrb[0].mxu0
        %v6636 = vadd.f32 0.0, %v6635
        %v6637 = vpop.f32.mrb[0].mxu0
        %6638 = vmatprep.mubr.bf16.mxu0 0
        %6639 = vmatmul.mubr.bf16.gmra.mrb[0].mxu0 %v6467
        %v6640 = vpop.f32.mrb[0].mxu0
        %v6641 = vadd.f32 0.0, %v6640
        %v6642 = vpop.f32.mrb[0].mxu0
        %v6643 = vpop.f32.mrb[0].mxu0
        %v6644 = vadd.f32 0.0, %v6643
        %v6645 = vpop.f32.mrb[0].mxu0
        %6646 = vmatprep.mubr.bf16.mxu0 0
        %6647 = vmatmul.mubr.bf16.gmra.mrb[0].mxu0 %v6468
        %v6648 = vpop.f32.mrb[0].mxu0
        %v6649 = vadd.f32 0.0, %v6648
        %v6650 = vpop.f32.mrb[0].mxu0
        %v6651 = vpop.f32.mrb[0].mxu0
        %v6652 = vpop.f32.mrb[0].mxu0
        %6653 = vdwg.mxu0
        %v6670 = vunpack.c.l.b16 %v6448
        %v6671 = vunpack.c.l.b16 %v6449
        %v6672 = vunpack.c.l.b16 %v6450
        %v6673 = vunpack.c.l.b16 %v6451
        %v6674 = vunpack.c.l.b16 %v6452
        %v6675 = vunpack.c.l.b16 %v6453
        %v6676 = vunpack.c.l.b16 %v6454
        %v6677 = vunpack.c.l.b16 %v6455
        %v6678 = vunpack.c.l.b16 %v6456
        %v6679 = vunpack.c.l.b16 %v6457
        %v6680 = vunpack.c.l.b16 %v6458
        %v6681 = vunpack.c.l.b16 %v6459
        %v6682 = vunpack.c.l.b16 %v6460
        %v6683 = vunpack.c.l.b16 %v6461
        %v6684 = vunpack.c.l.b16 %v6462
        %v6685 = vunpack.c.l.b16 %v6463
        %v6686 = vpack.c.b16 %v6671, %v6670
        %v6687 = vpack.c.b16 %v6673, %v6672
        %v6688 = vpack.c.b16 %v6675, %v6674
        %v6689 = vpack.c.b16 %v6677, %v6676
        %v6690 = vpack.c.b16 %v6679, %v6678
        %v6691 = vpack.c.b16 %v6681, %v6680
        %v6692 = vpack.c.b16 %v6683, %v6682
        %v6693 = vpack.c.b16 %v6685, %v6684
        %6702 = vmatprep.subr.bf16.mxu0 0
        %6703 = vmatpush1.bf16.msra.mxu0 %v6686
        %6704 = vmatprep.subr.bf16.mxu0 0
        %6705 = vmatpush1.bf16.msra.mxu0 %v6687
        %6706 = vmatprep.subr.bf16.mxu0 0
        %6707 = vmatpush1.bf16.msra.mxu0 %v6688
        %6708 = vmatprep.subr.bf16.mxu0 0
        %6709 = vmatpush1.bf16.msra.mxu0 %v6689
        %6710 = vmatprep.subr.bf16.mxu0 0
        %6711 = vmatpush1.bf16.msra.mxu0 %v6690
        %6712 = vmatprep.subr.bf16.mxu0 0
        %6713 = vmatpush1.bf16.msra.mxu0 %v6691
        %6714 = vmatprep.subr.bf16.mxu0 0
        %6715 = vmatpush1.bf16.msra.mxu0 %v6692
        %6716 = vmatprep.subr.bf16.mxu0 0
        %6717 = vmatpush1.bf16.msra.mxu0 %v6693
        %6718 = vmatprep.subr.bf16.mxu0 0
        %6719 = vmatpush1.bf16.msra.mxu0 0
        %6720 = vmatprep.subr.bf16.mxu0 0
        %6721 = vmatpush1.bf16.msra.mxu0 0
        %6722 = vmatprep.subr.bf16.mxu0 0
        %6723 = vmatpush1.bf16.msra.mxu0 0
        %6724 = vmatprep.subr.bf16.mxu0 0
        %6725 = vmatpush1.bf16.msra.mxu0 0
        %6726 = vmatprep.subr.bf16.mxu0 0
        %6727 = vmatpush1.bf16.msra.mxu0 0
        %6728 = vmatprep.subr.bf16.mxu0 0
        %6729 = vmatpush1.bf16.msra.mxu0 0
        %6730 = vmatprep.subr.bf16.mxu0 0
        %6731 = vmatpush1.bf16.msra.mxu0 0
        %6732 = vmatprep.subr.bf16.mxu0 0
        %6733 = vmatpush1.bf16.msra.mxu0 0
        %6734 = vmatprep.mubr.bf16.mxu0 0
        %6735 = vmatmul.mubr.bf16.gmra.mrb[0].mxu0 %v6437
        %v6736 = vpop.f32.mrb[0].mxu0
        %v6737 = vadd.f32 %v6569, %v6736
        %v6738 = vpop.f32.mrb[0].mxu0
        %v6739 = vpop.f32.mrb[0].mxu0
        %v6740 = vadd.f32 %v6572, %v6739
        %v6741 = vpop.f32.mrb[0].mxu0
        %6742 = vmatprep.mubr.bf16.mxu0 0
        %6743 = vmatmul.mubr.bf16.gmra.mrb[0].mxu0 %v6438
        %v6744 = vpop.f32.mrb[0].mxu0
        %v6745 = vadd.f32 %v6577, %v6744
        %v6746 = vpop.f32.mrb[0].mxu0
        %v6747 = vpop.f32.mrb[0].mxu0
        %v6748 = vadd.f32 %v6580, %v6747
        %v6749 = vpop.f32.mrb[0].mxu0
        %6750 = vmatprep.mubr.bf16.mxu0 0
        %6751 = vmatmul.mubr.bf16.gmra.mrb[0].mxu0 %v6439
        %v6752 = vpop.f32.mrb[0].mxu0
        %v6753 = vadd.f32 %v6585, %v6752
        %v6754 = vpop.f32.mrb[0].mxu0
        %v6755 = vpop.f32.mrb[0].mxu0
        %v6756 = vadd.f32 %v6588, %v6755
        %v6757 = vpop.f32.mrb[0].mxu0
        %6758 = vmatprep.mubr.bf16.mxu0 0
        %6759 = vmatmul.mubr.bf16.gmra.mrb[0].mxu0 %v6440
        %v6760 = vpop.f32.mrb[0].mxu0
        %v6761 = vadd.f32 %v6593, %v6760
        %v6762 = vpop.f32.mrb[0].mxu0
        %v6763 = vpop.f32.mrb[0].mxu0
        %v6764 = vadd.f32 %v6596, %v6763
        %v6765 = vpop.f32.mrb[0].mxu0
        %6766 = vmatprep.mubr.bf16.mxu0 0
        %6767 = vmatmul.mubr.bf16.gmra.mrb[0].mxu0 %v6441
        %v6768 = vpop.f32.mrb[0].mxu0
        %v6769 = vadd.f32 %v6601, %v6768
        %v6770 = vpop.f32.mrb[0].mxu0
        %v6771 = vpop.f32.mrb[0].mxu0
        %v6772 = vadd.f32 %v6604, %v6771
        %v6773 = vpop.f32.mrb[0].mxu0
        %6774 = vmatprep.mubr.bf16.mxu0 0
        %6775 = vmatmul.mubr.bf16.gmra.mrb[0].mxu0 %v6442
        %v6776 = vpop.f32.mrb[0].mxu0
        %v6777 = vadd.f32 %v6609, %v6776
        %v6778 = vpop.f32.mrb[0].mxu0
        %v6779 = vpop.f32.mrb[0].mxu0
        %v6780 = vadd.f32 %v6612, %v6779
        %v6781 = vpop.f32.mrb[0].mxu0
        %6782 = vmatprep.mubr.bf16.mxu0 0
        %6783 = vmatmul.mubr.bf16.gmra.mrb[0].mxu0 %v6443
        %v6784 = vpop.f32.mrb[0].mxu0
        %v6785 = vadd.f32 %v6617, %v6784
        %v6786 = vpop.f32.mrb[0].mxu0
        %v6787 = vpop.f32.mrb[0].mxu0
        %v6788 = vadd.f32 %v6620, %v6787
        %v6789 = vpop.f32.mrb[0].mxu0
        %6790 = vmatprep.mubr.bf16.mxu0 0
        %6791 = vmatmul.mubr.bf16.gmra.mrb[0].mxu0 %v6444
        %v6792 = vpop.f32.mrb[0].mxu0
        %v6793 = vadd.f32 %v6625, %v6792
        %v6794 = vpop.f32.mrb[0].mxu0
        %v6795 = vpop.f32.mrb[0].mxu0
        %v6796 = vadd.f32 %v6628, %v6795
        %v6797 = vpop.f32.mrb[0].mxu0
        %6798 = vmatprep.mubr.bf16.mxu0 0
        %6799 = vmatmul.mubr.bf16.gmra.mrb[0].mxu0 %v6445
        %v6800 = vpop.f32.mrb[0].mxu0
        %v6801 = vadd.f32 %v6633, %v6800
        %v6802 = vpop.f32.mrb[0].mxu0
        %v6803 = vpop.f32.mrb[0].mxu0
        %v6804 = vadd.f32 %v6636, %v6803
        %v6805 = vpop.f32.mrb[0].mxu0
        %6806 = vmatprep.mubr.bf16.mxu0 0
        %6807 = vmatmul.mubr.bf16.gmra.mrb[0].mxu0 %v6446
        %v6808 = vpop.f32.mrb[0].mxu0
        %v6809 = vadd.f32 %v6641, %v6808
        %v6810 = vpop.f32.mrb[0].mxu0
        %v6811 = vpop.f32.mrb[0].mxu0
        %v6812 = vadd.f32 %v6644, %v6811
        %v6813 = vpop.f32.mrb[0].mxu0
        %6814 = vmatprep.mubr.bf16.mxu0 0
        %6815 = vmatmul.mubr.bf16.gmra.mrb[0].mxu0 %v6447
        %v6816 = vpop.f32.mrb[0].mxu0
        %v6817 = vadd.f32 %v6649, %v6816
        %v6818 = vpop.f32.mrb[0].mxu0
        %v6819 = vpop.f32.mrb[0].mxu0
        %v6820 = vpop.f32.mrb[0].mxu0
        %6821 = vdwg.mxu0
        %v6822 = vld [vmem:[#allocation4 + $0x20] sm:$0xff]
        %v6823 = vld [vmem:[#allocation4 + $0x28] sm:$0xff]
        %v6824 = vld [vmem:[#allocation4 + $0x30] sm:$0xff]
        %v6825 = vld [vmem:[#allocation4 + $0x38] sm:$0xff]
        %v6826 = vld [vmem:[#allocation4 + $0x40] sm:$0xff]
        %v6827 = vld [vmem:[#allocation4 + $0x48] sm:$0xff]
        %v6828 = vld [vmem:[#allocation4 + $0x50] sm:$0xff]
        %v6829 = vld [vmem:[#allocation4 + $0x58] sm:$0xff]
        %v6830 = vld [vmem:[#allocation4 + $0x60] sm:$0xff]
        %v6831 = vld [vmem:[#allocation4 + $0x68] sm:$0xff]
        %v6832 = vld [vmem:[#allocation4 + $0x70] sm:$0xff]
        %v6833 = vld [vmem:[#allocation4 + $0x78] sm:$0xff]
        %v6834 = vld [vmem:[#allocation4 + $0x80] sm:$0xff]
        %v6835 = vld [vmem:[#allocation4 + $0x88] sm:$0xff]
        %v6836 = vld [vmem:[#allocation4 + $0x90] sm:$0xff]
        %v6837 = vld [vmem:[#allocation4 + $0x98] sm:$0xff]
        %v6838 = vld [vmem:[#allocation4 + $0xa0] sm:$0xff]
        %v6839 = vld [vmem:[#allocation4 + $0xa8] sm:$0xff]
        %v6840 = vld [vmem:[#allocation4 + $0xb0] sm:$0xff]
        %v6841 = vld [vmem:[#allocation4 + $0xb8] sm:$0xff]
        %v6842 = vld [vmem:[#allocation4 + $0xc0] sm:$0x1]
        %v6843 = vpack.c.bf16 %v6823, %v6822
        %v6844 = vpack.c.bf16 %v6825, %v6824
        %v6845 = vpack.c.bf16 %v6827, %v6826
        %v6846 = vpack.c.bf16 %v6829, %v6828
        %v6847 = vpack.c.bf16 %v6831, %v6830
        %v6848 = vpack.c.bf16 %v6833, %v6832
        %v6849 = vpack.c.bf16 %v6835, %v6834
        %v6850 = vpack.c.bf16 %v6837, %v6836
        %v6851 = vpack.c.bf16 %v6839, %v6838
        %v6852 = vpack.c.bf16 %v6841, %v6840
        %v6853 = vpack.c.bf16 %v6842, %v6842
        %s6854 = scalar_lea.vmem [#allocation14], 128
        %v6855 = vld [vmem:[%s6854] sm:$0xf]
        %v6856 = vld [vmem:[%s6854 + $0x4] sm:$0xf]
        %v6857 = vld [vmem:[%s6854 + $0x8] sm:$0xf]
        %v6858 = vld [vmem:[%s6854 + $0xc] sm:$0xf]
        %v6859 = vld [vmem:[%s6854 + $0x10] sm:$0xf]
        %v6860 = vld [vmem:[%s6854 + $0x14] sm:$0xf]
        %v6861 = vld [vmem:[%s6854 + $0x18] sm:$0xf]
        %v6862 = vld [vmem:[%s6854 + $0x1c] sm:$0xf]
        %v6863 = vld [vmem:[%s6854 + $0x20] sm:$0xf]
        %v6864 = vld [vmem:[%s6854 + $0x24] sm:$0xf]
        %v6865 = vld [vmem:[%s6854 + $0x28] sm:$0xf]
        %v6866 = vld [vmem:[%s6854 + $0x2c] sm:$0xf]
        %v6867 = vld [vmem:[%s6854 + $0x30] sm:$0xf]
        %v6868 = vld [vmem:[%s6854 + $0x34] sm:$0xf]
        %v6869 = vld [vmem:[%s6854 + $0x38] sm:$0xf]
        %v6870 = vld [vmem:[%s6854 + $0x3c] sm:$0xf]
        %v6887 = vunpack.c.l.b16 %v6855
        %v6888 = vunpack.c.l.b16 %v6856
        %v6889 = vunpack.c.l.b16 %v6857
        %v6890 = vunpack.c.l.b16 %v6858
        %v6891 = vunpack.c.l.b16 %v6859
        %v6892 = vunpack.c.l.b16 %v6860
        %v6893 = vunpack.c.l.b16 %v6861
        %v6894 = vunpack.c.l.b16 %v6862
        %v6895 = vunpack.c.l.b16 %v6863
        %v6896 = vunpack.c.l.b16 %v6864
        %v6897 = vunpack.c.l.b16 %v6865
        %v6898 = vunpack.c.l.b16 %v6866
        %v6899 = vunpack.c.l.b16 %v6867
        %v6900 = vunpack.c.l.b16 %v6868
        %v6901 = vunpack.c.l.b16 %v6869
        %v6902 = vunpack.c.l.b16 %v6870
        %v6903 = vpack.c.b16 %v6888, %v6887
        %v6904 = vpack.c.b16 %v6890, %v6889
        %v6905 = vpack.c.b16 %v6892, %v6891
        %v6906 = vpack.c.b16 %v6894, %v6893
        %v6907 = vpack.c.b16 %v6896, %v6895
        %v6908 = vpack.c.b16 %v6898, %v6897
        %v6909 = vpack.c.b16 %v6900, %v6899
        %v6910 = vpack.c.b16 %v6902, %v6901
        %6919 = vmatprep.subr.bf16.mxu0 0
        %6920 = vmatpush1.bf16.msra.mxu0 %v6903
        %6921 = vmatprep.subr.bf16.mxu0 0
        %6922 = vmatpush1.bf16.msra.mxu0 %v6904
        %6923 = vmatprep.subr.bf16.mxu0 0
        %6924 = vmatpush1.bf16.msra.mxu0 %v6905
        %6925 = vmatprep.subr.bf16.mxu0 0
        %6926 = vmatpush1.bf16.msra.mxu0 %v6906
        %6927 = vmatprep.subr.bf16.mxu0 0
        %6928 = vmatpush1.bf16.msra.mxu0 %v6907
        %6929 = vmatprep.subr.bf16.mxu0 0
        %6930 = vmatpush1.bf16.msra.mxu0 %v6908
        %6931 = vmatprep.subr.bf16.mxu0 0
        %6932 = vmatpush1.bf16.msra.mxu0 %v6909
        %6933 = vmatprep.subr.bf16.mxu0 0
        %6934 = vmatpush1.bf16.msra.mxu0 %v6910
        %6935 = vmatprep.subr.bf16.mxu0 0
        %6936 = vmatpush1.bf16.msra.mxu0 0
        %6937 = vmatprep.subr.bf16.mxu0 0
        %6938 = vmatpush1.bf16.msra.mxu0 0
        %6939 = vmatprep.subr.bf16.mxu0 0
        %6940 = vmatpush1.bf16.msra.mxu0 0
        %6941 = vmatprep.subr.bf16.mxu0 0
        %6942 = vmatpush1.bf16.msra.mxu0 0
        %6943 = vmatprep.subr.bf16.mxu0 0
        %6944 = vmatpush1.bf16.msra.mxu0 0
        %6945 = vmatprep.subr.bf16.mxu0 0
        %6946 = vmatpush1.bf16.msra.mxu0 0
        %6947 = vmatprep.subr.bf16.mxu0 0
        %6948 = vmatpush1.bf16.msra.mxu0 0
        %6949 = vmatprep.subr.bf16.mxu0 0
        %6950 = vmatpush1.bf16.msra.mxu0 0
        %6951 = vmatprep.mubr.bf16.mxu0 0
        %6952 = vmatmul.mubr.bf16.gmra.mrb[0].mxu0 %v6843
        %v6953 = vpop.f32.mrb[0].mxu0
        %v6954 = vadd.f32 0.0, %v6953
        %v6955 = vpop.f32.mrb[0].mxu0
        %v6956 = vpop.f32.mrb[0].mxu0
        %v6957 = vadd.f32 0.0, %v6956
        %v6958 = vpop.f32.mrb[0].mxu0
        %6959 = vmatprep.mubr.bf16.mxu0 0
        %6960 = vmatmul.mubr.bf16.gmra.mrb[0].mxu0 %v6844
        %v6961 = vpop.f32.mrb[0].mxu0
        %v6962 = vadd.f32 0.0, %v6961
        %v6963 = vpop.f32.mrb[0].mxu0
        %v6964 = vpop.f32.mrb[0].mxu0
        %v6965 = vadd.f32 0.0, %v6964
        %v6966 = vpop.f32.mrb[0].mxu0
        %6967 = vmatprep.mubr.bf16.mxu0 0
        %6968 = vmatmul.mubr.bf16.gmra.mrb[0].mxu0 %v6845
        %v6969 = vpop.f32.mrb[0].mxu0
        %v6970 = vadd.f32 0.0, %v6969
        %v6971 = vpop.f32.mrb[0].mxu0
        %v6972 = vpop.f32.mrb[0].mxu0
        %v6973 = vadd.f32 0.0, %v6972
        %v6974 = vpop.f32.mrb[0].mxu0
        %6975 = vmatprep.mubr.bf16.mxu0 0
        %6976 = vmatmul.mubr.bf16.gmra.mrb[0].mxu0 %v6846
        %v6977 = vpop.f32.mrb[0].mxu0
        %v6978 = vadd.f32 0.0, %v6977
        %v6979 = vpop.f32.mrb[0].mxu0
        %v6980 = vpop.f32.mrb[0].mxu0
        %v6981 = vadd.f32 0.0, %v6980
        %v6982 = vpop.f32.mrb[0].mxu0
        %6983 = vmatprep.mubr.bf16.mxu0 0
        %6984 = vmatmul.mubr.bf16.gmra.mrb[0].mxu0 %v6847
        %v6985 = vpop.f32.mrb[0].mxu0
        %v6986 = vadd.f32 0.0, %v6985
        %v6987 = vpop.f32.mrb[0].mxu0
        %v6988 = vpop.f32.mrb[0].mxu0
        %v6989 = vadd.f32 0.0, %v6988
        %v6990 = vpop.f32.mrb[0].mxu0
        %6991 = vmatprep.mubr.bf16.mxu0 0
        %6992 = vmatmul.mubr.bf16.gmra.mrb[0].mxu0 %v6848
        %v6993 = vpop.f32.mrb[0].mxu0
        %v6994 = vadd.f32 0.0, %v6993
        %v6995 = vpop.f32.mrb[0].mxu0
        %v6996 = vpop.f32.mrb[0].mxu0
        %v6997 = vadd.f32 0.0, %v6996
        %v6998 = vpop.f32.mrb[0].mxu0
        %6999 = vmatprep.mubr.bf16.mxu0 0
        %7000 = vmatmul.mubr.bf16.gmra.mrb[0].mxu0 %v6849
        %v7001 = vpop.f32.mrb[0].mxu0
        %v7002 = vadd.f32 0.0, %v7001
        %v7003 = vpop.f32.mrb[0].mxu0
        %v7004 = vpop.f32.mrb[0].mxu0
        %v7005 = vadd.f32 0.0, %v7004
        %v7006 = vpop.f32.mrb[0].mxu0
        %7007 = vmatprep.mubr.bf16.mxu0 0
        %7008 = vmatmul.mubr.bf16.gmra.mrb[0].mxu0 %v6850
        %v7009 = vpop.f32.mrb[0].mxu0
        %v7010 = vadd.f32 0.0, %v7009
        %v7011 = vpop.f32.mrb[0].mxu0
        %v7012 = vpop.f32.mrb[0].mxu0
        %v7013 = vadd.f32 0.0, %v7012
        %v7014 = vpop.f32.mrb[0].mxu0
        %7015 = vmatprep.mubr.bf16.mxu0 0
        %7016 = vmatmul.mubr.bf16.gmra.mrb[0].mxu0 %v6851
        %v7017 = vpop.f32.mrb[0].mxu0
        %v7018 = vadd.f32 0.0, %v7017
        %v7019 = vpop.f32.mrb[0].mxu0
        %v7020 = vpop.f32.mrb[0].mxu0
        %v7021 = vadd.f32 0.0, %v7020
        %v7022 = vpop.f32.mrb[0].mxu0
        %7023 = vmatprep.mubr.bf16.mxu0 0
        %7024 = vmatmul.mubr.bf16.gmra.mrb[0].mxu0 %v6852
        %v7025 = vpop.f32.mrb[0].mxu0
        %v7026 = vadd.f32 0.0, %v7025
        %v7027 = vpop.f32.mrb[0].mxu0
        %v7028 = vpop.f32.mrb[0].mxu0
        %v7029 = vadd.f32 0.0, %v7028
        %v7030 = vpop.f32.mrb[0].mxu0
        %7031 = vmatprep.mubr.bf16.mxu0 0
        %7032 = vmatmul.mubr.bf16.gmra.mrb[0].mxu0 %v6853
        %v7033 = vpop.f32.mrb[0].mxu0
        %v7034 = vadd.f32 0.0, %v7033
        %v7035 = vpop.f32.mrb[0].mxu0
        %v7036 = vpop.f32.mrb[0].mxu0
        %v7037 = vpop.f32.mrb[0].mxu0
        %7038 = vdwg.mxu0
        %v7039 = vadd.f32 %v6737, %v6954
        %v7040 = vadd.f32 %v6740, %v6957
        %v7041 = vadd.f32 %v6745, %v6962
        %v7042 = vadd.f32 %v6748, %v6965
        %v7043 = vadd.f32 %v6753, %v6970
        %v7044 = vadd.f32 %v6756, %v6973
        %v7045 = vadd.f32 %v6761, %v6978
        %v7046 = vadd.f32 %v6764, %v6981
        %v7047 = vadd.f32 %v6769, %v6986
        %v7048 = vadd.f32 %v6772, %v6989
        %v7049 = vadd.f32 %v6777, %v6994
        %v7050 = vadd.f32 %v6780, %v6997
        %v7051 = vadd.f32 %v6785, %v7002
        %v7052 = vadd.f32 %v6788, %v7005
        %v7053 = vadd.f32 %v6793, %v7010
        %v7054 = vadd.f32 %v6796, %v7013
        %v7055 = vadd.f32 %v6801, %v7018
        %v7056 = vadd.f32 %v6804, %v7021
        %v7057 = vadd.f32 %v6809, %v7026
        %v7058 = vadd.f32 %v6812, %v7029
        %v7059 = vadd.f32 %v6817, %v7034
        %v7060 = vld [vmem:[#allocation4 + $0x30] sm:$0xff]
        %v7061 = vld [vmem:[#allocation4 + $0x38] sm:$0xff]
        %v7062 = vld [vmem:[#allocation4 + $0x40] sm:$0xff]
        %v7063 = vld [vmem:[#allocation4 + $0x48] sm:$0xff]
        %v7064 = vld [vmem:[#allocation4 + $0x50] sm:$0xff]
        %v7065 = vld [vmem:[#allocation4 + $0x58] sm:$0xff]
        %v7066 = vld [vmem:[#allocation4 + $0x60] sm:$0xff]
        %v7067 = vld [vmem:[#allocation4 + $0x68] sm:$0xff]
        %v7068 = vld [vmem:[#allocation4 + $0x70] sm:$0xff]
        %v7069 = vld [vmem:[#allocation4 + $0x78] sm:$0xff]
        %v7070 = vld [vmem:[#allocation4 + $0x80] sm:$0xff]
        %v7071 = vld [vmem:[#allocation4 + $0x88] sm:$0xff]
        %v7072 = vld [vmem:[#allocation4 + $0x90] sm:$0xff]
        %v7073 = vld [vmem:[#allocation4 + $0x98] sm:$0xff]
        %v7074 = vld [vmem:[#allocation4 + $0xa0] sm:$0xff]
        %v7075 = vld [vmem:[#allocation4 + $0xa8] sm:$0xff]
        %v7076 = vld [vmem:[#allocation4 + $0xb0] sm:$0xff]
        %v7077 = vld [vmem:[#allocation4 + $0xb8] sm:$0xff]
        %v7078 = vld [vmem:[#allocation4 + $0xc0] sm:$0xff]
        %v7079 = vld [vmem:[#allocation4 + $0xc8] sm:$0xff]
        %v7080 = vld [vmem:[#allocation4 + $0xd0] sm:$0x1]
        %v7081 = vpack.c.bf16 %v7061, %v7060
        %v7082 = vpack.c.bf16 %v7063, %v7062
        %v7083 = vpack.c.bf16 %v7065, %v7064
        %v7084 = vpack.c.bf16 %v7067, %v7066
        %v7085 = vpack.c.bf16 %v7069, %v7068
        %v7086 = vpack.c.bf16 %v7071, %v7070
        %v7087 = vpack.c.bf16 %v7073, %v7072
        %v7088 = vpack.c.bf16 %v7075, %v7074
        %v7089 = vpack.c.bf16 %v7077, %v7076
        %v7090 = vpack.c.bf16 %v7079, %v7078
        %v7091 = vpack.c.bf16 %v7080, %v7080
        %s7092 = scalar_lea.vmem [#allocation14], 192
        %v7093 = vld [vmem:[%s7092] sm:$0xf]
        %v7094 = vld [vmem:[%s7092 + $0x4] sm:$0xf]
        %v7095 = vld [vmem:[%s7092 + $0x8] sm:$0xf]
        %v7096 = vld [vmem:[%s7092 + $0xc] sm:$0xf]
        %v7097 = vld [vmem:[%s7092 + $0x10] sm:$0xf]
        %v7098 = vld [vmem:[%s7092 + $0x14] sm:$0xf]
        %v7099 = vld [vmem:[%s7092 + $0x18] sm:$0xf]
        %v7100 = vld [vmem:[%s7092 + $0x1c] sm:$0xf]
        %v7101 = vld [vmem:[%s7092 + $0x20] sm:$0xf]
        %v7102 = vld [vmem:[%s7092 + $0x24] sm:$0xf]
        %v7103 = vld [vmem:[%s7092 + $0x28] sm:$0xf]
        %v7104 = vld [vmem:[%s7092 + $0x2c] sm:$0xf]
        %v7105 = vld [vmem:[%s7092 + $0x30] sm:$0xf]
        %v7106 = vld [vmem:[%s7092 + $0x34] sm:$0xf]
        %v7107 = vld [vmem:[%s7092 + $0x38] sm:$0xf]
        %v7108 = vld [vmem:[%s7092 + $0x3c] sm:$0xf]
        %v7125 = vunpack.c.l.b16 %v7093
        %v7126 = vunpack.c.l.b16 %v7094
        %v7127 = vunpack.c.l.b16 %v7095
        %v7128 = vunpack.c.l.b16 %v7096
        %v7129 = vunpack.c.l.b16 %v7097
        %v7130 = vunpack.c.l.b16 %v7098
        %v7131 = vunpack.c.l.b16 %v7099
        %v7132 = vunpack.c.l.b16 %v7100
        %v7133 = vunpack.c.l.b16 %v7101
        %v7134 = vunpack.c.l.b16 %v7102
        %v7135 = vunpack.c.l.b16 %v7103
        %v7136 = vunpack.c.l.b16 %v7104
        %v7137 = vunpack.c.l.b16 %v7105
        %v7138 = vunpack.c.l.b16 %v7106
        %v7139 = vunpack.c.l.b16 %v7107
        %v7140 = vunpack.c.l.b16 %v7108
        %v7141 = vpack.c.b16 %v7126, %v7125
        %v7142 = vpack.c.b16 %v7128, %v7127
        %v7143 = vpack.c.b16 %v7130, %v7129
        %v7144 = vpack.c.b16 %v7132, %v7131
        %v7145 = vpack.c.b16 %v7134, %v7133
        %v7146 = vpack.c.b16 %v7136, %v7135
        %v7147 = vpack.c.b16 %v7138, %v7137
        %v7148 = vpack.c.b16 %v7140, %v7139
        %7157 = vmatprep.subr.bf16.mxu0 0
        %7158 = vmatpush1.bf16.msra.mxu0 %v7141
        %7159 = vmatprep.subr.bf16.mxu0 0
        %7160 = vmatpush1.bf16.msra.mxu0 %v7142
        %7161 = vmatprep.subr.bf16.mxu0 0
        %7162 = vmatpush1.bf16.msra.mxu0 %v7143
        %7163 = vmatprep.subr.bf16.mxu0 0
        %7164 = vmatpush1.bf16.msra.mxu0 %v7144
        %7165 = vmatprep.subr.bf16.mxu0 0
        %7166 = vmatpush1.bf16.msra.mxu0 %v7145
        %7167 = vmatprep.subr.bf16.mxu0 0
        %7168 = vmatpush1.bf16.msra.mxu0 %v7146
        %7169 = vmatprep.subr.bf16.mxu0 0
        %7170 = vmatpush1.bf16.msra.mxu0 %v7147
        %7171 = vmatprep.subr.bf16.mxu0 0
        %7172 = vmatpush1.bf16.msra.mxu0 %v7148
        %7173 = vmatprep.subr.bf16.mxu0 0
        %7174 = vmatpush1.bf16.msra.mxu0 0
        %7175 = vmatprep.subr.bf16.mxu0 0
        %7176 = vmatpush1.bf16.msra.mxu0 0
        %7177 = vmatprep.subr.bf16.mxu0 0
        %7178 = vmatpush1.bf16.msra.mxu0 0
        %7179 = vmatprep.subr.bf16.mxu0 0
        %7180 = vmatpush1.bf16.msra.mxu0 0
        %7181 = vmatprep.subr.bf16.mxu0 0
        %7182 = vmatpush1.bf16.msra.mxu0 0
        %7183 = vmatprep.subr.bf16.mxu0 0
        %7184 = vmatpush1.bf16.msra.mxu0 0
        %7185 = vmatprep.subr.bf16.mxu0 0
        %7186 = vmatpush1.bf16.msra.mxu0 0
        %7187 = vmatprep.subr.bf16.mxu0 0
        %7188 = vmatpush1.bf16.msra.mxu0 0
        %7189 = vmatprep.mubr.bf16.mxu0 0
        %7190 = vmatmul.mubr.bf16.gmra.mrb[0].mxu0 %v7081
        %v7191 = vpop.f32.mrb[0].mxu0
        %v7192 = vadd.f32 0.0, %v7191
        %v7193 = vpop.f32.mrb[0].mxu0
        %v7194 = vpop.f32.mrb[0].mxu0
        %v7195 = vadd.f32 0.0, %v7194
        %v7196 = vpop.f32.mrb[0].mxu0
        %7197 = vmatprep.mubr.bf16.mxu0 0
        %7198 = vmatmul.mubr.bf16.gmra.mrb[0].mxu0 %v7082
        %v7199 = vpop.f32.mrb[0].mxu0
        %v7200 = vadd.f32 0.0, %v7199
        %v7201 = vpop.f32.mrb[0].mxu0
        %v7202 = vpop.f32.mrb[0].mxu0
        %v7203 = vadd.f32 0.0, %v7202
        %v7204 = vpop.f32.mrb[0].mxu0
        %7205 = vmatprep.mubr.bf16.mxu0 0
        %7206 = vmatmul.mubr.bf16.gmra.mrb[0].mxu0 %v7083
        %v7207 = vpop.f32.mrb[0].mxu0
        %v7208 = vadd.f32 0.0, %v7207
        %v7209 = vpop.f32.mrb[0].mxu0
        %v7210 = vpop.f32.mrb[0].mxu0
        %v7211 = vadd.f32 0.0, %v7210
        %v7212 = vpop.f32.mrb[0].mxu0
        %7213 = vmatprep.mubr.bf16.mxu0 0
        %7214 = vmatmul.mubr.bf16.gmra.mrb[0].mxu0 %v7084
        %v7215 = vpop.f32.mrb[0].mxu0
        %v7216 = vadd.f32 0.0, %v7215
        %v7217 = vpop.f32.mrb[0].mxu0
        %v7218 = vpop.f32.mrb[0].mxu0
        %v7219 = vadd.f32 0.0, %v7218
        %v7220 = vpop.f32.mrb[0].mxu0
        %7221 = vmatprep.mubr.bf16.mxu0 0
        %7222 = vmatmul.mubr.bf16.gmra.mrb[0].mxu0 %v7085
        %v7223 = vpop.f32.mrb[0].mxu0
        %v7224 = vadd.f32 0.0, %v7223
        %v7225 = vpop.f32.mrb[0].mxu0
        %v7226 = vpop.f32.mrb[0].mxu0
        %v7227 = vadd.f32 0.0, %v7226
        %v7228 = vpop.f32.mrb[0].mxu0
        %7229 = vmatprep.mubr.bf16.mxu0 0
        %7230 = vmatmul.mubr.bf16.gmra.mrb[0].mxu0 %v7086
        %v7231 = vpop.f32.mrb[0].mxu0
        %v7232 = vadd.f32 0.0, %v7231
        %v7233 = vpop.f32.mrb[0].mxu0
        %v7234 = vpop.f32.mrb[0].mxu0
        %v7235 = vadd.f32 0.0, %v7234
        %v7236 = vpop.f32.mrb[0].mxu0
        %7237 = vmatprep.mubr.bf16.mxu0 0
        %7238 = vmatmul.mubr.bf16.gmra.mrb[0].mxu0 %v7087
        %v7239 = vpop.f32.mrb[0].mxu0
        %v7240 = vadd.f32 0.0, %v7239
        %v7241 = vpop.f32.mrb[0].mxu0
        %v7242 = vpop.f32.mrb[0].mxu0
        %v7243 = vadd.f32 0.0, %v7242
        %v7244 = vpop.f32.mrb[0].mxu0
        %7245 = vmatprep.mubr.bf16.mxu0 0
        %7246 = vmatmul.mubr.bf16.gmra.mrb[0].mxu0 %v7088
        %v7247 = vpop.f32.mrb[0].mxu0
        %v7248 = vadd.f32 0.0, %v7247
        %v7249 = vpop.f32.mrb[0].mxu0
        %v7250 = vpop.f32.mrb[0].mxu0
        %v7251 = vadd.f32 0.0, %v7250
        %v7252 = vpop.f32.mrb[0].mxu0
        %7253 = vmatprep.mubr.bf16.mxu0 0
        %7254 = vmatmul.mubr.bf16.gmra.mrb[0].mxu0 %v7089
        %v7255 = vpop.f32.mrb[0].mxu0
        %v7256 = vadd.f32 0.0, %v7255
        %v7257 = vpop.f32.mrb[0].mxu0
        %v7258 = vpop.f32.mrb[0].mxu0
        %v7259 = vadd.f32 0.0, %v7258
        %v7260 = vpop.f32.mrb[0].mxu0
        %7261 = vmatprep.mubr.bf16.mxu0 0
        %7262 = vmatmul.mubr.bf16.gmra.mrb[0].mxu0 %v7090
        %v7263 = vpop.f32.mrb[0].mxu0
        %v7264 = vadd.f32 0.0, %v7263
        %v7265 = vpop.f32.mrb[0].mxu0
        %v7266 = vpop.f32.mrb[0].mxu0
        %v7267 = vadd.f32 0.0, %v7266
        %v7268 = vpop.f32.mrb[0].mxu0
        %7269 = vmatprep.mubr.bf16.mxu0 0
        %7270 = vmatmul.mubr.bf16.gmra.mrb[0].mxu0 %v7091
        %v7271 = vpop.f32.mrb[0].mxu0
        %v7272 = vadd.f32 0.0, %v7271
        %v7273 = vpop.f32.mrb[0].mxu0
        %v7274 = vpop.f32.mrb[0].mxu0
        %v7275 = vpop.f32.mrb[0].mxu0
        %7276 = vdwg.mxu0
        %v7277 = vadd.f32 %v7039, %v7192
        %v7278 = vadd.f32 %v7040, %v7195
        %v7279 = vadd.f32 %v7041, %v7200
        %v7280 = vadd.f32 %v7042, %v7203
        %v7281 = vadd.f32 %v7043, %v7208
        %v7282 = vadd.f32 %v7044, %v7211
        %v7283 = vadd.f32 %v7045, %v7216
        %v7284 = vadd.f32 %v7046, %v7219
        %v7285 = vadd.f32 %v7047, %v7224
        %v7286 = vadd.f32 %v7048, %v7227
        %v7287 = vadd.f32 %v7049, %v7232
        %v7288 = vadd.f32 %v7050, %v7235
        %v7289 = vadd.f32 %v7051, %v7240
        %v7290 = vadd.f32 %v7052, %v7243
        %v7291 = vadd.f32 %v7053, %v7248
        %v7292 = vadd.f32 %v7054, %v7251
        %v7293 = vadd.f32 %v7055, %v7256
        %v7294 = vadd.f32 %v7056, %v7259
        %v7295 = vadd.f32 %v7057, %v7264
        %v7296 = vadd.f32 %v7058, %v7267
        %v7297 = vadd.f32 %v7059, %v7272
        %v7298 = vld [vmem:[%s13] sm:$0x1]
        %v7299 = vlaneseq
        %v7300 = vshrl.u32 %v7299, 7
        %v7301 = vsub.s32 0, %v7300
        %v7302 = vrot.slane %v7298, %v7301
        %v7303 = vadd.f32 %v7277, %v7302
        %v7304 = vadd.f32 %v7278, %v7302
        %v7305 = vadd.f32 %v7279, %v7302
        %v7306 = vadd.f32 %v7280, %v7302
        %v7307 = vadd.f32 %v7281, %v7302
        %v7308 = vadd.f32 %v7282, %v7302
        %v7309 = vadd.f32 %v7283, %v7302
        %v7310 = vadd.f32 %v7284, %v7302
        %v7311 = vadd.f32 %v7285, %v7302
        %v7312 = vadd.f32 %v7286, %v7302
        %v7313 = vadd.f32 %v7287, %v7302
        %v7314 = vadd.f32 %v7288, %v7302
        %v7315 = vadd.f32 %v7289, %v7302
        %v7316 = vadd.f32 %v7290, %v7302
        %v7317 = vadd.f32 %v7291, %v7302
        %v7318 = vadd.f32 %v7292, %v7302
        %v7319 = vadd.f32 %v7293, %v7302
        %v7320 = vadd.f32 %v7294, %v7302
        %v7321 = vadd.f32 %v7295, %v7302
        %v7322 = vadd.f32 %v7296, %v7302
        %v7323 = vadd.f32 %v7297, %v7302
        %v7324 = vmax.f32 %v7303, 0.0
        %v7325 = vmax.f32 %v7304, 0.0
        %v7326 = vmax.f32 %v7305, 0.0
        %v7327 = vmax.f32 %v7306, 0.0
        %v7328 = vmax.f32 %v7307, 0.0
        %v7329 = vmax.f32 %v7308, 0.0
        %v7330 = vmax.f32 %v7309, 0.0
        %v7331 = vmax.f32 %v7310, 0.0
        %v7332 = vmax.f32 %v7311, 0.0
        %v7333 = vmax.f32 %v7312, 0.0
        %v7334 = vmax.f32 %v7313, 0.0
        %v7335 = vmax.f32 %v7314, 0.0
        %v7336 = vmax.f32 %v7315, 0.0
        %v7337 = vmax.f32 %v7316, 0.0
        %v7338 = vmax.f32 %v7317, 0.0
        %v7339 = vmax.f32 %v7318, 0.0
        %v7340 = vmax.f32 %v7319, 0.0
        %v7341 = vmax.f32 %v7320, 0.0
        %v7342 = vmax.f32 %v7321, 0.0
        %v7343 = vmax.f32 %v7322, 0.0
        %v7344 = vmax.f32 %v7323, 0.0
        %v7345 = vld [vmem:[%s13 + $0x1] sm:$0x1]
        %v7346 = vlaneseq
        %v7347 = vshrl.u32 %v7346, 7
        %v7348 = vsub.s32 0, %v7347
        %v7349 = vrot.slane %v7345, %v7348
        %v7350 = vmul.f32 %v7324, %v7349
        %v7351 = vmul.f32 %v7325, %v7349
        %v7352 = vmul.f32 %v7326, %v7349
        %v7353 = vmul.f32 %v7327, %v7349
        %v7354 = vmul.f32 %v7328, %v7349
        %v7355 = vmul.f32 %v7329, %v7349
        %v7356 = vmul.f32 %v7330, %v7349
        %v7357 = vmul.f32 %v7331, %v7349
        %v7358 = vmul.f32 %v7332, %v7349
        %v7359 = vmul.f32 %v7333, %v7349
        %v7360 = vmul.f32 %v7334, %v7349
        %v7361 = vmul.f32 %v7335, %v7349
        %v7362 = vmul.f32 %v7336, %v7349
        %v7363 = vmul.f32 %v7337, %v7349
        %v7364 = vmul.f32 %v7338, %v7349
        %v7365 = vmul.f32 %v7339, %v7349
        %v7366 = vmul.f32 %v7340, %v7349
        %v7367 = vmul.f32 %v7341, %v7349
        %v7368 = vmul.f32 %v7342, %v7349
        %v7369 = vmul.f32 %v7343, %v7349
        %v7370 = vmul.f32 %v7344, %v7349
        %v7371 = vld [vmem:[%s13 + $0x2] sm:$0x1]
        %v7372 = vlaneseq
        %v7373 = vshrl.u32 %v7372, 7
        %v7374 = vsub.s32 0, %v7373
        %v7375 = vrot.slane %v7371, %v7374
        %v7376 = vadd.f32 %v7350, %v7375
        %v7377 = vadd.f32 %v7351, %v7375
        %v7378 = vadd.f32 %v7352, %v7375
        %v7379 = vadd.f32 %v7353, %v7375
        %v7380 = vadd.f32 %v7354, %v7375
        %v7381 = vadd.f32 %v7355, %v7375
        %v7382 = vadd.f32 %v7356, %v7375
        %v7383 = vadd.f32 %v7357, %v7375
        %v7384 = vadd.f32 %v7358, %v7375
        %v7385 = vadd.f32 %v7359, %v7375
        %v7386 = vadd.f32 %v7360, %v7375
        %v7387 = vadd.f32 %v7361, %v7375
        %v7388 = vadd.f32 %v7362, %v7375
        %v7389 = vadd.f32 %v7363, %v7375
        %v7390 = vadd.f32 %v7364, %v7375
        %v7391 = vadd.f32 %v7365, %v7375
        %v7392 = vadd.f32 %v7366, %v7375
        %v7393 = vadd.f32 %v7367, %v7375
        %v7394 = vadd.f32 %v7368, %v7375
        %v7395 = vadd.f32 %v7369, %v7375
        %v7396 = vadd.f32 %v7370, %v7375
        %7397 = vst [vmem:[#allocation5] sm:$0xff] %v7376
        %7398 = vst [vmem:[#allocation5 + $0x8] sm:$0xff] %v7377
        %7399 = vst [vmem:[#allocation5 + $0x10] sm:$0xff] %v7378
        %7400 = vst [vmem:[#allocation5 + $0x18] sm:$0xff] %v7379
        %7401 = vst [vmem:[#allocation5 + $0x20] sm:$0xff] %v7380
        %7402 = vst [vmem:[#allocation5 + $0x28] sm:$0xff] %v7381
        %7403 = vst [vmem:[#allocation5 + $0x30] sm:$0xff] %v7382
        %7404 = vst [vmem:[#allocation5 + $0x38] sm:$0xff] %v7383
        %7405 = vst [vmem:[#allocation5 + $0x40] sm:$0xff] %v7384
        %7406 = vst [vmem:[#allocation5 + $0x48] sm:$0xff] %v7385
        %7407 = vst [vmem:[#allocation5 + $0x50] sm:$0xff] %v7386
        %7408 = vst [vmem:[#allocation5 + $0x58] sm:$0xff] %v7387
        %7409 = vst [vmem:[#allocation5 + $0x60] sm:$0xff] %v7388
        %7410 = vst [vmem:[#allocation5 + $0x68] sm:$0xff] %v7389
        %7411 = vst [vmem:[#allocation5 + $0x70] sm:$0xff] %v7390
        %7412 = vst [vmem:[#allocation5 + $0x78] sm:$0xff] %v7391
        %7413 = vst [vmem:[#allocation5 + $0x80] sm:$0xff] %v7392
        %7414 = vst [vmem:[#allocation5 + $0x88] sm:$0xff] %v7393
        %7415 = vst [vmem:[#allocation5 + $0x90] sm:$0xff] %v7394
        %7416 = vst [vmem:[#allocation5 + $0x98] sm:$0xff] %v7395
        %7417 = vst [vmem:[#allocation5 + $0xa0] sm:$0x1] %v7396
        %v7418 = vld [vmem:[#allocation5] sm:$0xff]
        %v7419 = vld [vmem:[#allocation5 + $0x8] sm:$0xff]
        %v7420 = vld [vmem:[#allocation5 + $0x10] sm:$0xff]
        %v7421 = vld [vmem:[#allocation5 + $0x18] sm:$0xff]
        %v7422 = vld [vmem:[#allocation5 + $0x20] sm:$0xff]
        %v7423 = vld [vmem:[#allocation5 + $0x28] sm:$0xff]
        %v7424 = vld [vmem:[#allocation5 + $0x30] sm:$0xff]
        %v7425 = vld [vmem:[#allocation5 + $0x38] sm:$0xff]
        %v7426 = vld [vmem:[#allocation5 + $0x40] sm:$0x1]
        %v7427 = vpack.c.bf16 %v7419, %v7418
        %v7428 = vpack.c.bf16 %v7421, %v7420
        %v7429 = vpack.c.bf16 %v7423, %v7422
        %v7430 = vpack.c.bf16 %v7425, %v7424
        %v7431 = vpack.c.bf16 %v7426, %v7426
        %v7432 = vld [vmem:[#allocation15] sm:$0xf]
        %v7433 = vld [vmem:[#allocation15 + $0x4] sm:$0xf]
        %v7434 = vld [vmem:[#allocation15 + $0x8] sm:$0xf]
        %v7435 = vld [vmem:[#allocation15 + $0xc] sm:$0xf]
        %v7436 = vld [vmem:[#allocation15 + $0x10] sm:$0xf]
        %v7437 = vld [vmem:[#allocation15 + $0x14] sm:$0xf]
        %v7438 = vld [vmem:[#allocation15 + $0x18] sm:$0xf]
        %v7439 = vld [vmem:[#allocation15 + $0x1c] sm:$0xf]
        %v7440 = vld [vmem:[#allocation15 + $0x20] sm:$0xf]
        %v7441 = vld [vmem:[#allocation15 + $0x24] sm:$0xf]
        %v7442 = vld [vmem:[#allocation15 + $0x28] sm:$0xf]
        %v7443 = vld [vmem:[#allocation15 + $0x2c] sm:$0xf]
        %v7444 = vld [vmem:[#allocation15 + $0x30] sm:$0xf]
        %v7445 = vld [vmem:[#allocation15 + $0x34] sm:$0xf]
        %v7446 = vld [vmem:[#allocation15 + $0x38] sm:$0xf]
        %v7447 = vld [vmem:[#allocation15 + $0x3c] sm:$0xf]
        %v7448 = vld [vmem:[#allocation5 + $0x40] sm:$0xff]
        %v7449 = vld [vmem:[#allocation5 + $0x48] sm:$0xff]
        %v7450 = vld [vmem:[#allocation5 + $0x50] sm:$0xff]
        %v7451 = vld [vmem:[#allocation5 + $0x58] sm:$0xff]
        %v7452 = vld [vmem:[#allocation5 + $0x60] sm:$0x1]
        %v7453 = vpack.c.bf16 %v7449, %v7448
        %v7454 = vpack.c.bf16 %v7451, %v7450
        %v7455 = vpack.c.bf16 %v7452, %v7452
        %s7456 = scalar_lea.vmem [#allocation15], 64
        %v7457 = vld [vmem:[%s7456] sm:$0xf]
        %v7458 = vld [vmem:[%s7456 + $0x4] sm:$0xf]
        %v7459 = vld [vmem:[%s7456 + $0x8] sm:$0xf]
        %v7460 = vld [vmem:[%s7456 + $0xc] sm:$0xf]
        %v7461 = vld [vmem:[%s7456 + $0x10] sm:$0xf]
        %v7462 = vld [vmem:[%s7456 + $0x14] sm:$0xf]
        %v7463 = vld [vmem:[%s7456 + $0x18] sm:$0xf]
        %v7464 = vld [vmem:[%s7456 + $0x1c] sm:$0xf]
        %v7465 = vld [vmem:[%s7456 + $0x20] sm:$0xf]
        %v7466 = vld [vmem:[%s7456 + $0x24] sm:$0xf]
        %v7467 = vld [vmem:[%s7456 + $0x28] sm:$0xf]
        %v7468 = vld [vmem:[%s7456 + $0x2c] sm:$0xf]
        %v7469 = vld [vmem:[%s7456 + $0x30] sm:$0xf]
        %v7470 = vld [vmem:[%s7456 + $0x34] sm:$0xf]
        %v7471 = vld [vmem:[%s7456 + $0x38] sm:$0xf]
        %v7472 = vld [vmem:[%s7456 + $0x3c] sm:$0xf]
        %v7489 = vunpack.c.l.b16 %v7457
        %v7490 = vunpack.c.l.b16 %v7458
        %v7491 = vunpack.c.l.b16 %v7459
        %v7492 = vunpack.c.l.b16 %v7460
        %v7493 = vunpack.c.l.b16 %v7461
        %v7494 = vunpack.c.l.b16 %v7462
        %v7495 = vunpack.c.l.b16 %v7463
        %v7496 = vunpack.c.l.b16 %v7464
        %v7497 = vunpack.c.l.b16 %v7465
        %v7498 = vunpack.c.l.b16 %v7466
        %v7499 = vunpack.c.l.b16 %v7467
        %v7500 = vunpack.c.l.b16 %v7468
        %v7501 = vunpack.c.l.b16 %v7469
        %v7502 = vunpack.c.l.b16 %v7470
        %v7503 = vunpack.c.l.b16 %v7471
        %v7504 = vunpack.c.l.b16 %v7472
        %v7505 = vpack.c.b16 %v7490, %v7489
        %v7506 = vpack.c.b16 %v7492, %v7491
        %v7507 = vpack.c.b16 %v7494, %v7493
        %v7508 = vpack.c.b16 %v7496, %v7495
        %v7509 = vpack.c.b16 %v7498, %v7497
        %v7510 = vpack.c.b16 %v7500, %v7499
        %v7511 = vpack.c.b16 %v7502, %v7501
        %v7512 = vpack.c.b16 %v7504, %v7503
        %7521 = vmatprep.subr.bf16.mxu0 0
        %7522 = vmatpush1.bf16.msra.mxu0 %v7505
        %7523 = vmatprep.subr.bf16.mxu0 0
        %7524 = vmatpush1.bf16.msra.mxu0 %v7506
        %7525 = vmatprep.subr.bf16.mxu0 0
        %7526 = vmatpush1.bf16.msra.mxu0 %v7507
        %7527 = vmatprep.subr.bf16.mxu0 0
        %7528 = vmatpush1.bf16.msra.mxu0 %v7508
        %7529 = vmatprep.subr.bf16.mxu0 0
        %7530 = vmatpush1.bf16.msra.mxu0 %v7509
        %7531 = vmatprep.subr.bf16.mxu0 0
        %7532 = vmatpush1.bf16.msra.mxu0 %v7510
        %7533 = vmatprep.subr.bf16.mxu0 0
        %7534 = vmatpush1.bf16.msra.mxu0 %v7511
        %7535 = vmatprep.subr.bf16.mxu0 0
        %7536 = vmatpush1.bf16.msra.mxu0 %v7512
        %7537 = vmatprep.subr.bf16.mxu0 0
        %7538 = vmatpush1.bf16.msra.mxu0 0
        %7539 = vmatprep.subr.bf16.mxu0 0
        %7540 = vmatpush1.bf16.msra.mxu0 0
        %7541 = vmatprep.subr.bf16.mxu0 0
        %7542 = vmatpush1.bf16.msra.mxu0 0
        %7543 = vmatprep.subr.bf16.mxu0 0
        %7544 = vmatpush1.bf16.msra.mxu0 0
        %7545 = vmatprep.subr.bf16.mxu0 0
        %7546 = vmatpush1.bf16.msra.mxu0 0
        %7547 = vmatprep.subr.bf16.mxu0 0
        %7548 = vmatpush1.bf16.msra.mxu0 0
        %7549 = vmatprep.subr.bf16.mxu0 0
        %7550 = vmatpush1.bf16.msra.mxu0 0
        %7551 = vmatprep.subr.bf16.mxu0 0
        %7552 = vmatpush1.bf16.msra.mxu0 0
        %7553 = vmatprep.mubr.bf16.mxu0 0
        %7554 = vmatmul.mubr.bf16.gmra.mrb[0].mxu0 %v7429
        %v7555 = vpop.f32.mrb[0].mxu0
        %v7556 = vadd.f32 0.0, %v7555
        %v7557 = vpop.f32.mrb[0].mxu0
        %v7558 = vpop.f32.mrb[0].mxu0
        %v7559 = vpop.f32.mrb[0].mxu0
        %7560 = vmatprep.mubr.bf16.mxu0 0
        %7561 = vmatmul.mubr.bf16.gmra.mrb[0].mxu0 %v7430
        %v7562 = vpop.f32.mrb[0].mxu0
        %v7563 = vpop.f32.mrb[0].mxu0
        %v7564 = vpop.f32.mrb[0].mxu0
        %v7565 = vpop.f32.mrb[0].mxu0
        %7566 = vmatprep.mubr.bf16.mxu0 0
        %7567 = vmatmul.mubr.bf16.gmra.mrb[0].mxu0 %v7453
        %v7568 = vpop.f32.mrb[0].mxu0
        %v7569 = vpop.f32.mrb[0].mxu0
        %v7570 = vpop.f32.mrb[0].mxu0
        %v7571 = vpop.f32.mrb[0].mxu0
        %7572 = vmatprep.mubr.bf16.mxu0 0
        %7573 = vmatmul.mubr.bf16.gmra.mrb[0].mxu0 %v7454
        %v7574 = vpop.f32.mrb[0].mxu0
        %v7575 = vpop.f32.mrb[0].mxu0
        %v7576 = vpop.f32.mrb[0].mxu0
        %v7577 = vpop.f32.mrb[0].mxu0
        %7578 = vmatprep.mubr.bf16.mxu0 0
        %7579 = vmatmul.mubr.bf16.gmra.mrb[0].mxu0 %v7455
        %v7580 = vpop.f32.mrb[0].mxu0
        %v7581 = vadd.f32 0.0, %v7580
        %v7582 = vpop.f32.mrb[0].mxu0
        %v7583 = vpop.f32.mrb[0].mxu0
        %v7584 = vpop.f32.mrb[0].mxu0
        %7585 = vdwg.mxu0
        %v7602 = vunpack.c.l.b16 %v7432
        %v7603 = vunpack.c.l.b16 %v7433
        %v7604 = vunpack.c.l.b16 %v7434
        %v7605 = vunpack.c.l.b16 %v7435
        %v7606 = vunpack.c.l.b16 %v7436
        %v7607 = vunpack.c.l.b16 %v7437
        %v7608 = vunpack.c.l.b16 %v7438
        %v7609 = vunpack.c.l.b16 %v7439
        %v7610 = vunpack.c.l.b16 %v7440
        %v7611 = vunpack.c.l.b16 %v7441
        %v7612 = vunpack.c.l.b16 %v7442
        %v7613 = vunpack.c.l.b16 %v7443
        %v7614 = vunpack.c.l.b16 %v7444
        %v7615 = vunpack.c.l.b16 %v7445
        %v7616 = vunpack.c.l.b16 %v7446
        %v7617 = vunpack.c.l.b16 %v7447
        %v7618 = vpack.c.b16 %v7603, %v7602
        %v7619 = vpack.c.b16 %v7605, %v7604
        %v7620 = vpack.c.b16 %v7607, %v7606
        %v7621 = vpack.c.b16 %v7609, %v7608
        %v7622 = vpack.c.b16 %v7611, %v7610
        %v7623 = vpack.c.b16 %v7613, %v7612
        %v7624 = vpack.c.b16 %v7615, %v7614
        %v7625 = vpack.c.b16 %v7617, %v7616
        %7634 = vmatprep.subr.bf16.mxu0 0
        %7635 = vmatpush1.bf16.msra.mxu0 %v7618
        %7636 = vmatprep.subr.bf16.mxu0 0
        %7637 = vmatpush1.bf16.msra.mxu0 %v7619
        %7638 = vmatprep.subr.bf16.mxu0 0
        %7639 = vmatpush1.bf16.msra.mxu0 %v7620
        %7640 = vmatprep.subr.bf16.mxu0 0
        %7641 = vmatpush1.bf16.msra.mxu0 %v7621
        %7642 = vmatprep.subr.bf16.mxu0 0
        %7643 = vmatpush1.bf16.msra.mxu0 %v7622
        %7644 = vmatprep.subr.bf16.mxu0 0
        %7645 = vmatpush1.bf16.msra.mxu0 %v7623
        %7646 = vmatprep.subr.bf16.mxu0 0
        %7647 = vmatpush1.bf16.msra.mxu0 %v7624
        %7648 = vmatprep.subr.bf16.mxu0 0
        %7649 = vmatpush1.bf16.msra.mxu0 %v7625
        %7650 = vmatprep.subr.bf16.mxu0 0
        %7651 = vmatpush1.bf16.msra.mxu0 0
        %7652 = vmatprep.subr.bf16.mxu0 0
        %7653 = vmatpush1.bf16.msra.mxu0 0
        %7654 = vmatprep.subr.bf16.mxu0 0
        %7655 = vmatpush1.bf16.msra.mxu0 0
        %7656 = vmatprep.subr.bf16.mxu0 0
        %7657 = vmatpush1.bf16.msra.mxu0 0
        %7658 = vmatprep.subr.bf16.mxu0 0
        %7659 = vmatpush1.bf16.msra.mxu0 0
        %7660 = vmatprep.subr.bf16.mxu0 0
        %7661 = vmatpush1.bf16.msra.mxu0 0
        %7662 = vmatprep.subr.bf16.mxu0 0
        %7663 = vmatpush1.bf16.msra.mxu0 0
        %7664 = vmatprep.subr.bf16.mxu0 0
        %7665 = vmatpush1.bf16.msra.mxu0 0
        %7666 = vmatprep.mubr.bf16.mxu0 0
        %7667 = vmatmul.mubr.bf16.gmra.mrb[0].mxu0 %v7427
        %v7668 = vpop.f32.mrb[0].mxu0
        %v7669 = vadd.f32 %v7556, %v7668
        %v7670 = vpop.f32.mrb[0].mxu0
        %v7671 = vpop.f32.mrb[0].mxu0
        %v7672 = vpop.f32.mrb[0].mxu0
        %7673 = vmatprep.mubr.bf16.mxu0 0
        %7674 = vmatmul.mubr.bf16.gmra.mrb[0].mxu0 %v7428
        %v7675 = vpop.f32.mrb[0].mxu0
        %v7676 = vpop.f32.mrb[0].mxu0
        %v7677 = vpop.f32.mrb[0].mxu0
        %v7678 = vpop.f32.mrb[0].mxu0
        %7679 = vmatprep.mubr.bf16.mxu0 0
        %7680 = vmatmul.mubr.bf16.gmra.mrb[0].mxu0 %v7429
        %v7681 = vpop.f32.mrb[0].mxu0
        %v7682 = vpop.f32.mrb[0].mxu0
        %v7683 = vpop.f32.mrb[0].mxu0
        %v7684 = vpop.f32.mrb[0].mxu0
        %7685 = vmatprep.mubr.bf16.mxu0 0
        %7686 = vmatmul.mubr.bf16.gmra.mrb[0].mxu0 %v7430
        %v7687 = vpop.f32.mrb[0].mxu0
        %v7688 = vpop.f32.mrb[0].mxu0
        %v7689 = vpop.f32.mrb[0].mxu0
        %v7690 = vpop.f32.mrb[0].mxu0
        %7691 = vmatprep.mubr.bf16.mxu0 0
        %7692 = vmatmul.mubr.bf16.gmra.mrb[0].mxu0 %v7431
        %v7693 = vpop.f32.mrb[0].mxu0
        %v7694 = vadd.f32 %v7581, %v7693
        %v7695 = vpop.f32.mrb[0].mxu0
        %v7696 = vpop.f32.mrb[0].mxu0
        %v7697 = vpop.f32.mrb[0].mxu0
        %7698 = vdwg.mxu0
        %v7699 = vld [vmem:[#allocation5 + $0x40] sm:$0xff]
        %v7700 = vld [vmem:[#allocation5 + $0x48] sm:$0xff]
        %v7701 = vld [vmem:[#allocation5 + $0x50] sm:$0xff]
        %v7702 = vld [vmem:[#allocation5 + $0x58] sm:$0xff]
        %v7703 = vld [vmem:[#allocation5 + $0x60] sm:$0xff]
        %v7704 = vld [vmem:[#allocation5 + $0x68] sm:$0xff]
        %v7705 = vld [vmem:[#allocation5 + $0x70] sm:$0xff]
        %v7706 = vld [vmem:[#allocation5 + $0x78] sm:$0xff]
        %v7707 = vld [vmem:[#allocation5 + $0x80] sm:$0x1]
        %v7708 = vpack.c.bf16 %v7700, %v7699
        %v7709 = vpack.c.bf16 %v7702, %v7701
        %v7710 = vpack.c.bf16 %v7704, %v7703
        %v7711 = vpack.c.bf16 %v7706, %v7705
        %v7712 = vpack.c.bf16 %v7707, %v7707
        %s7713 = scalar_lea.vmem [#allocation15], 128
        %v7714 = vld [vmem:[%s7713] sm:$0xf]
        %v7715 = vld [vmem:[%s7713 + $0x4] sm:$0xf]
        %v7716 = vld [vmem:[%s7713 + $0x8] sm:$0xf]
        %v7717 = vld [vmem:[%s7713 + $0xc] sm:$0xf]
        %v7718 = vld [vmem:[%s7713 + $0x10] sm:$0xf]
        %v7719 = vld [vmem:[%s7713 + $0x14] sm:$0xf]
        %v7720 = vld [vmem:[%s7713 + $0x18] sm:$0xf]
        %v7721 = vld [vmem:[%s7713 + $0x1c] sm:$0xf]
        %v7722 = vld [vmem:[%s7713 + $0x20] sm:$0xf]
        %v7723 = vld [vmem:[%s7713 + $0x24] sm:$0xf]
        %v7724 = vld [vmem:[%s7713 + $0x28] sm:$0xf]
        %v7725 = vld [vmem:[%s7713 + $0x2c] sm:$0xf]
        %v7726 = vld [vmem:[%s7713 + $0x30] sm:$0xf]
        %v7727 = vld [vmem:[%s7713 + $0x34] sm:$0xf]
        %v7728 = vld [vmem:[%s7713 + $0x38] sm:$0xf]
        %v7729 = vld [vmem:[%s7713 + $0x3c] sm:$0xf]
        %v7746 = vunpack.c.l.b16 %v7714
        %v7747 = vunpack.c.l.b16 %v7715
        %v7748 = vunpack.c.l.b16 %v7716
        %v7749 = vunpack.c.l.b16 %v7717
        %v7750 = vunpack.c.l.b16 %v7718
        %v7751 = vunpack.c.l.b16 %v7719
        %v7752 = vunpack.c.l.b16 %v7720
        %v7753 = vunpack.c.l.b16 %v7721
        %v7754 = vunpack.c.l.b16 %v7722
        %v7755 = vunpack.c.l.b16 %v7723
        %v7756 = vunpack.c.l.b16 %v7724
        %v7757 = vunpack.c.l.b16 %v7725
        %v7758 = vunpack.c.l.b16 %v7726
        %v7759 = vunpack.c.l.b16 %v7727
        %v7760 = vunpack.c.l.b16 %v7728
        %v7761 = vunpack.c.l.b16 %v7729
        %v7762 = vpack.c.b16 %v7747, %v7746
        %v7763 = vpack.c.b16 %v7749, %v7748
        %v7764 = vpack.c.b16 %v7751, %v7750
        %v7765 = vpack.c.b16 %v7753, %v7752
        %v7766 = vpack.c.b16 %v7755, %v7754
        %v7767 = vpack.c.b16 %v7757, %v7756
        %v7768 = vpack.c.b16 %v7759, %v7758
        %v7769 = vpack.c.b16 %v7761, %v7760
        %7778 = vmatprep.subr.bf16.mxu0 0
        %7779 = vmatpush1.bf16.msra.mxu0 %v7762
        %7780 = vmatprep.subr.bf16.mxu0 0
        %7781 = vmatpush1.bf16.msra.mxu0 %v7763
        %7782 = vmatprep.subr.bf16.mxu0 0
        %7783 = vmatpush1.bf16.msra.mxu0 %v7764
        %7784 = vmatprep.subr.bf16.mxu0 0
        %7785 = vmatpush1.bf16.msra.mxu0 %v7765
        %7786 = vmatprep.subr.bf16.mxu0 0
        %7787 = vmatpush1.bf16.msra.mxu0 %v7766
        %7788 = vmatprep.subr.bf16.mxu0 0
        %7789 = vmatpush1.bf16.msra.mxu0 %v7767
        %7790 = vmatprep.subr.bf16.mxu0 0
        %7791 = vmatpush1.bf16.msra.mxu0 %v7768
        %7792 = vmatprep.subr.bf16.mxu0 0
        %7793 = vmatpush1.bf16.msra.mxu0 %v7769
        %7794 = vmatprep.subr.bf16.mxu0 0
        %7795 = vmatpush1.bf16.msra.mxu0 0
        %7796 = vmatprep.subr.bf16.mxu0 0
        %7797 = vmatpush1.bf16.msra.mxu0 0
        %7798 = vmatprep.subr.bf16.mxu0 0
        %7799 = vmatpush1.bf16.msra.mxu0 0
        %7800 = vmatprep.subr.bf16.mxu0 0
        %7801 = vmatpush1.bf16.msra.mxu0 0
        %7802 = vmatprep.subr.bf16.mxu0 0
        %7803 = vmatpush1.bf16.msra.mxu0 0
        %7804 = vmatprep.subr.bf16.mxu0 0
        %7805 = vmatpush1.bf16.msra.mxu0 0
        %7806 = vmatprep.subr.bf16.mxu0 0
        %7807 = vmatpush1.bf16.msra.mxu0 0
        %7808 = vmatprep.subr.bf16.mxu0 0
        %7809 = vmatpush1.bf16.msra.mxu0 0
        %7810 = vmatprep.mubr.bf16.mxu0 0
        %7811 = vmatmul.mubr.bf16.gmra.mrb[0].mxu0 %v7708
        %v7812 = vpop.f32.mrb[0].mxu0
        %v7813 = vadd.f32 0.0, %v7812
        %v7814 = vpop.f32.mrb[0].mxu0
        %v7815 = vpop.f32.mrb[0].mxu0
        %v7816 = vpop.f32.mrb[0].mxu0
        %7817 = vmatprep.mubr.bf16.mxu0 0
        %7818 = vmatmul.mubr.bf16.gmra.mrb[0].mxu0 %v7709
        %v7819 = vpop.f32.mrb[0].mxu0
        %v7820 = vpop.f32.mrb[0].mxu0
        %v7821 = vpop.f32.mrb[0].mxu0
        %v7822 = vpop.f32.mrb[0].mxu0
        %7823 = vmatprep.mubr.bf16.mxu0 0
        %7824 = vmatmul.mubr.bf16.gmra.mrb[0].mxu0 %v7710
        %v7825 = vpop.f32.mrb[0].mxu0
        %v7826 = vpop.f32.mrb[0].mxu0
        %v7827 = vpop.f32.mrb[0].mxu0
        %v7828 = vpop.f32.mrb[0].mxu0
        %7829 = vmatprep.mubr.bf16.mxu0 0
        %7830 = vmatmul.mubr.bf16.gmra.mrb[0].mxu0 %v7711
        %v7831 = vpop.f32.mrb[0].mxu0
        %v7832 = vpop.f32.mrb[0].mxu0
        %v7833 = vpop.f32.mrb[0].mxu0
        %v7834 = vpop.f32.mrb[0].mxu0
        %7835 = vmatprep.mubr.bf16.mxu0 0
        %7836 = vmatmul.mubr.bf16.gmra.mrb[0].mxu0 %v7712
        %v7837 = vpop.f32.mrb[0].mxu0
        %v7838 = vadd.f32 0.0, %v7837
        %v7839 = vpop.f32.mrb[0].mxu0
        %v7840 = vpop.f32.mrb[0].mxu0
        %v7841 = vpop.f32.mrb[0].mxu0
        %7842 = vdwg.mxu0
        %v7843 = vadd.f32 %v7669, %v7813
        %v7844 = vadd.f32 %v7694, %v7838
        %v7845 = vld [vmem:[#allocation5 + $0x60] sm:$0xff]
        %v7846 = vld [vmem:[#allocation5 + $0x68] sm:$0xff]
        %v7847 = vld [vmem:[#allocation5 + $0x70] sm:$0xff]
        %v7848 = vld [vmem:[#allocation5 + $0x78] sm:$0xff]
        %v7849 = vld [vmem:[#allocation5 + $0x80] sm:$0xff]
        %v7850 = vld [vmem:[#allocation5 + $0x88] sm:$0xff]
        %v7851 = vld [vmem:[#allocation5 + $0x90] sm:$0xff]
        %v7852 = vld [vmem:[#allocation5 + $0x98] sm:$0xff]
        %v7853 = vld [vmem:[#allocation5 + $0xa0] sm:$0x1]
        %v7854 = vpack.c.bf16 %v7846, %v7845
        %v7855 = vpack.c.bf16 %v7848, %v7847
        %v7856 = vpack.c.bf16 %v7850, %v7849
        %v7857 = vpack.c.bf16 %v7852, %v7851
        %v7858 = vpack.c.bf16 %v7853, %v7853
        %s7859 = scalar_lea.vmem [#allocation15], 192
        %v7860 = vld [vmem:[%s7859] sm:$0xf]
        %v7861 = vld [vmem:[%s7859 + $0x4] sm:$0xf]
        %v7862 = vld [vmem:[%s7859 + $0x8] sm:$0xf]
        %v7863 = vld [vmem:[%s7859 + $0xc] sm:$0xf]
        %v7864 = vld [vmem:[%s7859 + $0x10] sm:$0xf]
        %v7865 = vld [vmem:[%s7859 + $0x14] sm:$0xf]
        %v7866 = vld [vmem:[%s7859 + $0x18] sm:$0xf]
        %v7867 = vld [vmem:[%s7859 + $0x1c] sm:$0xf]
        %v7868 = vld [vmem:[%s7859 + $0x20] sm:$0xf]
        %v7869 = vld [vmem:[%s7859 + $0x24] sm:$0xf]
        %v7870 = vld [vmem:[%s7859 + $0x28] sm:$0xf]
        %v7871 = vld [vmem:[%s7859 + $0x2c] sm:$0xf]
        %v7872 = vld [vmem:[%s7859 + $0x30] sm:$0xf]
        %v7873 = vld [vmem:[%s7859 + $0x34] sm:$0xf]
        %v7874 = vld [vmem:[%s7859 + $0x38] sm:$0xf]
        %v7875 = vld [vmem:[%s7859 + $0x3c] sm:$0xf]
        %v7892 = vunpack.c.l.b16 %v7860
        %v7893 = vunpack.c.l.b16 %v7861
        %v7894 = vunpack.c.l.b16 %v7862
        %v7895 = vunpack.c.l.b16 %v7863
        %v7896 = vunpack.c.l.b16 %v7864
        %v7897 = vunpack.c.l.b16 %v7865
        %v7898 = vunpack.c.l.b16 %v7866
        %v7899 = vunpack.c.l.b16 %v7867
        %v7900 = vunpack.c.l.b16 %v7868
        %v7901 = vunpack.c.l.b16 %v7869
        %v7902 = vunpack.c.l.b16 %v7870
        %v7903 = vunpack.c.l.b16 %v7871
        %v7904 = vunpack.c.l.b16 %v7872
        %v7905 = vunpack.c.l.b16 %v7873
        %v7906 = vunpack.c.l.b16 %v7874
        %v7907 = vunpack.c.l.b16 %v7875
        %v7908 = vpack.c.b16 %v7893, %v7892
        %v7909 = vpack.c.b16 %v7895, %v7894
        %v7910 = vpack.c.b16 %v7897, %v7896
        %v7911 = vpack.c.b16 %v7899, %v7898
        %v7912 = vpack.c.b16 %v7901, %v7900
        %v7913 = vpack.c.b16 %v7903, %v7902
        %v7914 = vpack.c.b16 %v7905, %v7904
        %v7915 = vpack.c.b16 %v7907, %v7906
        %7924 = vmatprep.subr.bf16.mxu0 0
        %7925 = vmatpush1.bf16.msra.mxu0 %v7908
        %7926 = vmatprep.subr.bf16.mxu0 0
        %7927 = vmatpush1.bf16.msra.mxu0 %v7909
        %7928 = vmatprep.subr.bf16.mxu0 0
        %7929 = vmatpush1.bf16.msra.mxu0 %v7910
        %7930 = vmatprep.subr.bf16.mxu0 0
        %7931 = vmatpush1.bf16.msra.mxu0 %v7911
        %7932 = vmatprep.subr.bf16.mxu0 0
        %7933 = vmatpush1.bf16.msra.mxu0 %v7912
        %7934 = vmatprep.subr.bf16.mxu0 0
        %7935 = vmatpush1.bf16.msra.mxu0 %v7913
        %7936 = vmatprep.subr.bf16.mxu0 0
        %7937 = vmatpush1.bf16.msra.mxu0 %v7914
        %7938 = vmatprep.subr.bf16.mxu0 0
        %7939 = vmatpush1.bf16.msra.mxu0 %v7915
        %7940 = vmatprep.subr.bf16.mxu0 0
        %7941 = vmatpush1.bf16.msra.mxu0 0
        %7942 = vmatprep.subr.bf16.mxu0 0
        %7943 = vmatpush1.bf16.msra.mxu0 0
        %7944 = vmatprep.subr.bf16.mxu0 0
        %7945 = vmatpush1.bf16.msra.mxu0 0
        %7946 = vmatprep.subr.bf16.mxu0 0
        %7947 = vmatpush1.bf16.msra.mxu0 0
        %7948 = vmatprep.subr.bf16.mxu0 0
        %7949 = vmatpush1.bf16.msra.mxu0 0
        %7950 = vmatprep.subr.bf16.mxu0 0
        %7951 = vmatpush1.bf16.msra.mxu0 0
        %7952 = vmatprep.subr.bf16.mxu0 0
        %7953 = vmatpush1.bf16.msra.mxu0 0
        %7954 = vmatprep.subr.bf16.mxu0 0
        %7955 = vmatpush1.bf16.msra.mxu0 0
        %7956 = vmatprep.mubr.bf16.mxu0 0
        %7957 = vmatmul.mubr.bf16.gmra.mrb[0].mxu0 %v7854
        %v7958 = vpop.f32.mrb[0].mxu0
        %v7959 = vadd.f32 0.0, %v7958
        %v7960 = vpop.f32.mrb[0].mxu0
        %v7961 = vpop.f32.mrb[0].mxu0
        %v7962 = vpop.f32.mrb[0].mxu0
        %7963 = vmatprep.mubr.bf16.mxu0 0
        %7964 = vmatmul.mubr.bf16.gmra.mrb[0].mxu0 %v7855
        %v7965 = vpop.f32.mrb[0].mxu0
        %v7966 = vpop.f32.mrb[0].mxu0
        %v7967 = vpop.f32.mrb[0].mxu0
        %v7968 = vpop.f32.mrb[0].mxu0
        %7969 = vmatprep.mubr.bf16.mxu0 0
        %7970 = vmatmul.mubr.bf16.gmra.mrb[0].mxu0 %v7856
        %v7971 = vpop.f32.mrb[0].mxu0
        %v7972 = vpop.f32.mrb[0].mxu0
        %v7973 = vpop.f32.mrb[0].mxu0
        %v7974 = vpop.f32.mrb[0].mxu0
        %7975 = vmatprep.mubr.bf16.mxu0 0
        %7976 = vmatmul.mubr.bf16.gmra.mrb[0].mxu0 %v7857
        %v7977 = vpop.f32.mrb[0].mxu0
        %v7978 = vpop.f32.mrb[0].mxu0
        %v7979 = vpop.f32.mrb[0].mxu0
        %v7980 = vpop.f32.mrb[0].mxu0
        %7981 = vmatprep.mubr.bf16.mxu0 0
        %7982 = vmatmul.mubr.bf16.gmra.mrb[0].mxu0 %v7858
        %v7983 = vpop.f32.mrb[0].mxu0
        %v7984 = vadd.f32 0.0, %v7983
        %v7985 = vpop.f32.mrb[0].mxu0
        %v7986 = vpop.f32.mrb[0].mxu0
        %v7987 = vpop.f32.mrb[0].mxu0
        %7988 = vdwg.mxu0
        %v7989 = vadd.f32 %v7843, %v7959
        %v7990 = vadd.f32 %v7844, %v7984
        %v7991 = vld [vmem:[%s15] sm:$0x1]
        %v7992 = vlaneseq
        %v7993 = vshrl.u32 %v7992, 7
        %v7994 = vsub.s32 0, %v7993
        %v7995 = vrot.slane %v7991, %v7994
        %v7996 = vadd.f32 %v7989, %v7995
        %v7997 = vadd.f32 %v7990, %v7995
        %v7998 = vmax.f32 %v7996, 0.0
        %v7999 = vmax.f32 %v7997, 0.0
        %v8000 = vld [vmem:[%s15 + $0x1] sm:$0x1]
        %v8001 = vlaneseq
        %v8002 = vshrl.u32 %v8001, 7
        %v8003 = vsub.s32 0, %v8002
        %v8004 = vrot.slane %v8000, %v8003
        %v8005 = vmul.f32 %v7998, %v8004
        %v8006 = vmul.f32 %v7999, %v8004
        %v8007 = vld [vmem:[%s15 + $0x2] sm:$0x1]
        %v8008 = vlaneseq
        %v8009 = vshrl.u32 %v8008, 7
        %v8010 = vsub.s32 0, %v8009
        %v8011 = vrot.slane %v8007, %v8010
        %v8012 = vadd.f32 %v8005, %v8011
        %v8013 = vadd.f32 %v8006, %v8011
        %v8015 = vrot.slane %v8013, 7
        %vm8017 = vcmask 1040384
        %v8018 = vsel %vm8017, %v8012, %v8015
        %8019 = vst [vmem:[%s637] sm:$0x3] %v8018
        %s8020 = sand.u32 %s398, 1
        %s8021 = scalar_lea.sflag [#allocation8], %s8020
        %s8022 = sand.u32 %s398, 1
        %s8023 = smul.addr %s8022, 2
        %s8024 = scalar_lea.vmem [#allocation17], %s8023
        // Predicated region
        $region109: #{_lambda_.1} parent=83 // pred_check
          %p8025 = pneg %p408
        $region110: #{_lambda_.1} parent=83 // pred_check_branch
          %8027 = sbr.rel (%p8025) target = $region112
        $region111: #{_lambda_.1} parent=83 // pred_region
          %s8029 = ssub.s32 32, 32
          %8030 = vsyncadd %s8021, %s8029
          %s8031 = smul.addr %s34, 32
          %s8032 = scalar_lea.hbm %s16, %s8031
          %s8034 = sshll.u32 %s8024, 4
          %s8035 = int_to_ptr.vmem [resolvable:$true] %s8034
          %8037 = dma.vmem_to_hbm [thread:$0]  %s8035, 32, %s8032, %s8021
        $region112: #{_lambda_.1} parent=83 // pred_fallthru
          _
      $region84: #{_lambda_.1} parent=5 // pred_fallthru
        _
      %p8038 = scmp.le.s32.totalorder 2, %s29
      // Predicated region
      $region113: #{_lambda_.1} parent=5 // pred_check
        %p8039 = pneg %p8038
      $region114: #{_lambda_.1} parent=5 // pred_check_branch
        %8041 = sbr.rel (%p8039) target = $region116
      $region115: #{_lambda_.1} parent=5 // pred_region
        %s8042 = ssub.s32 %s29, 2
        // Predicated region
        $region117: #{_lambda_.1} parent=115 // pred_check
          %p8043 = pneg %p414
        $region118: #{_lambda_.1} parent=115 // pred_check_branch
          %8045 = sbr.rel (%p8043) target = $region120
        $region119: #{_lambda_.1} parent=115 // pred_region
          %s8046 = sand.u32 %s399, 1
          %s8047 = scalar_lea.sflag [#allocation8], %s8046
          %s8048 = sand.u32 %s399, 1
          %s8049 = smul.addr %s8048, 2
          %s8050 = scalar_lea.vmem [#allocation17], %s8049
          %8051 = dma.done %s8047, 32
        $region120: #{_lambda_.1} parent=115 // pred_fallthru
          _
      $region116: #{_lambda_.1} parent=5 // pred_fallthru
        _
    $region6: #{_lambda_.1} parent=1 // loop_footer
      %s33 = sadd.s32 1, %s29
    $region7: #{_lambda_.1} parent=1 // loop_footer_branch
      %28 = sbr.rel target = $region3
    $region8: #{_lambda_.1} parent=1 // loop_exit
      _
    %8052 = vsyncpa [#allocation7], 1
    %s8053 = scalar_lea.sflag [#allocation7], 1
    %8054 = vsyncpa %s8053, 1
    %8055 = vsyncpa [#allocation10], 1
    %8056 = vsyncpa [#allocation13], 1
    %8057 = vsyncpa [#allocation16], 1
    %8058 = vsyncpa [#allocation8], 1
    %s8059 = scalar_lea.sflag [#allocation8], 1
    %8060 = vsyncpa %s8059, 1

</llo_original>
